<compile_context>
chip_gen: v5e
topology: v5e:2x2
jax: 0.10.0
libtpu: 0.0.40
codegen_flags: <defaults>
</compile_context>

<pallas_src>
import functools

import jax
import jax.numpy as jnp
from jax.experimental import pallas as pl
from jax.experimental.pallas import tpu as pltpu

DIM = 2           # "dimension" in the PyTorch module (points in R^2)
K_IN = 8          # layer-1 contraction dim: DIM + 1 zero-padded to 8 (sublane multiple)
HID = 256         # hidden width of every Linear layer
NEG_SLOPE = 0.01  # torch.nn.LeakyReLU default negative_slope


def _leaky_relu(v):
    # max(v, a*v) == LeakyReLU(v) for 0 < a < 1; cheaper than where(cmp, v, a*v).
    return jnp.maximum(v, NEG_SLOPE * v)


def _round_up(a, b):
    return ((a + b - 1) // b) * b


def mlp_kernel(xt_ref,
               w1_ref, b1_ref,
               w2_ref, b2_ref,
               w3_ref, b3_ref,
               w4_ref, b4_ref,
               w5_ref, b5_ref,
               o_ref):
    """Full 5-layer MLP forward for one batch tile, entirely in VMEM.

    xt_ref: (TB, 8)   bf16  rows are [x0, x1, t, 0, 0, 0, 0, 0]
    w1_ref: (8, HID)  bf16  (rows 3..7 zero), wK_ref (K>=2): bf16
    b1..b4: (1, HID)  bf16, b5: (1, DIM) f32
    o_ref:  (TB, DIM) f32
    """
    # Layer 1 on the MXU (K padded to 8 with zeros); bf16 bias/activation epilogue.
    h = jnp.dot(xt_ref[...], w1_ref[...],
                preferred_element_type=jnp.float32).astype(jnp.bfloat16)
    h = _leaky_relu(h + b1_ref[...])

    # Layers 2-4: bf16 MXU matmuls with f32 accumulation, bf16 epilogue (packed VALU
    # on v6e/v7x; harmless on v5e, which lowers bf16 elementwise through f32).
    for w_ref, b_ref in ((w2_ref, b2_ref), (w3_ref, b3_ref), (w4_ref, b4_ref)):
        h = jnp.dot(h, w_ref[...],
                    preferred_element_type=jnp.float32).astype(jnp.bfloat16)
        h = _leaky_relu(h + b_ref[...])

    # Layer 5 (no activation); keep the tiny (TB, 2) final epilogue in f32.
    out = jnp.dot(h, w5_ref[...], preferred_element_type=jnp.float32) + b5_ref[...]
    o_ref[...] = out.astype(o_ref.dtype)


def network_forward(x, t, params, *, batch_tile=4096):
    """JAX wrapper reproducing Network.forward(x, t).

    x: (N, DIM) float32, t: (N,) float32 -> (N, DIM) float32.
    batch_tile: rows per grid step.  Large tiles amortize the ~0.35 us per-step
    overhead; the tile is capped so the grid keeps >= 2 steps (v7x megacore) and is
    rounded to an MXU-friendly multiple of 256.  Arbitrary N handled by zero-padding.
    """
    n = x.shape[0]
    n8 = _round_up(n, 8)

    # --- batch-tile selection -------------------------------------------------
    tile = max(256, _round_up(batch_tile, 256))
    if n8 > 2 * 256:
        # guarantee >= 2 grid steps so both v7x TensorCores get work
        tile = min(tile, _round_up((n8 + 1) // 2, 256))
    tile = min(tile, n8)            # never allocate more than needed
    if tile < n8:
        tile = _round_up(tile, 8)   # sublane multiple (already mult. of 256 here)
    n_pad = _round_up(n8, tile)

    # --- input packing: cat([x, t[:,None]]) zero-padded to 8 lanes, bf16 -------
    xt = jnp.concatenate(
        [x.astype(jnp.float32), t.astype(jnp.float32)[:, None],
         jnp.zeros((n, K_IN - DIM - 1), jnp.float32)], axis=-1).astype(jnp.bfloat16)
    if n_pad != n:
        xt = jnp.pad(xt, ((0, n_pad - n), (0, 0)))

    (w1, b1), (w2, b2), (w3, b3), (w4, b4), (w5, b5) = params
    # MXU weights in bf16 (halves weight DMA, native MXU dtype); w1 padded to K=8.
    w1b = jnp.pad(w1, ((0, K_IN - (DIM + 1)), (0, 0))).astype(jnp.bfloat16)
    w2b, w3b, w4b, w5b = (w.astype(jnp.bfloat16) for w in (w2, w3, w4, w5))
    # Hidden-layer biases in bf16 so the epilogue stays packed bf16; final bias f32.
    b1b, b2b, b3b, b4b = (b.astype(jnp.bfloat16) for b in (b1, b2, b3, b4))
    b5f = b5.astype(jnp.float32)

    grid = (n_pad // tile,)

    def batched(i):      # tile along the batch axis
        return (i, 0)

    def rep(i):          # replicated (whole-array) block
        return (0, 0)

    def rep_spec(shape):
        # constant-index block: single buffer, no per-step double-buffer bookkeeping
        return pl.BlockSpec(shape, rep, pipeline_mode=pl.Buffered(buffer_count=1))

    in_specs = [
        pl.BlockSpec((tile, K_IN), batched),  # packed [x | t | zero pad]
        rep_spec((K_IN, HID)),                # w1 (bf16, zero-padded K)
        rep_spec((1, HID)),                   # b1 (bf16)
        rep_spec((HID, HID)),                 # w2 (bf16)
        rep_spec((1, HID)),                   # b2 (bf16)
        rep_spec((HID, HID)),                 # w3 (bf16)
        rep_spec((1, HID)),                   # b3 (bf16)
        rep_spec((HID, HID)),                 # w4 (bf16)
        rep_spec((1, HID)),                   # b4 (bf16)
        rep_spec((HID, DIM)),                 # w5 (bf16)
        rep_spec((1, DIM)),                   # b5 (f32)
    ]

    flops = 2 * n_pad * (K_IN * HID + 3 * HID * HID + HID * DIM)
    weight_bytes = (K_IN * HID * 2 + 3 * HID * HID * 2 + HID * DIM * 2
                    + 4 * HID * 2 + DIM * 4)
    bytes_accessed = n_pad * (K_IN * 2 + DIM * 4) + weight_bytes

    # Explicit VMEM limit: v5e's scoped default is only 16 MiB, which the (tile, 256)
    # f32/bf16 intermediates can exceed at large tiles.  Stay under v7x's 64 MiB.
    vmem_est = (2 * tile * K_IN * 2 + 2 * tile * DIM * 4
                + 6 * tile * HID * 4 + 2 * 1024 * 1024)
    vmem_limit = int(min(max(vmem_est, 32 * 1024 * 1024), 56 * 1024 * 1024))

    out = pl.pallas_call(
        mlp_kernel,
        out_shape=jax.ShapeDtypeStruct((n_pad, DIM), jnp.float32),
        grid_spec=pltpu.PrefetchScalarGridSpec(
            num_scalar_prefetch=0,
            grid=grid,
            in_specs=in_specs,
            out_specs=pl.BlockSpec((tile, DIM), batched),
        ),
        compiler_params=pltpu.CompilerParams(
            dimension_semantics=("parallel",),   # batch axis shards across TCs (v7x)
            vmem_limit_bytes=vmem_limit),
        cost_estimate=pl.CostEstimate(
            flops=flops, transcendentals=0, bytes_accessed=bytes_accessed),
    )(xt, w1b, b1b, w2b, b2b, w3b, b3b, w4b, b4b, w5b, b5f)
    # TODO(synk): if the 2-lane-wide output store ever shows in the bundle, pad w5/b5
    # to 128 output columns (lane-dense vst) and slice [:, :DIM] in the wrapper.

    return out[:n] if n_pad != n else out


def init_params(key):
    """Deterministic init mimicking torch.nn.Linear default (uniform +/- 1/sqrt(fan_in)).

    Weights are stored transposed vs. PyTorch: (in_features, out_features).
    Biases are stored as (1, out_features) for a clean 2-D TPU layout.
    """
    sizes = [(DIM + 1, HID), (HID, HID), (HID, HID), (HID, HID), (HID, DIM)]
    params = []
    for i, (fan_in, fan_out) in enumerate(sizes):
        kw, kb = jax.random.split(jax.random.fold_in(key, i))
        bound = 1.0 / jnp.sqrt(jnp.float32(fan_in))
        w = jax.random.uniform(kw, (fan_in, fan_out), jnp.float32, -bound, bound)
        b = jax.random.uniform(kb, (1, fan_out), jnp.float32, -bound, bound)
        params.append((w, b))
    return params


def reference_forward(x, t, params):
    """Pure-JAX f32 reference with exact PyTorch semantics."""
    h = jnp.concatenate([x, t[:, None]], axis=-1)
    for i, (w, b) in enumerate(params):
        h = h @ w + b
        if i < len(params) - 1:
            h = _leaky_relu(h)
    return h


if __name__ == "__main__":
    key = jax.random.PRNGKey(0)
    params = init_params(key)

    # Non-multiple of the tile -> exercises padding; the >=2-step cap gives a (2,)
    # grid with tile=512 here, so both v7x TensorCores get work.
    N = 1000
    kx, kt = jax.random.split(jax.random.fold_in(key, 100))
    x = jax.random.normal(kx, (N, DIM), jnp.float32)
    t = jax.random.uniform(kt, (N,), jnp.float32)

    fwd = jax.jit(functools.partial(network_forward, batch_tile=4096))
    out = jax.block_until_ready(fwd(x, t, params))

    ref = reference_forward(x, t, params)
    assert out.shape == (N, DIM)
    # bf16 MXU inputs + bf16 bias/activation epilogue (f32 accumulation) vs. an
    # all-f32 reference -> relaxed tolerance (intentional, documented).
    assert jnp.allclose(out, ref, atol=5e-2, rtol=5e-2), "mismatch vs JAX reference"

    print("KERNEL_OK")
</pallas_src>

<mosaic_0001>
module attributes {stable_mosaic.version = 11 : i64} {
  func.func @mlp_kernel(%arg0: i32, %arg1: memref<512x8xbf16, #tpu.memory_space<vmem>>, %arg2: memref<8x256xbf16, #tpu.memory_space<vmem>>, %arg3: memref<1x256xbf16, #tpu.memory_space<vmem>>, %arg4: memref<256x256xbf16, #tpu.memory_space<vmem>>, %arg5: memref<1x256xbf16, #tpu.memory_space<vmem>>, %arg6: memref<256x256xbf16, #tpu.memory_space<vmem>>, %arg7: memref<1x256xbf16, #tpu.memory_space<vmem>>, %arg8: memref<256x256xbf16, #tpu.memory_space<vmem>>, %arg9: memref<1x256xbf16, #tpu.memory_space<vmem>>, %arg10: memref<256x2xbf16, #tpu.memory_space<vmem>>, %arg11: memref<1x2xf32, #tpu.memory_space<vmem>>, %arg12: memref<512x2xf32, #tpu.memory_space<vmem>>) attributes {dimension_semantics = [#tpu.dimension_semantics<parallel>], iteration_bounds = array<i64: 2>, scalar_prefetch = 0 : i64, scratch_operands = 0 : i64, tpu.core_type = #tpu.core_type<tc>, window_params = [{transform_indices = @transform_0, window_bounds = array<i64: 512, 8>}, {pipeline_mode = #tpu.pipeline_mode<synchronous>, transform_indices = @transform_1, window_bounds = array<i64: 8, 256>}, {pipeline_mode = #tpu.pipeline_mode<synchronous>, transform_indices = @transform_2, window_bounds = array<i64: 1, 256>}, {pipeline_mode = #tpu.pipeline_mode<synchronous>, transform_indices = @transform_3, window_bounds = array<i64: 256, 256>}, {pipeline_mode = #tpu.pipeline_mode<synchronous>, transform_indices = @transform_4, window_bounds = array<i64: 1, 256>}, {pipeline_mode = #tpu.pipeline_mode<synchronous>, transform_indices = @transform_5, window_bounds = array<i64: 256, 256>}, {pipeline_mode = #tpu.pipeline_mode<synchronous>, transform_indices = @transform_6, window_bounds = array<i64: 1, 256>}, {pipeline_mode = #tpu.pipeline_mode<synchronous>, transform_indices = @transform_7, window_bounds = array<i64: 256, 256>}, {pipeline_mode = #tpu.pipeline_mode<synchronous>, transform_indices = @transform_8, window_bounds = array<i64: 1, 256>}, {pipeline_mode = #tpu.pipeline_mode<synchronous>, transform_indices = @transform_9, window_bounds = array<i64: 256, 2>}, {pipeline_mode = #tpu.pipeline_mode<synchronous>, transform_indices = @transform_10, window_bounds = array<i64: 1, 2>}, {transform_indices = @transform_11, window_bounds = array<i64: 512, 2>}]} {
    %c0 = arith.constant 0 : index
    %c0_0 = arith.constant 0 : index
    %0 = vector.load %arg1[%c0, %c0_0] : memref<512x8xbf16, #tpu.memory_space<vmem>>, vector<512x8xbf16>
    %c0_1 = arith.constant 0 : index
    %c0_2 = arith.constant 0 : index
    %1 = vector.load %arg2[%c0_1, %c0_2] : memref<8x256xbf16, #tpu.memory_space<vmem>>, vector<8x256xbf16>
    %cst = arith.constant dense<0.000000e+00> : vector<512x256xf32>
    %2 = tpu.matmul %0, %1, %cst {dimension_numbers = #tpu.dot_dimension_numbers<[1], [0], [0], [1], [0, 0, 1, 1], [], []>} : vector<512x8xbf16>, vector<8x256xbf16>, vector<512x256xf32> -> vector<512x256xf32>
    %3 = arith.truncf %2 : vector<512x256xf32> to vector<512x256xbf16>
    %c0_3 = arith.constant 0 : index
    %c0_4 = arith.constant 0 : index
    %4 = vector.load %arg3[%c0_3, %c0_4] : memref<1x256xbf16, #tpu.memory_space<vmem>>, vector<1x256xbf16>
    %5 = vector.broadcast %4 : vector<1x256xbf16> to vector<512x256xbf16>
    %6 = arith.addf %3, %5 : vector<512x256xbf16>
    %cst_5 = arith.constant 1.000980e-02 : bf16
    %7 = vector.broadcast %cst_5 : bf16 to vector<512x256xbf16>
    %8 = arith.mulf %7, %6 : vector<512x256xbf16>
    %9 = arith.maximumf %6, %8 : vector<512x256xbf16>
    %c0_6 = arith.constant 0 : index
    %c0_7 = arith.constant 0 : index
    %10 = vector.load %arg4[%c0_6, %c0_7] : memref<256x256xbf16, #tpu.memory_space<vmem>>, vector<256x256xbf16>
    %cst_8 = arith.constant dense<0.000000e+00> : vector<512x256xf32>
    %11 = tpu.matmul %9, %10, %cst_8 {dimension_numbers = #tpu.dot_dimension_numbers<[1], [0], [0], [1], [0, 0, 1, 1], [], []>} : vector<512x256xbf16>, vector<256x256xbf16>, vector<512x256xf32> -> vector<512x256xf32>
    %12 = arith.truncf %11 : vector<512x256xf32> to vector<512x256xbf16>
    %c0_9 = arith.constant 0 : index
    %c0_10 = arith.constant 0 : index
    %13 = vector.load %arg5[%c0_9, %c0_10] : memref<1x256xbf16, #tpu.memory_space<vmem>>, vector<1x256xbf16>
    %14 = vector.broadcast %13 : vector<1x256xbf16> to vector<512x256xbf16>
    %15 = arith.addf %12, %14 : vector<512x256xbf16>
    %cst_11 = arith.constant 1.000980e-02 : bf16
    %16 = vector.broadcast %cst_11 : bf16 to vector<512x256xbf16>
    %17 = arith.mulf %16, %15 : vector<512x256xbf16>
    %18 = arith.maximumf %15, %17 : vector<512x256xbf16>
    %c0_12 = arith.constant 0 : index
    %c0_13 = arith.constant 0 : index
    %19 = vector.load %arg6[%c0_12, %c0_13] : memref<256x256xbf16, #tpu.memory_space<vmem>>, vector<256x256xbf16>
    %cst_14 = arith.constant dense<0.000000e+00> : vector<512x256xf32>
    %20 = tpu.matmul %18, %19, %cst_14 {dimension_numbers = #tpu.dot_dimension_numbers<[1], [0], [0], [1], [0, 0, 1, 1], [], []>} : vector<512x256xbf16>, vector<256x256xbf16>, vector<512x256xf32> -> vector<512x256xf32>
    %21 = arith.truncf %20 : vector<512x256xf32> to vector<512x256xbf16>
    %c0_15 = arith.constant 0 : index
    %c0_16 = arith.constant 0 : index
    %22 = vector.load %arg7[%c0_15, %c0_16] : memref<1x256xbf16, #tpu.memory_space<vmem>>, vector<1x256xbf16>
    %23 = vector.broadcast %22 : vector<1x256xbf16> to vector<512x256xbf16>
    %24 = arith.addf %21, %23 : vector<512x256xbf16>
    %cst_17 = arith.constant 1.000980e-02 : bf16
    %25 = vector.broadcast %cst_17 : bf16 to vector<512x256xbf16>
    %26 = arith.mulf %25, %24 : vector<512x256xbf16>
    %27 = arith.maximumf %24, %26 : vector<512x256xbf16>
    %c0_18 = arith.constant 0 : index
    %c0_19 = arith.constant 0 : index
    %28 = vector.load %arg8[%c0_18, %c0_19] : memref<256x256xbf16, #tpu.memory_space<vmem>>, vector<256x256xbf16>
    %cst_20 = arith.constant dense<0.000000e+00> : vector<512x256xf32>
    %29 = tpu.matmul %27, %28, %cst_20 {dimension_numbers = #tpu.dot_dimension_numbers<[1], [0], [0], [1], [0, 0, 1, 1], [], []>} : vector<512x256xbf16>, vector<256x256xbf16>, vector<512x256xf32> -> vector<512x256xf32>
    %30 = arith.truncf %29 : vector<512x256xf32> to vector<512x256xbf16>
    %c0_21 = arith.constant 0 : index
    %c0_22 = arith.constant 0 : index
    %31 = vector.load %arg9[%c0_21, %c0_22] : memref<1x256xbf16, #tpu.memory_space<vmem>>, vector<1x256xbf16>
    %32 = vector.broadcast %31 : vector<1x256xbf16> to vector<512x256xbf16>
    %33 = arith.addf %30, %32 : vector<512x256xbf16>
    %cst_23 = arith.constant 1.000980e-02 : bf16
    %34 = vector.broadcast %cst_23 : bf16 to vector<512x256xbf16>
    %35 = arith.mulf %34, %33 : vector<512x256xbf16>
    %36 = arith.maximumf %33, %35 : vector<512x256xbf16>
    %c0_24 = arith.constant 0 : index
    %c0_25 = arith.constant 0 : index
    %37 = vector.load %arg10[%c0_24, %c0_25] : memref<256x2xbf16, #tpu.memory_space<vmem>>, vector<256x2xbf16>
    %cst_26 = arith.constant dense<0.000000e+00> : vector<512x2xf32>
    %38 = tpu.matmul %36, %37, %cst_26 {dimension_numbers = #tpu.dot_dimension_numbers<[1], [0], [0], [1], [0, 0, 1, 1], [], []>} : vector<512x256xbf16>, vector<256x2xbf16>, vector<512x2xf32> -> vector<512x2xf32>
    %c0_27 = arith.constant 0 : index
    %c0_28 = arith.constant 0 : index
    %39 = vector.load %arg11[%c0_27, %c0_28] : memref<1x2xf32, #tpu.memory_space<vmem>>, vector<1x2xf32>
    %40 = vector.broadcast %39 : vector<1x2xf32> to vector<512x2xf32>
    %41 = arith.addf %38, %40 : vector<512x2xf32>
    %c0_29 = arith.constant 0 : index
    %c0_30 = arith.constant 0 : index
    %42 = vector.load %arg12[%c0_29, %c0_30] : memref<512x2xf32, #tpu.memory_space<vmem>>, vector<512x2xf32>
    tpu.vector_store %arg12[%c0_29, %c0_30], %41 {strides = array<i32>} : memref<512x2xf32, #tpu.memory_space<vmem>>, vector<512x2xf32>,
    return
  }
  func.func @transform_0(%arg0: i32) -> (i32, i32) {
    %c0_i32 = arith.constant 0 : i32
    %c0_i32_0 = arith.constant 0 : i32
    return %arg0, %c0_i32 : i32, i32
  }
  func.func @transform_1(%arg0: i32) -> (i32, i32) {
    %c0_i32 = arith.constant 0 : i32
    %c0_i32_0 = arith.constant 0 : i32
    %c0_i32_1 = arith.constant 0 : i32
    return %c0_i32, %c0_i32_0 : i32, i32
  }
  func.func @transform_2(%arg0: i32) -> (i32, i32) {
    %c0_i32 = arith.constant 0 : i32
    %c0_i32_0 = arith.constant 0 : i32
    %c0_i32_1 = arith.constant 0 : i32
    return %c0_i32, %c0_i32_0 : i32, i32
  }
  func.func @transform_3(%arg0: i32) -> (i32, i32) {
    %c0_i32 = arith.constant 0 : i32
    %c0_i32_0 = arith.constant 0 : i32
    %c0_i32_1 = arith.constant 0 : i32
    return %c0_i32, %c0_i32_0 : i32, i32
  }
  func.func @transform_4(%arg0: i32) -> (i32, i32) {
    %c0_i32 = arith.constant 0 : i32
    %c0_i32_0 = arith.constant 0 : i32
    %c0_i32_1 = arith.constant 0 : i32
    return %c0_i32, %c0_i32_0 : i32, i32
  }
  func.func @transform_5(%arg0: i32) -> (i32, i32) {
    %c0_i32 = arith.constant 0 : i32
    %c0_i32_0 = arith.constant 0 : i32
    %c0_i32_1 = arith.constant 0 : i32
    return %c0_i32, %c0_i32_0 : i32, i32
  }
  func.func @transform_6(%arg0: i32) -> (i32, i32) {
    %c0_i32 = arith.constant 0 : i32
    %c0_i32_0 = arith.constant 0 : i32
    %c0_i32_1 = arith.constant 0 : i32
    return %c0_i32, %c0_i32_0 : i32, i32
  }
  func.func @transform_7(%arg0: i32) -> (i32, i32) {
    %c0_i32 = arith.constant 0 : i32
    %c0_i32_0 = arith.constant 0 : i32
    %c0_i32_1 = arith.constant 0 : i32
    return %c0_i32, %c0_i32_0 : i32, i32
  }
  func.func @transform_8(%arg0: i32) -> (i32, i32) {
    %c0_i32 = arith.constant 0 : i32
    %c0_i32_0 = arith.constant 0 : i32
    %c0_i32_1 = arith.constant 0 : i32
    return %c0_i32, %c0_i32_0 : i32, i32
  }
  func.func @transform_9(%arg0: i32) -> (i32, i32) {
    %c0_i32 = arith.constant 0 : i32
    %c0_i32_0 = arith.constant 0 : i32
    %c0_i32_1 = arith.constant 0 : i32
    return %c0_i32, %c0_i32_0 : i32, i32
  }
  func.func @transform_10(%arg0: i32) -> (i32, i32) {
    %c0_i32 = arith.constant 0 : i32
    %c0_i32_0 = arith.constant 0 : i32
    %c0_i32_1 = arith.constant 0 : i32
    return %c0_i32, %c0_i32_0 : i32, i32
  }
  func.func @transform_11(%arg0: i32) -> (i32, i32) {
    %c0_i32 = arith.constant 0 : i32
    %c0_i32_0 = arith.constant 0 : i32
    return %arg0, %c0_i32 : i32, i32
  }
}

</mosaic_0001>

<llo_original>
// kernel: network_forward.1
$region0: #{network_forward.1}
  #allocation0 [shape = 'u32[]', space=smem, size = 0x4, offset = 0x4, fixed_abs, tag = 'smem constant byte address 0x4 - core index']
  #allocation1 [shape = 'u32[72,128]{1,0:T(1,128)}', space=vmem, size = 0x9000, scoped, tag = 'internal scratch']
  %s0 = inlined_call_operand.vmem [shape: bf16[1024,8], index: 0, kind: input, shape index: {}]
  %s1 = inlined_call_operand.vmem [shape: bf16[8,256], index: 1, kind: input, shape index: {}]
  %s2 = inlined_call_operand.vmem [shape: bf16[1,256], index: 2, kind: input, shape index: {}]
  %s3 = inlined_call_operand.vmem [shape: bf16[256,256], index: 3, kind: input, shape index: {}]
  %s4 = inlined_call_operand.vmem [shape: bf16[1,256], index: 4, kind: input, shape index: {}]
  %s5 = inlined_call_operand.vmem [shape: bf16[256,256], index: 5, kind: input, shape index: {}]
  %s6 = inlined_call_operand.vmem [shape: bf16[1,256], index: 6, kind: input, shape index: {}]
  %s7 = inlined_call_operand.vmem [shape: bf16[256,256], index: 7, kind: input, shape index: {}]
  %s8 = inlined_call_operand.vmem [shape: bf16[1,256], index: 8, kind: input, shape index: {}]
  %s9 = inlined_call_operand.vmem [shape: bf16[256,2], index: 9, kind: input, shape index: {}]
  %s10 = inlined_call_operand.vmem [shape: f32[1,2], index: 10, kind: input, shape index: {}]
  %s11 = inlined_call_operand.vmem [shape: f32[1024,2], index: 11, kind: output, shape index: {}]
  %s12 = sld [smem:[#allocation0]]
  $region77: #{network_forward.1} parent=0
    _
  %s14 = ssub.s32 1, %s12
  %s15 = scalar_select 0, %s14, %s12
  loop: start=0, step=1, limit=4
  $region2: #{network_forward.1} parent=0 // loop_pre_header
    _
  $region3: #{network_forward.1} parent=0 // loop_header
    %s17 = sphi 0, %s21
    %p18 = scmp.ge.s32.totalorder %s17, 4
    %s27 = sphi 0, %s29
    %s30 = sphi 0, %s27
    %s31 = sphi 0, %s30
    %s47 = sphi 0, %s31
    %s51 = sphi 0, %s51
    %s53 = sphi 0, %s51
    %s54 = sphi 0, %s53
    %s68 = sphi 0, %s54
    %s72 = sphi 0, %s72
    %s74 = sphi 0, %s72
    %s75 = sphi 0, %s74
    %s89 = sphi 0, %s75
    %s93 = sphi 0, %s93
    %s95 = sphi 0, %s93
    %s96 = sphi 0, %s95
    %s110 = sphi 0, %s96
    %s114 = sphi 0, %s114
    %s116 = sphi 0, %s114
    %s117 = sphi 0, %s116
    %s131 = sphi 0, %s117
    %s135 = sphi 0, %s135
    %s137 = sphi 0, %s135
    %s138 = sphi 0, %s137
    %s152 = sphi 0, %s138
    %s156 = sphi 0, %s156
    %s158 = sphi 0, %s156
    %s159 = sphi 0, %s158
    %s173 = sphi 0, %s159
    %s177 = sphi 0, %s177
    %s179 = sphi 0, %s177
    %s180 = sphi 0, %s179
    %s194 = sphi 0, %s180
    %s198 = sphi 0, %s198
    %s200 = sphi 0, %s198
    %s201 = sphi 0, %s200
    %s215 = sphi 0, %s201
    %s219 = sphi 0, %s219
    %s221 = sphi 0, %s219
    %s222 = sphi 0, %s221
    %s236 = sphi 0, %s222
    %s240 = sphi 0, %s240
    %s242 = sphi 0, %s240
    %s243 = sphi 0, %s242
    %s257 = sphi 0, %s243
    %s263 = sphi 0, %s265
    %s266 = sphi 0, %s263
    %s267 = sphi 0, %s266
    %s283 = sphi 0, %s267
  $region4: #{network_forward.1} parent=0 // loop_header_branch
    %20 = sbr.rel (%p18) target = $region8
  $region5: #{network_forward.1} parent=0 // loop_body
    %s22 = ssub.s32 %s17, 1
    %s23 = ssub.s32 %s17, 2
    %s24 = sadd.s32 %s17, 1
    %s25 = ssub.s32 %s17, %s24
    %p26 = scmp.eq.s32.totalorder %s25, 0
    %s28 = sadd.s32 %s27, 1
    %s29 = scalar_select %p26, %s27, %s28
    %p32 = pneg %p26
    %p33 = scmp.eq.s32.totalorder %s17, 1
    %p34 = por %p32, %p33
    %p35 = scmp.ne.s32.totalorder %s27, %s30
    %p36 = scmp.eq.s32.totalorder %s17, 0
    %p37 = por %p35, %p36
    %p38 = scmp.ne.s32.totalorder %s27, %s30
    %p39 = scmp.eq.s32.totalorder %s22, 1
    %p40 = por %p38, %p39
    %p41 = scmp.ne.s32.totalorder %s30, %s31
    %p42 = scmp.eq.s32.totalorder %s22, 0
    %p43 = por %p41, %p42
    %p44 = scmp.ne.s32.totalorder %s30, %s31
    %p45 = scmp.eq.s32.totalorder %s23, 1
    %p46 = por %p44, %p45
    %p48 = scmp.ne.s32.totalorder %s31, %s47
    %p49 = scmp.eq.s32.totalorder %s23, 0
    %p50 = por %p48, %p49
    %s52 = sadd.s32 %s51, 1
    %p55 = scmp.eq.s32.totalorder %s17, 1
    %p56 = scmp.ne.s32.totalorder %s51, %s53
    %p57 = scmp.eq.s32.totalorder %s17, 0
    %p58 = por %p56, %p57
    %p59 = scmp.ne.s32.totalorder %s51, %s53
    %p60 = scmp.eq.s32.totalorder %s22, 1
    %p61 = por %p59, %p60
    %p62 = scmp.ne.s32.totalorder %s53, %s54
    %p63 = scmp.eq.s32.totalorder %s22, 0
    %p64 = por %p62, %p63
    %p65 = scmp.ne.s32.totalorder %s53, %s54
    %p66 = scmp.eq.s32.totalorder %s23, 1
    %p67 = por %p65, %p66
    %p69 = scmp.ne.s32.totalorder %s54, %s68
    %p70 = scmp.eq.s32.totalorder %s23, 0
    %p71 = por %p69, %p70
    %s73 = sadd.s32 %s72, 1
    %p76 = scmp.eq.s32.totalorder %s17, 1
    %p77 = scmp.ne.s32.totalorder %s72, %s74
    %p78 = scmp.eq.s32.totalorder %s17, 0
    %p79 = por %p77, %p78
    %p80 = scmp.ne.s32.totalorder %s72, %s74
    %p81 = scmp.eq.s32.totalorder %s22, 1
    %p82 = por %p80, %p81
    %p83 = scmp.ne.s32.totalorder %s74, %s75
    %p84 = scmp.eq.s32.totalorder %s22, 0
    %p85 = por %p83, %p84
    %p86 = scmp.ne.s32.totalorder %s74, %s75
    %p87 = scmp.eq.s32.totalorder %s23, 1
    %p88 = por %p86, %p87
    %p90 = scmp.ne.s32.totalorder %s75, %s89
    %p91 = scmp.eq.s32.totalorder %s23, 0
    %p92 = por %p90, %p91
    %s94 = sadd.s32 %s93, 1
    %p97 = scmp.eq.s32.totalorder %s17, 1
    %p98 = scmp.ne.s32.totalorder %s93, %s95
    %p99 = scmp.eq.s32.totalorder %s17, 0
    %p100 = por %p98, %p99
    %p101 = scmp.ne.s32.totalorder %s93, %s95
    %p102 = scmp.eq.s32.totalorder %s22, 1
    %p103 = por %p101, %p102
    %p104 = scmp.ne.s32.totalorder %s95, %s96
    %p105 = scmp.eq.s32.totalorder %s22, 0
    %p106 = por %p104, %p105
    %p107 = scmp.ne.s32.totalorder %s95, %s96
    %p108 = scmp.eq.s32.totalorder %s23, 1
    %p109 = por %p107, %p108
    %p111 = scmp.ne.s32.totalorder %s96, %s110
    %p112 = scmp.eq.s32.totalorder %s23, 0
    %p113 = por %p111, %p112
    %s115 = sadd.s32 %s114, 1
    %p118 = scmp.eq.s32.totalorder %s17, 1
    %p119 = scmp.ne.s32.totalorder %s114, %s116
    %p120 = scmp.eq.s32.totalorder %s17, 0
    %p121 = por %p119, %p120
    %p122 = scmp.ne.s32.totalorder %s114, %s116
    %p123 = scmp.eq.s32.totalorder %s22, 1
    %p124 = por %p122, %p123
    %p125 = scmp.ne.s32.totalorder %s116, %s117
    %p126 = scmp.eq.s32.totalorder %s22, 0
    %p127 = por %p125, %p126
    %p128 = scmp.ne.s32.totalorder %s116, %s117
    %p129 = scmp.eq.s32.totalorder %s23, 1
    %p130 = por %p128, %p129
    %p132 = scmp.ne.s32.totalorder %s117, %s131
    %p133 = scmp.eq.s32.totalorder %s23, 0
    %p134 = por %p132, %p133
    %s136 = sadd.s32 %s135, 1
    %p139 = scmp.eq.s32.totalorder %s17, 1
    %p140 = scmp.ne.s32.totalorder %s135, %s137
    %p141 = scmp.eq.s32.totalorder %s17, 0
    %p142 = por %p140, %p141
    %p143 = scmp.ne.s32.totalorder %s135, %s137
    %p144 = scmp.eq.s32.totalorder %s22, 1
    %p145 = por %p143, %p144
    %p146 = scmp.ne.s32.totalorder %s137, %s138
    %p147 = scmp.eq.s32.totalorder %s22, 0
    %p148 = por %p146, %p147
    %p149 = scmp.ne.s32.totalorder %s137, %s138
    %p150 = scmp.eq.s32.totalorder %s23, 1
    %p151 = por %p149, %p150
    %p153 = scmp.ne.s32.totalorder %s138, %s152
    %p154 = scmp.eq.s32.totalorder %s23, 0
    %p155 = por %p153, %p154
    %s157 = sadd.s32 %s156, 1
    %p160 = scmp.eq.s32.totalorder %s17, 1
    %p161 = scmp.ne.s32.totalorder %s156, %s158
    %p162 = scmp.eq.s32.totalorder %s17, 0
    %p163 = por %p161, %p162
    %p164 = scmp.ne.s32.totalorder %s156, %s158
    %p165 = scmp.eq.s32.totalorder %s22, 1
    %p166 = por %p164, %p165
    %p167 = scmp.ne.s32.totalorder %s158, %s159
    %p168 = scmp.eq.s32.totalorder %s22, 0
    %p169 = por %p167, %p168
    %p170 = scmp.ne.s32.totalorder %s158, %s159
    %p171 = scmp.eq.s32.totalorder %s23, 1
    %p172 = por %p170, %p171
    %p174 = scmp.ne.s32.totalorder %s159, %s173
    %p175 = scmp.eq.s32.totalorder %s23, 0
    %p176 = por %p174, %p175
    %s178 = sadd.s32 %s177, 1
    %p181 = scmp.eq.s32.totalorder %s17, 1
    %p182 = scmp.ne.s32.totalorder %s177, %s179
    %p183 = scmp.eq.s32.totalorder %s17, 0
    %p184 = por %p182, %p183
    %p185 = scmp.ne.s32.totalorder %s177, %s179
    %p186 = scmp.eq.s32.totalorder %s22, 1
    %p187 = por %p185, %p186
    %p188 = scmp.ne.s32.totalorder %s179, %s180
    %p189 = scmp.eq.s32.totalorder %s22, 0
    %p190 = por %p188, %p189
    %p191 = scmp.ne.s32.totalorder %s179, %s180
    %p192 = scmp.eq.s32.totalorder %s23, 1
    %p193 = por %p191, %p192
    %p195 = scmp.ne.s32.totalorder %s180, %s194
    %p196 = scmp.eq.s32.totalorder %s23, 0
    %p197 = por %p195, %p196
    %s199 = sadd.s32 %s198, 1
    %p202 = scmp.eq.s32.totalorder %s17, 1
    %p203 = scmp.ne.s32.totalorder %s198, %s200
    %p204 = scmp.eq.s32.totalorder %s17, 0
    %p205 = por %p203, %p204
    %p206 = scmp.ne.s32.totalorder %s198, %s200
    %p207 = scmp.eq.s32.totalorder %s22, 1
    %p208 = por %p206, %p207
    %p209 = scmp.ne.s32.totalorder %s200, %s201
    %p210 = scmp.eq.s32.totalorder %s22, 0
    %p211 = por %p209, %p210
    %p212 = scmp.ne.s32.totalorder %s200, %s201
    %p213 = scmp.eq.s32.totalorder %s23, 1
    %p214 = por %p212, %p213
    %p216 = scmp.ne.s32.totalorder %s201, %s215
    %p217 = scmp.eq.s32.totalorder %s23, 0
    %p218 = por %p216, %p217
    %s220 = sadd.s32 %s219, 1
    %p223 = scmp.eq.s32.totalorder %s17, 1
    %p224 = scmp.ne.s32.totalorder %s219, %s221
    %p225 = scmp.eq.s32.totalorder %s17, 0
    %p226 = por %p224, %p225
    %p227 = scmp.ne.s32.totalorder %s219, %s221
    %p228 = scmp.eq.s32.totalorder %s22, 1
    %p229 = por %p227, %p228
    %p230 = scmp.ne.s32.totalorder %s221, %s222
    %p231 = scmp.eq.s32.totalorder %s22, 0
    %p232 = por %p230, %p231
    %p233 = scmp.ne.s32.totalorder %s221, %s222
    %p234 = scmp.eq.s32.totalorder %s23, 1
    %p235 = por %p233, %p234
    %p237 = scmp.ne.s32.totalorder %s222, %s236
    %p238 = scmp.eq.s32.totalorder %s23, 0
    %p239 = por %p237, %p238
    %s241 = sadd.s32 %s240, 1
    %p244 = scmp.eq.s32.totalorder %s17, 1
    %p245 = scmp.ne.s32.totalorder %s240, %s242
    %p246 = scmp.eq.s32.totalorder %s17, 0
    %p247 = por %p245, %p246
    %p248 = scmp.ne.s32.totalorder %s240, %s242
    %p249 = scmp.eq.s32.totalorder %s22, 1
    %p250 = por %p248, %p249
    %p251 = scmp.ne.s32.totalorder %s242, %s243
    %p252 = scmp.eq.s32.totalorder %s22, 0
    %p253 = por %p251, %p252
    %p254 = scmp.ne.s32.totalorder %s242, %s243
    %p255 = scmp.eq.s32.totalorder %s23, 1
    %p256 = por %p254, %p255
    %p258 = scmp.ne.s32.totalorder %s243, %s257
    %p259 = scmp.eq.s32.totalorder %s23, 0
    %p260 = por %p258, %p259
    %s261 = ssub.s32 %s17, %s24
    %p262 = scmp.eq.s32.totalorder %s261, 0
    %s264 = sadd.s32 %s263, 1
    %s265 = scalar_select %p262, %s263, %s264
    %p268 = pneg %p262
    %p269 = scmp.eq.s32.totalorder %s17, 1
    %p270 = por %p268, %p269
    %p271 = scmp.ne.s32.totalorder %s263, %s266
    %p272 = scmp.eq.s32.totalorder %s17, 0
    %p273 = por %p271, %p272
    %p274 = scmp.ne.s32.totalorder %s263, %s266
    %p275 = scmp.eq.s32.totalorder %s22, 1
    %p276 = por %p274, %p275
    %p277 = scmp.ne.s32.totalorder %s266, %s267
    %p278 = scmp.eq.s32.totalorder %s22, 0
    %p279 = por %p277, %p278
    %p280 = scmp.ne.s32.totalorder %s266, %s267
    %p281 = scmp.eq.s32.totalorder %s23, 1
    %p282 = por %p280, %p281
    %p284 = scmp.ne.s32.totalorder %s267, %s283
    %p285 = scmp.eq.s32.totalorder %s23, 0
    %p286 = por %p284, %p285
    %p287 = scmp.le.s32.totalorder 1, %s17
    %p288 = scmp.lt.s32.totalorder %s17, 3
    %p289 = pnand %p287, %p288
    %p290 = pneg %p289
    // Predicated region
    $region9: #{network_forward.1} parent=5 // pred_check
      _
    $region10: #{network_forward.1} parent=5 // pred_check_branch
      %292 = sbr.rel (%p289) target = $region12
    $region11: #{network_forward.1} parent=5 // pred_region
      %s293 = ssub.s32 %s17, 1
      // Predicated region
      $region13: #{network_forward.1} parent=11 // pred_check
        %p294 = pneg %p64
      $region14: #{network_forward.1} parent=11 // pred_check_branch
        %296 = sbr.rel (%p294) target = $region16
      $region15: #{network_forward.1} parent=11 // pred_region
        _
      $region16: #{network_forward.1} parent=11 // pred_fallthru
        _
      // Predicated region
      $region17: #{network_forward.1} parent=11 // pred_check
        %p297 = pneg %p85
      $region18: #{network_forward.1} parent=11 // pred_check_branch
        %299 = sbr.rel (%p297) target = $region20
      $region19: #{network_forward.1} parent=11 // pred_region
        _
      $region20: #{network_forward.1} parent=11 // pred_fallthru
        _
      // Predicated region
      $region21: #{network_forward.1} parent=11 // pred_check
        %p300 = pneg %p106
      $region22: #{network_forward.1} parent=11 // pred_check_branch
        %302 = sbr.rel (%p300) target = $region24
      $region23: #{network_forward.1} parent=11 // pred_region
        _
      $region24: #{network_forward.1} parent=11 // pred_fallthru
        _
      // Predicated region
      $region25: #{network_forward.1} parent=11 // pred_check
        %p303 = pneg %p127
      $region26: #{network_forward.1} parent=11 // pred_check_branch
        %305 = sbr.rel (%p303) target = $region28
      $region27: #{network_forward.1} parent=11 // pred_region
        _
      $region28: #{network_forward.1} parent=11 // pred_fallthru
        _
      // Predicated region
      $region29: #{network_forward.1} parent=11 // pred_check
        %p306 = pneg %p148
      $region30: #{network_forward.1} parent=11 // pred_check_branch
        %308 = sbr.rel (%p306) target = $region32
      $region31: #{network_forward.1} parent=11 // pred_region
        _
      $region32: #{network_forward.1} parent=11 // pred_fallthru
        _
      // Predicated region
      $region33: #{network_forward.1} parent=11 // pred_check
        %p309 = pneg %p169
      $region34: #{network_forward.1} parent=11 // pred_check_branch
        %311 = sbr.rel (%p309) target = $region36
      $region35: #{network_forward.1} parent=11 // pred_region
        _
      $region36: #{network_forward.1} parent=11 // pred_fallthru
        _
      // Predicated region
      $region37: #{network_forward.1} parent=11 // pred_check
        %p312 = pneg %p190
      $region38: #{network_forward.1} parent=11 // pred_check_branch
        %314 = sbr.rel (%p312) target = $region40
      $region39: #{network_forward.1} parent=11 // pred_region
        _
      $region40: #{network_forward.1} parent=11 // pred_fallthru
        _
      // Predicated region
      $region41: #{network_forward.1} parent=11 // pred_check
        %p315 = pneg %p211
      $region42: #{network_forward.1} parent=11 // pred_check_branch
        %317 = sbr.rel (%p315) target = $region44
      $region43: #{network_forward.1} parent=11 // pred_region
        _
      $region44: #{network_forward.1} parent=11 // pred_fallthru
        _
      // Predicated region
      $region45: #{network_forward.1} parent=11 // pred_check
        %p318 = pneg %p232
      $region46: #{network_forward.1} parent=11 // pred_check_branch
        %320 = sbr.rel (%p318) target = $region48
      $region47: #{network_forward.1} parent=11 // pred_region
        _
      $region48: #{network_forward.1} parent=11 // pred_fallthru
        _
      // Predicated region
      $region49: #{network_forward.1} parent=11 // pred_check
        %p321 = pneg %p253
      $region50: #{network_forward.1} parent=11 // pred_check_branch
        %323 = sbr.rel (%p321) target = $region52
      $region51: #{network_forward.1} parent=11 // pred_region
        _
      $region52: #{network_forward.1} parent=11 // pred_fallthru
        _
    $region12: #{network_forward.1} parent=5 // pred_fallthru
      _
    %p324 = scmp.lt.s32.totalorder %s17, 2
    // Predicated region
    $region53: #{network_forward.1} parent=5 // pred_check
      %p325 = pneg %p324
    $region54: #{network_forward.1} parent=5 // pred_check_branch
      %327 = sbr.rel (%p325) target = $region56
    $region55: #{network_forward.1} parent=5 // pred_region
      // Predicated region
      $region57: #{network_forward.1} parent=55 // pred_check
        %p328 = pneg %p37
      $region58: #{network_forward.1} parent=55 // pred_check_branch
        %330 = sbr.rel (%p328) target = $region60
      $region59: #{network_forward.1} parent=55 // pred_region
        %s331 = smul.u32 64, %s17
        %p332 = scmp.lt.s32.totalorder %s331, 127
        %s333 = scalar_select %p332, %s331, 127
        %s334 = smul.addr %s333, 4
        %s335 = scalar_lea.vmem %s0, %s334
        %s336 = smul.u32 64, %s17
      $region60: #{network_forward.1} parent=55 // pred_fallthru
        _
    $region56: #{network_forward.1} parent=5 // pred_fallthru
      _
    %p337 = scmp.le.s32.totalorder 1, %s17
    %p338 = scmp.lt.s32.totalorder %s17, 3
    %p339 = pnand %p337, %p338
    %p340 = pneg %p339
    // Predicated region
    $region61: #{network_forward.1} parent=5 // pred_check
      _
    $region62: #{network_forward.1} parent=5 // pred_check_branch
      %342 = sbr.rel (%p339) target = $region64
    $region63: #{network_forward.1} parent=5 // pred_region
      %s343 = ssub.s32 %s17, 1
      %s344 = smul.u32 64, %s22
      %p345 = scmp.lt.s32.totalorder %s344, 127
      %s346 = scalar_select %p345, %s344, 127
      %s347 = smul.addr %s346, 4
      %s348 = scalar_lea.vmem %s0, %s347
      %p349 = pneg %p43
      %p350 = pneg %p40
      %p351 = pneg %p64
      %p352 = pneg %p61
      %p353 = pneg %p85
      %p354 = pneg %p82
      %p355 = pneg %p106
      %p356 = pneg %p103
      %p357 = pneg %p127
      %p358 = pneg %p124
      %p359 = pneg %p148
      %p360 = pneg %p145
      %p361 = pneg %p169
      %p362 = pneg %p166
      %p363 = pneg %p190
      %p364 = pneg %p187
      %p365 = pneg %p211
      %p366 = pneg %p208
      %p367 = pneg %p232
      %p368 = pneg %p229
      %p369 = pneg %p253
      %p370 = pneg %p250
      %p371 = pneg %p279
      %p372 = pneg %p276
      %s373 = smul.u32 64, %s22
      %p374 = scmp.lt.s32.totalorder %s373, 127
      %s375 = scalar_select %p374, %s373, 127
      %s376 = smul.addr %s375, 8
      %s377 = scalar_lea.vmem %s11, %s376
      %s378 = smul.u32 64, %s22
      %p379 = scmp.lt.s32.totalorder %s378, 127
      %s380 = scalar_select %p379, %s378, 127
      %s381 = smul.addr %s380, 4
      %s382 = scalar_lea.vmem %s0, %s381
      %s383 = smul.u32 64, %s22
      %s384 = smul.u32 64, %s22
      %p385 = scmp.lt.s32.totalorder %s384, 127
      %s386 = scalar_select %p385, %s384, 127
      %s387 = smul.addr %s386, 8
      %s388 = scalar_lea.vmem %s11, %s387
      %s389 = smul.u32 64, %s22
      %v391 = vld [vmem:[%s382] sm:$0xf]
      %v392 = vld [vmem:[%s382 + $0x4] sm:$0xf]
      %v393 = vld [vmem:[%s382 + $0x8] sm:$0xf]
      %v394 = vld [vmem:[%s382 + $0xc] sm:$0xf]
      %v395 = vld [vmem:[%s382 + $0x10] sm:$0xf]
      %v396 = vld [vmem:[%s382 + $0x14] sm:$0xf]
      %v397 = vld [vmem:[%s382 + $0x18] sm:$0xf]
      %v398 = vld [vmem:[%s382 + $0x1c] sm:$0xf]
      %v399 = vld [vmem:[%s382 + $0x20] sm:$0xf]
      %v400 = vld [vmem:[%s382 + $0x24] sm:$0xf]
      %v401 = vld [vmem:[%s382 + $0x28] sm:$0xf]
      %v402 = vld [vmem:[%s382 + $0x2c] sm:$0xf]
      %v403 = vld [vmem:[%s382 + $0x30] sm:$0xf]
      %v404 = vld [vmem:[%s382 + $0x34] sm:$0xf]
      %v405 = vld [vmem:[%s382 + $0x38] sm:$0xf]
      %v406 = vld [vmem:[%s382 + $0x3c] sm:$0xf]
      %v407 = vld [vmem:[%s382 + $0x40] sm:$0xf]
      %v408 = vld [vmem:[%s382 + $0x44] sm:$0xf]
      %v409 = vld [vmem:[%s382 + $0x48] sm:$0xf]
      %v410 = vld [vmem:[%s382 + $0x4c] sm:$0xf]
      %v411 = vld [vmem:[%s382 + $0x50] sm:$0xf]
      %v412 = vld [vmem:[%s382 + $0x54] sm:$0xf]
      %v413 = vld [vmem:[%s382 + $0x58] sm:$0xf]
      %v414 = vld [vmem:[%s382 + $0x5c] sm:$0xf]
      %v415 = vld [vmem:[%s382 + $0x60] sm:$0xf]
      %v416 = vld [vmem:[%s382 + $0x64] sm:$0xf]
      %v417 = vld [vmem:[%s382 + $0x68] sm:$0xf]
      %v418 = vld [vmem:[%s382 + $0x6c] sm:$0xf]
      %v419 = vld [vmem:[%s382 + $0x70] sm:$0xf]
      %v420 = vld [vmem:[%s382 + $0x74] sm:$0xf]
      %v421 = vld [vmem:[%s382 + $0x78] sm:$0xf]
      %v422 = vld [vmem:[%s382 + $0x7c] sm:$0xf]
      %v423 = vld [vmem:[%s382 + $0x80] sm:$0xf]
      %v424 = vld [vmem:[%s382 + $0x84] sm:$0xf]
      %v425 = vld [vmem:[%s382 + $0x88] sm:$0xf]
      %v426 = vld [vmem:[%s382 + $0x8c] sm:$0xf]
      %v427 = vld [vmem:[%s382 + $0x90] sm:$0xf]
      %v428 = vld [vmem:[%s382 + $0x94] sm:$0xf]
      %v429 = vld [vmem:[%s382 + $0x98] sm:$0xf]
      %v430 = vld [vmem:[%s382 + $0x9c] sm:$0xf]
      %v431 = vld [vmem:[%s382 + $0xa0] sm:$0xf]
      %v432 = vld [vmem:[%s382 + $0xa4] sm:$0xf]
      %v433 = vld [vmem:[%s382 + $0xa8] sm:$0xf]
      %v434 = vld [vmem:[%s382 + $0xac] sm:$0xf]
      %v435 = vld [vmem:[%s382 + $0xb0] sm:$0xf]
      %v436 = vld [vmem:[%s382 + $0xb4] sm:$0xf]
      %v437 = vld [vmem:[%s382 + $0xb8] sm:$0xf]
      %v438 = vld [vmem:[%s382 + $0xbc] sm:$0xf]
      %v439 = vld [vmem:[%s382 + $0xc0] sm:$0xf]
      %v440 = vld [vmem:[%s382 + $0xc4] sm:$0xf]
      %v441 = vld [vmem:[%s382 + $0xc8] sm:$0xf]
      %v442 = vld [vmem:[%s382 + $0xcc] sm:$0xf]
      %v443 = vld [vmem:[%s382 + $0xd0] sm:$0xf]
      %v444 = vld [vmem:[%s382 + $0xd4] sm:$0xf]
      %v445 = vld [vmem:[%s382 + $0xd8] sm:$0xf]
      %v446 = vld [vmem:[%s382 + $0xdc] sm:$0xf]
      %v447 = vld [vmem:[%s382 + $0xe0] sm:$0xf]
      %v448 = vld [vmem:[%s382 + $0xe4] sm:$0xf]
      %v449 = vld [vmem:[%s382 + $0xe8] sm:$0xf]
      %v450 = vld [vmem:[%s382 + $0xec] sm:$0xf]
      %v451 = vld [vmem:[%s382 + $0xf0] sm:$0xf]
      %v452 = vld [vmem:[%s382 + $0xf4] sm:$0xf]
      %v453 = vld [vmem:[%s382 + $0xf8] sm:$0xf]
      %v454 = vld [vmem:[%s382 + $0xfc] sm:$0xf]
      %v455 = vld [vmem:[%s1] sm:$0xff]
      %v520 = vunpack.c.l.b16 %v391
      %v521 = vunpack.c.l.b16 %v392
      %v522 = vunpack.c.l.b16 %v393
      %v523 = vunpack.c.l.b16 %v394
      %v524 = vunpack.c.l.b16 %v395
      %v525 = vunpack.c.l.b16 %v396
      %v526 = vunpack.c.l.b16 %v397
      %v527 = vunpack.c.l.b16 %v398
      %v528 = vunpack.c.l.b16 %v399
      %v529 = vunpack.c.l.b16 %v400
      %v530 = vunpack.c.l.b16 %v401
      %v531 = vunpack.c.l.b16 %v402
      %v532 = vunpack.c.l.b16 %v403
      %v533 = vunpack.c.l.b16 %v404
      %v534 = vunpack.c.l.b16 %v405
      %v535 = vunpack.c.l.b16 %v406
      %v536 = vunpack.c.l.b16 %v407
      %v537 = vunpack.c.l.b16 %v408
      %v538 = vunpack.c.l.b16 %v409
      %v539 = vunpack.c.l.b16 %v410
      %v540 = vunpack.c.l.b16 %v411
      %v541 = vunpack.c.l.b16 %v412
      %v542 = vunpack.c.l.b16 %v413
      %v543 = vunpack.c.l.b16 %v414
      %v544 = vunpack.c.l.b16 %v415
      %v545 = vunpack.c.l.b16 %v416
      %v546 = vunpack.c.l.b16 %v417
      %v547 = vunpack.c.l.b16 %v418
      %v548 = vunpack.c.l.b16 %v419
      %v549 = vunpack.c.l.b16 %v420
      %v550 = vunpack.c.l.b16 %v421
      %v551 = vunpack.c.l.b16 %v422
      %v552 = vunpack.c.l.b16 %v423
      %v553 = vunpack.c.l.b16 %v424
      %v554 = vunpack.c.l.b16 %v425
      %v555 = vunpack.c.l.b16 %v426
      %v556 = vunpack.c.l.b16 %v427
      %v557 = vunpack.c.l.b16 %v428
      %v558 = vunpack.c.l.b16 %v429
      %v559 = vunpack.c.l.b16 %v430
      %v560 = vunpack.c.l.b16 %v431
      %v561 = vunpack.c.l.b16 %v432
      %v562 = vunpack.c.l.b16 %v433
      %v563 = vunpack.c.l.b16 %v434
      %v564 = vunpack.c.l.b16 %v435
      %v565 = vunpack.c.l.b16 %v436
      %v566 = vunpack.c.l.b16 %v437
      %v567 = vunpack.c.l.b16 %v438
      %v568 = vunpack.c.l.b16 %v439
      %v569 = vunpack.c.l.b16 %v440
      %v570 = vunpack.c.l.b16 %v441
      %v571 = vunpack.c.l.b16 %v442
      %v572 = vunpack.c.l.b16 %v443
      %v573 = vunpack.c.l.b16 %v444
      %v574 = vunpack.c.l.b16 %v445
      %v575 = vunpack.c.l.b16 %v446
      %v576 = vunpack.c.l.b16 %v447
      %v577 = vunpack.c.l.b16 %v448
      %v578 = vunpack.c.l.b16 %v449
      %v579 = vunpack.c.l.b16 %v450
      %v580 = vunpack.c.l.b16 %v451
      %v581 = vunpack.c.l.b16 %v452
      %v582 = vunpack.c.l.b16 %v453
      %v583 = vunpack.c.l.b16 %v454
      %v584 = vpack.c.b16 %v521, %v520
      %v585 = vpack.c.b16 %v523, %v522
      %v586 = vpack.c.b16 %v525, %v524
      %v587 = vpack.c.b16 %v527, %v526
      %v588 = vpack.c.b16 %v529, %v528
      %v589 = vpack.c.b16 %v531, %v530
      %v590 = vpack.c.b16 %v533, %v532
      %v591 = vpack.c.b16 %v535, %v534
      %v592 = vpack.c.b16 %v537, %v536
      %v593 = vpack.c.b16 %v539, %v538
      %v594 = vpack.c.b16 %v541, %v540
      %v595 = vpack.c.b16 %v543, %v542
      %v596 = vpack.c.b16 %v545, %v544
      %v597 = vpack.c.b16 %v547, %v546
      %v598 = vpack.c.b16 %v549, %v548
      %v599 = vpack.c.b16 %v551, %v550
      %v600 = vpack.c.b16 %v553, %v552
      %v601 = vpack.c.b16 %v555, %v554
      %v602 = vpack.c.b16 %v557, %v556
      %v603 = vpack.c.b16 %v559, %v558
      %v604 = vpack.c.b16 %v561, %v560
      %v605 = vpack.c.b16 %v563, %v562
      %v606 = vpack.c.b16 %v565, %v564
      %v607 = vpack.c.b16 %v567, %v566
      %v608 = vpack.c.b16 %v569, %v568
      %v609 = vpack.c.b16 %v571, %v570
      %v610 = vpack.c.b16 %v573, %v572
      %v611 = vpack.c.b16 %v575, %v574
      %v612 = vpack.c.b16 %v577, %v576
      %v613 = vpack.c.b16 %v579, %v578
      %v614 = vpack.c.b16 %v581, %v580
      %v615 = vpack.c.b16 %v583, %v582
      %v617 = vunpack.c.l.b16 %v455
      %v618 = vunpack.c.h.b16 %v455
      %v619 = vpack.c.b16 %v617, %v617
      %v620 = vpack.c.b16 %v618, %v618
      %vm621 = vcmask 64512
      %v623 = vsel %vm621, %v584, 0
      %v626 = vsel %vm621, %v585, 0
      %v629 = vsel %vm621, %v586, 0
      %v632 = vsel %vm621, %v587, 0
      %v635 = vsel %vm621, %v588, 0
      %v638 = vsel %vm621, %v589, 0
      %v641 = vsel %vm621, %v590, 0
      %v644 = vsel %vm621, %v591, 0
      %v647 = vsel %vm621, %v592, 0
      %v650 = vsel %vm621, %v593, 0
      %v653 = vsel %vm621, %v594, 0
      %v656 = vsel %vm621, %v595, 0
      %v659 = vsel %vm621, %v596, 0
      %v662 = vsel %vm621, %v597, 0
      %v665 = vsel %vm621, %v598, 0
      %v668 = vsel %vm621, %v599, 0
      %v671 = vsel %vm621, %v600, 0
      %v674 = vsel %vm621, %v601, 0
      %v677 = vsel %vm621, %v602, 0
      %v680 = vsel %vm621, %v603, 0
      %v683 = vsel %vm621, %v604, 0
      %v686 = vsel %vm621, %v605, 0
      %v689 = vsel %vm621, %v606, 0
      %v692 = vsel %vm621, %v607, 0
      %v695 = vsel %vm621, %v608, 0
      %v698 = vsel %vm621, %v609, 0
      %v701 = vsel %vm621, %v610, 0
      %v704 = vsel %vm621, %v611, 0
      %v707 = vsel %vm621, %v612, 0
      %v710 = vsel %vm621, %v613, 0
      %v713 = vsel %vm621, %v614, 0
      %v716 = vsel %vm621, %v615, 0
      %vm718 = vcmask 1043456
      %v720 = vsel %vm718, %v619, 0
      %v723 = vsel %vm718, %v620, 0
      %725 = vmatpush.bf16.msra.mxu0 0
      %726 = vmatpush.bf16.msra.mxu0 0
      %727 = vmatpush.bf16.msra.mxu0 0
      %728 = vmatpush.bf16.msra.mxu0 0
      %729 = vmatpush.bf16.msra.mxu0 0
      %730 = vmatpush.bf16.msra.mxu0 0
      %731 = vmatpush.bf16.msra.mxu0 0
      %732 = vmatpush.bf16.msra.mxu0 %v720
      %733 = vmatmul.bf16.gmra.mxu0 %v623
      %v734 = vpop.f32.mrf.mxu0
      %v735 = vadd.f32 0.0, %v734
      %v736 = vpop.f32.mrf.mxu0
      %v737 = vadd.f32 0.0, %v736
      %738 = vmatmul.bf16.gmra.mxu0 %v626
      %v739 = vpop.f32.mrf.mxu0
      %v740 = vadd.f32 0.0, %v739
      %v741 = vpop.f32.mrf.mxu0
      %v742 = vadd.f32 0.0, %v741
      %743 = vmatmul.bf16.gmra.mxu0 %v629
      %v744 = vpop.f32.mrf.mxu0
      %v745 = vadd.f32 0.0, %v744
      %v746 = vpop.f32.mrf.mxu0
      %v747 = vadd.f32 0.0, %v746
      %748 = vmatmul.bf16.gmra.mxu0 %v632
      %v749 = vpop.f32.mrf.mxu0
      %v750 = vadd.f32 0.0, %v749
      %v751 = vpop.f32.mrf.mxu0
      %v752 = vadd.f32 0.0, %v751
      %753 = vmatmul.bf16.gmra.mxu0 %v635
      %v754 = vpop.f32.mrf.mxu0
      %v755 = vadd.f32 0.0, %v754
      %v756 = vpop.f32.mrf.mxu0
      %v757 = vadd.f32 0.0, %v756
      %758 = vmatmul.bf16.gmra.mxu0 %v638
      %v759 = vpop.f32.mrf.mxu0
      %v760 = vadd.f32 0.0, %v759
      %v761 = vpop.f32.mrf.mxu0
      %v762 = vadd.f32 0.0, %v761
      %763 = vmatmul.bf16.gmra.mxu0 %v641
      %v764 = vpop.f32.mrf.mxu0
      %v765 = vadd.f32 0.0, %v764
      %v766 = vpop.f32.mrf.mxu0
      %v767 = vadd.f32 0.0, %v766
      %768 = vmatmul.bf16.gmra.mxu0 %v644
      %v769 = vpop.f32.mrf.mxu0
      %v770 = vadd.f32 0.0, %v769
      %v771 = vpop.f32.mrf.mxu0
      %v772 = vadd.f32 0.0, %v771
      %773 = vmatmul.bf16.gmra.mxu0 %v647
      %v774 = vpop.f32.mrf.mxu0
      %v775 = vadd.f32 0.0, %v774
      %v776 = vpop.f32.mrf.mxu0
      %v777 = vadd.f32 0.0, %v776
      %778 = vmatmul.bf16.gmra.mxu0 %v650
      %v779 = vpop.f32.mrf.mxu0
      %v780 = vadd.f32 0.0, %v779
      %v781 = vpop.f32.mrf.mxu0
      %v782 = vadd.f32 0.0, %v781
      %783 = vmatmul.bf16.gmra.mxu0 %v653
      %v784 = vpop.f32.mrf.mxu0
      %v785 = vadd.f32 0.0, %v784
      %v786 = vpop.f32.mrf.mxu0
      %v787 = vadd.f32 0.0, %v786
      %788 = vmatmul.bf16.gmra.mxu0 %v656
      %v789 = vpop.f32.mrf.mxu0
      %v790 = vadd.f32 0.0, %v789
      %v791 = vpop.f32.mrf.mxu0
      %v792 = vadd.f32 0.0, %v791
      %793 = vmatmul.bf16.gmra.mxu0 %v659
      %v794 = vpop.f32.mrf.mxu0
      %v795 = vadd.f32 0.0, %v794
      %v796 = vpop.f32.mrf.mxu0
      %v797 = vadd.f32 0.0, %v796
      %798 = vmatmul.bf16.gmra.mxu0 %v662
      %v799 = vpop.f32.mrf.mxu0
      %v800 = vadd.f32 0.0, %v799
      %v801 = vpop.f32.mrf.mxu0
      %v802 = vadd.f32 0.0, %v801
      %803 = vmatmul.bf16.gmra.mxu0 %v665
      %v804 = vpop.f32.mrf.mxu0
      %v805 = vadd.f32 0.0, %v804
      %v806 = vpop.f32.mrf.mxu0
      %v807 = vadd.f32 0.0, %v806
      %808 = vmatmul.bf16.gmra.mxu0 %v668
      %v809 = vpop.f32.mrf.mxu0
      %v810 = vadd.f32 0.0, %v809
      %v811 = vpop.f32.mrf.mxu0
      %v812 = vadd.f32 0.0, %v811
      %813 = vmatmul.bf16.gmra.mxu0 %v671
      %v814 = vpop.f32.mrf.mxu0
      %v815 = vadd.f32 0.0, %v814
      %v816 = vpop.f32.mrf.mxu0
      %v817 = vadd.f32 0.0, %v816
      %818 = vmatmul.bf16.gmra.mxu0 %v674
      %v819 = vpop.f32.mrf.mxu0
      %v820 = vadd.f32 0.0, %v819
      %v821 = vpop.f32.mrf.mxu0
      %v822 = vadd.f32 0.0, %v821
      %823 = vmatmul.bf16.gmra.mxu0 %v677
      %v824 = vpop.f32.mrf.mxu0
      %v825 = vadd.f32 0.0, %v824
      %v826 = vpop.f32.mrf.mxu0
      %v827 = vadd.f32 0.0, %v826
      %828 = vmatmul.bf16.gmra.mxu0 %v680
      %v829 = vpop.f32.mrf.mxu0
      %v830 = vadd.f32 0.0, %v829
      %v831 = vpop.f32.mrf.mxu0
      %v832 = vadd.f32 0.0, %v831
      %833 = vmatmul.bf16.gmra.mxu0 %v683
      %v834 = vpop.f32.mrf.mxu0
      %v835 = vadd.f32 0.0, %v834
      %v836 = vpop.f32.mrf.mxu0
      %v837 = vadd.f32 0.0, %v836
      %838 = vmatmul.bf16.gmra.mxu0 %v686
      %v839 = vpop.f32.mrf.mxu0
      %v840 = vadd.f32 0.0, %v839
      %v841 = vpop.f32.mrf.mxu0
      %v842 = vadd.f32 0.0, %v841
      %843 = vmatmul.bf16.gmra.mxu0 %v689
      %v844 = vpop.f32.mrf.mxu0
      %v845 = vadd.f32 0.0, %v844
      %v846 = vpop.f32.mrf.mxu0
      %v847 = vadd.f32 0.0, %v846
      %848 = vmatmul.bf16.gmra.mxu0 %v692
      %v849 = vpop.f32.mrf.mxu0
      %v850 = vadd.f32 0.0, %v849
      %v851 = vpop.f32.mrf.mxu0
      %v852 = vadd.f32 0.0, %v851
      %853 = vmatmul.bf16.gmra.mxu0 %v695
      %v854 = vpop.f32.mrf.mxu0
      %v855 = vadd.f32 0.0, %v854
      %v856 = vpop.f32.mrf.mxu0
      %v857 = vadd.f32 0.0, %v856
      %858 = vmatmul.bf16.gmra.mxu0 %v698
      %v859 = vpop.f32.mrf.mxu0
      %v860 = vadd.f32 0.0, %v859
      %v861 = vpop.f32.mrf.mxu0
      %v862 = vadd.f32 0.0, %v861
      %863 = vmatmul.bf16.gmra.mxu0 %v701
      %v864 = vpop.f32.mrf.mxu0
      %v865 = vadd.f32 0.0, %v864
      %v866 = vpop.f32.mrf.mxu0
      %v867 = vadd.f32 0.0, %v866
      %868 = vmatmul.bf16.gmra.mxu0 %v704
      %v869 = vpop.f32.mrf.mxu0
      %v870 = vadd.f32 0.0, %v869
      %v871 = vpop.f32.mrf.mxu0
      %v872 = vadd.f32 0.0, %v871
      %873 = vmatmul.bf16.gmra.mxu0 %v707
      %v874 = vpop.f32.mrf.mxu0
      %v875 = vadd.f32 0.0, %v874
      %v876 = vpop.f32.mrf.mxu0
      %v877 = vadd.f32 0.0, %v876
      %878 = vmatmul.bf16.gmra.mxu0 %v710
      %v879 = vpop.f32.mrf.mxu0
      %v880 = vadd.f32 0.0, %v879
      %v881 = vpop.f32.mrf.mxu0
      %v882 = vadd.f32 0.0, %v881
      %883 = vmatmul.bf16.gmra.mxu0 %v713
      %v884 = vpop.f32.mrf.mxu0
      %v885 = vadd.f32 0.0, %v884
      %v886 = vpop.f32.mrf.mxu0
      %v887 = vadd.f32 0.0, %v886
      %888 = vmatmul.bf16.gmra.mxu0 %v716
      %v889 = vpop.f32.mrf.mxu0
      %v890 = vadd.f32 0.0, %v889
      %v891 = vpop.f32.mrf.mxu0
      %v892 = vadd.f32 0.0, %v891
      %893 = vdwg.mxu0
      %894 = vmatpush.bf16.msra.mxu0 0
      %895 = vmatpush.bf16.msra.mxu0 0
      %896 = vmatpush.bf16.msra.mxu0 0
      %897 = vmatpush.bf16.msra.mxu0 0
      %898 = vmatpush.bf16.msra.mxu0 0
      %899 = vmatpush.bf16.msra.mxu0 0
      %900 = vmatpush.bf16.msra.mxu0 0
      %901 = vmatpush.bf16.msra.mxu0 %v723
      %902 = vmatmul.bf16.gmra.mxu0 %v623
      %v903 = vpop.f32.mrf.mxu0
      %v904 = vadd.f32 0.0, %v903
      %v905 = vpop.f32.mrf.mxu0
      %v906 = vadd.f32 0.0, %v905
      %907 = vmatmul.bf16.gmra.mxu0 %v626
      %v908 = vpop.f32.mrf.mxu0
      %v909 = vadd.f32 0.0, %v908
      %v910 = vpop.f32.mrf.mxu0
      %v911 = vadd.f32 0.0, %v910
      %912 = vmatmul.bf16.gmra.mxu0 %v629
      %v913 = vpop.f32.mrf.mxu0
      %v914 = vadd.f32 0.0, %v913
      %v915 = vpop.f32.mrf.mxu0
      %v916 = vadd.f32 0.0, %v915
      %917 = vmatmul.bf16.gmra.mxu0 %v632
      %v918 = vpop.f32.mrf.mxu0
      %v919 = vadd.f32 0.0, %v918
      %v920 = vpop.f32.mrf.mxu0
      %v921 = vadd.f32 0.0, %v920
      %922 = vmatmul.bf16.gmra.mxu0 %v635
      %v923 = vpop.f32.mrf.mxu0
      %v924 = vadd.f32 0.0, %v923
      %v925 = vpop.f32.mrf.mxu0
      %v926 = vadd.f32 0.0, %v925
      %927 = vmatmul.bf16.gmra.mxu0 %v638
      %v928 = vpop.f32.mrf.mxu0
      %v929 = vadd.f32 0.0, %v928
      %v930 = vpop.f32.mrf.mxu0
      %v931 = vadd.f32 0.0, %v930
      %932 = vmatmul.bf16.gmra.mxu0 %v641
      %v933 = vpop.f32.mrf.mxu0
      %v934 = vadd.f32 0.0, %v933
      %v935 = vpop.f32.mrf.mxu0
      %v936 = vadd.f32 0.0, %v935
      %937 = vmatmul.bf16.gmra.mxu0 %v644
      %v938 = vpop.f32.mrf.mxu0
      %v939 = vadd.f32 0.0, %v938
      %v940 = vpop.f32.mrf.mxu0
      %v941 = vadd.f32 0.0, %v940
      %942 = vmatmul.bf16.gmra.mxu0 %v647
      %v943 = vpop.f32.mrf.mxu0
      %v944 = vadd.f32 0.0, %v943
      %v945 = vpop.f32.mrf.mxu0
      %v946 = vadd.f32 0.0, %v945
      %947 = vmatmul.bf16.gmra.mxu0 %v650
      %v948 = vpop.f32.mrf.mxu0
      %v949 = vadd.f32 0.0, %v948
      %v950 = vpop.f32.mrf.mxu0
      %v951 = vadd.f32 0.0, %v950
      %952 = vmatmul.bf16.gmra.mxu0 %v653
      %v953 = vpop.f32.mrf.mxu0
      %v954 = vadd.f32 0.0, %v953
      %v955 = vpop.f32.mrf.mxu0
      %v956 = vadd.f32 0.0, %v955
      %957 = vmatmul.bf16.gmra.mxu0 %v656
      %v958 = vpop.f32.mrf.mxu0
      %v959 = vadd.f32 0.0, %v958
      %v960 = vpop.f32.mrf.mxu0
      %v961 = vadd.f32 0.0, %v960
      %962 = vmatmul.bf16.gmra.mxu0 %v659
      %v963 = vpop.f32.mrf.mxu0
      %v964 = vadd.f32 0.0, %v963
      %v965 = vpop.f32.mrf.mxu0
      %v966 = vadd.f32 0.0, %v965
      %967 = vmatmul.bf16.gmra.mxu0 %v662
      %v968 = vpop.f32.mrf.mxu0
      %v969 = vadd.f32 0.0, %v968
      %v970 = vpop.f32.mrf.mxu0
      %v971 = vadd.f32 0.0, %v970
      %972 = vmatmul.bf16.gmra.mxu0 %v665
      %v973 = vpop.f32.mrf.mxu0
      %v974 = vadd.f32 0.0, %v973
      %v975 = vpop.f32.mrf.mxu0
      %v976 = vadd.f32 0.0, %v975
      %977 = vmatmul.bf16.gmra.mxu0 %v668
      %v978 = vpop.f32.mrf.mxu0
      %v979 = vadd.f32 0.0, %v978
      %v980 = vpop.f32.mrf.mxu0
      %v981 = vadd.f32 0.0, %v980
      %982 = vmatmul.bf16.gmra.mxu0 %v671
      %v983 = vpop.f32.mrf.mxu0
      %v984 = vadd.f32 0.0, %v983
      %v985 = vpop.f32.mrf.mxu0
      %v986 = vadd.f32 0.0, %v985
      %987 = vmatmul.bf16.gmra.mxu0 %v674
      %v988 = vpop.f32.mrf.mxu0
      %v989 = vadd.f32 0.0, %v988
      %v990 = vpop.f32.mrf.mxu0
      %v991 = vadd.f32 0.0, %v990
      %992 = vmatmul.bf16.gmra.mxu0 %v677
      %v993 = vpop.f32.mrf.mxu0
      %v994 = vadd.f32 0.0, %v993
      %v995 = vpop.f32.mrf.mxu0
      %v996 = vadd.f32 0.0, %v995
      %997 = vmatmul.bf16.gmra.mxu0 %v680
      %v998 = vpop.f32.mrf.mxu0
      %v999 = vadd.f32 0.0, %v998
      %v1000 = vpop.f32.mrf.mxu0
      %v1001 = vadd.f32 0.0, %v1000
      %1002 = vmatmul.bf16.gmra.mxu0 %v683
      %v1003 = vpop.f32.mrf.mxu0
      %v1004 = vadd.f32 0.0, %v1003
      %v1005 = vpop.f32.mrf.mxu0
      %v1006 = vadd.f32 0.0, %v1005
      %1007 = vmatmul.bf16.gmra.mxu0 %v686
      %v1008 = vpop.f32.mrf.mxu0
      %v1009 = vadd.f32 0.0, %v1008
      %v1010 = vpop.f32.mrf.mxu0
      %v1011 = vadd.f32 0.0, %v1010
      %1012 = vmatmul.bf16.gmra.mxu0 %v689
      %v1013 = vpop.f32.mrf.mxu0
      %v1014 = vadd.f32 0.0, %v1013
      %v1015 = vpop.f32.mrf.mxu0
      %v1016 = vadd.f32 0.0, %v1015
      %1017 = vmatmul.bf16.gmra.mxu0 %v692
      %v1018 = vpop.f32.mrf.mxu0
      %v1019 = vadd.f32 0.0, %v1018
      %v1020 = vpop.f32.mrf.mxu0
      %v1021 = vadd.f32 0.0, %v1020
      %1022 = vmatmul.bf16.gmra.mxu0 %v695
      %v1023 = vpop.f32.mrf.mxu0
      %v1024 = vadd.f32 0.0, %v1023
      %v1025 = vpop.f32.mrf.mxu0
      %v1026 = vadd.f32 0.0, %v1025
      %1027 = vmatmul.bf16.gmra.mxu0 %v698
      %v1028 = vpop.f32.mrf.mxu0
      %v1029 = vadd.f32 0.0, %v1028
      %v1030 = vpop.f32.mrf.mxu0
      %v1031 = vadd.f32 0.0, %v1030
      %1032 = vmatmul.bf16.gmra.mxu0 %v701
      %v1033 = vpop.f32.mrf.mxu0
      %v1034 = vadd.f32 0.0, %v1033
      %v1035 = vpop.f32.mrf.mxu0
      %v1036 = vadd.f32 0.0, %v1035
      %1037 = vmatmul.bf16.gmra.mxu0 %v704
      %v1038 = vpop.f32.mrf.mxu0
      %v1039 = vadd.f32 0.0, %v1038
      %v1040 = vpop.f32.mrf.mxu0
      %v1041 = vadd.f32 0.0, %v1040
      %1042 = vmatmul.bf16.gmra.mxu0 %v707
      %v1043 = vpop.f32.mrf.mxu0
      %v1044 = vadd.f32 0.0, %v1043
      %v1045 = vpop.f32.mrf.mxu0
      %v1046 = vadd.f32 0.0, %v1045
      %1047 = vmatmul.bf16.gmra.mxu0 %v710
      %v1048 = vpop.f32.mrf.mxu0
      %v1049 = vadd.f32 0.0, %v1048
      %v1050 = vpop.f32.mrf.mxu0
      %v1051 = vadd.f32 0.0, %v1050
      %1052 = vmatmul.bf16.gmra.mxu0 %v713
      %v1053 = vpop.f32.mrf.mxu0
      %v1054 = vadd.f32 0.0, %v1053
      %v1055 = vpop.f32.mrf.mxu0
      %v1056 = vadd.f32 0.0, %v1055
      %1057 = vmatmul.bf16.gmra.mxu0 %v716
      %v1058 = vpop.f32.mrf.mxu0
      %v1059 = vadd.f32 0.0, %v1058
      %v1060 = vpop.f32.mrf.mxu0
      %v1061 = vadd.f32 0.0, %v1060
      %1062 = vdwg.mxu0
      %v1063 = vpack.c.bf16 %v904, %v735
      %v1064 = vpack.c.bf16 %v906, %v737
      %v1065 = vpack.c.bf16 %v909, %v740
      %v1066 = vpack.c.bf16 %v911, %v742
      %v1067 = vpack.c.bf16 %v914, %v745
      %v1068 = vpack.c.bf16 %v916, %v747
      %v1069 = vpack.c.bf16 %v919, %v750
      %v1070 = vpack.c.bf16 %v921, %v752
      %v1071 = vpack.c.bf16 %v924, %v755
      %v1072 = vpack.c.bf16 %v926, %v757
      %v1073 = vpack.c.bf16 %v929, %v760
      %v1074 = vpack.c.bf16 %v931, %v762
      %v1075 = vpack.c.bf16 %v934, %v765
      %v1076 = vpack.c.bf16 %v936, %v767
      %v1077 = vpack.c.bf16 %v939, %v770
      %v1078 = vpack.c.bf16 %v941, %v772
      %v1079 = vpack.c.bf16 %v944, %v775
      %v1080 = vpack.c.bf16 %v946, %v777
      %v1081 = vpack.c.bf16 %v949, %v780
      %v1082 = vpack.c.bf16 %v951, %v782
      %v1083 = vpack.c.bf16 %v954, %v785
      %v1084 = vpack.c.bf16 %v956, %v787
      %v1085 = vpack.c.bf16 %v959, %v790
      %v1086 = vpack.c.bf16 %v961, %v792
      %v1087 = vpack.c.bf16 %v964, %v795
      %v1088 = vpack.c.bf16 %v966, %v797
      %v1089 = vpack.c.bf16 %v969, %v800
      %v1090 = vpack.c.bf16 %v971, %v802
      %v1091 = vpack.c.bf16 %v974, %v805
      %v1092 = vpack.c.bf16 %v976, %v807
      %v1093 = vpack.c.bf16 %v979, %v810
      %v1094 = vpack.c.bf16 %v981, %v812
      %v1095 = vpack.c.bf16 %v984, %v815
      %v1096 = vpack.c.bf16 %v986, %v817
      %v1097 = vpack.c.bf16 %v989, %v820
      %v1098 = vpack.c.bf16 %v991, %v822
      %v1099 = vpack.c.bf16 %v994, %v825
      %v1100 = vpack.c.bf16 %v996, %v827
      %v1101 = vpack.c.bf16 %v999, %v830
      %v1102 = vpack.c.bf16 %v1001, %v832
      %v1103 = vpack.c.bf16 %v1004, %v835
      %v1104 = vpack.c.bf16 %v1006, %v837
      %v1105 = vpack.c.bf16 %v1009, %v840
      %v1106 = vpack.c.bf16 %v1011, %v842
      %v1107 = vpack.c.bf16 %v1014, %v845
      %v1108 = vpack.c.bf16 %v1016, %v847
      %v1109 = vpack.c.bf16 %v1019, %v850
      %v1110 = vpack.c.bf16 %v1021, %v852
      %v1111 = vpack.c.bf16 %v1024, %v855
      %v1112 = vpack.c.bf16 %v1026, %v857
      %v1113 = vpack.c.bf16 %v1029, %v860
      %v1114 = vpack.c.bf16 %v1031, %v862
      %v1115 = vpack.c.bf16 %v1034, %v865
      %v1116 = vpack.c.bf16 %v1036, %v867
      %v1117 = vpack.c.bf16 %v1039, %v870
      %v1118 = vpack.c.bf16 %v1041, %v872
      %v1119 = vpack.c.bf16 %v1044, %v875
      %v1120 = vpack.c.bf16 %v1046, %v877
      %v1121 = vpack.c.bf16 %v1049, %v880
      %v1122 = vpack.c.bf16 %v1051, %v882
      %v1123 = vpack.c.bf16 %v1054, %v885
      %v1124 = vpack.c.bf16 %v1056, %v887
      %v1125 = vpack.c.bf16 %v1059, %v890
      %v1126 = vpack.c.bf16 %v1061, %v892
      %v1127 = vld [vmem:[%s2] sm:$0x3]
      %1129 = vst [vmem:[#allocation1] ss:$9 sm:$0xff] %v1127
      %v1130 = vld [vmem:[#allocation1] sm:$0xff]
      %v1131 = vld [vmem:[#allocation1 + $0x9] sm:$0xff]
      %v1132 = vpack.i.b16 %v1130, %v1130
      %v1134 = vperm.slane %v1132, 0
      %v1135 = vpack.i.b16 %v1131, %v1131
      %v1137 = vperm.slane %v1135, 0
      %v1138 = vunpack.c.l.bf16 %v1063
      %v1139 = vunpack.c.h.bf16 %v1063
      %v1140 = vunpack.c.l.bf16 %v1064
      %v1141 = vunpack.c.h.bf16 %v1064
      %v1142 = vunpack.c.l.bf16 %v1065
      %v1143 = vunpack.c.h.bf16 %v1065
      %v1144 = vunpack.c.l.bf16 %v1066
      %v1145 = vunpack.c.h.bf16 %v1066
      %v1146 = vunpack.c.l.bf16 %v1067
      %v1147 = vunpack.c.h.bf16 %v1067
      %v1148 = vunpack.c.l.bf16 %v1068
      %v1149 = vunpack.c.h.bf16 %v1068
      %v1150 = vunpack.c.l.bf16 %v1069
      %v1151 = vunpack.c.h.bf16 %v1069
      %v1152 = vunpack.c.l.bf16 %v1070
      %v1153 = vunpack.c.h.bf16 %v1070
      %v1154 = vunpack.c.l.bf16 %v1071
      %v1155 = vunpack.c.h.bf16 %v1071
      %v1156 = vunpack.c.l.bf16 %v1072
      %v1157 = vunpack.c.h.bf16 %v1072
      %v1158 = vunpack.c.l.bf16 %v1073
      %v1159 = vunpack.c.h.bf16 %v1073
      %v1160 = vunpack.c.l.bf16 %v1074
      %v1161 = vunpack.c.h.bf16 %v1074
      %v1162 = vunpack.c.l.bf16 %v1075
      %v1163 = vunpack.c.h.bf16 %v1075
      %v1164 = vunpack.c.l.bf16 %v1076
      %v1165 = vunpack.c.h.bf16 %v1076
      %v1166 = vunpack.c.l.bf16 %v1077
      %v1167 = vunpack.c.h.bf16 %v1077
      %v1168 = vunpack.c.l.bf16 %v1078
      %v1169 = vunpack.c.h.bf16 %v1078
      %v1170 = vunpack.c.l.bf16 %v1079
      %v1171 = vunpack.c.h.bf16 %v1079
      %v1172 = vunpack.c.l.bf16 %v1080
      %v1173 = vunpack.c.h.bf16 %v1080
      %v1174 = vunpack.c.l.bf16 %v1081
      %v1175 = vunpack.c.h.bf16 %v1081
      %v1176 = vunpack.c.l.bf16 %v1082
      %v1177 = vunpack.c.h.bf16 %v1082
      %v1178 = vunpack.c.l.bf16 %v1083
      %v1179 = vunpack.c.h.bf16 %v1083
      %v1180 = vunpack.c.l.bf16 %v1084
      %v1181 = vunpack.c.h.bf16 %v1084
      %v1182 = vunpack.c.l.bf16 %v1085
      %v1183 = vunpack.c.h.bf16 %v1085
      %v1184 = vunpack.c.l.bf16 %v1086
      %v1185 = vunpack.c.h.bf16 %v1086
      %v1186 = vunpack.c.l.bf16 %v1087
      %v1187 = vunpack.c.h.bf16 %v1087
      %v1188 = vunpack.c.l.bf16 %v1088
      %v1189 = vunpack.c.h.bf16 %v1088
      %v1190 = vunpack.c.l.bf16 %v1089
      %v1191 = vunpack.c.h.bf16 %v1089
      %v1192 = vunpack.c.l.bf16 %v1090
      %v1193 = vunpack.c.h.bf16 %v1090
      %v1194 = vunpack.c.l.bf16 %v1091
      %v1195 = vunpack.c.h.bf16 %v1091
      %v1196 = vunpack.c.l.bf16 %v1092
      %v1197 = vunpack.c.h.bf16 %v1092
      %v1198 = vunpack.c.l.bf16 %v1093
      %v1199 = vunpack.c.h.bf16 %v1093
      %v1200 = vunpack.c.l.bf16 %v1094
      %v1201 = vunpack.c.h.bf16 %v1094
      %v1202 = vunpack.c.l.bf16 %v1095
      %v1203 = vunpack.c.h.bf16 %v1095
      %v1204 = vunpack.c.l.bf16 %v1096
      %v1205 = vunpack.c.h.bf16 %v1096
      %v1206 = vunpack.c.l.bf16 %v1097
      %v1207 = vunpack.c.h.bf16 %v1097
      %v1208 = vunpack.c.l.bf16 %v1098
      %v1209 = vunpack.c.h.bf16 %v1098
      %v1210 = vunpack.c.l.bf16 %v1099
      %v1211 = vunpack.c.h.bf16 %v1099
      %v1212 = vunpack.c.l.bf16 %v1100
      %v1213 = vunpack.c.h.bf16 %v1100
      %v1214 = vunpack.c.l.bf16 %v1101
      %v1215 = vunpack.c.h.bf16 %v1101
      %v1216 = vunpack.c.l.bf16 %v1102
      %v1217 = vunpack.c.h.bf16 %v1102
      %v1218 = vunpack.c.l.bf16 %v1103
      %v1219 = vunpack.c.h.bf16 %v1103
      %v1220 = vunpack.c.l.bf16 %v1104
      %v1221 = vunpack.c.h.bf16 %v1104
      %v1222 = vunpack.c.l.bf16 %v1105
      %v1223 = vunpack.c.h.bf16 %v1105
      %v1224 = vunpack.c.l.bf16 %v1106
      %v1225 = vunpack.c.h.bf16 %v1106
      %v1226 = vunpack.c.l.bf16 %v1107
      %v1227 = vunpack.c.h.bf16 %v1107
      %v1228 = vunpack.c.l.bf16 %v1108
      %v1229 = vunpack.c.h.bf16 %v1108
      %v1230 = vunpack.c.l.bf16 %v1109
      %v1231 = vunpack.c.h.bf16 %v1109
      %v1232 = vunpack.c.l.bf16 %v1110
      %v1233 = vunpack.c.h.bf16 %v1110
      %v1234 = vunpack.c.l.bf16 %v1111
      %v1235 = vunpack.c.h.bf16 %v1111
      %v1236 = vunpack.c.l.bf16 %v1112
      %v1237 = vunpack.c.h.bf16 %v1112
      %v1238 = vunpack.c.l.bf16 %v1113
      %v1239 = vunpack.c.h.bf16 %v1113
      %v1240 = vunpack.c.l.bf16 %v1114
      %v1241 = vunpack.c.h.bf16 %v1114
      %v1242 = vunpack.c.l.bf16 %v1115
      %v1243 = vunpack.c.h.bf16 %v1115
      %v1244 = vunpack.c.l.bf16 %v1116
      %v1245 = vunpack.c.h.bf16 %v1116
      %v1246 = vunpack.c.l.bf16 %v1117
      %v1247 = vunpack.c.h.bf16 %v1117
      %v1248 = vunpack.c.l.bf16 %v1118
      %v1249 = vunpack.c.h.bf16 %v1118
      %v1250 = vunpack.c.l.bf16 %v1119
      %v1251 = vunpack.c.h.bf16 %v1119
      %v1252 = vunpack.c.l.bf16 %v1120
      %v1253 = vunpack.c.h.bf16 %v1120
      %v1254 = vunpack.c.l.bf16 %v1121
      %v1255 = vunpack.c.h.bf16 %v1121
      %v1256 = vunpack.c.l.bf16 %v1122
      %v1257 = vunpack.c.h.bf16 %v1122
      %v1258 = vunpack.c.l.bf16 %v1123
      %v1259 = vunpack.c.h.bf16 %v1123
      %v1260 = vunpack.c.l.bf16 %v1124
      %v1261 = vunpack.c.h.bf16 %v1124
      %v1262 = vunpack.c.l.bf16 %v1125
      %v1263 = vunpack.c.h.bf16 %v1125
      %v1264 = vunpack.c.l.bf16 %v1126
      %v1265 = vunpack.c.h.bf16 %v1126
      %v1266 = vunpack.c.l.bf16 %v1134
      %v1267 = vunpack.c.l.bf16 %v1137
      %v1268 = vadd.f32 %v1138, %v1266
      %v1269 = vadd.f32 %v1139, %v1267
      %v1270 = vadd.f32 %v1140, %v1266
      %v1271 = vadd.f32 %v1141, %v1267
      %v1272 = vadd.f32 %v1142, %v1266
      %v1273 = vadd.f32 %v1143, %v1267
      %v1274 = vadd.f32 %v1144, %v1266
      %v1275 = vadd.f32 %v1145, %v1267
      %v1276 = vadd.f32 %v1146, %v1266
      %v1277 = vadd.f32 %v1147, %v1267
      %v1278 = vadd.f32 %v1148, %v1266
      %v1279 = vadd.f32 %v1149, %v1267
      %v1280 = vadd.f32 %v1150, %v1266
      %v1281 = vadd.f32 %v1151, %v1267
      %v1282 = vadd.f32 %v1152, %v1266
      %v1283 = vadd.f32 %v1153, %v1267
      %v1284 = vadd.f32 %v1154, %v1266
      %v1285 = vadd.f32 %v1155, %v1267
      %v1286 = vadd.f32 %v1156, %v1266
      %v1287 = vadd.f32 %v1157, %v1267
      %v1288 = vadd.f32 %v1158, %v1266
      %v1289 = vadd.f32 %v1159, %v1267
      %v1290 = vadd.f32 %v1160, %v1266
      %v1291 = vadd.f32 %v1161, %v1267
      %v1292 = vadd.f32 %v1162, %v1266
      %v1293 = vadd.f32 %v1163, %v1267
      %v1294 = vadd.f32 %v1164, %v1266
      %v1295 = vadd.f32 %v1165, %v1267
      %v1296 = vadd.f32 %v1166, %v1266
      %v1297 = vadd.f32 %v1167, %v1267
      %v1298 = vadd.f32 %v1168, %v1266
      %v1299 = vadd.f32 %v1169, %v1267
      %v1300 = vadd.f32 %v1170, %v1266
      %v1301 = vadd.f32 %v1171, %v1267
      %v1302 = vadd.f32 %v1172, %v1266
      %v1303 = vadd.f32 %v1173, %v1267
      %v1304 = vadd.f32 %v1174, %v1266
      %v1305 = vadd.f32 %v1175, %v1267
      %v1306 = vadd.f32 %v1176, %v1266
      %v1307 = vadd.f32 %v1177, %v1267
      %v1308 = vadd.f32 %v1178, %v1266
      %v1309 = vadd.f32 %v1179, %v1267
      %v1310 = vadd.f32 %v1180, %v1266
      %v1311 = vadd.f32 %v1181, %v1267
      %v1312 = vadd.f32 %v1182, %v1266
      %v1313 = vadd.f32 %v1183, %v1267
      %v1314 = vadd.f32 %v1184, %v1266
      %v1315 = vadd.f32 %v1185, %v1267
      %v1316 = vadd.f32 %v1186, %v1266
      %v1317 = vadd.f32 %v1187, %v1267
      %v1318 = vadd.f32 %v1188, %v1266
      %v1319 = vadd.f32 %v1189, %v1267
      %v1320 = vadd.f32 %v1190, %v1266
      %v1321 = vadd.f32 %v1191, %v1267
      %v1322 = vadd.f32 %v1192, %v1266
      %v1323 = vadd.f32 %v1193, %v1267
      %v1324 = vadd.f32 %v1194, %v1266
      %v1325 = vadd.f32 %v1195, %v1267
      %v1326 = vadd.f32 %v1196, %v1266
      %v1327 = vadd.f32 %v1197, %v1267
      %v1328 = vadd.f32 %v1198, %v1266
      %v1329 = vadd.f32 %v1199, %v1267
      %v1330 = vadd.f32 %v1200, %v1266
      %v1331 = vadd.f32 %v1201, %v1267
      %v1332 = vadd.f32 %v1202, %v1266
      %v1333 = vadd.f32 %v1203, %v1267
      %v1334 = vadd.f32 %v1204, %v1266
      %v1335 = vadd.f32 %v1205, %v1267
      %v1336 = vadd.f32 %v1206, %v1266
      %v1337 = vadd.f32 %v1207, %v1267
      %v1338 = vadd.f32 %v1208, %v1266
      %v1339 = vadd.f32 %v1209, %v1267
      %v1340 = vadd.f32 %v1210, %v1266
      %v1341 = vadd.f32 %v1211, %v1267
      %v1342 = vadd.f32 %v1212, %v1266
      %v1343 = vadd.f32 %v1213, %v1267
      %v1344 = vadd.f32 %v1214, %v1266
      %v1345 = vadd.f32 %v1215, %v1267
      %v1346 = vadd.f32 %v1216, %v1266
      %v1347 = vadd.f32 %v1217, %v1267
      %v1348 = vadd.f32 %v1218, %v1266
      %v1349 = vadd.f32 %v1219, %v1267
      %v1350 = vadd.f32 %v1220, %v1266
      %v1351 = vadd.f32 %v1221, %v1267
      %v1352 = vadd.f32 %v1222, %v1266
      %v1353 = vadd.f32 %v1223, %v1267
      %v1354 = vadd.f32 %v1224, %v1266
      %v1355 = vadd.f32 %v1225, %v1267
      %v1356 = vadd.f32 %v1226, %v1266
      %v1357 = vadd.f32 %v1227, %v1267
      %v1358 = vadd.f32 %v1228, %v1266
      %v1359 = vadd.f32 %v1229, %v1267
      %v1360 = vadd.f32 %v1230, %v1266
      %v1361 = vadd.f32 %v1231, %v1267
      %v1362 = vadd.f32 %v1232, %v1266
      %v1363 = vadd.f32 %v1233, %v1267
      %v1364 = vadd.f32 %v1234, %v1266
      %v1365 = vadd.f32 %v1235, %v1267
      %v1366 = vadd.f32 %v1236, %v1266
      %v1367 = vadd.f32 %v1237, %v1267
      %v1368 = vadd.f32 %v1238, %v1266
      %v1369 = vadd.f32 %v1239, %v1267
      %v1370 = vadd.f32 %v1240, %v1266
      %v1371 = vadd.f32 %v1241, %v1267
      %v1372 = vadd.f32 %v1242, %v1266
      %v1373 = vadd.f32 %v1243, %v1267
      %v1374 = vadd.f32 %v1244, %v1266
      %v1375 = vadd.f32 %v1245, %v1267
      %v1376 = vadd.f32 %v1246, %v1266
      %v1377 = vadd.f32 %v1247, %v1267
      %v1378 = vadd.f32 %v1248, %v1266
      %v1379 = vadd.f32 %v1249, %v1267
      %v1380 = vadd.f32 %v1250, %v1266
      %v1381 = vadd.f32 %v1251, %v1267
      %v1382 = vadd.f32 %v1252, %v1266
      %v1383 = vadd.f32 %v1253, %v1267
      %v1384 = vadd.f32 %v1254, %v1266
      %v1385 = vadd.f32 %v1255, %v1267
      %v1386 = vadd.f32 %v1256, %v1266
      %v1387 = vadd.f32 %v1257, %v1267
      %v1388 = vadd.f32 %v1258, %v1266
      %v1389 = vadd.f32 %v1259, %v1267
      %v1390 = vadd.f32 %v1260, %v1266
      %v1391 = vadd.f32 %v1261, %v1267
      %v1392 = vadd.f32 %v1262, %v1266
      %v1393 = vadd.f32 %v1263, %v1267
      %v1394 = vadd.f32 %v1264, %v1266
      %v1395 = vadd.f32 %v1265, %v1267
      %v1396 = vpack.c.bf16 %v1269, %v1268
      %v1397 = vpack.c.bf16 %v1271, %v1270
      %v1398 = vpack.c.bf16 %v1273, %v1272
      %v1399 = vpack.c.bf16 %v1275, %v1274
      %v1400 = vpack.c.bf16 %v1277, %v1276
      %v1401 = vpack.c.bf16 %v1279, %v1278
      %v1402 = vpack.c.bf16 %v1281, %v1280
      %v1403 = vpack.c.bf16 %v1283, %v1282
      %v1404 = vpack.c.bf16 %v1285, %v1284
      %v1405 = vpack.c.bf16 %v1287, %v1286
      %v1406 = vpack.c.bf16 %v1289, %v1288
      %v1407 = vpack.c.bf16 %v1291, %v1290
      %v1408 = vpack.c.bf16 %v1293, %v1292
      %v1409 = vpack.c.bf16 %v1295, %v1294
      %v1410 = vpack.c.bf16 %v1297, %v1296
      %v1411 = vpack.c.bf16 %v1299, %v1298
      %v1412 = vpack.c.bf16 %v1301, %v1300
      %v1413 = vpack.c.bf16 %v1303, %v1302
      %v1414 = vpack.c.bf16 %v1305, %v1304
      %v1415 = vpack.c.bf16 %v1307, %v1306
      %v1416 = vpack.c.bf16 %v1309, %v1308
      %v1417 = vpack.c.bf16 %v1311, %v1310
      %v1418 = vpack.c.bf16 %v1313, %v1312
      %v1419 = vpack.c.bf16 %v1315, %v1314
      %v1420 = vpack.c.bf16 %v1317, %v1316
      %v1421 = vpack.c.bf16 %v1319, %v1318
      %v1422 = vpack.c.bf16 %v1321, %v1320
      %v1423 = vpack.c.bf16 %v1323, %v1322
      %v1424 = vpack.c.bf16 %v1325, %v1324
      %v1425 = vpack.c.bf16 %v1327, %v1326
      %v1426 = vpack.c.bf16 %v1329, %v1328
      %v1427 = vpack.c.bf16 %v1331, %v1330
      %v1428 = vpack.c.bf16 %v1333, %v1332
      %v1429 = vpack.c.bf16 %v1335, %v1334
      %v1430 = vpack.c.bf16 %v1337, %v1336
      %v1431 = vpack.c.bf16 %v1339, %v1338
      %v1432 = vpack.c.bf16 %v1341, %v1340
      %v1433 = vpack.c.bf16 %v1343, %v1342
      %v1434 = vpack.c.bf16 %v1345, %v1344
      %v1435 = vpack.c.bf16 %v1347, %v1346
      %v1436 = vpack.c.bf16 %v1349, %v1348
      %v1437 = vpack.c.bf16 %v1351, %v1350
      %v1438 = vpack.c.bf16 %v1353, %v1352
      %v1439 = vpack.c.bf16 %v1355, %v1354
      %v1440 = vpack.c.bf16 %v1357, %v1356
      %v1441 = vpack.c.bf16 %v1359, %v1358
      %v1442 = vpack.c.bf16 %v1361, %v1360
      %v1443 = vpack.c.bf16 %v1363, %v1362
      %v1444 = vpack.c.bf16 %v1365, %v1364
      %v1445 = vpack.c.bf16 %v1367, %v1366
      %v1446 = vpack.c.bf16 %v1369, %v1368
      %v1447 = vpack.c.bf16 %v1371, %v1370
      %v1448 = vpack.c.bf16 %v1373, %v1372
      %v1449 = vpack.c.bf16 %v1375, %v1374
      %v1450 = vpack.c.bf16 %v1377, %v1376
      %v1451 = vpack.c.bf16 %v1379, %v1378
      %v1452 = vpack.c.bf16 %v1381, %v1380
      %v1453 = vpack.c.bf16 %v1383, %v1382
      %v1454 = vpack.c.bf16 %v1385, %v1384
      %v1455 = vpack.c.bf16 %v1387, %v1386
      %v1456 = vpack.c.bf16 %v1389, %v1388
      %v1457 = vpack.c.bf16 %v1391, %v1390
      %v1458 = vpack.c.bf16 %v1393, %v1392
      %v1459 = vpack.c.bf16 %v1395, %v1394
      %v1460 = vunpack.c.l.bf16 %v1396
      %v1461 = vunpack.c.h.bf16 %v1396
      %v1462 = vunpack.c.l.bf16 %v1397
      %v1463 = vunpack.c.h.bf16 %v1397
      %v1464 = vunpack.c.l.bf16 %v1398
      %v1465 = vunpack.c.h.bf16 %v1398
      %v1466 = vunpack.c.l.bf16 %v1399
      %v1467 = vunpack.c.h.bf16 %v1399
      %v1468 = vunpack.c.l.bf16 %v1400
      %v1469 = vunpack.c.h.bf16 %v1400
      %v1470 = vunpack.c.l.bf16 %v1401
      %v1471 = vunpack.c.h.bf16 %v1401
      %v1472 = vunpack.c.l.bf16 %v1402
      %v1473 = vunpack.c.h.bf16 %v1402
      %v1474 = vunpack.c.l.bf16 %v1403
      %v1475 = vunpack.c.h.bf16 %v1403
      %v1476 = vunpack.c.l.bf16 %v1404
      %v1477 = vunpack.c.h.bf16 %v1404
      %v1478 = vunpack.c.l.bf16 %v1405
      %v1479 = vunpack.c.h.bf16 %v1405
      %v1480 = vunpack.c.l.bf16 %v1406
      %v1481 = vunpack.c.h.bf16 %v1406
      %v1482 = vunpack.c.l.bf16 %v1407
      %v1483 = vunpack.c.h.bf16 %v1407
      %v1484 = vunpack.c.l.bf16 %v1408
      %v1485 = vunpack.c.h.bf16 %v1408
      %v1486 = vunpack.c.l.bf16 %v1409
      %v1487 = vunpack.c.h.bf16 %v1409
      %v1488 = vunpack.c.l.bf16 %v1410
      %v1489 = vunpack.c.h.bf16 %v1410
      %v1490 = vunpack.c.l.bf16 %v1411
      %v1491 = vunpack.c.h.bf16 %v1411
      %v1492 = vunpack.c.l.bf16 %v1412
      %v1493 = vunpack.c.h.bf16 %v1412
      %v1494 = vunpack.c.l.bf16 %v1413
      %v1495 = vunpack.c.h.bf16 %v1413
      %v1496 = vunpack.c.l.bf16 %v1414
      %v1497 = vunpack.c.h.bf16 %v1414
      %v1498 = vunpack.c.l.bf16 %v1415
      %v1499 = vunpack.c.h.bf16 %v1415
      %v1500 = vunpack.c.l.bf16 %v1416
      %v1501 = vunpack.c.h.bf16 %v1416
      %v1502 = vunpack.c.l.bf16 %v1417
      %v1503 = vunpack.c.h.bf16 %v1417
      %v1504 = vunpack.c.l.bf16 %v1418
      %v1505 = vunpack.c.h.bf16 %v1418
      %v1506 = vunpack.c.l.bf16 %v1419
      %v1507 = vunpack.c.h.bf16 %v1419
      %v1508 = vunpack.c.l.bf16 %v1420
      %v1509 = vunpack.c.h.bf16 %v1420
      %v1510 = vunpack.c.l.bf16 %v1421
      %v1511 = vunpack.c.h.bf16 %v1421
      %v1512 = vunpack.c.l.bf16 %v1422
      %v1513 = vunpack.c.h.bf16 %v1422
      %v1514 = vunpack.c.l.bf16 %v1423
      %v1515 = vunpack.c.h.bf16 %v1423
      %v1516 = vunpack.c.l.bf16 %v1424
      %v1517 = vunpack.c.h.bf16 %v1424
      %v1518 = vunpack.c.l.bf16 %v1425
      %v1519 = vunpack.c.h.bf16 %v1425
      %v1520 = vunpack.c.l.bf16 %v1426
      %v1521 = vunpack.c.h.bf16 %v1426
      %v1522 = vunpack.c.l.bf16 %v1427
      %v1523 = vunpack.c.h.bf16 %v1427
      %v1524 = vunpack.c.l.bf16 %v1428
      %v1525 = vunpack.c.h.bf16 %v1428
      %v1526 = vunpack.c.l.bf16 %v1429
      %v1527 = vunpack.c.h.bf16 %v1429
      %v1528 = vunpack.c.l.bf16 %v1430
      %v1529 = vunpack.c.h.bf16 %v1430
      %v1530 = vunpack.c.l.bf16 %v1431
      %v1531 = vunpack.c.h.bf16 %v1431
      %v1532 = vunpack.c.l.bf16 %v1432
      %v1533 = vunpack.c.h.bf16 %v1432
      %v1534 = vunpack.c.l.bf16 %v1433
      %v1535 = vunpack.c.h.bf16 %v1433
      %v1536 = vunpack.c.l.bf16 %v1434
      %v1537 = vunpack.c.h.bf16 %v1434
      %v1538 = vunpack.c.l.bf16 %v1435
      %v1539 = vunpack.c.h.bf16 %v1435
      %v1540 = vunpack.c.l.bf16 %v1436
      %v1541 = vunpack.c.h.bf16 %v1436
      %v1542 = vunpack.c.l.bf16 %v1437
      %v1543 = vunpack.c.h.bf16 %v1437
      %v1544 = vunpack.c.l.bf16 %v1438
      %v1545 = vunpack.c.h.bf16 %v1438
      %v1546 = vunpack.c.l.bf16 %v1439
      %v1547 = vunpack.c.h.bf16 %v1439
      %v1548 = vunpack.c.l.bf16 %v1440
      %v1549 = vunpack.c.h.bf16 %v1440
      %v1550 = vunpack.c.l.bf16 %v1441
      %v1551 = vunpack.c.h.bf16 %v1441
      %v1552 = vunpack.c.l.bf16 %v1442
      %v1553 = vunpack.c.h.bf16 %v1442
      %v1554 = vunpack.c.l.bf16 %v1443
      %v1555 = vunpack.c.h.bf16 %v1443
      %v1556 = vunpack.c.l.bf16 %v1444
      %v1557 = vunpack.c.h.bf16 %v1444
      %v1558 = vunpack.c.l.bf16 %v1445
      %v1559 = vunpack.c.h.bf16 %v1445
      %v1560 = vunpack.c.l.bf16 %v1446
      %v1561 = vunpack.c.h.bf16 %v1446
      %v1562 = vunpack.c.l.bf16 %v1447
      %v1563 = vunpack.c.h.bf16 %v1447
      %v1564 = vunpack.c.l.bf16 %v1448
      %v1565 = vunpack.c.h.bf16 %v1448
      %v1566 = vunpack.c.l.bf16 %v1449
      %v1567 = vunpack.c.h.bf16 %v1449
      %v1568 = vunpack.c.l.bf16 %v1450
      %v1569 = vunpack.c.h.bf16 %v1450
      %v1570 = vunpack.c.l.bf16 %v1451
      %v1571 = vunpack.c.h.bf16 %v1451
      %v1572 = vunpack.c.l.bf16 %v1452
      %v1573 = vunpack.c.h.bf16 %v1452
      %v1574 = vunpack.c.l.bf16 %v1453
      %v1575 = vunpack.c.h.bf16 %v1453
      %v1576 = vunpack.c.l.bf16 %v1454
      %v1577 = vunpack.c.h.bf16 %v1454
      %v1578 = vunpack.c.l.bf16 %v1455
      %v1579 = vunpack.c.h.bf16 %v1455
      %v1580 = vunpack.c.l.bf16 %v1456
      %v1581 = vunpack.c.h.bf16 %v1456
      %v1582 = vunpack.c.l.bf16 %v1457
      %v1583 = vunpack.c.h.bf16 %v1457
      %v1584 = vunpack.c.l.bf16 %v1458
      %v1585 = vunpack.c.h.bf16 %v1458
      %v1586 = vunpack.c.l.bf16 %v1459
      %v1587 = vunpack.c.h.bf16 %v1459
      %v1588 = vmul.f32 %v1460, 0.010009766
      %v1589 = vmul.f32 %v1461, 0.010009766
      %v1590 = vmul.f32 %v1462, 0.010009766
      %v1591 = vmul.f32 %v1463, 0.010009766
      %v1592 = vmul.f32 %v1464, 0.010009766
      %v1593 = vmul.f32 %v1465, 0.010009766
      %v1594 = vmul.f32 %v1466, 0.010009766
      %v1595 = vmul.f32 %v1467, 0.010009766
      %v1596 = vmul.f32 %v1468, 0.010009766
      %v1597 = vmul.f32 %v1469, 0.010009766
      %v1598 = vmul.f32 %v1470, 0.010009766
      %v1599 = vmul.f32 %v1471, 0.010009766
      %v1600 = vmul.f32 %v1472, 0.010009766
      %v1601 = vmul.f32 %v1473, 0.010009766
      %v1602 = vmul.f32 %v1474, 0.010009766
      %v1603 = vmul.f32 %v1475, 0.010009766
      %v1604 = vmul.f32 %v1476, 0.010009766
      %v1605 = vmul.f32 %v1477, 0.010009766
      %v1606 = vmul.f32 %v1478, 0.010009766
      %v1607 = vmul.f32 %v1479, 0.010009766
      %v1608 = vmul.f32 %v1480, 0.010009766
      %v1609 = vmul.f32 %v1481, 0.010009766
      %v1610 = vmul.f32 %v1482, 0.010009766
      %v1611 = vmul.f32 %v1483, 0.010009766
      %v1612 = vmul.f32 %v1484, 0.010009766
      %v1613 = vmul.f32 %v1485, 0.010009766
      %v1614 = vmul.f32 %v1486, 0.010009766
      %v1615 = vmul.f32 %v1487, 0.010009766
      %v1616 = vmul.f32 %v1488, 0.010009766
      %v1617 = vmul.f32 %v1489, 0.010009766
      %v1618 = vmul.f32 %v1490, 0.010009766
      %v1619 = vmul.f32 %v1491, 0.010009766
      %v1620 = vmul.f32 %v1492, 0.010009766
      %v1621 = vmul.f32 %v1493, 0.010009766
      %v1622 = vmul.f32 %v1494, 0.010009766
      %v1623 = vmul.f32 %v1495, 0.010009766
      %v1624 = vmul.f32 %v1496, 0.010009766
      %v1625 = vmul.f32 %v1497, 0.010009766
      %v1626 = vmul.f32 %v1498, 0.010009766
      %v1627 = vmul.f32 %v1499, 0.010009766
      %v1628 = vmul.f32 %v1500, 0.010009766
      %v1629 = vmul.f32 %v1501, 0.010009766
      %v1630 = vmul.f32 %v1502, 0.010009766
      %v1631 = vmul.f32 %v1503, 0.010009766
      %v1632 = vmul.f32 %v1504, 0.010009766
      %v1633 = vmul.f32 %v1505, 0.010009766
      %v1634 = vmul.f32 %v1506, 0.010009766
      %v1635 = vmul.f32 %v1507, 0.010009766
      %v1636 = vmul.f32 %v1508, 0.010009766
      %v1637 = vmul.f32 %v1509, 0.010009766
      %v1638 = vmul.f32 %v1510, 0.010009766
      %v1639 = vmul.f32 %v1511, 0.010009766
      %v1640 = vmul.f32 %v1512, 0.010009766
      %v1641 = vmul.f32 %v1513, 0.010009766
      %v1642 = vmul.f32 %v1514, 0.010009766
      %v1643 = vmul.f32 %v1515, 0.010009766
      %v1644 = vmul.f32 %v1516, 0.010009766
      %v1645 = vmul.f32 %v1517, 0.010009766
      %v1646 = vmul.f32 %v1518, 0.010009766
      %v1647 = vmul.f32 %v1519, 0.010009766
      %v1648 = vmul.f32 %v1520, 0.010009766
      %v1649 = vmul.f32 %v1521, 0.010009766
      %v1650 = vmul.f32 %v1522, 0.010009766
      %v1651 = vmul.f32 %v1523, 0.010009766
      %v1652 = vmul.f32 %v1524, 0.010009766
      %v1653 = vmul.f32 %v1525, 0.010009766
      %v1654 = vmul.f32 %v1526, 0.010009766
      %v1655 = vmul.f32 %v1527, 0.010009766
      %v1656 = vmul.f32 %v1528, 0.010009766
      %v1657 = vmul.f32 %v1529, 0.010009766
      %v1658 = vmul.f32 %v1530, 0.010009766
      %v1659 = vmul.f32 %v1531, 0.010009766
      %v1660 = vmul.f32 %v1532, 0.010009766
      %v1661 = vmul.f32 %v1533, 0.010009766
      %v1662 = vmul.f32 %v1534, 0.010009766
      %v1663 = vmul.f32 %v1535, 0.010009766
      %v1664 = vmul.f32 %v1536, 0.010009766
      %v1665 = vmul.f32 %v1537, 0.010009766
      %v1666 = vmul.f32 %v1538, 0.010009766
      %v1667 = vmul.f32 %v1539, 0.010009766
      %v1668 = vmul.f32 %v1540, 0.010009766
      %v1669 = vmul.f32 %v1541, 0.010009766
      %v1670 = vmul.f32 %v1542, 0.010009766
      %v1671 = vmul.f32 %v1543, 0.010009766
      %v1672 = vmul.f32 %v1544, 0.010009766
      %v1673 = vmul.f32 %v1545, 0.010009766
      %v1674 = vmul.f32 %v1546, 0.010009766
      %v1675 = vmul.f32 %v1547, 0.010009766
      %v1676 = vmul.f32 %v1548, 0.010009766
      %v1677 = vmul.f32 %v1549, 0.010009766
      %v1678 = vmul.f32 %v1550, 0.010009766
      %v1679 = vmul.f32 %v1551, 0.010009766
      %v1680 = vmul.f32 %v1552, 0.010009766
      %v1681 = vmul.f32 %v1553, 0.010009766
      %v1682 = vmul.f32 %v1554, 0.010009766
      %v1683 = vmul.f32 %v1555, 0.010009766
      %v1684 = vmul.f32 %v1556, 0.010009766
      %v1685 = vmul.f32 %v1557, 0.010009766
      %v1686 = vmul.f32 %v1558, 0.010009766
      %v1687 = vmul.f32 %v1559, 0.010009766
      %v1688 = vmul.f32 %v1560, 0.010009766
      %v1689 = vmul.f32 %v1561, 0.010009766
      %v1690 = vmul.f32 %v1562, 0.010009766
      %v1691 = vmul.f32 %v1563, 0.010009766
      %v1692 = vmul.f32 %v1564, 0.010009766
      %v1693 = vmul.f32 %v1565, 0.010009766
      %v1694 = vmul.f32 %v1566, 0.010009766
      %v1695 = vmul.f32 %v1567, 0.010009766
      %v1696 = vmul.f32 %v1568, 0.010009766
      %v1697 = vmul.f32 %v1569, 0.010009766
      %v1698 = vmul.f32 %v1570, 0.010009766
      %v1699 = vmul.f32 %v1571, 0.010009766
      %v1700 = vmul.f32 %v1572, 0.010009766
      %v1701 = vmul.f32 %v1573, 0.010009766
      %v1702 = vmul.f32 %v1574, 0.010009766
      %v1703 = vmul.f32 %v1575, 0.010009766
      %v1704 = vmul.f32 %v1576, 0.010009766
      %v1705 = vmul.f32 %v1577, 0.010009766
      %v1706 = vmul.f32 %v1578, 0.010009766
      %v1707 = vmul.f32 %v1579, 0.010009766
      %v1708 = vmul.f32 %v1580, 0.010009766
      %v1709 = vmul.f32 %v1581, 0.010009766
      %v1710 = vmul.f32 %v1582, 0.010009766
      %v1711 = vmul.f32 %v1583, 0.010009766
      %v1712 = vmul.f32 %v1584, 0.010009766
      %v1713 = vmul.f32 %v1585, 0.010009766
      %v1714 = vmul.f32 %v1586, 0.010009766
      %v1715 = vmul.f32 %v1587, 0.010009766
      %v1716 = vpack.c.bf16 %v1589, %v1588
      %v1717 = vpack.c.bf16 %v1591, %v1590
      %v1718 = vpack.c.bf16 %v1593, %v1592
      %v1719 = vpack.c.bf16 %v1595, %v1594
      %v1720 = vpack.c.bf16 %v1597, %v1596
      %v1721 = vpack.c.bf16 %v1599, %v1598
      %v1722 = vpack.c.bf16 %v1601, %v1600
      %v1723 = vpack.c.bf16 %v1603, %v1602
      %v1724 = vpack.c.bf16 %v1605, %v1604
      %v1725 = vpack.c.bf16 %v1607, %v1606
      %v1726 = vpack.c.bf16 %v1609, %v1608
      %v1727 = vpack.c.bf16 %v1611, %v1610
      %v1728 = vpack.c.bf16 %v1613, %v1612
      %v1729 = vpack.c.bf16 %v1615, %v1614
      %v1730 = vpack.c.bf16 %v1617, %v1616
      %v1731 = vpack.c.bf16 %v1619, %v1618
      %v1732 = vpack.c.bf16 %v1621, %v1620
      %v1733 = vpack.c.bf16 %v1623, %v1622
      %v1734 = vpack.c.bf16 %v1625, %v1624
      %v1735 = vpack.c.bf16 %v1627, %v1626
      %v1736 = vpack.c.bf16 %v1629, %v1628
      %v1737 = vpack.c.bf16 %v1631, %v1630
      %v1738 = vpack.c.bf16 %v1633, %v1632
      %v1739 = vpack.c.bf16 %v1635, %v1634
      %v1740 = vpack.c.bf16 %v1637, %v1636
      %v1741 = vpack.c.bf16 %v1639, %v1638
      %v1742 = vpack.c.bf16 %v1641, %v1640
      %v1743 = vpack.c.bf16 %v1643, %v1642
      %v1744 = vpack.c.bf16 %v1645, %v1644
      %v1745 = vpack.c.bf16 %v1647, %v1646
      %v1746 = vpack.c.bf16 %v1649, %v1648
      %v1747 = vpack.c.bf16 %v1651, %v1650
      %v1748 = vpack.c.bf16 %v1653, %v1652
      %v1749 = vpack.c.bf16 %v1655, %v1654
      %v1750 = vpack.c.bf16 %v1657, %v1656
      %v1751 = vpack.c.bf16 %v1659, %v1658
      %v1752 = vpack.c.bf16 %v1661, %v1660
      %v1753 = vpack.c.bf16 %v1663, %v1662
      %v1754 = vpack.c.bf16 %v1665, %v1664
      %v1755 = vpack.c.bf16 %v1667, %v1666
      %v1756 = vpack.c.bf16 %v1669, %v1668
      %v1757 = vpack.c.bf16 %v1671, %v1670
      %v1758 = vpack.c.bf16 %v1673, %v1672
      %v1759 = vpack.c.bf16 %v1675, %v1674
      %v1760 = vpack.c.bf16 %v1677, %v1676
      %v1761 = vpack.c.bf16 %v1679, %v1678
      %v1762 = vpack.c.bf16 %v1681, %v1680
      %v1763 = vpack.c.bf16 %v1683, %v1682
      %v1764 = vpack.c.bf16 %v1685, %v1684
      %v1765 = vpack.c.bf16 %v1687, %v1686
      %v1766 = vpack.c.bf16 %v1689, %v1688
      %v1767 = vpack.c.bf16 %v1691, %v1690
      %v1768 = vpack.c.bf16 %v1693, %v1692
      %v1769 = vpack.c.bf16 %v1695, %v1694
      %v1770 = vpack.c.bf16 %v1697, %v1696
      %v1771 = vpack.c.bf16 %v1699, %v1698
      %v1772 = vpack.c.bf16 %v1701, %v1700
      %v1773 = vpack.c.bf16 %v1703, %v1702
      %v1774 = vpack.c.bf16 %v1705, %v1704
      %v1775 = vpack.c.bf16 %v1707, %v1706
      %v1776 = vpack.c.bf16 %v1709, %v1708
      %v1777 = vpack.c.bf16 %v1711, %v1710
      %v1778 = vpack.c.bf16 %v1713, %v1712
      %v1779 = vpack.c.bf16 %v1715, %v1714
      %v1780 = vunpack.c.l.bf16 %v1716
      %v1781 = vunpack.c.h.bf16 %v1716
      %v1782 = vunpack.c.l.bf16 %v1717
      %v1783 = vunpack.c.h.bf16 %v1717
      %v1784 = vunpack.c.l.bf16 %v1718
      %v1785 = vunpack.c.h.bf16 %v1718
      %v1786 = vunpack.c.l.bf16 %v1719
      %v1787 = vunpack.c.h.bf16 %v1719
      %v1788 = vunpack.c.l.bf16 %v1720
      %v1789 = vunpack.c.h.bf16 %v1720
      %v1790 = vunpack.c.l.bf16 %v1721
      %v1791 = vunpack.c.h.bf16 %v1721
      %v1792 = vunpack.c.l.bf16 %v1722
      %v1793 = vunpack.c.h.bf16 %v1722
      %v1794 = vunpack.c.l.bf16 %v1723
      %v1795 = vunpack.c.h.bf16 %v1723
      %v1796 = vunpack.c.l.bf16 %v1724
      %v1797 = vunpack.c.h.bf16 %v1724
      %v1798 = vunpack.c.l.bf16 %v1725
      %v1799 = vunpack.c.h.bf16 %v1725
      %v1800 = vunpack.c.l.bf16 %v1726
      %v1801 = vunpack.c.h.bf16 %v1726
      %v1802 = vunpack.c.l.bf16 %v1727
      %v1803 = vunpack.c.h.bf16 %v1727
      %v1804 = vunpack.c.l.bf16 %v1728
      %v1805 = vunpack.c.h.bf16 %v1728
      %v1806 = vunpack.c.l.bf16 %v1729
      %v1807 = vunpack.c.h.bf16 %v1729
      %v1808 = vunpack.c.l.bf16 %v1730
      %v1809 = vunpack.c.h.bf16 %v1730
      %v1810 = vunpack.c.l.bf16 %v1731
      %v1811 = vunpack.c.h.bf16 %v1731
      %v1812 = vunpack.c.l.bf16 %v1732
      %v1813 = vunpack.c.h.bf16 %v1732
      %v1814 = vunpack.c.l.bf16 %v1733
      %v1815 = vunpack.c.h.bf16 %v1733
      %v1816 = vunpack.c.l.bf16 %v1734
      %v1817 = vunpack.c.h.bf16 %v1734
      %v1818 = vunpack.c.l.bf16 %v1735
      %v1819 = vunpack.c.h.bf16 %v1735
      %v1820 = vunpack.c.l.bf16 %v1736
      %v1821 = vunpack.c.h.bf16 %v1736
      %v1822 = vunpack.c.l.bf16 %v1737
      %v1823 = vunpack.c.h.bf16 %v1737
      %v1824 = vunpack.c.l.bf16 %v1738
      %v1825 = vunpack.c.h.bf16 %v1738
      %v1826 = vunpack.c.l.bf16 %v1739
      %v1827 = vunpack.c.h.bf16 %v1739
      %v1828 = vunpack.c.l.bf16 %v1740
      %v1829 = vunpack.c.h.bf16 %v1740
      %v1830 = vunpack.c.l.bf16 %v1741
      %v1831 = vunpack.c.h.bf16 %v1741
      %v1832 = vunpack.c.l.bf16 %v1742
      %v1833 = vunpack.c.h.bf16 %v1742
      %v1834 = vunpack.c.l.bf16 %v1743
      %v1835 = vunpack.c.h.bf16 %v1743
      %v1836 = vunpack.c.l.bf16 %v1744
      %v1837 = vunpack.c.h.bf16 %v1744
      %v1838 = vunpack.c.l.bf16 %v1745
      %v1839 = vunpack.c.h.bf16 %v1745
      %v1840 = vunpack.c.l.bf16 %v1746
      %v1841 = vunpack.c.h.bf16 %v1746
      %v1842 = vunpack.c.l.bf16 %v1747
      %v1843 = vunpack.c.h.bf16 %v1747
      %v1844 = vunpack.c.l.bf16 %v1748
      %v1845 = vunpack.c.h.bf16 %v1748
      %v1846 = vunpack.c.l.bf16 %v1749
      %v1847 = vunpack.c.h.bf16 %v1749
      %v1848 = vunpack.c.l.bf16 %v1750
      %v1849 = vunpack.c.h.bf16 %v1750
      %v1850 = vunpack.c.l.bf16 %v1751
      %v1851 = vunpack.c.h.bf16 %v1751
      %v1852 = vunpack.c.l.bf16 %v1752
      %v1853 = vunpack.c.h.bf16 %v1752
      %v1854 = vunpack.c.l.bf16 %v1753
      %v1855 = vunpack.c.h.bf16 %v1753
      %v1856 = vunpack.c.l.bf16 %v1754
      %v1857 = vunpack.c.h.bf16 %v1754
      %v1858 = vunpack.c.l.bf16 %v1755
      %v1859 = vunpack.c.h.bf16 %v1755
      %v1860 = vunpack.c.l.bf16 %v1756
      %v1861 = vunpack.c.h.bf16 %v1756
      %v1862 = vunpack.c.l.bf16 %v1757
      %v1863 = vunpack.c.h.bf16 %v1757
      %v1864 = vunpack.c.l.bf16 %v1758
      %v1865 = vunpack.c.h.bf16 %v1758
      %v1866 = vunpack.c.l.bf16 %v1759
      %v1867 = vunpack.c.h.bf16 %v1759
      %v1868 = vunpack.c.l.bf16 %v1760
      %v1869 = vunpack.c.h.bf16 %v1760
      %v1870 = vunpack.c.l.bf16 %v1761
      %v1871 = vunpack.c.h.bf16 %v1761
      %v1872 = vunpack.c.l.bf16 %v1762
      %v1873 = vunpack.c.h.bf16 %v1762
      %v1874 = vunpack.c.l.bf16 %v1763
      %v1875 = vunpack.c.h.bf16 %v1763
      %v1876 = vunpack.c.l.bf16 %v1764
      %v1877 = vunpack.c.h.bf16 %v1764
      %v1878 = vunpack.c.l.bf16 %v1765
      %v1879 = vunpack.c.h.bf16 %v1765
      %v1880 = vunpack.c.l.bf16 %v1766
      %v1881 = vunpack.c.h.bf16 %v1766
      %v1882 = vunpack.c.l.bf16 %v1767
      %v1883 = vunpack.c.h.bf16 %v1767
      %v1884 = vunpack.c.l.bf16 %v1768
      %v1885 = vunpack.c.h.bf16 %v1768
      %v1886 = vunpack.c.l.bf16 %v1769
      %v1887 = vunpack.c.h.bf16 %v1769
      %v1888 = vunpack.c.l.bf16 %v1770
      %v1889 = vunpack.c.h.bf16 %v1770
      %v1890 = vunpack.c.l.bf16 %v1771
      %v1891 = vunpack.c.h.bf16 %v1771
      %v1892 = vunpack.c.l.bf16 %v1772
      %v1893 = vunpack.c.h.bf16 %v1772
      %v1894 = vunpack.c.l.bf16 %v1773
      %v1895 = vunpack.c.h.bf16 %v1773
      %v1896 = vunpack.c.l.bf16 %v1774
      %v1897 = vunpack.c.h.bf16 %v1774
      %v1898 = vunpack.c.l.bf16 %v1775
      %v1899 = vunpack.c.h.bf16 %v1775
      %v1900 = vunpack.c.l.bf16 %v1776
      %v1901 = vunpack.c.h.bf16 %v1776
      %v1902 = vunpack.c.l.bf16 %v1777
      %v1903 = vunpack.c.h.bf16 %v1777
      %v1904 = vunpack.c.l.bf16 %v1778
      %v1905 = vunpack.c.h.bf16 %v1778
      %v1906 = vunpack.c.l.bf16 %v1779
      %v1907 = vunpack.c.h.bf16 %v1779
      %v1908 = vmax.f32 %v1460, %v1780
      %v1909 = vmax.f32 %v1461, %v1781
      %v1910 = vmax.f32 %v1462, %v1782
      %v1911 = vmax.f32 %v1463, %v1783
      %v1912 = vmax.f32 %v1464, %v1784
      %v1913 = vmax.f32 %v1465, %v1785
      %v1914 = vmax.f32 %v1466, %v1786
      %v1915 = vmax.f32 %v1467, %v1787
      %v1916 = vmax.f32 %v1468, %v1788
      %v1917 = vmax.f32 %v1469, %v1789
      %v1918 = vmax.f32 %v1470, %v1790
      %v1919 = vmax.f32 %v1471, %v1791
      %v1920 = vmax.f32 %v1472, %v1792
      %v1921 = vmax.f32 %v1473, %v1793
      %v1922 = vmax.f32 %v1474, %v1794
      %v1923 = vmax.f32 %v1475, %v1795
      %v1924 = vmax.f32 %v1476, %v1796
      %v1925 = vmax.f32 %v1477, %v1797
      %v1926 = vmax.f32 %v1478, %v1798
      %v1927 = vmax.f32 %v1479, %v1799
      %v1928 = vmax.f32 %v1480, %v1800
      %v1929 = vmax.f32 %v1481, %v1801
      %v1930 = vmax.f32 %v1482, %v1802
      %v1931 = vmax.f32 %v1483, %v1803
      %v1932 = vmax.f32 %v1484, %v1804
      %v1933 = vmax.f32 %v1485, %v1805
      %v1934 = vmax.f32 %v1486, %v1806
      %v1935 = vmax.f32 %v1487, %v1807
      %v1936 = vmax.f32 %v1488, %v1808
      %v1937 = vmax.f32 %v1489, %v1809
      %v1938 = vmax.f32 %v1490, %v1810
      %v1939 = vmax.f32 %v1491, %v1811
      %v1940 = vmax.f32 %v1492, %v1812
      %v1941 = vmax.f32 %v1493, %v1813
      %v1942 = vmax.f32 %v1494, %v1814
      %v1943 = vmax.f32 %v1495, %v1815
      %v1944 = vmax.f32 %v1496, %v1816
      %v1945 = vmax.f32 %v1497, %v1817
      %v1946 = vmax.f32 %v1498, %v1818
      %v1947 = vmax.f32 %v1499, %v1819
      %v1948 = vmax.f32 %v1500, %v1820
      %v1949 = vmax.f32 %v1501, %v1821
      %v1950 = vmax.f32 %v1502, %v1822
      %v1951 = vmax.f32 %v1503, %v1823
      %v1952 = vmax.f32 %v1504, %v1824
      %v1953 = vmax.f32 %v1505, %v1825
      %v1954 = vmax.f32 %v1506, %v1826
      %v1955 = vmax.f32 %v1507, %v1827
      %v1956 = vmax.f32 %v1508, %v1828
      %v1957 = vmax.f32 %v1509, %v1829
      %v1958 = vmax.f32 %v1510, %v1830
      %v1959 = vmax.f32 %v1511, %v1831
      %v1960 = vmax.f32 %v1512, %v1832
      %v1961 = vmax.f32 %v1513, %v1833
      %v1962 = vmax.f32 %v1514, %v1834
      %v1963 = vmax.f32 %v1515, %v1835
      %v1964 = vmax.f32 %v1516, %v1836
      %v1965 = vmax.f32 %v1517, %v1837
      %v1966 = vmax.f32 %v1518, %v1838
      %v1967 = vmax.f32 %v1519, %v1839
      %v1968 = vmax.f32 %v1520, %v1840
      %v1969 = vmax.f32 %v1521, %v1841
      %v1970 = vmax.f32 %v1522, %v1842
      %v1971 = vmax.f32 %v1523, %v1843
      %v1972 = vmax.f32 %v1524, %v1844
      %v1973 = vmax.f32 %v1525, %v1845
      %v1974 = vmax.f32 %v1526, %v1846
      %v1975 = vmax.f32 %v1527, %v1847
      %v1976 = vmax.f32 %v1528, %v1848
      %v1977 = vmax.f32 %v1529, %v1849
      %v1978 = vmax.f32 %v1530, %v1850
      %v1979 = vmax.f32 %v1531, %v1851
      %v1980 = vmax.f32 %v1532, %v1852
      %v1981 = vmax.f32 %v1533, %v1853
      %v1982 = vmax.f32 %v1534, %v1854
      %v1983 = vmax.f32 %v1535, %v1855
      %v1984 = vmax.f32 %v1536, %v1856
      %v1985 = vmax.f32 %v1537, %v1857
      %v1986 = vmax.f32 %v1538, %v1858
      %v1987 = vmax.f32 %v1539, %v1859
      %v1988 = vmax.f32 %v1540, %v1860
      %v1989 = vmax.f32 %v1541, %v1861
      %v1990 = vmax.f32 %v1542, %v1862
      %v1991 = vmax.f32 %v1543, %v1863
      %v1992 = vmax.f32 %v1544, %v1864
      %v1993 = vmax.f32 %v1545, %v1865
      %v1994 = vmax.f32 %v1546, %v1866
      %v1995 = vmax.f32 %v1547, %v1867
      %v1996 = vmax.f32 %v1548, %v1868
      %v1997 = vmax.f32 %v1549, %v1869
      %v1998 = vmax.f32 %v1550, %v1870
      %v1999 = vmax.f32 %v1551, %v1871
      %v2000 = vmax.f32 %v1552, %v1872
      %v2001 = vmax.f32 %v1553, %v1873
      %v2002 = vmax.f32 %v1554, %v1874
      %v2003 = vmax.f32 %v1555, %v1875
      %v2004 = vmax.f32 %v1556, %v1876
      %v2005 = vmax.f32 %v1557, %v1877
      %v2006 = vmax.f32 %v1558, %v1878
      %v2007 = vmax.f32 %v1559, %v1879
      %v2008 = vmax.f32 %v1560, %v1880
      %v2009 = vmax.f32 %v1561, %v1881
      %v2010 = vmax.f32 %v1562, %v1882
      %v2011 = vmax.f32 %v1563, %v1883
      %v2012 = vmax.f32 %v1564, %v1884
      %v2013 = vmax.f32 %v1565, %v1885
      %v2014 = vmax.f32 %v1566, %v1886
      %v2015 = vmax.f32 %v1567, %v1887
      %v2016 = vmax.f32 %v1568, %v1888
      %v2017 = vmax.f32 %v1569, %v1889
      %v2018 = vmax.f32 %v1570, %v1890
      %v2019 = vmax.f32 %v1571, %v1891
      %v2020 = vmax.f32 %v1572, %v1892
      %v2021 = vmax.f32 %v1573, %v1893
      %v2022 = vmax.f32 %v1574, %v1894
      %v2023 = vmax.f32 %v1575, %v1895
      %v2024 = vmax.f32 %v1576, %v1896
      %v2025 = vmax.f32 %v1577, %v1897
      %v2026 = vmax.f32 %v1578, %v1898
      %v2027 = vmax.f32 %v1579, %v1899
      %v2028 = vmax.f32 %v1580, %v1900
      %v2029 = vmax.f32 %v1581, %v1901
      %v2030 = vmax.f32 %v1582, %v1902
      %v2031 = vmax.f32 %v1583, %v1903
      %v2032 = vmax.f32 %v1584, %v1904
      %v2033 = vmax.f32 %v1585, %v1905
      %v2034 = vmax.f32 %v1586, %v1906
      %v2035 = vmax.f32 %v1587, %v1907
      %v2036 = vpack.c.bf16 %v1910, %v1908
      %v2037 = vpack.c.bf16 %v1911, %v1909
      %v2038 = vpack.c.bf16 %v1914, %v1912
      %v2039 = vpack.c.bf16 %v1915, %v1913
      %v2040 = vpack.c.bf16 %v1918, %v1916
      %v2041 = vpack.c.bf16 %v1919, %v1917
      %v2042 = vpack.c.bf16 %v1922, %v1920
      %v2043 = vpack.c.bf16 %v1923, %v1921
      %v2044 = vpack.c.bf16 %v1926, %v1924
      %v2045 = vpack.c.bf16 %v1927, %v1925
      %v2046 = vpack.c.bf16 %v1930, %v1928
      %v2047 = vpack.c.bf16 %v1931, %v1929
      %v2048 = vpack.c.bf16 %v1934, %v1932
      %v2049 = vpack.c.bf16 %v1935, %v1933
      %v2050 = vpack.c.bf16 %v1938, %v1936
      %v2051 = vpack.c.bf16 %v1939, %v1937
      %v2052 = vpack.c.bf16 %v1942, %v1940
      %v2053 = vpack.c.bf16 %v1943, %v1941
      %v2054 = vpack.c.bf16 %v1946, %v1944
      %v2055 = vpack.c.bf16 %v1947, %v1945
      %v2056 = vpack.c.bf16 %v1950, %v1948
      %v2057 = vpack.c.bf16 %v1951, %v1949
      %v2058 = vpack.c.bf16 %v1954, %v1952
      %v2059 = vpack.c.bf16 %v1955, %v1953
      %v2060 = vpack.c.bf16 %v1958, %v1956
      %v2061 = vpack.c.bf16 %v1959, %v1957
      %v2062 = vpack.c.bf16 %v1962, %v1960
      %v2063 = vpack.c.bf16 %v1963, %v1961
      %v2064 = vpack.c.bf16 %v1966, %v1964
      %v2065 = vpack.c.bf16 %v1967, %v1965
      %v2066 = vpack.c.bf16 %v1970, %v1968
      %v2067 = vpack.c.bf16 %v1971, %v1969
      %v2068 = vpack.c.bf16 %v1974, %v1972
      %v2069 = vpack.c.bf16 %v1975, %v1973
      %v2070 = vpack.c.bf16 %v1978, %v1976
      %v2071 = vpack.c.bf16 %v1979, %v1977
      %v2072 = vpack.c.bf16 %v1982, %v1980
      %v2073 = vpack.c.bf16 %v1983, %v1981
      %v2074 = vpack.c.bf16 %v1986, %v1984
      %v2075 = vpack.c.bf16 %v1987, %v1985
      %v2076 = vpack.c.bf16 %v1990, %v1988
      %v2077 = vpack.c.bf16 %v1991, %v1989
      %v2078 = vpack.c.bf16 %v1994, %v1992
      %v2079 = vpack.c.bf16 %v1995, %v1993
      %v2080 = vpack.c.bf16 %v1998, %v1996
      %v2081 = vpack.c.bf16 %v1999, %v1997
      %v2082 = vpack.c.bf16 %v2002, %v2000
      %v2083 = vpack.c.bf16 %v2003, %v2001
      %v2084 = vpack.c.bf16 %v2006, %v2004
      %v2085 = vpack.c.bf16 %v2007, %v2005
      %v2086 = vpack.c.bf16 %v2010, %v2008
      %v2087 = vpack.c.bf16 %v2011, %v2009
      %v2088 = vpack.c.bf16 %v2014, %v2012
      %v2089 = vpack.c.bf16 %v2015, %v2013
      %v2090 = vpack.c.bf16 %v2018, %v2016
      %v2091 = vpack.c.bf16 %v2019, %v2017
      %v2092 = vpack.c.bf16 %v2022, %v2020
      %v2093 = vpack.c.bf16 %v2023, %v2021
      %v2094 = vpack.c.bf16 %v2026, %v2024
      %v2095 = vpack.c.bf16 %v2027, %v2025
      %v2096 = vpack.c.bf16 %v2030, %v2028
      %v2097 = vpack.c.bf16 %v2031, %v2029
      %v2098 = vpack.c.bf16 %v2034, %v2032
      %v2099 = vpack.c.bf16 %v2035, %v2033
      %v2100 = vld [vmem:[%s3] sm:$0xff]
      %v2101 = vld [vmem:[%s3 + $0x8] sm:$0xff]
      %v2102 = vld [vmem:[%s3 + $0x10] sm:$0xff]
      %v2103 = vld [vmem:[%s3 + $0x18] sm:$0xff]
      %v2104 = vld [vmem:[%s3 + $0x20] sm:$0xff]
      %v2105 = vld [vmem:[%s3 + $0x28] sm:$0xff]
      %v2106 = vld [vmem:[%s3 + $0x30] sm:$0xff]
      %v2107 = vld [vmem:[%s3 + $0x38] sm:$0xff]
      %v2108 = vld [vmem:[%s3 + $0x40] sm:$0xff]
      %v2109 = vld [vmem:[%s3 + $0x48] sm:$0xff]
      %v2110 = vld [vmem:[%s3 + $0x50] sm:$0xff]
      %v2111 = vld [vmem:[%s3 + $0x58] sm:$0xff]
      %v2112 = vld [vmem:[%s3 + $0x60] sm:$0xff]
      %v2113 = vld [vmem:[%s3 + $0x68] sm:$0xff]
      %v2114 = vld [vmem:[%s3 + $0x70] sm:$0xff]
      %v2115 = vld [vmem:[%s3 + $0x78] sm:$0xff]
      %v2116 = vld [vmem:[%s3 + $0x80] sm:$0xff]
      %v2117 = vld [vmem:[%s3 + $0x88] sm:$0xff]
      %v2118 = vld [vmem:[%s3 + $0x90] sm:$0xff]
      %v2119 = vld [vmem:[%s3 + $0x98] sm:$0xff]
      %v2120 = vld [vmem:[%s3 + $0xa0] sm:$0xff]
      %v2121 = vld [vmem:[%s3 + $0xa8] sm:$0xff]
      %v2122 = vld [vmem:[%s3 + $0xb0] sm:$0xff]
      %v2123 = vld [vmem:[%s3 + $0xb8] sm:$0xff]
      %v2124 = vld [vmem:[%s3 + $0xc0] sm:$0xff]
      %v2125 = vld [vmem:[%s3 + $0xc8] sm:$0xff]
      %v2126 = vld [vmem:[%s3 + $0xd0] sm:$0xff]
      %v2127 = vld [vmem:[%s3 + $0xd8] sm:$0xff]
      %v2128 = vld [vmem:[%s3 + $0xe0] sm:$0xff]
      %v2129 = vld [vmem:[%s3 + $0xe8] sm:$0xff]
      %v2130 = vld [vmem:[%s3 + $0xf0] sm:$0xff]
      %v2131 = vld [vmem:[%s3 + $0xf8] sm:$0xff]
      %v2164 = vunpack.c.l.b16 %v2100
      %v2165 = vunpack.c.h.b16 %v2100
      %v2166 = vunpack.c.l.b16 %v2101
      %v2167 = vunpack.c.h.b16 %v2101
      %v2168 = vunpack.c.l.b16 %v2102
      %v2169 = vunpack.c.h.b16 %v2102
      %v2170 = vunpack.c.l.b16 %v2103
      %v2171 = vunpack.c.h.b16 %v2103
      %v2172 = vunpack.c.l.b16 %v2104
      %v2173 = vunpack.c.h.b16 %v2104
      %v2174 = vunpack.c.l.b16 %v2105
      %v2175 = vunpack.c.h.b16 %v2105
      %v2176 = vunpack.c.l.b16 %v2106
      %v2177 = vunpack.c.h.b16 %v2106
      %v2178 = vunpack.c.l.b16 %v2107
      %v2179 = vunpack.c.h.b16 %v2107
      %v2180 = vunpack.c.l.b16 %v2108
      %v2181 = vunpack.c.h.b16 %v2108
      %v2182 = vunpack.c.l.b16 %v2109
      %v2183 = vunpack.c.h.b16 %v2109
      %v2184 = vunpack.c.l.b16 %v2110
      %v2185 = vunpack.c.h.b16 %v2110
      %v2186 = vunpack.c.l.b16 %v2111
      %v2187 = vunpack.c.h.b16 %v2111
      %v2188 = vunpack.c.l.b16 %v2112
      %v2189 = vunpack.c.h.b16 %v2112
      %v2190 = vunpack.c.l.b16 %v2113
      %v2191 = vunpack.c.h.b16 %v2113
      %v2192 = vunpack.c.l.b16 %v2114
      %v2193 = vunpack.c.h.b16 %v2114
      %v2194 = vunpack.c.l.b16 %v2115
      %v2195 = vunpack.c.h.b16 %v2115
      %v2196 = vunpack.c.l.b16 %v2116
      %v2197 = vunpack.c.h.b16 %v2116
      %v2198 = vunpack.c.l.b16 %v2117
      %v2199 = vunpack.c.h.b16 %v2117
      %v2200 = vunpack.c.l.b16 %v2118
      %v2201 = vunpack.c.h.b16 %v2118
      %v2202 = vunpack.c.l.b16 %v2119
      %v2203 = vunpack.c.h.b16 %v2119
      %v2204 = vunpack.c.l.b16 %v2120
      %v2205 = vunpack.c.h.b16 %v2120
      %v2206 = vunpack.c.l.b16 %v2121
      %v2207 = vunpack.c.h.b16 %v2121
      %v2208 = vunpack.c.l.b16 %v2122
      %v2209 = vunpack.c.h.b16 %v2122
      %v2210 = vunpack.c.l.b16 %v2123
      %v2211 = vunpack.c.h.b16 %v2123
      %v2212 = vunpack.c.l.b16 %v2124
      %v2213 = vunpack.c.h.b16 %v2124
      %v2214 = vunpack.c.l.b16 %v2125
      %v2215 = vunpack.c.h.b16 %v2125
      %v2216 = vunpack.c.l.b16 %v2126
      %v2217 = vunpack.c.h.b16 %v2126
      %v2218 = vunpack.c.l.b16 %v2127
      %v2219 = vunpack.c.h.b16 %v2127
      %v2220 = vunpack.c.l.b16 %v2128
      %v2221 = vunpack.c.h.b16 %v2128
      %v2222 = vunpack.c.l.b16 %v2129
      %v2223 = vunpack.c.h.b16 %v2129
      %v2224 = vunpack.c.l.b16 %v2130
      %v2225 = vunpack.c.h.b16 %v2130
      %v2226 = vunpack.c.l.b16 %v2131
      %v2227 = vunpack.c.h.b16 %v2131
      %v2228 = vpack.c.b16 %v2166, %v2164
      %v2229 = vpack.c.b16 %v2167, %v2165
      %v2230 = vpack.c.b16 %v2170, %v2168
      %v2231 = vpack.c.b16 %v2171, %v2169
      %v2232 = vpack.c.b16 %v2174, %v2172
      %v2233 = vpack.c.b16 %v2175, %v2173
      %v2234 = vpack.c.b16 %v2178, %v2176
      %v2235 = vpack.c.b16 %v2179, %v2177
      %v2236 = vpack.c.b16 %v2182, %v2180
      %v2237 = vpack.c.b16 %v2183, %v2181
      %v2238 = vpack.c.b16 %v2186, %v2184
      %v2239 = vpack.c.b16 %v2187, %v2185
      %v2240 = vpack.c.b16 %v2190, %v2188
      %v2241 = vpack.c.b16 %v2191, %v2189
      %v2242 = vpack.c.b16 %v2194, %v2192
      %v2243 = vpack.c.b16 %v2195, %v2193
      %v2244 = vpack.c.b16 %v2198, %v2196
      %v2245 = vpack.c.b16 %v2199, %v2197
      %v2246 = vpack.c.b16 %v2202, %v2200
      %v2247 = vpack.c.b16 %v2203, %v2201
      %v2248 = vpack.c.b16 %v2206, %v2204
      %v2249 = vpack.c.b16 %v2207, %v2205
      %v2250 = vpack.c.b16 %v2210, %v2208
      %v2251 = vpack.c.b16 %v2211, %v2209
      %v2252 = vpack.c.b16 %v2214, %v2212
      %v2253 = vpack.c.b16 %v2215, %v2213
      %v2254 = vpack.c.b16 %v2218, %v2216
      %v2255 = vpack.c.b16 %v2219, %v2217
      %v2256 = vpack.c.b16 %v2222, %v2220
      %v2257 = vpack.c.b16 %v2223, %v2221
      %v2258 = vpack.c.b16 %v2226, %v2224
      %v2259 = vpack.c.b16 %v2227, %v2225
      %2292 = vmatpush.bf16.msra.mxu0 %v2242
      %2293 = vmatpush.bf16.msra.mxu0 %v2240
      %2294 = vmatpush.bf16.msra.mxu0 %v2238
      %2295 = vmatpush.bf16.msra.mxu0 %v2236
      %2296 = vmatpush.bf16.msra.mxu0 %v2234
      %2297 = vmatpush.bf16.msra.mxu0 %v2232
      %2298 = vmatpush.bf16.msra.mxu0 %v2230
      %2299 = vmatpush.bf16.msra.mxu0 %v2228
      %2300 = vmatmul.bf16.gmra.mxu0 %v2036
      %v2301 = vpop.f32.mrf.mxu0
      %v2302 = vadd.f32 0.0, %v2301
      %v2303 = vpop.f32.mrf.mxu0
      %v2304 = vadd.f32 0.0, %v2303
      %2305 = vmatmul.bf16.gmra.mxu0 %v2038
      %v2306 = vpop.f32.mrf.mxu0
      %v2307 = vadd.f32 0.0, %v2306
      %v2308 = vpop.f32.mrf.mxu0
      %v2309 = vadd.f32 0.0, %v2308
      %2310 = vmatmul.bf16.gmra.mxu0 %v2040
      %v2311 = vpop.f32.mrf.mxu0
      %v2312 = vadd.f32 0.0, %v2311
      %v2313 = vpop.f32.mrf.mxu0
      %v2314 = vadd.f32 0.0, %v2313
      %2315 = vmatmul.bf16.gmra.mxu0 %v2042
      %v2316 = vpop.f32.mrf.mxu0
      %v2317 = vadd.f32 0.0, %v2316
      %v2318 = vpop.f32.mrf.mxu0
      %v2319 = vadd.f32 0.0, %v2318
      %2320 = vmatmul.bf16.gmra.mxu0 %v2044
      %v2321 = vpop.f32.mrf.mxu0
      %v2322 = vadd.f32 0.0, %v2321
      %v2323 = vpop.f32.mrf.mxu0
      %v2324 = vadd.f32 0.0, %v2323
      %2325 = vmatmul.bf16.gmra.mxu0 %v2046
      %v2326 = vpop.f32.mrf.mxu0
      %v2327 = vadd.f32 0.0, %v2326
      %v2328 = vpop.f32.mrf.mxu0
      %v2329 = vadd.f32 0.0, %v2328
      %2330 = vmatmul.bf16.gmra.mxu0 %v2048
      %v2331 = vpop.f32.mrf.mxu0
      %v2332 = vadd.f32 0.0, %v2331
      %v2333 = vpop.f32.mrf.mxu0
      %v2334 = vadd.f32 0.0, %v2333
      %2335 = vmatmul.bf16.gmra.mxu0 %v2050
      %v2336 = vpop.f32.mrf.mxu0
      %v2337 = vadd.f32 0.0, %v2336
      %v2338 = vpop.f32.mrf.mxu0
      %v2339 = vadd.f32 0.0, %v2338
      %2340 = vmatmul.bf16.gmra.mxu0 %v2052
      %v2341 = vpop.f32.mrf.mxu0
      %v2342 = vadd.f32 0.0, %v2341
      %v2343 = vpop.f32.mrf.mxu0
      %v2344 = vadd.f32 0.0, %v2343
      %2345 = vmatmul.bf16.gmra.mxu0 %v2054
      %v2346 = vpop.f32.mrf.mxu0
      %v2347 = vadd.f32 0.0, %v2346
      %v2348 = vpop.f32.mrf.mxu0
      %v2349 = vadd.f32 0.0, %v2348
      %2350 = vmatmul.bf16.gmra.mxu0 %v2056
      %v2351 = vpop.f32.mrf.mxu0
      %v2352 = vadd.f32 0.0, %v2351
      %v2353 = vpop.f32.mrf.mxu0
      %v2354 = vadd.f32 0.0, %v2353
      %2355 = vmatmul.bf16.gmra.mxu0 %v2058
      %v2356 = vpop.f32.mrf.mxu0
      %v2357 = vadd.f32 0.0, %v2356
      %v2358 = vpop.f32.mrf.mxu0
      %v2359 = vadd.f32 0.0, %v2358
      %2360 = vmatmul.bf16.gmra.mxu0 %v2060
      %v2361 = vpop.f32.mrf.mxu0
      %v2362 = vadd.f32 0.0, %v2361
      %v2363 = vpop.f32.mrf.mxu0
      %v2364 = vadd.f32 0.0, %v2363
      %2365 = vmatmul.bf16.gmra.mxu0 %v2062
      %v2366 = vpop.f32.mrf.mxu0
      %v2367 = vadd.f32 0.0, %v2366
      %v2368 = vpop.f32.mrf.mxu0
      %v2369 = vadd.f32 0.0, %v2368
      %2370 = vmatmul.bf16.gmra.mxu0 %v2064
      %v2371 = vpop.f32.mrf.mxu0
      %v2372 = vadd.f32 0.0, %v2371
      %v2373 = vpop.f32.mrf.mxu0
      %v2374 = vadd.f32 0.0, %v2373
      %2375 = vmatmul.bf16.gmra.mxu0 %v2066
      %v2376 = vpop.f32.mrf.mxu0
      %v2377 = vadd.f32 0.0, %v2376
      %v2378 = vpop.f32.mrf.mxu0
      %v2379 = vadd.f32 0.0, %v2378
      %2380 = vmatmul.bf16.gmra.mxu0 %v2068
      %v2381 = vpop.f32.mrf.mxu0
      %v2382 = vadd.f32 0.0, %v2381
      %v2383 = vpop.f32.mrf.mxu0
      %v2384 = vadd.f32 0.0, %v2383
      %2385 = vmatmul.bf16.gmra.mxu0 %v2070
      %v2386 = vpop.f32.mrf.mxu0
      %v2387 = vadd.f32 0.0, %v2386
      %v2388 = vpop.f32.mrf.mxu0
      %v2389 = vadd.f32 0.0, %v2388
      %2390 = vmatmul.bf16.gmra.mxu0 %v2072
      %v2391 = vpop.f32.mrf.mxu0
      %v2392 = vadd.f32 0.0, %v2391
      %v2393 = vpop.f32.mrf.mxu0
      %v2394 = vadd.f32 0.0, %v2393
      %2395 = vmatmul.bf16.gmra.mxu0 %v2074
      %v2396 = vpop.f32.mrf.mxu0
      %v2397 = vadd.f32 0.0, %v2396
      %v2398 = vpop.f32.mrf.mxu0
      %v2399 = vadd.f32 0.0, %v2398
      %2400 = vmatmul.bf16.gmra.mxu0 %v2076
      %v2401 = vpop.f32.mrf.mxu0
      %v2402 = vadd.f32 0.0, %v2401
      %v2403 = vpop.f32.mrf.mxu0
      %v2404 = vadd.f32 0.0, %v2403
      %2405 = vmatmul.bf16.gmra.mxu0 %v2078
      %v2406 = vpop.f32.mrf.mxu0
      %v2407 = vadd.f32 0.0, %v2406
      %v2408 = vpop.f32.mrf.mxu0
      %v2409 = vadd.f32 0.0, %v2408
      %2410 = vmatmul.bf16.gmra.mxu0 %v2080
      %v2411 = vpop.f32.mrf.mxu0
      %v2412 = vadd.f32 0.0, %v2411
      %v2413 = vpop.f32.mrf.mxu0
      %v2414 = vadd.f32 0.0, %v2413
      %2415 = vmatmul.bf16.gmra.mxu0 %v2082
      %v2416 = vpop.f32.mrf.mxu0
      %v2417 = vadd.f32 0.0, %v2416
      %v2418 = vpop.f32.mrf.mxu0
      %v2419 = vadd.f32 0.0, %v2418
      %2420 = vmatmul.bf16.gmra.mxu0 %v2084
      %v2421 = vpop.f32.mrf.mxu0
      %v2422 = vadd.f32 0.0, %v2421
      %v2423 = vpop.f32.mrf.mxu0
      %v2424 = vadd.f32 0.0, %v2423
      %2425 = vmatmul.bf16.gmra.mxu0 %v2086
      %v2426 = vpop.f32.mrf.mxu0
      %v2427 = vadd.f32 0.0, %v2426
      %v2428 = vpop.f32.mrf.mxu0
      %v2429 = vadd.f32 0.0, %v2428
      %2430 = vmatmul.bf16.gmra.mxu0 %v2088
      %v2431 = vpop.f32.mrf.mxu0
      %v2432 = vadd.f32 0.0, %v2431
      %v2433 = vpop.f32.mrf.mxu0
      %v2434 = vadd.f32 0.0, %v2433
      %2435 = vmatmul.bf16.gmra.mxu0 %v2090
      %v2436 = vpop.f32.mrf.mxu0
      %v2437 = vadd.f32 0.0, %v2436
      %v2438 = vpop.f32.mrf.mxu0
      %v2439 = vadd.f32 0.0, %v2438
      %2440 = vmatmul.bf16.gmra.mxu0 %v2092
      %v2441 = vpop.f32.mrf.mxu0
      %v2442 = vadd.f32 0.0, %v2441
      %v2443 = vpop.f32.mrf.mxu0
      %v2444 = vadd.f32 0.0, %v2443
      %2445 = vmatmul.bf16.gmra.mxu0 %v2094
      %v2446 = vpop.f32.mrf.mxu0
      %v2447 = vadd.f32 0.0, %v2446
      %v2448 = vpop.f32.mrf.mxu0
      %v2449 = vadd.f32 0.0, %v2448
      %2450 = vmatmul.bf16.gmra.mxu0 %v2096
      %v2451 = vpop.f32.mrf.mxu0
      %v2452 = vadd.f32 0.0, %v2451
      %v2453 = vpop.f32.mrf.mxu0
      %v2454 = vadd.f32 0.0, %v2453
      %2455 = vmatmul.bf16.gmra.mxu0 %v2098
      %v2456 = vpop.f32.mrf.mxu0
      %v2457 = vadd.f32 0.0, %v2456
      %v2458 = vpop.f32.mrf.mxu0
      %v2459 = vadd.f32 0.0, %v2458
      %2460 = vdwg.mxu0
      %2461 = vmatpush.bf16.msra.mxu0 %v2258
      %2462 = vmatpush.bf16.msra.mxu0 %v2256
      %2463 = vmatpush.bf16.msra.mxu0 %v2254
      %2464 = vmatpush.bf16.msra.mxu0 %v2252
      %2465 = vmatpush.bf16.msra.mxu0 %v2250
      %2466 = vmatpush.bf16.msra.mxu0 %v2248
      %2467 = vmatpush.bf16.msra.mxu0 %v2246
      %2468 = vmatpush.bf16.msra.mxu0 %v2244
      %2469 = vmatmul.bf16.gmra.mxu0 %v2037
      %v2470 = vpop.f32.mrf.mxu0
      %v2471 = vadd.f32 %v2302, %v2470
      %v2472 = vpop.f32.mrf.mxu0
      %v2473 = vadd.f32 %v2304, %v2472
      %2474 = vmatmul.bf16.gmra.mxu0 %v2039
      %v2475 = vpop.f32.mrf.mxu0
      %v2476 = vadd.f32 %v2307, %v2475
      %v2477 = vpop.f32.mrf.mxu0
      %v2478 = vadd.f32 %v2309, %v2477
      %2479 = vmatmul.bf16.gmra.mxu0 %v2041
      %v2480 = vpop.f32.mrf.mxu0
      %v2481 = vadd.f32 %v2312, %v2480
      %v2482 = vpop.f32.mrf.mxu0
      %v2483 = vadd.f32 %v2314, %v2482
      %2484 = vmatmul.bf16.gmra.mxu0 %v2043
      %v2485 = vpop.f32.mrf.mxu0
      %v2486 = vadd.f32 %v2317, %v2485
      %v2487 = vpop.f32.mrf.mxu0
      %v2488 = vadd.f32 %v2319, %v2487
      %2489 = vmatmul.bf16.gmra.mxu0 %v2045
      %v2490 = vpop.f32.mrf.mxu0
      %v2491 = vadd.f32 %v2322, %v2490
      %v2492 = vpop.f32.mrf.mxu0
      %v2493 = vadd.f32 %v2324, %v2492
      %2494 = vmatmul.bf16.gmra.mxu0 %v2047
      %v2495 = vpop.f32.mrf.mxu0
      %v2496 = vadd.f32 %v2327, %v2495
      %v2497 = vpop.f32.mrf.mxu0
      %v2498 = vadd.f32 %v2329, %v2497
      %2499 = vmatmul.bf16.gmra.mxu0 %v2049
      %v2500 = vpop.f32.mrf.mxu0
      %v2501 = vadd.f32 %v2332, %v2500
      %v2502 = vpop.f32.mrf.mxu0
      %v2503 = vadd.f32 %v2334, %v2502
      %2504 = vmatmul.bf16.gmra.mxu0 %v2051
      %v2505 = vpop.f32.mrf.mxu0
      %v2506 = vadd.f32 %v2337, %v2505
      %v2507 = vpop.f32.mrf.mxu0
      %v2508 = vadd.f32 %v2339, %v2507
      %2509 = vmatmul.bf16.gmra.mxu0 %v2053
      %v2510 = vpop.f32.mrf.mxu0
      %v2511 = vadd.f32 %v2342, %v2510
      %v2512 = vpop.f32.mrf.mxu0
      %v2513 = vadd.f32 %v2344, %v2512
      %2514 = vmatmul.bf16.gmra.mxu0 %v2055
      %v2515 = vpop.f32.mrf.mxu0
      %v2516 = vadd.f32 %v2347, %v2515
      %v2517 = vpop.f32.mrf.mxu0
      %v2518 = vadd.f32 %v2349, %v2517
      %2519 = vmatmul.bf16.gmra.mxu0 %v2057
      %v2520 = vpop.f32.mrf.mxu0
      %v2521 = vadd.f32 %v2352, %v2520
      %v2522 = vpop.f32.mrf.mxu0
      %v2523 = vadd.f32 %v2354, %v2522
      %2524 = vmatmul.bf16.gmra.mxu0 %v2059
      %v2525 = vpop.f32.mrf.mxu0
      %v2526 = vadd.f32 %v2357, %v2525
      %v2527 = vpop.f32.mrf.mxu0
      %v2528 = vadd.f32 %v2359, %v2527
      %2529 = vmatmul.bf16.gmra.mxu0 %v2061
      %v2530 = vpop.f32.mrf.mxu0
      %v2531 = vadd.f32 %v2362, %v2530
      %v2532 = vpop.f32.mrf.mxu0
      %v2533 = vadd.f32 %v2364, %v2532
      %2534 = vmatmul.bf16.gmra.mxu0 %v2063
      %v2535 = vpop.f32.mrf.mxu0
      %v2536 = vadd.f32 %v2367, %v2535
      %v2537 = vpop.f32.mrf.mxu0
      %v2538 = vadd.f32 %v2369, %v2537
      %2539 = vmatmul.bf16.gmra.mxu0 %v2065
      %v2540 = vpop.f32.mrf.mxu0
      %v2541 = vadd.f32 %v2372, %v2540
      %v2542 = vpop.f32.mrf.mxu0
      %v2543 = vadd.f32 %v2374, %v2542
      %2544 = vmatmul.bf16.gmra.mxu0 %v2067
      %v2545 = vpop.f32.mrf.mxu0
      %v2546 = vadd.f32 %v2377, %v2545
      %v2547 = vpop.f32.mrf.mxu0
      %v2548 = vadd.f32 %v2379, %v2547
      %2549 = vmatmul.bf16.gmra.mxu0 %v2069
      %v2550 = vpop.f32.mrf.mxu0
      %v2551 = vadd.f32 %v2382, %v2550
      %v2552 = vpop.f32.mrf.mxu0
      %v2553 = vadd.f32 %v2384, %v2552
      %2554 = vmatmul.bf16.gmra.mxu0 %v2071
      %v2555 = vpop.f32.mrf.mxu0
      %v2556 = vadd.f32 %v2387, %v2555
      %v2557 = vpop.f32.mrf.mxu0
      %v2558 = vadd.f32 %v2389, %v2557
      %2559 = vmatmul.bf16.gmra.mxu0 %v2073
      %v2560 = vpop.f32.mrf.mxu0
      %v2561 = vadd.f32 %v2392, %v2560
      %v2562 = vpop.f32.mrf.mxu0
      %v2563 = vadd.f32 %v2394, %v2562
      %2564 = vmatmul.bf16.gmra.mxu0 %v2075
      %v2565 = vpop.f32.mrf.mxu0
      %v2566 = vadd.f32 %v2397, %v2565
      %v2567 = vpop.f32.mrf.mxu0
      %v2568 = vadd.f32 %v2399, %v2567
      %2569 = vmatmul.bf16.gmra.mxu0 %v2077
      %v2570 = vpop.f32.mrf.mxu0
      %v2571 = vadd.f32 %v2402, %v2570
      %v2572 = vpop.f32.mrf.mxu0
      %v2573 = vadd.f32 %v2404, %v2572
      %2574 = vmatmul.bf16.gmra.mxu0 %v2079
      %v2575 = vpop.f32.mrf.mxu0
      %v2576 = vadd.f32 %v2407, %v2575
      %v2577 = vpop.f32.mrf.mxu0
      %v2578 = vadd.f32 %v2409, %v2577
      %2579 = vmatmul.bf16.gmra.mxu0 %v2081
      %v2580 = vpop.f32.mrf.mxu0
      %v2581 = vadd.f32 %v2412, %v2580
      %v2582 = vpop.f32.mrf.mxu0
      %v2583 = vadd.f32 %v2414, %v2582
      %2584 = vmatmul.bf16.gmra.mxu0 %v2083
      %v2585 = vpop.f32.mrf.mxu0
      %v2586 = vadd.f32 %v2417, %v2585
      %v2587 = vpop.f32.mrf.mxu0
      %v2588 = vadd.f32 %v2419, %v2587
      %2589 = vmatmul.bf16.gmra.mxu0 %v2085
      %v2590 = vpop.f32.mrf.mxu0
      %v2591 = vadd.f32 %v2422, %v2590
      %v2592 = vpop.f32.mrf.mxu0
      %v2593 = vadd.f32 %v2424, %v2592
      %2594 = vmatmul.bf16.gmra.mxu0 %v2087
      %v2595 = vpop.f32.mrf.mxu0
      %v2596 = vadd.f32 %v2427, %v2595
      %v2597 = vpop.f32.mrf.mxu0
      %v2598 = vadd.f32 %v2429, %v2597
      %2599 = vmatmul.bf16.gmra.mxu0 %v2089
      %v2600 = vpop.f32.mrf.mxu0
      %v2601 = vadd.f32 %v2432, %v2600
      %v2602 = vpop.f32.mrf.mxu0
      %v2603 = vadd.f32 %v2434, %v2602
      %2604 = vmatmul.bf16.gmra.mxu0 %v2091
      %v2605 = vpop.f32.mrf.mxu0
      %v2606 = vadd.f32 %v2437, %v2605
      %v2607 = vpop.f32.mrf.mxu0
      %v2608 = vadd.f32 %v2439, %v2607
      %2609 = vmatmul.bf16.gmra.mxu0 %v2093
      %v2610 = vpop.f32.mrf.mxu0
      %v2611 = vadd.f32 %v2442, %v2610
      %v2612 = vpop.f32.mrf.mxu0
      %v2613 = vadd.f32 %v2444, %v2612
      %2614 = vmatmul.bf16.gmra.mxu0 %v2095
      %v2615 = vpop.f32.mrf.mxu0
      %v2616 = vadd.f32 %v2447, %v2615
      %v2617 = vpop.f32.mrf.mxu0
      %v2618 = vadd.f32 %v2449, %v2617
      %2619 = vmatmul.bf16.gmra.mxu0 %v2097
      %v2620 = vpop.f32.mrf.mxu0
      %v2621 = vadd.f32 %v2452, %v2620
      %v2622 = vpop.f32.mrf.mxu0
      %v2623 = vadd.f32 %v2454, %v2622
      %2624 = vmatmul.bf16.gmra.mxu0 %v2099
      %v2625 = vpop.f32.mrf.mxu0
      %v2626 = vadd.f32 %v2457, %v2625
      %v2627 = vpop.f32.mrf.mxu0
      %v2628 = vadd.f32 %v2459, %v2627
      %2629 = vdwg.mxu0
      %2630 = vmatpush.bf16.msra.mxu0 %v2243
      %2631 = vmatpush.bf16.msra.mxu0 %v2241
      %2632 = vmatpush.bf16.msra.mxu0 %v2239
      %2633 = vmatpush.bf16.msra.mxu0 %v2237
      %2634 = vmatpush.bf16.msra.mxu0 %v2235
      %2635 = vmatpush.bf16.msra.mxu0 %v2233
      %2636 = vmatpush.bf16.msra.mxu0 %v2231
      %2637 = vmatpush.bf16.msra.mxu0 %v2229
      %2638 = vmatmul.bf16.gmra.mxu0 %v2036
      %v2639 = vpop.f32.mrf.mxu0
      %v2640 = vadd.f32 0.0, %v2639
      %v2641 = vpop.f32.mrf.mxu0
      %v2642 = vadd.f32 0.0, %v2641
      %2643 = vmatmul.bf16.gmra.mxu0 %v2038
      %v2644 = vpop.f32.mrf.mxu0
      %v2645 = vadd.f32 0.0, %v2644
      %v2646 = vpop.f32.mrf.mxu0
      %v2647 = vadd.f32 0.0, %v2646
      %2648 = vmatmul.bf16.gmra.mxu0 %v2040
      %v2649 = vpop.f32.mrf.mxu0
      %v2650 = vadd.f32 0.0, %v2649
      %v2651 = vpop.f32.mrf.mxu0
      %v2652 = vadd.f32 0.0, %v2651
      %2653 = vmatmul.bf16.gmra.mxu0 %v2042
      %v2654 = vpop.f32.mrf.mxu0
      %v2655 = vadd.f32 0.0, %v2654
      %v2656 = vpop.f32.mrf.mxu0
      %v2657 = vadd.f32 0.0, %v2656
      %2658 = vmatmul.bf16.gmra.mxu0 %v2044
      %v2659 = vpop.f32.mrf.mxu0
      %v2660 = vadd.f32 0.0, %v2659
      %v2661 = vpop.f32.mrf.mxu0
      %v2662 = vadd.f32 0.0, %v2661
      %2663 = vmatmul.bf16.gmra.mxu0 %v2046
      %v2664 = vpop.f32.mrf.mxu0
      %v2665 = vadd.f32 0.0, %v2664
      %v2666 = vpop.f32.mrf.mxu0
      %v2667 = vadd.f32 0.0, %v2666
      %2668 = vmatmul.bf16.gmra.mxu0 %v2048
      %v2669 = vpop.f32.mrf.mxu0
      %v2670 = vadd.f32 0.0, %v2669
      %v2671 = vpop.f32.mrf.mxu0
      %v2672 = vadd.f32 0.0, %v2671
      %2673 = vmatmul.bf16.gmra.mxu0 %v2050
      %v2674 = vpop.f32.mrf.mxu0
      %v2675 = vadd.f32 0.0, %v2674
      %v2676 = vpop.f32.mrf.mxu0
      %v2677 = vadd.f32 0.0, %v2676
      %2678 = vmatmul.bf16.gmra.mxu0 %v2052
      %v2679 = vpop.f32.mrf.mxu0
      %v2680 = vadd.f32 0.0, %v2679
      %v2681 = vpop.f32.mrf.mxu0
      %v2682 = vadd.f32 0.0, %v2681
      %2683 = vmatmul.bf16.gmra.mxu0 %v2054
      %v2684 = vpop.f32.mrf.mxu0
      %v2685 = vadd.f32 0.0, %v2684
      %v2686 = vpop.f32.mrf.mxu0
      %v2687 = vadd.f32 0.0, %v2686
      %2688 = vmatmul.bf16.gmra.mxu0 %v2056
      %v2689 = vpop.f32.mrf.mxu0
      %v2690 = vadd.f32 0.0, %v2689
      %v2691 = vpop.f32.mrf.mxu0
      %v2692 = vadd.f32 0.0, %v2691
      %2693 = vmatmul.bf16.gmra.mxu0 %v2058
      %v2694 = vpop.f32.mrf.mxu0
      %v2695 = vadd.f32 0.0, %v2694
      %v2696 = vpop.f32.mrf.mxu0
      %v2697 = vadd.f32 0.0, %v2696
      %2698 = vmatmul.bf16.gmra.mxu0 %v2060
      %v2699 = vpop.f32.mrf.mxu0
      %v2700 = vadd.f32 0.0, %v2699
      %v2701 = vpop.f32.mrf.mxu0
      %v2702 = vadd.f32 0.0, %v2701
      %2703 = vmatmul.bf16.gmra.mxu0 %v2062
      %v2704 = vpop.f32.mrf.mxu0
      %v2705 = vadd.f32 0.0, %v2704
      %v2706 = vpop.f32.mrf.mxu0
      %v2707 = vadd.f32 0.0, %v2706
      %2708 = vmatmul.bf16.gmra.mxu0 %v2064
      %v2709 = vpop.f32.mrf.mxu0
      %v2710 = vadd.f32 0.0, %v2709
      %v2711 = vpop.f32.mrf.mxu0
      %v2712 = vadd.f32 0.0, %v2711
      %2713 = vmatmul.bf16.gmra.mxu0 %v2066
      %v2714 = vpop.f32.mrf.mxu0
      %v2715 = vadd.f32 0.0, %v2714
      %v2716 = vpop.f32.mrf.mxu0
      %v2717 = vadd.f32 0.0, %v2716
      %2718 = vmatmul.bf16.gmra.mxu0 %v2068
      %v2719 = vpop.f32.mrf.mxu0
      %v2720 = vadd.f32 0.0, %v2719
      %v2721 = vpop.f32.mrf.mxu0
      %v2722 = vadd.f32 0.0, %v2721
      %2723 = vmatmul.bf16.gmra.mxu0 %v2070
      %v2724 = vpop.f32.mrf.mxu0
      %v2725 = vadd.f32 0.0, %v2724
      %v2726 = vpop.f32.mrf.mxu0
      %v2727 = vadd.f32 0.0, %v2726
      %2728 = vmatmul.bf16.gmra.mxu0 %v2072
      %v2729 = vpop.f32.mrf.mxu0
      %v2730 = vadd.f32 0.0, %v2729
      %v2731 = vpop.f32.mrf.mxu0
      %v2732 = vadd.f32 0.0, %v2731
      %2733 = vmatmul.bf16.gmra.mxu0 %v2074
      %v2734 = vpop.f32.mrf.mxu0
      %v2735 = vadd.f32 0.0, %v2734
      %v2736 = vpop.f32.mrf.mxu0
      %v2737 = vadd.f32 0.0, %v2736
      %2738 = vmatmul.bf16.gmra.mxu0 %v2076
      %v2739 = vpop.f32.mrf.mxu0
      %v2740 = vadd.f32 0.0, %v2739
      %v2741 = vpop.f32.mrf.mxu0
      %v2742 = vadd.f32 0.0, %v2741
      %2743 = vmatmul.bf16.gmra.mxu0 %v2078
      %v2744 = vpop.f32.mrf.mxu0
      %v2745 = vadd.f32 0.0, %v2744
      %v2746 = vpop.f32.mrf.mxu0
      %v2747 = vadd.f32 0.0, %v2746
      %2748 = vmatmul.bf16.gmra.mxu0 %v2080
      %v2749 = vpop.f32.mrf.mxu0
      %v2750 = vadd.f32 0.0, %v2749
      %v2751 = vpop.f32.mrf.mxu0
      %v2752 = vadd.f32 0.0, %v2751
      %2753 = vmatmul.bf16.gmra.mxu0 %v2082
      %v2754 = vpop.f32.mrf.mxu0
      %v2755 = vadd.f32 0.0, %v2754
      %v2756 = vpop.f32.mrf.mxu0
      %v2757 = vadd.f32 0.0, %v2756
      %2758 = vmatmul.bf16.gmra.mxu0 %v2084
      %v2759 = vpop.f32.mrf.mxu0
      %v2760 = vadd.f32 0.0, %v2759
      %v2761 = vpop.f32.mrf.mxu0
      %v2762 = vadd.f32 0.0, %v2761
      %2763 = vmatmul.bf16.gmra.mxu0 %v2086
      %v2764 = vpop.f32.mrf.mxu0
      %v2765 = vadd.f32 0.0, %v2764
      %v2766 = vpop.f32.mrf.mxu0
      %v2767 = vadd.f32 0.0, %v2766
      %2768 = vmatmul.bf16.gmra.mxu0 %v2088
      %v2769 = vpop.f32.mrf.mxu0
      %v2770 = vadd.f32 0.0, %v2769
      %v2771 = vpop.f32.mrf.mxu0
      %v2772 = vadd.f32 0.0, %v2771
      %2773 = vmatmul.bf16.gmra.mxu0 %v2090
      %v2774 = vpop.f32.mrf.mxu0
      %v2775 = vadd.f32 0.0, %v2774
      %v2776 = vpop.f32.mrf.mxu0
      %v2777 = vadd.f32 0.0, %v2776
      %2778 = vmatmul.bf16.gmra.mxu0 %v2092
      %v2779 = vpop.f32.mrf.mxu0
      %v2780 = vadd.f32 0.0, %v2779
      %v2781 = vpop.f32.mrf.mxu0
      %v2782 = vadd.f32 0.0, %v2781
      %2783 = vmatmul.bf16.gmra.mxu0 %v2094
      %v2784 = vpop.f32.mrf.mxu0
      %v2785 = vadd.f32 0.0, %v2784
      %v2786 = vpop.f32.mrf.mxu0
      %v2787 = vadd.f32 0.0, %v2786
      %2788 = vmatmul.bf16.gmra.mxu0 %v2096
      %v2789 = vpop.f32.mrf.mxu0
      %v2790 = vadd.f32 0.0, %v2789
      %v2791 = vpop.f32.mrf.mxu0
      %v2792 = vadd.f32 0.0, %v2791
      %2793 = vmatmul.bf16.gmra.mxu0 %v2098
      %v2794 = vpop.f32.mrf.mxu0
      %v2795 = vadd.f32 0.0, %v2794
      %v2796 = vpop.f32.mrf.mxu0
      %v2797 = vadd.f32 0.0, %v2796
      %2798 = vdwg.mxu0
      %2799 = vmatpush.bf16.msra.mxu0 %v2259
      %2800 = vmatpush.bf16.msra.mxu0 %v2257
      %2801 = vmatpush.bf16.msra.mxu0 %v2255
      %2802 = vmatpush.bf16.msra.mxu0 %v2253
      %2803 = vmatpush.bf16.msra.mxu0 %v2251
      %2804 = vmatpush.bf16.msra.mxu0 %v2249
      %2805 = vmatpush.bf16.msra.mxu0 %v2247
      %2806 = vmatpush.bf16.msra.mxu0 %v2245
      %2807 = vmatmul.bf16.gmra.mxu0 %v2037
      %v2808 = vpop.f32.mrf.mxu0
      %v2809 = vadd.f32 %v2640, %v2808
      %v2810 = vpop.f32.mrf.mxu0
      %v2811 = vadd.f32 %v2642, %v2810
      %2812 = vmatmul.bf16.gmra.mxu0 %v2039
      %v2813 = vpop.f32.mrf.mxu0
      %v2814 = vadd.f32 %v2645, %v2813
      %v2815 = vpop.f32.mrf.mxu0
      %v2816 = vadd.f32 %v2647, %v2815
      %2817 = vmatmul.bf16.gmra.mxu0 %v2041
      %v2818 = vpop.f32.mrf.mxu0
      %v2819 = vadd.f32 %v2650, %v2818
      %v2820 = vpop.f32.mrf.mxu0
      %v2821 = vadd.f32 %v2652, %v2820
      %2822 = vmatmul.bf16.gmra.mxu0 %v2043
      %v2823 = vpop.f32.mrf.mxu0
      %v2824 = vadd.f32 %v2655, %v2823
      %v2825 = vpop.f32.mrf.mxu0
      %v2826 = vadd.f32 %v2657, %v2825
      %2827 = vmatmul.bf16.gmra.mxu0 %v2045
      %v2828 = vpop.f32.mrf.mxu0
      %v2829 = vadd.f32 %v2660, %v2828
      %v2830 = vpop.f32.mrf.mxu0
      %v2831 = vadd.f32 %v2662, %v2830
      %2832 = vmatmul.bf16.gmra.mxu0 %v2047
      %v2833 = vpop.f32.mrf.mxu0
      %v2834 = vadd.f32 %v2665, %v2833
      %v2835 = vpop.f32.mrf.mxu0
      %v2836 = vadd.f32 %v2667, %v2835
      %2837 = vmatmul.bf16.gmra.mxu0 %v2049
      %v2838 = vpop.f32.mrf.mxu0
      %v2839 = vadd.f32 %v2670, %v2838
      %v2840 = vpop.f32.mrf.mxu0
      %v2841 = vadd.f32 %v2672, %v2840
      %2842 = vmatmul.bf16.gmra.mxu0 %v2051
      %v2843 = vpop.f32.mrf.mxu0
      %v2844 = vadd.f32 %v2675, %v2843
      %v2845 = vpop.f32.mrf.mxu0
      %v2846 = vadd.f32 %v2677, %v2845
      %2847 = vmatmul.bf16.gmra.mxu0 %v2053
      %v2848 = vpop.f32.mrf.mxu0
      %v2849 = vadd.f32 %v2680, %v2848
      %v2850 = vpop.f32.mrf.mxu0
      %v2851 = vadd.f32 %v2682, %v2850
      %2852 = vmatmul.bf16.gmra.mxu0 %v2055
      %v2853 = vpop.f32.mrf.mxu0
      %v2854 = vadd.f32 %v2685, %v2853
      %v2855 = vpop.f32.mrf.mxu0
      %v2856 = vadd.f32 %v2687, %v2855
      %2857 = vmatmul.bf16.gmra.mxu0 %v2057
      %v2858 = vpop.f32.mrf.mxu0
      %v2859 = vadd.f32 %v2690, %v2858
      %v2860 = vpop.f32.mrf.mxu0
      %v2861 = vadd.f32 %v2692, %v2860
      %2862 = vmatmul.bf16.gmra.mxu0 %v2059
      %v2863 = vpop.f32.mrf.mxu0
      %v2864 = vadd.f32 %v2695, %v2863
      %v2865 = vpop.f32.mrf.mxu0
      %v2866 = vadd.f32 %v2697, %v2865
      %2867 = vmatmul.bf16.gmra.mxu0 %v2061
      %v2868 = vpop.f32.mrf.mxu0
      %v2869 = vadd.f32 %v2700, %v2868
      %v2870 = vpop.f32.mrf.mxu0
      %v2871 = vadd.f32 %v2702, %v2870
      %2872 = vmatmul.bf16.gmra.mxu0 %v2063
      %v2873 = vpop.f32.mrf.mxu0
      %v2874 = vadd.f32 %v2705, %v2873
      %v2875 = vpop.f32.mrf.mxu0
      %v2876 = vadd.f32 %v2707, %v2875
      %2877 = vmatmul.bf16.gmra.mxu0 %v2065
      %v2878 = vpop.f32.mrf.mxu0
      %v2879 = vadd.f32 %v2710, %v2878
      %v2880 = vpop.f32.mrf.mxu0
      %v2881 = vadd.f32 %v2712, %v2880
      %2882 = vmatmul.bf16.gmra.mxu0 %v2067
      %v2883 = vpop.f32.mrf.mxu0
      %v2884 = vadd.f32 %v2715, %v2883
      %v2885 = vpop.f32.mrf.mxu0
      %v2886 = vadd.f32 %v2717, %v2885
      %2887 = vmatmul.bf16.gmra.mxu0 %v2069
      %v2888 = vpop.f32.mrf.mxu0
      %v2889 = vadd.f32 %v2720, %v2888
      %v2890 = vpop.f32.mrf.mxu0
      %v2891 = vadd.f32 %v2722, %v2890
      %2892 = vmatmul.bf16.gmra.mxu0 %v2071
      %v2893 = vpop.f32.mrf.mxu0
      %v2894 = vadd.f32 %v2725, %v2893
      %v2895 = vpop.f32.mrf.mxu0
      %v2896 = vadd.f32 %v2727, %v2895
      %2897 = vmatmul.bf16.gmra.mxu0 %v2073
      %v2898 = vpop.f32.mrf.mxu0
      %v2899 = vadd.f32 %v2730, %v2898
      %v2900 = vpop.f32.mrf.mxu0
      %v2901 = vadd.f32 %v2732, %v2900
      %2902 = vmatmul.bf16.gmra.mxu0 %v2075
      %v2903 = vpop.f32.mrf.mxu0
      %v2904 = vadd.f32 %v2735, %v2903
      %v2905 = vpop.f32.mrf.mxu0
      %v2906 = vadd.f32 %v2737, %v2905
      %2907 = vmatmul.bf16.gmra.mxu0 %v2077
      %v2908 = vpop.f32.mrf.mxu0
      %v2909 = vadd.f32 %v2740, %v2908
      %v2910 = vpop.f32.mrf.mxu0
      %v2911 = vadd.f32 %v2742, %v2910
      %2912 = vmatmul.bf16.gmra.mxu0 %v2079
      %v2913 = vpop.f32.mrf.mxu0
      %v2914 = vadd.f32 %v2745, %v2913
      %v2915 = vpop.f32.mrf.mxu0
      %v2916 = vadd.f32 %v2747, %v2915
      %2917 = vmatmul.bf16.gmra.mxu0 %v2081
      %v2918 = vpop.f32.mrf.mxu0
      %v2919 = vadd.f32 %v2750, %v2918
      %v2920 = vpop.f32.mrf.mxu0
      %v2921 = vadd.f32 %v2752, %v2920
      %2922 = vmatmul.bf16.gmra.mxu0 %v2083
      %v2923 = vpop.f32.mrf.mxu0
      %v2924 = vadd.f32 %v2755, %v2923
      %v2925 = vpop.f32.mrf.mxu0
      %v2926 = vadd.f32 %v2757, %v2925
      %2927 = vmatmul.bf16.gmra.mxu0 %v2085
      %v2928 = vpop.f32.mrf.mxu0
      %v2929 = vadd.f32 %v2760, %v2928
      %v2930 = vpop.f32.mrf.mxu0
      %v2931 = vadd.f32 %v2762, %v2930
      %2932 = vmatmul.bf16.gmra.mxu0 %v2087
      %v2933 = vpop.f32.mrf.mxu0
      %v2934 = vadd.f32 %v2765, %v2933
      %v2935 = vpop.f32.mrf.mxu0
      %v2936 = vadd.f32 %v2767, %v2935
      %2937 = vmatmul.bf16.gmra.mxu0 %v2089
      %v2938 = vpop.f32.mrf.mxu0
      %v2939 = vadd.f32 %v2770, %v2938
      %v2940 = vpop.f32.mrf.mxu0
      %v2941 = vadd.f32 %v2772, %v2940
      %2942 = vmatmul.bf16.gmra.mxu0 %v2091
      %v2943 = vpop.f32.mrf.mxu0
      %v2944 = vadd.f32 %v2775, %v2943
      %v2945 = vpop.f32.mrf.mxu0
      %v2946 = vadd.f32 %v2777, %v2945
      %2947 = vmatmul.bf16.gmra.mxu0 %v2093
      %v2948 = vpop.f32.mrf.mxu0
      %v2949 = vadd.f32 %v2780, %v2948
      %v2950 = vpop.f32.mrf.mxu0
      %v2951 = vadd.f32 %v2782, %v2950
      %2952 = vmatmul.bf16.gmra.mxu0 %v2095
      %v2953 = vpop.f32.mrf.mxu0
      %v2954 = vadd.f32 %v2785, %v2953
      %v2955 = vpop.f32.mrf.mxu0
      %v2956 = vadd.f32 %v2787, %v2955
      %2957 = vmatmul.bf16.gmra.mxu0 %v2097
      %v2958 = vpop.f32.mrf.mxu0
      %v2959 = vadd.f32 %v2790, %v2958
      %v2960 = vpop.f32.mrf.mxu0
      %v2961 = vadd.f32 %v2792, %v2960
      %2962 = vmatmul.bf16.gmra.mxu0 %v2099
      %v2963 = vpop.f32.mrf.mxu0
      %v2964 = vadd.f32 %v2795, %v2963
      %v2965 = vpop.f32.mrf.mxu0
      %v2966 = vadd.f32 %v2797, %v2965
      %2967 = vdwg.mxu0
      %v2968 = vpack.c.bf16 %v2809, %v2471
      %v2969 = vpack.c.bf16 %v2811, %v2473
      %v2970 = vpack.c.bf16 %v2814, %v2476
      %v2971 = vpack.c.bf16 %v2816, %v2478
      %v2972 = vpack.c.bf16 %v2819, %v2481
      %v2973 = vpack.c.bf16 %v2821, %v2483
      %v2974 = vpack.c.bf16 %v2824, %v2486
      %v2975 = vpack.c.bf16 %v2826, %v2488
      %v2976 = vpack.c.bf16 %v2829, %v2491
      %v2977 = vpack.c.bf16 %v2831, %v2493
      %v2978 = vpack.c.bf16 %v2834, %v2496
      %v2979 = vpack.c.bf16 %v2836, %v2498
      %v2980 = vpack.c.bf16 %v2839, %v2501
      %v2981 = vpack.c.bf16 %v2841, %v2503
      %v2982 = vpack.c.bf16 %v2844, %v2506
      %v2983 = vpack.c.bf16 %v2846, %v2508
      %v2984 = vpack.c.bf16 %v2849, %v2511
      %v2985 = vpack.c.bf16 %v2851, %v2513
      %v2986 = vpack.c.bf16 %v2854, %v2516
      %v2987 = vpack.c.bf16 %v2856, %v2518
      %v2988 = vpack.c.bf16 %v2859, %v2521
      %v2989 = vpack.c.bf16 %v2861, %v2523
      %v2990 = vpack.c.bf16 %v2864, %v2526
      %v2991 = vpack.c.bf16 %v2866, %v2528
      %v2992 = vpack.c.bf16 %v2869, %v2531
      %v2993 = vpack.c.bf16 %v2871, %v2533
      %v2994 = vpack.c.bf16 %v2874, %v2536
      %v2995 = vpack.c.bf16 %v2876, %v2538
      %v2996 = vpack.c.bf16 %v2879, %v2541
      %v2997 = vpack.c.bf16 %v2881, %v2543
      %v2998 = vpack.c.bf16 %v2884, %v2546
      %v2999 = vpack.c.bf16 %v2886, %v2548
      %v3000 = vpack.c.bf16 %v2889, %v2551
      %v3001 = vpack.c.bf16 %v2891, %v2553
      %v3002 = vpack.c.bf16 %v2894, %v2556
      %v3003 = vpack.c.bf16 %v2896, %v2558
      %v3004 = vpack.c.bf16 %v2899, %v2561
      %v3005 = vpack.c.bf16 %v2901, %v2563
      %v3006 = vpack.c.bf16 %v2904, %v2566
      %v3007 = vpack.c.bf16 %v2906, %v2568
      %v3008 = vpack.c.bf16 %v2909, %v2571
      %v3009 = vpack.c.bf16 %v2911, %v2573
      %v3010 = vpack.c.bf16 %v2914, %v2576
      %v3011 = vpack.c.bf16 %v2916, %v2578
      %v3012 = vpack.c.bf16 %v2919, %v2581
      %v3013 = vpack.c.bf16 %v2921, %v2583
      %v3014 = vpack.c.bf16 %v2924, %v2586
      %v3015 = vpack.c.bf16 %v2926, %v2588
      %v3016 = vpack.c.bf16 %v2929, %v2591
      %v3017 = vpack.c.bf16 %v2931, %v2593
      %v3018 = vpack.c.bf16 %v2934, %v2596
      %v3019 = vpack.c.bf16 %v2936, %v2598
      %v3020 = vpack.c.bf16 %v2939, %v2601
      %v3021 = vpack.c.bf16 %v2941, %v2603
      %v3022 = vpack.c.bf16 %v2944, %v2606
      %v3023 = vpack.c.bf16 %v2946, %v2608
      %v3024 = vpack.c.bf16 %v2949, %v2611
      %v3025 = vpack.c.bf16 %v2951, %v2613
      %v3026 = vpack.c.bf16 %v2954, %v2616
      %v3027 = vpack.c.bf16 %v2956, %v2618
      %v3028 = vpack.c.bf16 %v2959, %v2621
      %v3029 = vpack.c.bf16 %v2961, %v2623
      %v3030 = vpack.c.bf16 %v2964, %v2626
      %v3031 = vpack.c.bf16 %v2966, %v2628
      %v3032 = vld [vmem:[%s4] sm:$0x3]
      %3034 = vst [vmem:[#allocation1] ss:$9 sm:$0xff] %v3032
      %v3035 = vld [vmem:[#allocation1] sm:$0xff]
      %v3036 = vld [vmem:[#allocation1 + $0x9] sm:$0xff]
      %v3037 = vpack.i.b16 %v3035, %v3035
      %v3039 = vperm.slane %v3037, 0
      %v3040 = vpack.i.b16 %v3036, %v3036
      %v3042 = vperm.slane %v3040, 0
      %v3043 = vunpack.c.l.bf16 %v2968
      %v3044 = vunpack.c.h.bf16 %v2968
      %v3045 = vunpack.c.l.bf16 %v2969
      %v3046 = vunpack.c.h.bf16 %v2969
      %v3047 = vunpack.c.l.bf16 %v2970
      %v3048 = vunpack.c.h.bf16 %v2970
      %v3049 = vunpack.c.l.bf16 %v2971
      %v3050 = vunpack.c.h.bf16 %v2971
      %v3051 = vunpack.c.l.bf16 %v2972
      %v3052 = vunpack.c.h.bf16 %v2972
      %v3053 = vunpack.c.l.bf16 %v2973
      %v3054 = vunpack.c.h.bf16 %v2973
      %v3055 = vunpack.c.l.bf16 %v2974
      %v3056 = vunpack.c.h.bf16 %v2974
      %v3057 = vunpack.c.l.bf16 %v2975
      %v3058 = vunpack.c.h.bf16 %v2975
      %v3059 = vunpack.c.l.bf16 %v2976
      %v3060 = vunpack.c.h.bf16 %v2976
      %v3061 = vunpack.c.l.bf16 %v2977
      %v3062 = vunpack.c.h.bf16 %v2977
      %v3063 = vunpack.c.l.bf16 %v2978
      %v3064 = vunpack.c.h.bf16 %v2978
      %v3065 = vunpack.c.l.bf16 %v2979
      %v3066 = vunpack.c.h.bf16 %v2979
      %v3067 = vunpack.c.l.bf16 %v2980
      %v3068 = vunpack.c.h.bf16 %v2980
      %v3069 = vunpack.c.l.bf16 %v2981
      %v3070 = vunpack.c.h.bf16 %v2981
      %v3071 = vunpack.c.l.bf16 %v2982
      %v3072 = vunpack.c.h.bf16 %v2982
      %v3073 = vunpack.c.l.bf16 %v2983
      %v3074 = vunpack.c.h.bf16 %v2983
      %v3075 = vunpack.c.l.bf16 %v2984
      %v3076 = vunpack.c.h.bf16 %v2984
      %v3077 = vunpack.c.l.bf16 %v2985
      %v3078 = vunpack.c.h.bf16 %v2985
      %v3079 = vunpack.c.l.bf16 %v2986
      %v3080 = vunpack.c.h.bf16 %v2986
      %v3081 = vunpack.c.l.bf16 %v2987
      %v3082 = vunpack.c.h.bf16 %v2987
      %v3083 = vunpack.c.l.bf16 %v2988
      %v3084 = vunpack.c.h.bf16 %v2988
      %v3085 = vunpack.c.l.bf16 %v2989
      %v3086 = vunpack.c.h.bf16 %v2989
      %v3087 = vunpack.c.l.bf16 %v2990
      %v3088 = vunpack.c.h.bf16 %v2990
      %v3089 = vunpack.c.l.bf16 %v2991
      %v3090 = vunpack.c.h.bf16 %v2991
      %v3091 = vunpack.c.l.bf16 %v2992
      %v3092 = vunpack.c.h.bf16 %v2992
      %v3093 = vunpack.c.l.bf16 %v2993
      %v3094 = vunpack.c.h.bf16 %v2993
      %v3095 = vunpack.c.l.bf16 %v2994
      %v3096 = vunpack.c.h.bf16 %v2994
      %v3097 = vunpack.c.l.bf16 %v2995
      %v3098 = vunpack.c.h.bf16 %v2995
      %v3099 = vunpack.c.l.bf16 %v2996
      %v3100 = vunpack.c.h.bf16 %v2996
      %v3101 = vunpack.c.l.bf16 %v2997
      %v3102 = vunpack.c.h.bf16 %v2997
      %v3103 = vunpack.c.l.bf16 %v2998
      %v3104 = vunpack.c.h.bf16 %v2998
      %v3105 = vunpack.c.l.bf16 %v2999
      %v3106 = vunpack.c.h.bf16 %v2999
      %v3107 = vunpack.c.l.bf16 %v3000
      %v3108 = vunpack.c.h.bf16 %v3000
      %v3109 = vunpack.c.l.bf16 %v3001
      %v3110 = vunpack.c.h.bf16 %v3001
      %v3111 = vunpack.c.l.bf16 %v3002
      %v3112 = vunpack.c.h.bf16 %v3002
      %v3113 = vunpack.c.l.bf16 %v3003
      %v3114 = vunpack.c.h.bf16 %v3003
      %v3115 = vunpack.c.l.bf16 %v3004
      %v3116 = vunpack.c.h.bf16 %v3004
      %v3117 = vunpack.c.l.bf16 %v3005
      %v3118 = vunpack.c.h.bf16 %v3005
      %v3119 = vunpack.c.l.bf16 %v3006
      %v3120 = vunpack.c.h.bf16 %v3006
      %v3121 = vunpack.c.l.bf16 %v3007
      %v3122 = vunpack.c.h.bf16 %v3007
      %v3123 = vunpack.c.l.bf16 %v3008
      %v3124 = vunpack.c.h.bf16 %v3008
      %v3125 = vunpack.c.l.bf16 %v3009
      %v3126 = vunpack.c.h.bf16 %v3009
      %v3127 = vunpack.c.l.bf16 %v3010
      %v3128 = vunpack.c.h.bf16 %v3010
      %v3129 = vunpack.c.l.bf16 %v3011
      %v3130 = vunpack.c.h.bf16 %v3011
      %v3131 = vunpack.c.l.bf16 %v3012
      %v3132 = vunpack.c.h.bf16 %v3012
      %v3133 = vunpack.c.l.bf16 %v3013
      %v3134 = vunpack.c.h.bf16 %v3013
      %v3135 = vunpack.c.l.bf16 %v3014
      %v3136 = vunpack.c.h.bf16 %v3014
      %v3137 = vunpack.c.l.bf16 %v3015
      %v3138 = vunpack.c.h.bf16 %v3015
      %v3139 = vunpack.c.l.bf16 %v3016
      %v3140 = vunpack.c.h.bf16 %v3016
      %v3141 = vunpack.c.l.bf16 %v3017
      %v3142 = vunpack.c.h.bf16 %v3017
      %v3143 = vunpack.c.l.bf16 %v3018
      %v3144 = vunpack.c.h.bf16 %v3018
      %v3145 = vunpack.c.l.bf16 %v3019
      %v3146 = vunpack.c.h.bf16 %v3019
      %v3147 = vunpack.c.l.bf16 %v3020
      %v3148 = vunpack.c.h.bf16 %v3020
      %v3149 = vunpack.c.l.bf16 %v3021
      %v3150 = vunpack.c.h.bf16 %v3021
      %v3151 = vunpack.c.l.bf16 %v3022
      %v3152 = vunpack.c.h.bf16 %v3022
      %v3153 = vunpack.c.l.bf16 %v3023
      %v3154 = vunpack.c.h.bf16 %v3023
      %v3155 = vunpack.c.l.bf16 %v3024
      %v3156 = vunpack.c.h.bf16 %v3024
      %v3157 = vunpack.c.l.bf16 %v3025
      %v3158 = vunpack.c.h.bf16 %v3025
      %v3159 = vunpack.c.l.bf16 %v3026
      %v3160 = vunpack.c.h.bf16 %v3026
      %v3161 = vunpack.c.l.bf16 %v3027
      %v3162 = vunpack.c.h.bf16 %v3027
      %v3163 = vunpack.c.l.bf16 %v3028
      %v3164 = vunpack.c.h.bf16 %v3028
      %v3165 = vunpack.c.l.bf16 %v3029
      %v3166 = vunpack.c.h.bf16 %v3029
      %v3167 = vunpack.c.l.bf16 %v3030
      %v3168 = vunpack.c.h.bf16 %v3030
      %v3169 = vunpack.c.l.bf16 %v3031
      %v3170 = vunpack.c.h.bf16 %v3031
      %v3171 = vunpack.c.l.bf16 %v3039
      %v3172 = vunpack.c.l.bf16 %v3042
      %v3173 = vadd.f32 %v3043, %v3171
      %v3174 = vadd.f32 %v3044, %v3172
      %v3175 = vadd.f32 %v3045, %v3171
      %v3176 = vadd.f32 %v3046, %v3172
      %v3177 = vadd.f32 %v3047, %v3171
      %v3178 = vadd.f32 %v3048, %v3172
      %v3179 = vadd.f32 %v3049, %v3171
      %v3180 = vadd.f32 %v3050, %v3172
      %v3181 = vadd.f32 %v3051, %v3171
      %v3182 = vadd.f32 %v3052, %v3172
      %v3183 = vadd.f32 %v3053, %v3171
      %v3184 = vadd.f32 %v3054, %v3172
      %v3185 = vadd.f32 %v3055, %v3171
      %v3186 = vadd.f32 %v3056, %v3172
      %v3187 = vadd.f32 %v3057, %v3171
      %v3188 = vadd.f32 %v3058, %v3172
      %v3189 = vadd.f32 %v3059, %v3171
      %v3190 = vadd.f32 %v3060, %v3172
      %v3191 = vadd.f32 %v3061, %v3171
      %v3192 = vadd.f32 %v3062, %v3172
      %v3193 = vadd.f32 %v3063, %v3171
      %v3194 = vadd.f32 %v3064, %v3172
      %v3195 = vadd.f32 %v3065, %v3171
      %v3196 = vadd.f32 %v3066, %v3172
      %v3197 = vadd.f32 %v3067, %v3171
      %v3198 = vadd.f32 %v3068, %v3172
      %v3199 = vadd.f32 %v3069, %v3171
      %v3200 = vadd.f32 %v3070, %v3172
      %v3201 = vadd.f32 %v3071, %v3171
      %v3202 = vadd.f32 %v3072, %v3172
      %v3203 = vadd.f32 %v3073, %v3171
      %v3204 = vadd.f32 %v3074, %v3172
      %v3205 = vadd.f32 %v3075, %v3171
      %v3206 = vadd.f32 %v3076, %v3172
      %v3207 = vadd.f32 %v3077, %v3171
      %v3208 = vadd.f32 %v3078, %v3172
      %v3209 = vadd.f32 %v3079, %v3171
      %v3210 = vadd.f32 %v3080, %v3172
      %v3211 = vadd.f32 %v3081, %v3171
      %v3212 = vadd.f32 %v3082, %v3172
      %v3213 = vadd.f32 %v3083, %v3171
      %v3214 = vadd.f32 %v3084, %v3172
      %v3215 = vadd.f32 %v3085, %v3171
      %v3216 = vadd.f32 %v3086, %v3172
      %v3217 = vadd.f32 %v3087, %v3171
      %v3218 = vadd.f32 %v3088, %v3172
      %v3219 = vadd.f32 %v3089, %v3171
      %v3220 = vadd.f32 %v3090, %v3172
      %v3221 = vadd.f32 %v3091, %v3171
      %v3222 = vadd.f32 %v3092, %v3172
      %v3223 = vadd.f32 %v3093, %v3171
      %v3224 = vadd.f32 %v3094, %v3172
      %v3225 = vadd.f32 %v3095, %v3171
      %v3226 = vadd.f32 %v3096, %v3172
      %v3227 = vadd.f32 %v3097, %v3171
      %v3228 = vadd.f32 %v3098, %v3172
      %v3229 = vadd.f32 %v3099, %v3171
      %v3230 = vadd.f32 %v3100, %v3172
      %v3231 = vadd.f32 %v3101, %v3171
      %v3232 = vadd.f32 %v3102, %v3172
      %v3233 = vadd.f32 %v3103, %v3171
      %v3234 = vadd.f32 %v3104, %v3172
      %v3235 = vadd.f32 %v3105, %v3171
      %v3236 = vadd.f32 %v3106, %v3172
      %v3237 = vadd.f32 %v3107, %v3171
      %v3238 = vadd.f32 %v3108, %v3172
      %v3239 = vadd.f32 %v3109, %v3171
      %v3240 = vadd.f32 %v3110, %v3172
      %v3241 = vadd.f32 %v3111, %v3171
      %v3242 = vadd.f32 %v3112, %v3172
      %v3243 = vadd.f32 %v3113, %v3171
      %v3244 = vadd.f32 %v3114, %v3172
      %v3245 = vadd.f32 %v3115, %v3171
      %v3246 = vadd.f32 %v3116, %v3172
      %v3247 = vadd.f32 %v3117, %v3171
      %v3248 = vadd.f32 %v3118, %v3172
      %v3249 = vadd.f32 %v3119, %v3171
      %v3250 = vadd.f32 %v3120, %v3172
      %v3251 = vadd.f32 %v3121, %v3171
      %v3252 = vadd.f32 %v3122, %v3172
      %v3253 = vadd.f32 %v3123, %v3171
      %v3254 = vadd.f32 %v3124, %v3172
      %v3255 = vadd.f32 %v3125, %v3171
      %v3256 = vadd.f32 %v3126, %v3172
      %v3257 = vadd.f32 %v3127, %v3171
      %v3258 = vadd.f32 %v3128, %v3172
      %v3259 = vadd.f32 %v3129, %v3171
      %v3260 = vadd.f32 %v3130, %v3172
      %v3261 = vadd.f32 %v3131, %v3171
      %v3262 = vadd.f32 %v3132, %v3172
      %v3263 = vadd.f32 %v3133, %v3171
      %v3264 = vadd.f32 %v3134, %v3172
      %v3265 = vadd.f32 %v3135, %v3171
      %v3266 = vadd.f32 %v3136, %v3172
      %v3267 = vadd.f32 %v3137, %v3171
      %v3268 = vadd.f32 %v3138, %v3172
      %v3269 = vadd.f32 %v3139, %v3171
      %v3270 = vadd.f32 %v3140, %v3172
      %v3271 = vadd.f32 %v3141, %v3171
      %v3272 = vadd.f32 %v3142, %v3172
      %v3273 = vadd.f32 %v3143, %v3171
      %v3274 = vadd.f32 %v3144, %v3172
      %v3275 = vadd.f32 %v3145, %v3171
      %v3276 = vadd.f32 %v3146, %v3172
      %v3277 = vadd.f32 %v3147, %v3171
      %v3278 = vadd.f32 %v3148, %v3172
      %v3279 = vadd.f32 %v3149, %v3171
      %v3280 = vadd.f32 %v3150, %v3172
      %v3281 = vadd.f32 %v3151, %v3171
      %v3282 = vadd.f32 %v3152, %v3172
      %v3283 = vadd.f32 %v3153, %v3171
      %v3284 = vadd.f32 %v3154, %v3172
      %v3285 = vadd.f32 %v3155, %v3171
      %v3286 = vadd.f32 %v3156, %v3172
      %v3287 = vadd.f32 %v3157, %v3171
      %v3288 = vadd.f32 %v3158, %v3172
      %v3289 = vadd.f32 %v3159, %v3171
      %v3290 = vadd.f32 %v3160, %v3172
      %v3291 = vadd.f32 %v3161, %v3171
      %v3292 = vadd.f32 %v3162, %v3172
      %v3293 = vadd.f32 %v3163, %v3171
      %v3294 = vadd.f32 %v3164, %v3172
      %v3295 = vadd.f32 %v3165, %v3171
      %v3296 = vadd.f32 %v3166, %v3172
      %v3297 = vadd.f32 %v3167, %v3171
      %v3298 = vadd.f32 %v3168, %v3172
      %v3299 = vadd.f32 %v3169, %v3171
      %v3300 = vadd.f32 %v3170, %v3172
      %v3301 = vpack.c.bf16 %v3174, %v3173
      %v3302 = vpack.c.bf16 %v3176, %v3175
      %v3303 = vpack.c.bf16 %v3178, %v3177
      %v3304 = vpack.c.bf16 %v3180, %v3179
      %v3305 = vpack.c.bf16 %v3182, %v3181
      %v3306 = vpack.c.bf16 %v3184, %v3183
      %v3307 = vpack.c.bf16 %v3186, %v3185
      %v3308 = vpack.c.bf16 %v3188, %v3187
      %v3309 = vpack.c.bf16 %v3190, %v3189
      %v3310 = vpack.c.bf16 %v3192, %v3191
      %v3311 = vpack.c.bf16 %v3194, %v3193
      %v3312 = vpack.c.bf16 %v3196, %v3195
      %v3313 = vpack.c.bf16 %v3198, %v3197
      %v3314 = vpack.c.bf16 %v3200, %v3199
      %v3315 = vpack.c.bf16 %v3202, %v3201
      %v3316 = vpack.c.bf16 %v3204, %v3203
      %v3317 = vpack.c.bf16 %v3206, %v3205
      %v3318 = vpack.c.bf16 %v3208, %v3207
      %v3319 = vpack.c.bf16 %v3210, %v3209
      %v3320 = vpack.c.bf16 %v3212, %v3211
      %v3321 = vpack.c.bf16 %v3214, %v3213
      %v3322 = vpack.c.bf16 %v3216, %v3215
      %v3323 = vpack.c.bf16 %v3218, %v3217
      %v3324 = vpack.c.bf16 %v3220, %v3219
      %v3325 = vpack.c.bf16 %v3222, %v3221
      %v3326 = vpack.c.bf16 %v3224, %v3223
      %v3327 = vpack.c.bf16 %v3226, %v3225
      %v3328 = vpack.c.bf16 %v3228, %v3227
      %v3329 = vpack.c.bf16 %v3230, %v3229
      %v3330 = vpack.c.bf16 %v3232, %v3231
      %v3331 = vpack.c.bf16 %v3234, %v3233
      %v3332 = vpack.c.bf16 %v3236, %v3235
      %v3333 = vpack.c.bf16 %v3238, %v3237
      %v3334 = vpack.c.bf16 %v3240, %v3239
      %v3335 = vpack.c.bf16 %v3242, %v3241
      %v3336 = vpack.c.bf16 %v3244, %v3243
      %v3337 = vpack.c.bf16 %v3246, %v3245
      %v3338 = vpack.c.bf16 %v3248, %v3247
      %v3339 = vpack.c.bf16 %v3250, %v3249
      %v3340 = vpack.c.bf16 %v3252, %v3251
      %v3341 = vpack.c.bf16 %v3254, %v3253
      %v3342 = vpack.c.bf16 %v3256, %v3255
      %v3343 = vpack.c.bf16 %v3258, %v3257
      %v3344 = vpack.c.bf16 %v3260, %v3259
      %v3345 = vpack.c.bf16 %v3262, %v3261
      %v3346 = vpack.c.bf16 %v3264, %v3263
      %v3347 = vpack.c.bf16 %v3266, %v3265
      %v3348 = vpack.c.bf16 %v3268, %v3267
      %v3349 = vpack.c.bf16 %v3270, %v3269
      %v3350 = vpack.c.bf16 %v3272, %v3271
      %v3351 = vpack.c.bf16 %v3274, %v3273
      %v3352 = vpack.c.bf16 %v3276, %v3275
      %v3353 = vpack.c.bf16 %v3278, %v3277
      %v3354 = vpack.c.bf16 %v3280, %v3279
      %v3355 = vpack.c.bf16 %v3282, %v3281
      %v3356 = vpack.c.bf16 %v3284, %v3283
      %v3357 = vpack.c.bf16 %v3286, %v3285
      %v3358 = vpack.c.bf16 %v3288, %v3287
      %v3359 = vpack.c.bf16 %v3290, %v3289
      %v3360 = vpack.c.bf16 %v3292, %v3291
      %v3361 = vpack.c.bf16 %v3294, %v3293
      %v3362 = vpack.c.bf16 %v3296, %v3295
      %v3363 = vpack.c.bf16 %v3298, %v3297
      %v3364 = vpack.c.bf16 %v3300, %v3299
      %v3365 = vunpack.c.l.bf16 %v3301
      %v3366 = vunpack.c.h.bf16 %v3301
      %v3367 = vunpack.c.l.bf16 %v3302
      %v3368 = vunpack.c.h.bf16 %v3302
      %v3369 = vunpack.c.l.bf16 %v3303
      %v3370 = vunpack.c.h.bf16 %v3303
      %v3371 = vunpack.c.l.bf16 %v3304
      %v3372 = vunpack.c.h.bf16 %v3304
      %v3373 = vunpack.c.l.bf16 %v3305
      %v3374 = vunpack.c.h.bf16 %v3305
      %v3375 = vunpack.c.l.bf16 %v3306
      %v3376 = vunpack.c.h.bf16 %v3306
      %v3377 = vunpack.c.l.bf16 %v3307
      %v3378 = vunpack.c.h.bf16 %v3307
      %v3379 = vunpack.c.l.bf16 %v3308
      %v3380 = vunpack.c.h.bf16 %v3308
      %v3381 = vunpack.c.l.bf16 %v3309
      %v3382 = vunpack.c.h.bf16 %v3309
      %v3383 = vunpack.c.l.bf16 %v3310
      %v3384 = vunpack.c.h.bf16 %v3310
      %v3385 = vunpack.c.l.bf16 %v3311
      %v3386 = vunpack.c.h.bf16 %v3311
      %v3387 = vunpack.c.l.bf16 %v3312
      %v3388 = vunpack.c.h.bf16 %v3312
      %v3389 = vunpack.c.l.bf16 %v3313
      %v3390 = vunpack.c.h.bf16 %v3313
      %v3391 = vunpack.c.l.bf16 %v3314
      %v3392 = vunpack.c.h.bf16 %v3314
      %v3393 = vunpack.c.l.bf16 %v3315
      %v3394 = vunpack.c.h.bf16 %v3315
      %v3395 = vunpack.c.l.bf16 %v3316
      %v3396 = vunpack.c.h.bf16 %v3316
      %v3397 = vunpack.c.l.bf16 %v3317
      %v3398 = vunpack.c.h.bf16 %v3317
      %v3399 = vunpack.c.l.bf16 %v3318
      %v3400 = vunpack.c.h.bf16 %v3318
      %v3401 = vunpack.c.l.bf16 %v3319
      %v3402 = vunpack.c.h.bf16 %v3319
      %v3403 = vunpack.c.l.bf16 %v3320
      %v3404 = vunpack.c.h.bf16 %v3320
      %v3405 = vunpack.c.l.bf16 %v3321
      %v3406 = vunpack.c.h.bf16 %v3321
      %v3407 = vunpack.c.l.bf16 %v3322
      %v3408 = vunpack.c.h.bf16 %v3322
      %v3409 = vunpack.c.l.bf16 %v3323
      %v3410 = vunpack.c.h.bf16 %v3323
      %v3411 = vunpack.c.l.bf16 %v3324
      %v3412 = vunpack.c.h.bf16 %v3324
      %v3413 = vunpack.c.l.bf16 %v3325
      %v3414 = vunpack.c.h.bf16 %v3325
      %v3415 = vunpack.c.l.bf16 %v3326
      %v3416 = vunpack.c.h.bf16 %v3326
      %v3417 = vunpack.c.l.bf16 %v3327
      %v3418 = vunpack.c.h.bf16 %v3327
      %v3419 = vunpack.c.l.bf16 %v3328
      %v3420 = vunpack.c.h.bf16 %v3328
      %v3421 = vunpack.c.l.bf16 %v3329
      %v3422 = vunpack.c.h.bf16 %v3329
      %v3423 = vunpack.c.l.bf16 %v3330
      %v3424 = vunpack.c.h.bf16 %v3330
      %v3425 = vunpack.c.l.bf16 %v3331
      %v3426 = vunpack.c.h.bf16 %v3331
      %v3427 = vunpack.c.l.bf16 %v3332
      %v3428 = vunpack.c.h.bf16 %v3332
      %v3429 = vunpack.c.l.bf16 %v3333
      %v3430 = vunpack.c.h.bf16 %v3333
      %v3431 = vunpack.c.l.bf16 %v3334
      %v3432 = vunpack.c.h.bf16 %v3334
      %v3433 = vunpack.c.l.bf16 %v3335
      %v3434 = vunpack.c.h.bf16 %v3335
      %v3435 = vunpack.c.l.bf16 %v3336
      %v3436 = vunpack.c.h.bf16 %v3336
      %v3437 = vunpack.c.l.bf16 %v3337
      %v3438 = vunpack.c.h.bf16 %v3337
      %v3439 = vunpack.c.l.bf16 %v3338
      %v3440 = vunpack.c.h.bf16 %v3338
      %v3441 = vunpack.c.l.bf16 %v3339
      %v3442 = vunpack.c.h.bf16 %v3339
      %v3443 = vunpack.c.l.bf16 %v3340
      %v3444 = vunpack.c.h.bf16 %v3340
      %v3445 = vunpack.c.l.bf16 %v3341
      %v3446 = vunpack.c.h.bf16 %v3341
      %v3447 = vunpack.c.l.bf16 %v3342
      %v3448 = vunpack.c.h.bf16 %v3342
      %v3449 = vunpack.c.l.bf16 %v3343
      %v3450 = vunpack.c.h.bf16 %v3343
      %v3451 = vunpack.c.l.bf16 %v3344
      %v3452 = vunpack.c.h.bf16 %v3344
      %v3453 = vunpack.c.l.bf16 %v3345
      %v3454 = vunpack.c.h.bf16 %v3345
      %v3455 = vunpack.c.l.bf16 %v3346
      %v3456 = vunpack.c.h.bf16 %v3346
      %v3457 = vunpack.c.l.bf16 %v3347
      %v3458 = vunpack.c.h.bf16 %v3347
      %v3459 = vunpack.c.l.bf16 %v3348
      %v3460 = vunpack.c.h.bf16 %v3348
      %v3461 = vunpack.c.l.bf16 %v3349
      %v3462 = vunpack.c.h.bf16 %v3349
      %v3463 = vunpack.c.l.bf16 %v3350
      %v3464 = vunpack.c.h.bf16 %v3350
      %v3465 = vunpack.c.l.bf16 %v3351
      %v3466 = vunpack.c.h.bf16 %v3351
      %v3467 = vunpack.c.l.bf16 %v3352
      %v3468 = vunpack.c.h.bf16 %v3352
      %v3469 = vunpack.c.l.bf16 %v3353
      %v3470 = vunpack.c.h.bf16 %v3353
      %v3471 = vunpack.c.l.bf16 %v3354
      %v3472 = vunpack.c.h.bf16 %v3354
      %v3473 = vunpack.c.l.bf16 %v3355
      %v3474 = vunpack.c.h.bf16 %v3355
      %v3475 = vunpack.c.l.bf16 %v3356
      %v3476 = vunpack.c.h.bf16 %v3356
      %v3477 = vunpack.c.l.bf16 %v3357
      %v3478 = vunpack.c.h.bf16 %v3357
      %v3479 = vunpack.c.l.bf16 %v3358
      %v3480 = vunpack.c.h.bf16 %v3358
      %v3481 = vunpack.c.l.bf16 %v3359
      %v3482 = vunpack.c.h.bf16 %v3359
      %v3483 = vunpack.c.l.bf16 %v3360
      %v3484 = vunpack.c.h.bf16 %v3360
      %v3485 = vunpack.c.l.bf16 %v3361
      %v3486 = vunpack.c.h.bf16 %v3361
      %v3487 = vunpack.c.l.bf16 %v3362
      %v3488 = vunpack.c.h.bf16 %v3362
      %v3489 = vunpack.c.l.bf16 %v3363
      %v3490 = vunpack.c.h.bf16 %v3363
      %v3491 = vunpack.c.l.bf16 %v3364
      %v3492 = vunpack.c.h.bf16 %v3364
      %v3493 = vmul.f32 %v3365, 0.010009766
      %v3494 = vmul.f32 %v3366, 0.010009766
      %v3495 = vmul.f32 %v3367, 0.010009766
      %v3496 = vmul.f32 %v3368, 0.010009766
      %v3497 = vmul.f32 %v3369, 0.010009766
      %v3498 = vmul.f32 %v3370, 0.010009766
      %v3499 = vmul.f32 %v3371, 0.010009766
      %v3500 = vmul.f32 %v3372, 0.010009766
      %v3501 = vmul.f32 %v3373, 0.010009766
      %v3502 = vmul.f32 %v3374, 0.010009766
      %v3503 = vmul.f32 %v3375, 0.010009766
      %v3504 = vmul.f32 %v3376, 0.010009766
      %v3505 = vmul.f32 %v3377, 0.010009766
      %v3506 = vmul.f32 %v3378, 0.010009766
      %v3507 = vmul.f32 %v3379, 0.010009766
      %v3508 = vmul.f32 %v3380, 0.010009766
      %v3509 = vmul.f32 %v3381, 0.010009766
      %v3510 = vmul.f32 %v3382, 0.010009766
      %v3511 = vmul.f32 %v3383, 0.010009766
      %v3512 = vmul.f32 %v3384, 0.010009766
      %v3513 = vmul.f32 %v3385, 0.010009766
      %v3514 = vmul.f32 %v3386, 0.010009766
      %v3515 = vmul.f32 %v3387, 0.010009766
      %v3516 = vmul.f32 %v3388, 0.010009766
      %v3517 = vmul.f32 %v3389, 0.010009766
      %v3518 = vmul.f32 %v3390, 0.010009766
      %v3519 = vmul.f32 %v3391, 0.010009766
      %v3520 = vmul.f32 %v3392, 0.010009766
      %v3521 = vmul.f32 %v3393, 0.010009766
      %v3522 = vmul.f32 %v3394, 0.010009766
      %v3523 = vmul.f32 %v3395, 0.010009766
      %v3524 = vmul.f32 %v3396, 0.010009766
      %v3525 = vmul.f32 %v3397, 0.010009766
      %v3526 = vmul.f32 %v3398, 0.010009766
      %v3527 = vmul.f32 %v3399, 0.010009766
      %v3528 = vmul.f32 %v3400, 0.010009766
      %v3529 = vmul.f32 %v3401, 0.010009766
      %v3530 = vmul.f32 %v3402, 0.010009766
      %v3531 = vmul.f32 %v3403, 0.010009766
      %v3532 = vmul.f32 %v3404, 0.010009766
      %v3533 = vmul.f32 %v3405, 0.010009766
      %v3534 = vmul.f32 %v3406, 0.010009766
      %v3535 = vmul.f32 %v3407, 0.010009766
      %v3536 = vmul.f32 %v3408, 0.010009766
      %v3537 = vmul.f32 %v3409, 0.010009766
      %v3538 = vmul.f32 %v3410, 0.010009766
      %v3539 = vmul.f32 %v3411, 0.010009766
      %v3540 = vmul.f32 %v3412, 0.010009766
      %v3541 = vmul.f32 %v3413, 0.010009766
      %v3542 = vmul.f32 %v3414, 0.010009766
      %v3543 = vmul.f32 %v3415, 0.010009766
      %v3544 = vmul.f32 %v3416, 0.010009766
      %v3545 = vmul.f32 %v3417, 0.010009766
      %v3546 = vmul.f32 %v3418, 0.010009766
      %v3547 = vmul.f32 %v3419, 0.010009766
      %v3548 = vmul.f32 %v3420, 0.010009766
      %v3549 = vmul.f32 %v3421, 0.010009766
      %v3550 = vmul.f32 %v3422, 0.010009766
      %v3551 = vmul.f32 %v3423, 0.010009766
      %v3552 = vmul.f32 %v3424, 0.010009766
      %v3553 = vmul.f32 %v3425, 0.010009766
      %v3554 = vmul.f32 %v3426, 0.010009766
      %v3555 = vmul.f32 %v3427, 0.010009766
      %v3556 = vmul.f32 %v3428, 0.010009766
      %v3557 = vmul.f32 %v3429, 0.010009766
      %v3558 = vmul.f32 %v3430, 0.010009766
      %v3559 = vmul.f32 %v3431, 0.010009766
      %v3560 = vmul.f32 %v3432, 0.010009766
      %v3561 = vmul.f32 %v3433, 0.010009766
      %v3562 = vmul.f32 %v3434, 0.010009766
      %v3563 = vmul.f32 %v3435, 0.010009766
      %v3564 = vmul.f32 %v3436, 0.010009766
      %v3565 = vmul.f32 %v3437, 0.010009766
      %v3566 = vmul.f32 %v3438, 0.010009766
      %v3567 = vmul.f32 %v3439, 0.010009766
      %v3568 = vmul.f32 %v3440, 0.010009766
      %v3569 = vmul.f32 %v3441, 0.010009766
      %v3570 = vmul.f32 %v3442, 0.010009766
      %v3571 = vmul.f32 %v3443, 0.010009766
      %v3572 = vmul.f32 %v3444, 0.010009766
      %v3573 = vmul.f32 %v3445, 0.010009766
      %v3574 = vmul.f32 %v3446, 0.010009766
      %v3575 = vmul.f32 %v3447, 0.010009766
      %v3576 = vmul.f32 %v3448, 0.010009766
      %v3577 = vmul.f32 %v3449, 0.010009766
      %v3578 = vmul.f32 %v3450, 0.010009766
      %v3579 = vmul.f32 %v3451, 0.010009766
      %v3580 = vmul.f32 %v3452, 0.010009766
      %v3581 = vmul.f32 %v3453, 0.010009766
      %v3582 = vmul.f32 %v3454, 0.010009766
      %v3583 = vmul.f32 %v3455, 0.010009766
      %v3584 = vmul.f32 %v3456, 0.010009766
      %v3585 = vmul.f32 %v3457, 0.010009766
      %v3586 = vmul.f32 %v3458, 0.010009766
      %v3587 = vmul.f32 %v3459, 0.010009766
      %v3588 = vmul.f32 %v3460, 0.010009766
      %v3589 = vmul.f32 %v3461, 0.010009766
      %v3590 = vmul.f32 %v3462, 0.010009766
      %v3591 = vmul.f32 %v3463, 0.010009766
      %v3592 = vmul.f32 %v3464, 0.010009766
      %v3593 = vmul.f32 %v3465, 0.010009766
      %v3594 = vmul.f32 %v3466, 0.010009766
      %v3595 = vmul.f32 %v3467, 0.010009766
      %v3596 = vmul.f32 %v3468, 0.010009766
      %v3597 = vmul.f32 %v3469, 0.010009766
      %v3598 = vmul.f32 %v3470, 0.010009766
      %v3599 = vmul.f32 %v3471, 0.010009766
      %v3600 = vmul.f32 %v3472, 0.010009766
      %v3601 = vmul.f32 %v3473, 0.010009766
      %v3602 = vmul.f32 %v3474, 0.010009766
      %v3603 = vmul.f32 %v3475, 0.010009766
      %v3604 = vmul.f32 %v3476, 0.010009766
      %v3605 = vmul.f32 %v3477, 0.010009766
      %v3606 = vmul.f32 %v3478, 0.010009766
      %v3607 = vmul.f32 %v3479, 0.010009766
      %v3608 = vmul.f32 %v3480, 0.010009766
      %v3609 = vmul.f32 %v3481, 0.010009766
      %v3610 = vmul.f32 %v3482, 0.010009766
      %v3611 = vmul.f32 %v3483, 0.010009766
      %v3612 = vmul.f32 %v3484, 0.010009766
      %v3613 = vmul.f32 %v3485, 0.010009766
      %v3614 = vmul.f32 %v3486, 0.010009766
      %v3615 = vmul.f32 %v3487, 0.010009766
      %v3616 = vmul.f32 %v3488, 0.010009766
      %v3617 = vmul.f32 %v3489, 0.010009766
      %v3618 = vmul.f32 %v3490, 0.010009766
      %v3619 = vmul.f32 %v3491, 0.010009766
      %v3620 = vmul.f32 %v3492, 0.010009766
      %v3621 = vpack.c.bf16 %v3494, %v3493
      %v3622 = vpack.c.bf16 %v3496, %v3495
      %v3623 = vpack.c.bf16 %v3498, %v3497
      %v3624 = vpack.c.bf16 %v3500, %v3499
      %v3625 = vpack.c.bf16 %v3502, %v3501
      %v3626 = vpack.c.bf16 %v3504, %v3503
      %v3627 = vpack.c.bf16 %v3506, %v3505
      %v3628 = vpack.c.bf16 %v3508, %v3507
      %v3629 = vpack.c.bf16 %v3510, %v3509
      %v3630 = vpack.c.bf16 %v3512, %v3511
      %v3631 = vpack.c.bf16 %v3514, %v3513
      %v3632 = vpack.c.bf16 %v3516, %v3515
      %v3633 = vpack.c.bf16 %v3518, %v3517
      %v3634 = vpack.c.bf16 %v3520, %v3519
      %v3635 = vpack.c.bf16 %v3522, %v3521
      %v3636 = vpack.c.bf16 %v3524, %v3523
      %v3637 = vpack.c.bf16 %v3526, %v3525
      %v3638 = vpack.c.bf16 %v3528, %v3527
      %v3639 = vpack.c.bf16 %v3530, %v3529
      %v3640 = vpack.c.bf16 %v3532, %v3531
      %v3641 = vpack.c.bf16 %v3534, %v3533
      %v3642 = vpack.c.bf16 %v3536, %v3535
      %v3643 = vpack.c.bf16 %v3538, %v3537
      %v3644 = vpack.c.bf16 %v3540, %v3539
      %v3645 = vpack.c.bf16 %v3542, %v3541
      %v3646 = vpack.c.bf16 %v3544, %v3543
      %v3647 = vpack.c.bf16 %v3546, %v3545
      %v3648 = vpack.c.bf16 %v3548, %v3547
      %v3649 = vpack.c.bf16 %v3550, %v3549
      %v3650 = vpack.c.bf16 %v3552, %v3551
      %v3651 = vpack.c.bf16 %v3554, %v3553
      %v3652 = vpack.c.bf16 %v3556, %v3555
      %v3653 = vpack.c.bf16 %v3558, %v3557
      %v3654 = vpack.c.bf16 %v3560, %v3559
      %v3655 = vpack.c.bf16 %v3562, %v3561
      %v3656 = vpack.c.bf16 %v3564, %v3563
      %v3657 = vpack.c.bf16 %v3566, %v3565
      %v3658 = vpack.c.bf16 %v3568, %v3567
      %v3659 = vpack.c.bf16 %v3570, %v3569
      %v3660 = vpack.c.bf16 %v3572, %v3571
      %v3661 = vpack.c.bf16 %v3574, %v3573
      %v3662 = vpack.c.bf16 %v3576, %v3575
      %v3663 = vpack.c.bf16 %v3578, %v3577
      %v3664 = vpack.c.bf16 %v3580, %v3579
      %v3665 = vpack.c.bf16 %v3582, %v3581
      %v3666 = vpack.c.bf16 %v3584, %v3583
      %v3667 = vpack.c.bf16 %v3586, %v3585
      %v3668 = vpack.c.bf16 %v3588, %v3587
      %v3669 = vpack.c.bf16 %v3590, %v3589
      %v3670 = vpack.c.bf16 %v3592, %v3591
      %v3671 = vpack.c.bf16 %v3594, %v3593
      %v3672 = vpack.c.bf16 %v3596, %v3595
      %v3673 = vpack.c.bf16 %v3598, %v3597
      %v3674 = vpack.c.bf16 %v3600, %v3599
      %v3675 = vpack.c.bf16 %v3602, %v3601
      %v3676 = vpack.c.bf16 %v3604, %v3603
      %v3677 = vpack.c.bf16 %v3606, %v3605
      %v3678 = vpack.c.bf16 %v3608, %v3607
      %v3679 = vpack.c.bf16 %v3610, %v3609
      %v3680 = vpack.c.bf16 %v3612, %v3611
      %v3681 = vpack.c.bf16 %v3614, %v3613
      %v3682 = vpack.c.bf16 %v3616, %v3615
      %v3683 = vpack.c.bf16 %v3618, %v3617
      %v3684 = vpack.c.bf16 %v3620, %v3619
      %v3685 = vunpack.c.l.bf16 %v3621
      %v3686 = vunpack.c.h.bf16 %v3621
      %v3687 = vunpack.c.l.bf16 %v3622
      %v3688 = vunpack.c.h.bf16 %v3622
      %v3689 = vunpack.c.l.bf16 %v3623
      %v3690 = vunpack.c.h.bf16 %v3623
      %v3691 = vunpack.c.l.bf16 %v3624
      %v3692 = vunpack.c.h.bf16 %v3624
      %v3693 = vunpack.c.l.bf16 %v3625
      %v3694 = vunpack.c.h.bf16 %v3625
      %v3695 = vunpack.c.l.bf16 %v3626
      %v3696 = vunpack.c.h.bf16 %v3626
      %v3697 = vunpack.c.l.bf16 %v3627
      %v3698 = vunpack.c.h.bf16 %v3627
      %v3699 = vunpack.c.l.bf16 %v3628
      %v3700 = vunpack.c.h.bf16 %v3628
      %v3701 = vunpack.c.l.bf16 %v3629
      %v3702 = vunpack.c.h.bf16 %v3629
      %v3703 = vunpack.c.l.bf16 %v3630
      %v3704 = vunpack.c.h.bf16 %v3630
      %v3705 = vunpack.c.l.bf16 %v3631
      %v3706 = vunpack.c.h.bf16 %v3631
      %v3707 = vunpack.c.l.bf16 %v3632
      %v3708 = vunpack.c.h.bf16 %v3632
      %v3709 = vunpack.c.l.bf16 %v3633
      %v3710 = vunpack.c.h.bf16 %v3633
      %v3711 = vunpack.c.l.bf16 %v3634
      %v3712 = vunpack.c.h.bf16 %v3634
      %v3713 = vunpack.c.l.bf16 %v3635
      %v3714 = vunpack.c.h.bf16 %v3635
      %v3715 = vunpack.c.l.bf16 %v3636
      %v3716 = vunpack.c.h.bf16 %v3636
      %v3717 = vunpack.c.l.bf16 %v3637
      %v3718 = vunpack.c.h.bf16 %v3637
      %v3719 = vunpack.c.l.bf16 %v3638
      %v3720 = vunpack.c.h.bf16 %v3638
      %v3721 = vunpack.c.l.bf16 %v3639
      %v3722 = vunpack.c.h.bf16 %v3639
      %v3723 = vunpack.c.l.bf16 %v3640
      %v3724 = vunpack.c.h.bf16 %v3640
      %v3725 = vunpack.c.l.bf16 %v3641
      %v3726 = vunpack.c.h.bf16 %v3641
      %v3727 = vunpack.c.l.bf16 %v3642
      %v3728 = vunpack.c.h.bf16 %v3642
      %v3729 = vunpack.c.l.bf16 %v3643
      %v3730 = vunpack.c.h.bf16 %v3643
      %v3731 = vunpack.c.l.bf16 %v3644
      %v3732 = vunpack.c.h.bf16 %v3644
      %v3733 = vunpack.c.l.bf16 %v3645
      %v3734 = vunpack.c.h.bf16 %v3645
      %v3735 = vunpack.c.l.bf16 %v3646
      %v3736 = vunpack.c.h.bf16 %v3646
      %v3737 = vunpack.c.l.bf16 %v3647
      %v3738 = vunpack.c.h.bf16 %v3647
      %v3739 = vunpack.c.l.bf16 %v3648
      %v3740 = vunpack.c.h.bf16 %v3648
      %v3741 = vunpack.c.l.bf16 %v3649
      %v3742 = vunpack.c.h.bf16 %v3649
      %v3743 = vunpack.c.l.bf16 %v3650
      %v3744 = vunpack.c.h.bf16 %v3650
      %v3745 = vunpack.c.l.bf16 %v3651
      %v3746 = vunpack.c.h.bf16 %v3651
      %v3747 = vunpack.c.l.bf16 %v3652
      %v3748 = vunpack.c.h.bf16 %v3652
      %v3749 = vunpack.c.l.bf16 %v3653
      %v3750 = vunpack.c.h.bf16 %v3653
      %v3751 = vunpack.c.l.bf16 %v3654
      %v3752 = vunpack.c.h.bf16 %v3654
      %v3753 = vunpack.c.l.bf16 %v3655
      %v3754 = vunpack.c.h.bf16 %v3655
      %v3755 = vunpack.c.l.bf16 %v3656
      %v3756 = vunpack.c.h.bf16 %v3656
      %v3757 = vunpack.c.l.bf16 %v3657
      %v3758 = vunpack.c.h.bf16 %v3657
      %v3759 = vunpack.c.l.bf16 %v3658
      %v3760 = vunpack.c.h.bf16 %v3658
      %v3761 = vunpack.c.l.bf16 %v3659
      %v3762 = vunpack.c.h.bf16 %v3659
      %v3763 = vunpack.c.l.bf16 %v3660
      %v3764 = vunpack.c.h.bf16 %v3660
      %v3765 = vunpack.c.l.bf16 %v3661
      %v3766 = vunpack.c.h.bf16 %v3661
      %v3767 = vunpack.c.l.bf16 %v3662
      %v3768 = vunpack.c.h.bf16 %v3662
      %v3769 = vunpack.c.l.bf16 %v3663
      %v3770 = vunpack.c.h.bf16 %v3663
      %v3771 = vunpack.c.l.bf16 %v3664
      %v3772 = vunpack.c.h.bf16 %v3664
      %v3773 = vunpack.c.l.bf16 %v3665
      %v3774 = vunpack.c.h.bf16 %v3665
      %v3775 = vunpack.c.l.bf16 %v3666
      %v3776 = vunpack.c.h.bf16 %v3666
      %v3777 = vunpack.c.l.bf16 %v3667
      %v3778 = vunpack.c.h.bf16 %v3667
      %v3779 = vunpack.c.l.bf16 %v3668
      %v3780 = vunpack.c.h.bf16 %v3668
      %v3781 = vunpack.c.l.bf16 %v3669
      %v3782 = vunpack.c.h.bf16 %v3669
      %v3783 = vunpack.c.l.bf16 %v3670
      %v3784 = vunpack.c.h.bf16 %v3670
      %v3785 = vunpack.c.l.bf16 %v3671
      %v3786 = vunpack.c.h.bf16 %v3671
      %v3787 = vunpack.c.l.bf16 %v3672
      %v3788 = vunpack.c.h.bf16 %v3672
      %v3789 = vunpack.c.l.bf16 %v3673
      %v3790 = vunpack.c.h.bf16 %v3673
      %v3791 = vunpack.c.l.bf16 %v3674
      %v3792 = vunpack.c.h.bf16 %v3674
      %v3793 = vunpack.c.l.bf16 %v3675
      %v3794 = vunpack.c.h.bf16 %v3675
      %v3795 = vunpack.c.l.bf16 %v3676
      %v3796 = vunpack.c.h.bf16 %v3676
      %v3797 = vunpack.c.l.bf16 %v3677
      %v3798 = vunpack.c.h.bf16 %v3677
      %v3799 = vunpack.c.l.bf16 %v3678
      %v3800 = vunpack.c.h.bf16 %v3678
      %v3801 = vunpack.c.l.bf16 %v3679
      %v3802 = vunpack.c.h.bf16 %v3679
      %v3803 = vunpack.c.l.bf16 %v3680
      %v3804 = vunpack.c.h.bf16 %v3680
      %v3805 = vunpack.c.l.bf16 %v3681
      %v3806 = vunpack.c.h.bf16 %v3681
      %v3807 = vunpack.c.l.bf16 %v3682
      %v3808 = vunpack.c.h.bf16 %v3682
      %v3809 = vunpack.c.l.bf16 %v3683
      %v3810 = vunpack.c.h.bf16 %v3683
      %v3811 = vunpack.c.l.bf16 %v3684
      %v3812 = vunpack.c.h.bf16 %v3684
      %v3813 = vmax.f32 %v3365, %v3685
      %v3814 = vmax.f32 %v3366, %v3686
      %v3815 = vmax.f32 %v3367, %v3687
      %v3816 = vmax.f32 %v3368, %v3688
      %v3817 = vmax.f32 %v3369, %v3689
      %v3818 = vmax.f32 %v3370, %v3690
      %v3819 = vmax.f32 %v3371, %v3691
      %v3820 = vmax.f32 %v3372, %v3692
      %v3821 = vmax.f32 %v3373, %v3693
      %v3822 = vmax.f32 %v3374, %v3694
      %v3823 = vmax.f32 %v3375, %v3695
      %v3824 = vmax.f32 %v3376, %v3696
      %v3825 = vmax.f32 %v3377, %v3697
      %v3826 = vmax.f32 %v3378, %v3698
      %v3827 = vmax.f32 %v3379, %v3699
      %v3828 = vmax.f32 %v3380, %v3700
      %v3829 = vmax.f32 %v3381, %v3701
      %v3830 = vmax.f32 %v3382, %v3702
      %v3831 = vmax.f32 %v3383, %v3703
      %v3832 = vmax.f32 %v3384, %v3704
      %v3833 = vmax.f32 %v3385, %v3705
      %v3834 = vmax.f32 %v3386, %v3706
      %v3835 = vmax.f32 %v3387, %v3707
      %v3836 = vmax.f32 %v3388, %v3708
      %v3837 = vmax.f32 %v3389, %v3709
      %v3838 = vmax.f32 %v3390, %v3710
      %v3839 = vmax.f32 %v3391, %v3711
      %v3840 = vmax.f32 %v3392, %v3712
      %v3841 = vmax.f32 %v3393, %v3713
      %v3842 = vmax.f32 %v3394, %v3714
      %v3843 = vmax.f32 %v3395, %v3715
      %v3844 = vmax.f32 %v3396, %v3716
      %v3845 = vmax.f32 %v3397, %v3717
      %v3846 = vmax.f32 %v3398, %v3718
      %v3847 = vmax.f32 %v3399, %v3719
      %v3848 = vmax.f32 %v3400, %v3720
      %v3849 = vmax.f32 %v3401, %v3721
      %v3850 = vmax.f32 %v3402, %v3722
      %v3851 = vmax.f32 %v3403, %v3723
      %v3852 = vmax.f32 %v3404, %v3724
      %v3853 = vmax.f32 %v3405, %v3725
      %v3854 = vmax.f32 %v3406, %v3726
      %v3855 = vmax.f32 %v3407, %v3727
      %v3856 = vmax.f32 %v3408, %v3728
      %v3857 = vmax.f32 %v3409, %v3729
      %v3858 = vmax.f32 %v3410, %v3730
      %v3859 = vmax.f32 %v3411, %v3731
      %v3860 = vmax.f32 %v3412, %v3732
      %v3861 = vmax.f32 %v3413, %v3733
      %v3862 = vmax.f32 %v3414, %v3734
      %v3863 = vmax.f32 %v3415, %v3735
      %v3864 = vmax.f32 %v3416, %v3736
      %v3865 = vmax.f32 %v3417, %v3737
      %v3866 = vmax.f32 %v3418, %v3738
      %v3867 = vmax.f32 %v3419, %v3739
      %v3868 = vmax.f32 %v3420, %v3740
      %v3869 = vmax.f32 %v3421, %v3741
      %v3870 = vmax.f32 %v3422, %v3742
      %v3871 = vmax.f32 %v3423, %v3743
      %v3872 = vmax.f32 %v3424, %v3744
      %v3873 = vmax.f32 %v3425, %v3745
      %v3874 = vmax.f32 %v3426, %v3746
      %v3875 = vmax.f32 %v3427, %v3747
      %v3876 = vmax.f32 %v3428, %v3748
      %v3877 = vmax.f32 %v3429, %v3749
      %v3878 = vmax.f32 %v3430, %v3750
      %v3879 = vmax.f32 %v3431, %v3751
      %v3880 = vmax.f32 %v3432, %v3752
      %v3881 = vmax.f32 %v3433, %v3753
      %v3882 = vmax.f32 %v3434, %v3754
      %v3883 = vmax.f32 %v3435, %v3755
      %v3884 = vmax.f32 %v3436, %v3756
      %v3885 = vmax.f32 %v3437, %v3757
      %v3886 = vmax.f32 %v3438, %v3758
      %v3887 = vmax.f32 %v3439, %v3759
      %v3888 = vmax.f32 %v3440, %v3760
      %v3889 = vmax.f32 %v3441, %v3761
      %v3890 = vmax.f32 %v3442, %v3762
      %v3891 = vmax.f32 %v3443, %v3763
      %v3892 = vmax.f32 %v3444, %v3764
      %v3893 = vmax.f32 %v3445, %v3765
      %v3894 = vmax.f32 %v3446, %v3766
      %v3895 = vmax.f32 %v3447, %v3767
      %v3896 = vmax.f32 %v3448, %v3768
      %v3897 = vmax.f32 %v3449, %v3769
      %v3898 = vmax.f32 %v3450, %v3770
      %v3899 = vmax.f32 %v3451, %v3771
      %v3900 = vmax.f32 %v3452, %v3772
      %v3901 = vmax.f32 %v3453, %v3773
      %v3902 = vmax.f32 %v3454, %v3774
      %v3903 = vmax.f32 %v3455, %v3775
      %v3904 = vmax.f32 %v3456, %v3776
      %v3905 = vmax.f32 %v3457, %v3777
      %v3906 = vmax.f32 %v3458, %v3778
      %v3907 = vmax.f32 %v3459, %v3779
      %v3908 = vmax.f32 %v3460, %v3780
      %v3909 = vmax.f32 %v3461, %v3781
      %v3910 = vmax.f32 %v3462, %v3782
      %v3911 = vmax.f32 %v3463, %v3783
      %v3912 = vmax.f32 %v3464, %v3784
      %v3913 = vmax.f32 %v3465, %v3785
      %v3914 = vmax.f32 %v3466, %v3786
      %v3915 = vmax.f32 %v3467, %v3787
      %v3916 = vmax.f32 %v3468, %v3788
      %v3917 = vmax.f32 %v3469, %v3789
      %v3918 = vmax.f32 %v3470, %v3790
      %v3919 = vmax.f32 %v3471, %v3791
      %v3920 = vmax.f32 %v3472, %v3792
      %v3921 = vmax.f32 %v3473, %v3793
      %v3922 = vmax.f32 %v3474, %v3794
      %v3923 = vmax.f32 %v3475, %v3795
      %v3924 = vmax.f32 %v3476, %v3796
      %v3925 = vmax.f32 %v3477, %v3797
      %v3926 = vmax.f32 %v3478, %v3798
      %v3927 = vmax.f32 %v3479, %v3799
      %v3928 = vmax.f32 %v3480, %v3800
      %v3929 = vmax.f32 %v3481, %v3801
      %v3930 = vmax.f32 %v3482, %v3802
      %v3931 = vmax.f32 %v3483, %v3803
      %v3932 = vmax.f32 %v3484, %v3804
      %v3933 = vmax.f32 %v3485, %v3805
      %v3934 = vmax.f32 %v3486, %v3806
      %v3935 = vmax.f32 %v3487, %v3807
      %v3936 = vmax.f32 %v3488, %v3808
      %v3937 = vmax.f32 %v3489, %v3809
      %v3938 = vmax.f32 %v3490, %v3810
      %v3939 = vmax.f32 %v3491, %v3811
      %v3940 = vmax.f32 %v3492, %v3812
      %v3941 = vpack.c.bf16 %v3815, %v3813
      %v3942 = vpack.c.bf16 %v3816, %v3814
      %v3943 = vpack.c.bf16 %v3819, %v3817
      %v3944 = vpack.c.bf16 %v3820, %v3818
      %v3945 = vpack.c.bf16 %v3823, %v3821
      %v3946 = vpack.c.bf16 %v3824, %v3822
      %v3947 = vpack.c.bf16 %v3827, %v3825
      %v3948 = vpack.c.bf16 %v3828, %v3826
      %v3949 = vpack.c.bf16 %v3831, %v3829
      %v3950 = vpack.c.bf16 %v3832, %v3830
      %v3951 = vpack.c.bf16 %v3835, %v3833
      %v3952 = vpack.c.bf16 %v3836, %v3834
      %v3953 = vpack.c.bf16 %v3839, %v3837
      %v3954 = vpack.c.bf16 %v3840, %v3838
      %v3955 = vpack.c.bf16 %v3843, %v3841
      %v3956 = vpack.c.bf16 %v3844, %v3842
      %v3957 = vpack.c.bf16 %v3847, %v3845
      %v3958 = vpack.c.bf16 %v3848, %v3846
      %v3959 = vpack.c.bf16 %v3851, %v3849
      %v3960 = vpack.c.bf16 %v3852, %v3850
      %v3961 = vpack.c.bf16 %v3855, %v3853
      %v3962 = vpack.c.bf16 %v3856, %v3854
      %v3963 = vpack.c.bf16 %v3859, %v3857
      %v3964 = vpack.c.bf16 %v3860, %v3858
      %v3965 = vpack.c.bf16 %v3863, %v3861
      %v3966 = vpack.c.bf16 %v3864, %v3862
      %v3967 = vpack.c.bf16 %v3867, %v3865
      %v3968 = vpack.c.bf16 %v3868, %v3866
      %v3969 = vpack.c.bf16 %v3871, %v3869
      %v3970 = vpack.c.bf16 %v3872, %v3870
      %v3971 = vpack.c.bf16 %v3875, %v3873
      %v3972 = vpack.c.bf16 %v3876, %v3874
      %v3973 = vpack.c.bf16 %v3879, %v3877
      %v3974 = vpack.c.bf16 %v3880, %v3878
      %v3975 = vpack.c.bf16 %v3883, %v3881
      %v3976 = vpack.c.bf16 %v3884, %v3882
      %v3977 = vpack.c.bf16 %v3887, %v3885
      %v3978 = vpack.c.bf16 %v3888, %v3886
      %v3979 = vpack.c.bf16 %v3891, %v3889
      %v3980 = vpack.c.bf16 %v3892, %v3890
      %v3981 = vpack.c.bf16 %v3895, %v3893
      %v3982 = vpack.c.bf16 %v3896, %v3894
      %v3983 = vpack.c.bf16 %v3899, %v3897
      %v3984 = vpack.c.bf16 %v3900, %v3898
      %v3985 = vpack.c.bf16 %v3903, %v3901
      %v3986 = vpack.c.bf16 %v3904, %v3902
      %v3987 = vpack.c.bf16 %v3907, %v3905
      %v3988 = vpack.c.bf16 %v3908, %v3906
      %v3989 = vpack.c.bf16 %v3911, %v3909
      %v3990 = vpack.c.bf16 %v3912, %v3910
      %v3991 = vpack.c.bf16 %v3915, %v3913
      %v3992 = vpack.c.bf16 %v3916, %v3914
      %v3993 = vpack.c.bf16 %v3919, %v3917
      %v3994 = vpack.c.bf16 %v3920, %v3918
      %v3995 = vpack.c.bf16 %v3923, %v3921
      %v3996 = vpack.c.bf16 %v3924, %v3922
      %v3997 = vpack.c.bf16 %v3927, %v3925
      %v3998 = vpack.c.bf16 %v3928, %v3926
      %v3999 = vpack.c.bf16 %v3931, %v3929
      %v4000 = vpack.c.bf16 %v3932, %v3930
      %v4001 = vpack.c.bf16 %v3935, %v3933
      %v4002 = vpack.c.bf16 %v3936, %v3934
      %v4003 = vpack.c.bf16 %v3939, %v3937
      %v4004 = vpack.c.bf16 %v3940, %v3938
      %v4005 = vld [vmem:[%s5] sm:$0xff]
      %v4006 = vld [vmem:[%s5 + $0x8] sm:$0xff]
      %v4007 = vld [vmem:[%s5 + $0x10] sm:$0xff]
      %v4008 = vld [vmem:[%s5 + $0x18] sm:$0xff]
      %v4009 = vld [vmem:[%s5 + $0x20] sm:$0xff]
      %v4010 = vld [vmem:[%s5 + $0x28] sm:$0xff]
      %v4011 = vld [vmem:[%s5 + $0x30] sm:$0xff]
      %v4012 = vld [vmem:[%s5 + $0x38] sm:$0xff]
      %v4013 = vld [vmem:[%s5 + $0x40] sm:$0xff]
      %v4014 = vld [vmem:[%s5 + $0x48] sm:$0xff]
      %v4015 = vld [vmem:[%s5 + $0x50] sm:$0xff]
      %v4016 = vld [vmem:[%s5 + $0x58] sm:$0xff]
      %v4017 = vld [vmem:[%s5 + $0x60] sm:$0xff]
      %v4018 = vld [vmem:[%s5 + $0x68] sm:$0xff]
      %v4019 = vld [vmem:[%s5 + $0x70] sm:$0xff]
      %v4020 = vld [vmem:[%s5 + $0x78] sm:$0xff]
      %v4021 = vld [vmem:[%s5 + $0x80] sm:$0xff]
      %v4022 = vld [vmem:[%s5 + $0x88] sm:$0xff]
      %v4023 = vld [vmem:[%s5 + $0x90] sm:$0xff]
      %v4024 = vld [vmem:[%s5 + $0x98] sm:$0xff]
      %v4025 = vld [vmem:[%s5 + $0xa0] sm:$0xff]
      %v4026 = vld [vmem:[%s5 + $0xa8] sm:$0xff]
      %v4027 = vld [vmem:[%s5 + $0xb0] sm:$0xff]
      %v4028 = vld [vmem:[%s5 + $0xb8] sm:$0xff]
      %v4029 = vld [vmem:[%s5 + $0xc0] sm:$0xff]
      %v4030 = vld [vmem:[%s5 + $0xc8] sm:$0xff]
      %v4031 = vld [vmem:[%s5 + $0xd0] sm:$0xff]
      %v4032 = vld [vmem:[%s5 + $0xd8] sm:$0xff]
      %v4033 = vld [vmem:[%s5 + $0xe0] sm:$0xff]
      %v4034 = vld [vmem:[%s5 + $0xe8] sm:$0xff]
      %v4035 = vld [vmem:[%s5 + $0xf0] sm:$0xff]
      %v4036 = vld [vmem:[%s5 + $0xf8] sm:$0xff]
      %v4069 = vunpack.c.l.b16 %v4005
      %v4070 = vunpack.c.h.b16 %v4005
      %v4071 = vunpack.c.l.b16 %v4006
      %v4072 = vunpack.c.h.b16 %v4006
      %v4073 = vunpack.c.l.b16 %v4007
      %v4074 = vunpack.c.h.b16 %v4007
      %v4075 = vunpack.c.l.b16 %v4008
      %v4076 = vunpack.c.h.b16 %v4008
      %v4077 = vunpack.c.l.b16 %v4009
      %v4078 = vunpack.c.h.b16 %v4009
      %v4079 = vunpack.c.l.b16 %v4010
      %v4080 = vunpack.c.h.b16 %v4010
      %v4081 = vunpack.c.l.b16 %v4011
      %v4082 = vunpack.c.h.b16 %v4011
      %v4083 = vunpack.c.l.b16 %v4012
      %v4084 = vunpack.c.h.b16 %v4012
      %v4085 = vunpack.c.l.b16 %v4013
      %v4086 = vunpack.c.h.b16 %v4013
      %v4087 = vunpack.c.l.b16 %v4014
      %v4088 = vunpack.c.h.b16 %v4014
      %v4089 = vunpack.c.l.b16 %v4015
      %v4090 = vunpack.c.h.b16 %v4015
      %v4091 = vunpack.c.l.b16 %v4016
      %v4092 = vunpack.c.h.b16 %v4016
      %v4093 = vunpack.c.l.b16 %v4017
      %v4094 = vunpack.c.h.b16 %v4017
      %v4095 = vunpack.c.l.b16 %v4018
      %v4096 = vunpack.c.h.b16 %v4018
      %v4097 = vunpack.c.l.b16 %v4019
      %v4098 = vunpack.c.h.b16 %v4019
      %v4099 = vunpack.c.l.b16 %v4020
      %v4100 = vunpack.c.h.b16 %v4020
      %v4101 = vunpack.c.l.b16 %v4021
      %v4102 = vunpack.c.h.b16 %v4021
      %v4103 = vunpack.c.l.b16 %v4022
      %v4104 = vunpack.c.h.b16 %v4022
      %v4105 = vunpack.c.l.b16 %v4023
      %v4106 = vunpack.c.h.b16 %v4023
      %v4107 = vunpack.c.l.b16 %v4024
      %v4108 = vunpack.c.h.b16 %v4024
      %v4109 = vunpack.c.l.b16 %v4025
      %v4110 = vunpack.c.h.b16 %v4025
      %v4111 = vunpack.c.l.b16 %v4026
      %v4112 = vunpack.c.h.b16 %v4026
      %v4113 = vunpack.c.l.b16 %v4027
      %v4114 = vunpack.c.h.b16 %v4027
      %v4115 = vunpack.c.l.b16 %v4028
      %v4116 = vunpack.c.h.b16 %v4028
      %v4117 = vunpack.c.l.b16 %v4029
      %v4118 = vunpack.c.h.b16 %v4029
      %v4119 = vunpack.c.l.b16 %v4030
      %v4120 = vunpack.c.h.b16 %v4030
      %v4121 = vunpack.c.l.b16 %v4031
      %v4122 = vunpack.c.h.b16 %v4031
      %v4123 = vunpack.c.l.b16 %v4032
      %v4124 = vunpack.c.h.b16 %v4032
      %v4125 = vunpack.c.l.b16 %v4033
      %v4126 = vunpack.c.h.b16 %v4033
      %v4127 = vunpack.c.l.b16 %v4034
      %v4128 = vunpack.c.h.b16 %v4034
      %v4129 = vunpack.c.l.b16 %v4035
      %v4130 = vunpack.c.h.b16 %v4035
      %v4131 = vunpack.c.l.b16 %v4036
      %v4132 = vunpack.c.h.b16 %v4036
      %v4133 = vpack.c.b16 %v4071, %v4069
      %v4134 = vpack.c.b16 %v4072, %v4070
      %v4135 = vpack.c.b16 %v4075, %v4073
      %v4136 = vpack.c.b16 %v4076, %v4074
      %v4137 = vpack.c.b16 %v4079, %v4077
      %v4138 = vpack.c.b16 %v4080, %v4078
      %v4139 = vpack.c.b16 %v4083, %v4081
      %v4140 = vpack.c.b16 %v4084, %v4082
      %v4141 = vpack.c.b16 %v4087, %v4085
      %v4142 = vpack.c.b16 %v4088, %v4086
      %v4143 = vpack.c.b16 %v4091, %v4089
      %v4144 = vpack.c.b16 %v4092, %v4090
      %v4145 = vpack.c.b16 %v4095, %v4093
      %v4146 = vpack.c.b16 %v4096, %v4094
      %v4147 = vpack.c.b16 %v4099, %v4097
      %v4148 = vpack.c.b16 %v4100, %v4098
      %v4149 = vpack.c.b16 %v4103, %v4101
      %v4150 = vpack.c.b16 %v4104, %v4102
      %v4151 = vpack.c.b16 %v4107, %v4105
      %v4152 = vpack.c.b16 %v4108, %v4106
      %v4153 = vpack.c.b16 %v4111, %v4109
      %v4154 = vpack.c.b16 %v4112, %v4110
      %v4155 = vpack.c.b16 %v4115, %v4113
      %v4156 = vpack.c.b16 %v4116, %v4114
      %v4157 = vpack.c.b16 %v4119, %v4117
      %v4158 = vpack.c.b16 %v4120, %v4118
      %v4159 = vpack.c.b16 %v4123, %v4121
      %v4160 = vpack.c.b16 %v4124, %v4122
      %v4161 = vpack.c.b16 %v4127, %v4125
      %v4162 = vpack.c.b16 %v4128, %v4126
      %v4163 = vpack.c.b16 %v4131, %v4129
      %v4164 = vpack.c.b16 %v4132, %v4130
      %4197 = vmatpush.bf16.msra.mxu0 %v4147
      %4198 = vmatpush.bf16.msra.mxu0 %v4145
      %4199 = vmatpush.bf16.msra.mxu0 %v4143
      %4200 = vmatpush.bf16.msra.mxu0 %v4141
      %4201 = vmatpush.bf16.msra.mxu0 %v4139
      %4202 = vmatpush.bf16.msra.mxu0 %v4137
      %4203 = vmatpush.bf16.msra.mxu0 %v4135
      %4204 = vmatpush.bf16.msra.mxu0 %v4133
      %4205 = vmatmul.bf16.gmra.mxu0 %v3941
      %v4206 = vpop.f32.mrf.mxu0
      %v4207 = vadd.f32 0.0, %v4206
      %v4208 = vpop.f32.mrf.mxu0
      %v4209 = vadd.f32 0.0, %v4208
      %4210 = vmatmul.bf16.gmra.mxu0 %v3943
      %v4211 = vpop.f32.mrf.mxu0
      %v4212 = vadd.f32 0.0, %v4211
      %v4213 = vpop.f32.mrf.mxu0
      %v4214 = vadd.f32 0.0, %v4213
      %4215 = vmatmul.bf16.gmra.mxu0 %v3945
      %v4216 = vpop.f32.mrf.mxu0
      %v4217 = vadd.f32 0.0, %v4216
      %v4218 = vpop.f32.mrf.mxu0
      %v4219 = vadd.f32 0.0, %v4218
      %4220 = vmatmul.bf16.gmra.mxu0 %v3947
      %v4221 = vpop.f32.mrf.mxu0
      %v4222 = vadd.f32 0.0, %v4221
      %v4223 = vpop.f32.mrf.mxu0
      %v4224 = vadd.f32 0.0, %v4223
      %4225 = vmatmul.bf16.gmra.mxu0 %v3949
      %v4226 = vpop.f32.mrf.mxu0
      %v4227 = vadd.f32 0.0, %v4226
      %v4228 = vpop.f32.mrf.mxu0
      %v4229 = vadd.f32 0.0, %v4228
      %4230 = vmatmul.bf16.gmra.mxu0 %v3951
      %v4231 = vpop.f32.mrf.mxu0
      %v4232 = vadd.f32 0.0, %v4231
      %v4233 = vpop.f32.mrf.mxu0
      %v4234 = vadd.f32 0.0, %v4233
      %4235 = vmatmul.bf16.gmra.mxu0 %v3953
      %v4236 = vpop.f32.mrf.mxu0
      %v4237 = vadd.f32 0.0, %v4236
      %v4238 = vpop.f32.mrf.mxu0
      %v4239 = vadd.f32 0.0, %v4238
      %4240 = vmatmul.bf16.gmra.mxu0 %v3955
      %v4241 = vpop.f32.mrf.mxu0
      %v4242 = vadd.f32 0.0, %v4241
      %v4243 = vpop.f32.mrf.mxu0
      %v4244 = vadd.f32 0.0, %v4243
      %4245 = vmatmul.bf16.gmra.mxu0 %v3957
      %v4246 = vpop.f32.mrf.mxu0
      %v4247 = vadd.f32 0.0, %v4246
      %v4248 = vpop.f32.mrf.mxu0
      %v4249 = vadd.f32 0.0, %v4248
      %4250 = vmatmul.bf16.gmra.mxu0 %v3959
      %v4251 = vpop.f32.mrf.mxu0
      %v4252 = vadd.f32 0.0, %v4251
      %v4253 = vpop.f32.mrf.mxu0
      %v4254 = vadd.f32 0.0, %v4253
      %4255 = vmatmul.bf16.gmra.mxu0 %v3961
      %v4256 = vpop.f32.mrf.mxu0
      %v4257 = vadd.f32 0.0, %v4256
      %v4258 = vpop.f32.mrf.mxu0
      %v4259 = vadd.f32 0.0, %v4258
      %4260 = vmatmul.bf16.gmra.mxu0 %v3963
      %v4261 = vpop.f32.mrf.mxu0
      %v4262 = vadd.f32 0.0, %v4261
      %v4263 = vpop.f32.mrf.mxu0
      %v4264 = vadd.f32 0.0, %v4263
      %4265 = vmatmul.bf16.gmra.mxu0 %v3965
      %v4266 = vpop.f32.mrf.mxu0
      %v4267 = vadd.f32 0.0, %v4266
      %v4268 = vpop.f32.mrf.mxu0
      %v4269 = vadd.f32 0.0, %v4268
      %4270 = vmatmul.bf16.gmra.mxu0 %v3967
      %v4271 = vpop.f32.mrf.mxu0
      %v4272 = vadd.f32 0.0, %v4271
      %v4273 = vpop.f32.mrf.mxu0
      %v4274 = vadd.f32 0.0, %v4273
      %4275 = vmatmul.bf16.gmra.mxu0 %v3969
      %v4276 = vpop.f32.mrf.mxu0
      %v4277 = vadd.f32 0.0, %v4276
      %v4278 = vpop.f32.mrf.mxu0
      %v4279 = vadd.f32 0.0, %v4278
      %4280 = vmatmul.bf16.gmra.mxu0 %v3971
      %v4281 = vpop.f32.mrf.mxu0
      %v4282 = vadd.f32 0.0, %v4281
      %v4283 = vpop.f32.mrf.mxu0
      %v4284 = vadd.f32 0.0, %v4283
      %4285 = vmatmul.bf16.gmra.mxu0 %v3973
      %v4286 = vpop.f32.mrf.mxu0
      %v4287 = vadd.f32 0.0, %v4286
      %v4288 = vpop.f32.mrf.mxu0
      %v4289 = vadd.f32 0.0, %v4288
      %4290 = vmatmul.bf16.gmra.mxu0 %v3975
      %v4291 = vpop.f32.mrf.mxu0
      %v4292 = vadd.f32 0.0, %v4291
      %v4293 = vpop.f32.mrf.mxu0
      %v4294 = vadd.f32 0.0, %v4293
      %4295 = vmatmul.bf16.gmra.mxu0 %v3977
      %v4296 = vpop.f32.mrf.mxu0
      %v4297 = vadd.f32 0.0, %v4296
      %v4298 = vpop.f32.mrf.mxu0
      %v4299 = vadd.f32 0.0, %v4298
      %4300 = vmatmul.bf16.gmra.mxu0 %v3979
      %v4301 = vpop.f32.mrf.mxu0
      %v4302 = vadd.f32 0.0, %v4301
      %v4303 = vpop.f32.mrf.mxu0
      %v4304 = vadd.f32 0.0, %v4303
      %4305 = vmatmul.bf16.gmra.mxu0 %v3981
      %v4306 = vpop.f32.mrf.mxu0
      %v4307 = vadd.f32 0.0, %v4306
      %v4308 = vpop.f32.mrf.mxu0
      %v4309 = vadd.f32 0.0, %v4308
      %4310 = vmatmul.bf16.gmra.mxu0 %v3983
      %v4311 = vpop.f32.mrf.mxu0
      %v4312 = vadd.f32 0.0, %v4311
      %v4313 = vpop.f32.mrf.mxu0
      %v4314 = vadd.f32 0.0, %v4313
      %4315 = vmatmul.bf16.gmra.mxu0 %v3985
      %v4316 = vpop.f32.mrf.mxu0
      %v4317 = vadd.f32 0.0, %v4316
      %v4318 = vpop.f32.mrf.mxu0
      %v4319 = vadd.f32 0.0, %v4318
      %4320 = vmatmul.bf16.gmra.mxu0 %v3987
      %v4321 = vpop.f32.mrf.mxu0
      %v4322 = vadd.f32 0.0, %v4321
      %v4323 = vpop.f32.mrf.mxu0
      %v4324 = vadd.f32 0.0, %v4323
      %4325 = vmatmul.bf16.gmra.mxu0 %v3989
      %v4326 = vpop.f32.mrf.mxu0
      %v4327 = vadd.f32 0.0, %v4326
      %v4328 = vpop.f32.mrf.mxu0
      %v4329 = vadd.f32 0.0, %v4328
      %4330 = vmatmul.bf16.gmra.mxu0 %v3991
      %v4331 = vpop.f32.mrf.mxu0
      %v4332 = vadd.f32 0.0, %v4331
      %v4333 = vpop.f32.mrf.mxu0
      %v4334 = vadd.f32 0.0, %v4333
      %4335 = vmatmul.bf16.gmra.mxu0 %v3993
      %v4336 = vpop.f32.mrf.mxu0
      %v4337 = vadd.f32 0.0, %v4336
      %v4338 = vpop.f32.mrf.mxu0
      %v4339 = vadd.f32 0.0, %v4338
      %4340 = vmatmul.bf16.gmra.mxu0 %v3995
      %v4341 = vpop.f32.mrf.mxu0
      %v4342 = vadd.f32 0.0, %v4341
      %v4343 = vpop.f32.mrf.mxu0
      %v4344 = vadd.f32 0.0, %v4343
      %4345 = vmatmul.bf16.gmra.mxu0 %v3997
      %v4346 = vpop.f32.mrf.mxu0
      %v4347 = vadd.f32 0.0, %v4346
      %v4348 = vpop.f32.mrf.mxu0
      %v4349 = vadd.f32 0.0, %v4348
      %4350 = vmatmul.bf16.gmra.mxu0 %v3999
      %v4351 = vpop.f32.mrf.mxu0
      %v4352 = vadd.f32 0.0, %v4351
      %v4353 = vpop.f32.mrf.mxu0
      %v4354 = vadd.f32 0.0, %v4353
      %4355 = vmatmul.bf16.gmra.mxu0 %v4001
      %v4356 = vpop.f32.mrf.mxu0
      %v4357 = vadd.f32 0.0, %v4356
      %v4358 = vpop.f32.mrf.mxu0
      %v4359 = vadd.f32 0.0, %v4358
      %4360 = vmatmul.bf16.gmra.mxu0 %v4003
      %v4361 = vpop.f32.mrf.mxu0
      %v4362 = vadd.f32 0.0, %v4361
      %v4363 = vpop.f32.mrf.mxu0
      %v4364 = vadd.f32 0.0, %v4363
      %4365 = vdwg.mxu0
      %4366 = vmatpush.bf16.msra.mxu0 %v4163
      %4367 = vmatpush.bf16.msra.mxu0 %v4161
      %4368 = vmatpush.bf16.msra.mxu0 %v4159
      %4369 = vmatpush.bf16.msra.mxu0 %v4157
      %4370 = vmatpush.bf16.msra.mxu0 %v4155
      %4371 = vmatpush.bf16.msra.mxu0 %v4153
      %4372 = vmatpush.bf16.msra.mxu0 %v4151
      %4373 = vmatpush.bf16.msra.mxu0 %v4149
      %4374 = vmatmul.bf16.gmra.mxu0 %v3942
      %v4375 = vpop.f32.mrf.mxu0
      %v4376 = vadd.f32 %v4207, %v4375
      %v4377 = vpop.f32.mrf.mxu0
      %v4378 = vadd.f32 %v4209, %v4377
      %4379 = vmatmul.bf16.gmra.mxu0 %v3944
      %v4380 = vpop.f32.mrf.mxu0
      %v4381 = vadd.f32 %v4212, %v4380
      %v4382 = vpop.f32.mrf.mxu0
      %v4383 = vadd.f32 %v4214, %v4382
      %4384 = vmatmul.bf16.gmra.mxu0 %v3946
      %v4385 = vpop.f32.mrf.mxu0
      %v4386 = vadd.f32 %v4217, %v4385
      %v4387 = vpop.f32.mrf.mxu0
      %v4388 = vadd.f32 %v4219, %v4387
      %4389 = vmatmul.bf16.gmra.mxu0 %v3948
      %v4390 = vpop.f32.mrf.mxu0
      %v4391 = vadd.f32 %v4222, %v4390
      %v4392 = vpop.f32.mrf.mxu0
      %v4393 = vadd.f32 %v4224, %v4392
      %4394 = vmatmul.bf16.gmra.mxu0 %v3950
      %v4395 = vpop.f32.mrf.mxu0
      %v4396 = vadd.f32 %v4227, %v4395
      %v4397 = vpop.f32.mrf.mxu0
      %v4398 = vadd.f32 %v4229, %v4397
      %4399 = vmatmul.bf16.gmra.mxu0 %v3952
      %v4400 = vpop.f32.mrf.mxu0
      %v4401 = vadd.f32 %v4232, %v4400
      %v4402 = vpop.f32.mrf.mxu0
      %v4403 = vadd.f32 %v4234, %v4402
      %4404 = vmatmul.bf16.gmra.mxu0 %v3954
      %v4405 = vpop.f32.mrf.mxu0
      %v4406 = vadd.f32 %v4237, %v4405
      %v4407 = vpop.f32.mrf.mxu0
      %v4408 = vadd.f32 %v4239, %v4407
      %4409 = vmatmul.bf16.gmra.mxu0 %v3956
      %v4410 = vpop.f32.mrf.mxu0
      %v4411 = vadd.f32 %v4242, %v4410
      %v4412 = vpop.f32.mrf.mxu0
      %v4413 = vadd.f32 %v4244, %v4412
      %4414 = vmatmul.bf16.gmra.mxu0 %v3958
      %v4415 = vpop.f32.mrf.mxu0
      %v4416 = vadd.f32 %v4247, %v4415
      %v4417 = vpop.f32.mrf.mxu0
      %v4418 = vadd.f32 %v4249, %v4417
      %4419 = vmatmul.bf16.gmra.mxu0 %v3960
      %v4420 = vpop.f32.mrf.mxu0
      %v4421 = vadd.f32 %v4252, %v4420
      %v4422 = vpop.f32.mrf.mxu0
      %v4423 = vadd.f32 %v4254, %v4422
      %4424 = vmatmul.bf16.gmra.mxu0 %v3962
      %v4425 = vpop.f32.mrf.mxu0
      %v4426 = vadd.f32 %v4257, %v4425
      %v4427 = vpop.f32.mrf.mxu0
      %v4428 = vadd.f32 %v4259, %v4427
      %4429 = vmatmul.bf16.gmra.mxu0 %v3964
      %v4430 = vpop.f32.mrf.mxu0
      %v4431 = vadd.f32 %v4262, %v4430
      %v4432 = vpop.f32.mrf.mxu0
      %v4433 = vadd.f32 %v4264, %v4432
      %4434 = vmatmul.bf16.gmra.mxu0 %v3966
      %v4435 = vpop.f32.mrf.mxu0
      %v4436 = vadd.f32 %v4267, %v4435
      %v4437 = vpop.f32.mrf.mxu0
      %v4438 = vadd.f32 %v4269, %v4437
      %4439 = vmatmul.bf16.gmra.mxu0 %v3968
      %v4440 = vpop.f32.mrf.mxu0
      %v4441 = vadd.f32 %v4272, %v4440
      %v4442 = vpop.f32.mrf.mxu0
      %v4443 = vadd.f32 %v4274, %v4442
      %4444 = vmatmul.bf16.gmra.mxu0 %v3970
      %v4445 = vpop.f32.mrf.mxu0
      %v4446 = vadd.f32 %v4277, %v4445
      %v4447 = vpop.f32.mrf.mxu0
      %v4448 = vadd.f32 %v4279, %v4447
      %4449 = vmatmul.bf16.gmra.mxu0 %v3972
      %v4450 = vpop.f32.mrf.mxu0
      %v4451 = vadd.f32 %v4282, %v4450
      %v4452 = vpop.f32.mrf.mxu0
      %v4453 = vadd.f32 %v4284, %v4452
      %4454 = vmatmul.bf16.gmra.mxu0 %v3974
      %v4455 = vpop.f32.mrf.mxu0
      %v4456 = vadd.f32 %v4287, %v4455
      %v4457 = vpop.f32.mrf.mxu0
      %v4458 = vadd.f32 %v4289, %v4457
      %4459 = vmatmul.bf16.gmra.mxu0 %v3976
      %v4460 = vpop.f32.mrf.mxu0
      %v4461 = vadd.f32 %v4292, %v4460
      %v4462 = vpop.f32.mrf.mxu0
      %v4463 = vadd.f32 %v4294, %v4462
      %4464 = vmatmul.bf16.gmra.mxu0 %v3978
      %v4465 = vpop.f32.mrf.mxu0
      %v4466 = vadd.f32 %v4297, %v4465
      %v4467 = vpop.f32.mrf.mxu0
      %v4468 = vadd.f32 %v4299, %v4467
      %4469 = vmatmul.bf16.gmra.mxu0 %v3980
      %v4470 = vpop.f32.mrf.mxu0
      %v4471 = vadd.f32 %v4302, %v4470
      %v4472 = vpop.f32.mrf.mxu0
      %v4473 = vadd.f32 %v4304, %v4472
      %4474 = vmatmul.bf16.gmra.mxu0 %v3982
      %v4475 = vpop.f32.mrf.mxu0
      %v4476 = vadd.f32 %v4307, %v4475
      %v4477 = vpop.f32.mrf.mxu0
      %v4478 = vadd.f32 %v4309, %v4477
      %4479 = vmatmul.bf16.gmra.mxu0 %v3984
      %v4480 = vpop.f32.mrf.mxu0
      %v4481 = vadd.f32 %v4312, %v4480
      %v4482 = vpop.f32.mrf.mxu0
      %v4483 = vadd.f32 %v4314, %v4482
      %4484 = vmatmul.bf16.gmra.mxu0 %v3986
      %v4485 = vpop.f32.mrf.mxu0
      %v4486 = vadd.f32 %v4317, %v4485
      %v4487 = vpop.f32.mrf.mxu0
      %v4488 = vadd.f32 %v4319, %v4487
      %4489 = vmatmul.bf16.gmra.mxu0 %v3988
      %v4490 = vpop.f32.mrf.mxu0
      %v4491 = vadd.f32 %v4322, %v4490
      %v4492 = vpop.f32.mrf.mxu0
      %v4493 = vadd.f32 %v4324, %v4492
      %4494 = vmatmul.bf16.gmra.mxu0 %v3990
      %v4495 = vpop.f32.mrf.mxu0
      %v4496 = vadd.f32 %v4327, %v4495
      %v4497 = vpop.f32.mrf.mxu0
      %v4498 = vadd.f32 %v4329, %v4497
      %4499 = vmatmul.bf16.gmra.mxu0 %v3992
      %v4500 = vpop.f32.mrf.mxu0
      %v4501 = vadd.f32 %v4332, %v4500
      %v4502 = vpop.f32.mrf.mxu0
      %v4503 = vadd.f32 %v4334, %v4502
      %4504 = vmatmul.bf16.gmra.mxu0 %v3994
      %v4505 = vpop.f32.mrf.mxu0
      %v4506 = vadd.f32 %v4337, %v4505
      %v4507 = vpop.f32.mrf.mxu0
      %v4508 = vadd.f32 %v4339, %v4507
      %4509 = vmatmul.bf16.gmra.mxu0 %v3996
      %v4510 = vpop.f32.mrf.mxu0
      %v4511 = vadd.f32 %v4342, %v4510
      %v4512 = vpop.f32.mrf.mxu0
      %v4513 = vadd.f32 %v4344, %v4512
      %4514 = vmatmul.bf16.gmra.mxu0 %v3998
      %v4515 = vpop.f32.mrf.mxu0
      %v4516 = vadd.f32 %v4347, %v4515
      %v4517 = vpop.f32.mrf.mxu0
      %v4518 = vadd.f32 %v4349, %v4517
      %4519 = vmatmul.bf16.gmra.mxu0 %v4000
      %v4520 = vpop.f32.mrf.mxu0
      %v4521 = vadd.f32 %v4352, %v4520
      %v4522 = vpop.f32.mrf.mxu0
      %v4523 = vadd.f32 %v4354, %v4522
      %4524 = vmatmul.bf16.gmra.mxu0 %v4002
      %v4525 = vpop.f32.mrf.mxu0
      %v4526 = vadd.f32 %v4357, %v4525
      %v4527 = vpop.f32.mrf.mxu0
      %v4528 = vadd.f32 %v4359, %v4527
      %4529 = vmatmul.bf16.gmra.mxu0 %v4004
      %v4530 = vpop.f32.mrf.mxu0
      %v4531 = vadd.f32 %v4362, %v4530
      %v4532 = vpop.f32.mrf.mxu0
      %v4533 = vadd.f32 %v4364, %v4532
      %4534 = vdwg.mxu0
      %4535 = vmatpush.bf16.msra.mxu0 %v4148
      %4536 = vmatpush.bf16.msra.mxu0 %v4146
      %4537 = vmatpush.bf16.msra.mxu0 %v4144
      %4538 = vmatpush.bf16.msra.mxu0 %v4142
      %4539 = vmatpush.bf16.msra.mxu0 %v4140
      %4540 = vmatpush.bf16.msra.mxu0 %v4138
      %4541 = vmatpush.bf16.msra.mxu0 %v4136
      %4542 = vmatpush.bf16.msra.mxu0 %v4134
      %4543 = vmatmul.bf16.gmra.mxu0 %v3941
      %v4544 = vpop.f32.mrf.mxu0
      %v4545 = vadd.f32 0.0, %v4544
      %v4546 = vpop.f32.mrf.mxu0
      %v4547 = vadd.f32 0.0, %v4546
      %4548 = vmatmul.bf16.gmra.mxu0 %v3943
      %v4549 = vpop.f32.mrf.mxu0
      %v4550 = vadd.f32 0.0, %v4549
      %v4551 = vpop.f32.mrf.mxu0
      %v4552 = vadd.f32 0.0, %v4551
      %4553 = vmatmul.bf16.gmra.mxu0 %v3945
      %v4554 = vpop.f32.mrf.mxu0
      %v4555 = vadd.f32 0.0, %v4554
      %v4556 = vpop.f32.mrf.mxu0
      %v4557 = vadd.f32 0.0, %v4556
      %4558 = vmatmul.bf16.gmra.mxu0 %v3947
      %v4559 = vpop.f32.mrf.mxu0
      %v4560 = vadd.f32 0.0, %v4559
      %v4561 = vpop.f32.mrf.mxu0
      %v4562 = vadd.f32 0.0, %v4561
      %4563 = vmatmul.bf16.gmra.mxu0 %v3949
      %v4564 = vpop.f32.mrf.mxu0
      %v4565 = vadd.f32 0.0, %v4564
      %v4566 = vpop.f32.mrf.mxu0
      %v4567 = vadd.f32 0.0, %v4566
      %4568 = vmatmul.bf16.gmra.mxu0 %v3951
      %v4569 = vpop.f32.mrf.mxu0
      %v4570 = vadd.f32 0.0, %v4569
      %v4571 = vpop.f32.mrf.mxu0
      %v4572 = vadd.f32 0.0, %v4571
      %4573 = vmatmul.bf16.gmra.mxu0 %v3953
      %v4574 = vpop.f32.mrf.mxu0
      %v4575 = vadd.f32 0.0, %v4574
      %v4576 = vpop.f32.mrf.mxu0
      %v4577 = vadd.f32 0.0, %v4576
      %4578 = vmatmul.bf16.gmra.mxu0 %v3955
      %v4579 = vpop.f32.mrf.mxu0
      %v4580 = vadd.f32 0.0, %v4579
      %v4581 = vpop.f32.mrf.mxu0
      %v4582 = vadd.f32 0.0, %v4581
      %4583 = vmatmul.bf16.gmra.mxu0 %v3957
      %v4584 = vpop.f32.mrf.mxu0
      %v4585 = vadd.f32 0.0, %v4584
      %v4586 = vpop.f32.mrf.mxu0
      %v4587 = vadd.f32 0.0, %v4586
      %4588 = vmatmul.bf16.gmra.mxu0 %v3959
      %v4589 = vpop.f32.mrf.mxu0
      %v4590 = vadd.f32 0.0, %v4589
      %v4591 = vpop.f32.mrf.mxu0
      %v4592 = vadd.f32 0.0, %v4591
      %4593 = vmatmul.bf16.gmra.mxu0 %v3961
      %v4594 = vpop.f32.mrf.mxu0
      %v4595 = vadd.f32 0.0, %v4594
      %v4596 = vpop.f32.mrf.mxu0
      %v4597 = vadd.f32 0.0, %v4596
      %4598 = vmatmul.bf16.gmra.mxu0 %v3963
      %v4599 = vpop.f32.mrf.mxu0
      %v4600 = vadd.f32 0.0, %v4599
      %v4601 = vpop.f32.mrf.mxu0
      %v4602 = vadd.f32 0.0, %v4601
      %4603 = vmatmul.bf16.gmra.mxu0 %v3965
      %v4604 = vpop.f32.mrf.mxu0
      %v4605 = vadd.f32 0.0, %v4604
      %v4606 = vpop.f32.mrf.mxu0
      %v4607 = vadd.f32 0.0, %v4606
      %4608 = vmatmul.bf16.gmra.mxu0 %v3967
      %v4609 = vpop.f32.mrf.mxu0
      %v4610 = vadd.f32 0.0, %v4609
      %v4611 = vpop.f32.mrf.mxu0
      %v4612 = vadd.f32 0.0, %v4611
      %4613 = vmatmul.bf16.gmra.mxu0 %v3969
      %v4614 = vpop.f32.mrf.mxu0
      %v4615 = vadd.f32 0.0, %v4614
      %v4616 = vpop.f32.mrf.mxu0
      %v4617 = vadd.f32 0.0, %v4616
      %4618 = vmatmul.bf16.gmra.mxu0 %v3971
      %v4619 = vpop.f32.mrf.mxu0
      %v4620 = vadd.f32 0.0, %v4619
      %v4621 = vpop.f32.mrf.mxu0
      %v4622 = vadd.f32 0.0, %v4621
      %4623 = vmatmul.bf16.gmra.mxu0 %v3973
      %v4624 = vpop.f32.mrf.mxu0
      %v4625 = vadd.f32 0.0, %v4624
      %v4626 = vpop.f32.mrf.mxu0
      %v4627 = vadd.f32 0.0, %v4626
      %4628 = vmatmul.bf16.gmra.mxu0 %v3975
      %v4629 = vpop.f32.mrf.mxu0
      %v4630 = vadd.f32 0.0, %v4629
      %v4631 = vpop.f32.mrf.mxu0
      %v4632 = vadd.f32 0.0, %v4631
      %4633 = vmatmul.bf16.gmra.mxu0 %v3977
      %v4634 = vpop.f32.mrf.mxu0
      %v4635 = vadd.f32 0.0, %v4634
      %v4636 = vpop.f32.mrf.mxu0
      %v4637 = vadd.f32 0.0, %v4636
      %4638 = vmatmul.bf16.gmra.mxu0 %v3979
      %v4639 = vpop.f32.mrf.mxu0
      %v4640 = vadd.f32 0.0, %v4639
      %v4641 = vpop.f32.mrf.mxu0
      %v4642 = vadd.f32 0.0, %v4641
      %4643 = vmatmul.bf16.gmra.mxu0 %v3981
      %v4644 = vpop.f32.mrf.mxu0
      %v4645 = vadd.f32 0.0, %v4644
      %v4646 = vpop.f32.mrf.mxu0
      %v4647 = vadd.f32 0.0, %v4646
      %4648 = vmatmul.bf16.gmra.mxu0 %v3983
      %v4649 = vpop.f32.mrf.mxu0
      %v4650 = vadd.f32 0.0, %v4649
      %v4651 = vpop.f32.mrf.mxu0
      %v4652 = vadd.f32 0.0, %v4651
      %4653 = vmatmul.bf16.gmra.mxu0 %v3985
      %v4654 = vpop.f32.mrf.mxu0
      %v4655 = vadd.f32 0.0, %v4654
      %v4656 = vpop.f32.mrf.mxu0
      %v4657 = vadd.f32 0.0, %v4656
      %4658 = vmatmul.bf16.gmra.mxu0 %v3987
      %v4659 = vpop.f32.mrf.mxu0
      %v4660 = vadd.f32 0.0, %v4659
      %v4661 = vpop.f32.mrf.mxu0
      %v4662 = vadd.f32 0.0, %v4661
      %4663 = vmatmul.bf16.gmra.mxu0 %v3989
      %v4664 = vpop.f32.mrf.mxu0
      %v4665 = vadd.f32 0.0, %v4664
      %v4666 = vpop.f32.mrf.mxu0
      %v4667 = vadd.f32 0.0, %v4666
      %4668 = vmatmul.bf16.gmra.mxu0 %v3991
      %v4669 = vpop.f32.mrf.mxu0
      %v4670 = vadd.f32 0.0, %v4669
      %v4671 = vpop.f32.mrf.mxu0
      %v4672 = vadd.f32 0.0, %v4671
      %4673 = vmatmul.bf16.gmra.mxu0 %v3993
      %v4674 = vpop.f32.mrf.mxu0
      %v4675 = vadd.f32 0.0, %v4674
      %v4676 = vpop.f32.mrf.mxu0
      %v4677 = vadd.f32 0.0, %v4676
      %4678 = vmatmul.bf16.gmra.mxu0 %v3995
      %v4679 = vpop.f32.mrf.mxu0
      %v4680 = vadd.f32 0.0, %v4679
      %v4681 = vpop.f32.mrf.mxu0
      %v4682 = vadd.f32 0.0, %v4681
      %4683 = vmatmul.bf16.gmra.mxu0 %v3997
      %v4684 = vpop.f32.mrf.mxu0
      %v4685 = vadd.f32 0.0, %v4684
      %v4686 = vpop.f32.mrf.mxu0
      %v4687 = vadd.f32 0.0, %v4686
      %4688 = vmatmul.bf16.gmra.mxu0 %v3999
      %v4689 = vpop.f32.mrf.mxu0
      %v4690 = vadd.f32 0.0, %v4689
      %v4691 = vpop.f32.mrf.mxu0
      %v4692 = vadd.f32 0.0, %v4691
      %4693 = vmatmul.bf16.gmra.mxu0 %v4001
      %v4694 = vpop.f32.mrf.mxu0
      %v4695 = vadd.f32 0.0, %v4694
      %v4696 = vpop.f32.mrf.mxu0
      %v4697 = vadd.f32 0.0, %v4696
      %4698 = vmatmul.bf16.gmra.mxu0 %v4003
      %v4699 = vpop.f32.mrf.mxu0
      %v4700 = vadd.f32 0.0, %v4699
      %v4701 = vpop.f32.mrf.mxu0
      %v4702 = vadd.f32 0.0, %v4701
      %4703 = vdwg.mxu0
      %4704 = vmatpush.bf16.msra.mxu0 %v4164
      %4705 = vmatpush.bf16.msra.mxu0 %v4162
      %4706 = vmatpush.bf16.msra.mxu0 %v4160
      %4707 = vmatpush.bf16.msra.mxu0 %v4158
      %4708 = vmatpush.bf16.msra.mxu0 %v4156
      %4709 = vmatpush.bf16.msra.mxu0 %v4154
      %4710 = vmatpush.bf16.msra.mxu0 %v4152
      %4711 = vmatpush.bf16.msra.mxu0 %v4150
      %4712 = vmatmul.bf16.gmra.mxu0 %v3942
      %v4713 = vpop.f32.mrf.mxu0
      %v4714 = vadd.f32 %v4545, %v4713
      %v4715 = vpop.f32.mrf.mxu0
      %v4716 = vadd.f32 %v4547, %v4715
      %4717 = vmatmul.bf16.gmra.mxu0 %v3944
      %v4718 = vpop.f32.mrf.mxu0
      %v4719 = vadd.f32 %v4550, %v4718
      %v4720 = vpop.f32.mrf.mxu0
      %v4721 = vadd.f32 %v4552, %v4720
      %4722 = vmatmul.bf16.gmra.mxu0 %v3946
      %v4723 = vpop.f32.mrf.mxu0
      %v4724 = vadd.f32 %v4555, %v4723
      %v4725 = vpop.f32.mrf.mxu0
      %v4726 = vadd.f32 %v4557, %v4725
      %4727 = vmatmul.bf16.gmra.mxu0 %v3948
      %v4728 = vpop.f32.mrf.mxu0
      %v4729 = vadd.f32 %v4560, %v4728
      %v4730 = vpop.f32.mrf.mxu0
      %v4731 = vadd.f32 %v4562, %v4730
      %4732 = vmatmul.bf16.gmra.mxu0 %v3950
      %v4733 = vpop.f32.mrf.mxu0
      %v4734 = vadd.f32 %v4565, %v4733
      %v4735 = vpop.f32.mrf.mxu0
      %v4736 = vadd.f32 %v4567, %v4735
      %4737 = vmatmul.bf16.gmra.mxu0 %v3952
      %v4738 = vpop.f32.mrf.mxu0
      %v4739 = vadd.f32 %v4570, %v4738
      %v4740 = vpop.f32.mrf.mxu0
      %v4741 = vadd.f32 %v4572, %v4740
      %4742 = vmatmul.bf16.gmra.mxu0 %v3954
      %v4743 = vpop.f32.mrf.mxu0
      %v4744 = vadd.f32 %v4575, %v4743
      %v4745 = vpop.f32.mrf.mxu0
      %v4746 = vadd.f32 %v4577, %v4745
      %4747 = vmatmul.bf16.gmra.mxu0 %v3956
      %v4748 = vpop.f32.mrf.mxu0
      %v4749 = vadd.f32 %v4580, %v4748
      %v4750 = vpop.f32.mrf.mxu0
      %v4751 = vadd.f32 %v4582, %v4750
      %4752 = vmatmul.bf16.gmra.mxu0 %v3958
      %v4753 = vpop.f32.mrf.mxu0
      %v4754 = vadd.f32 %v4585, %v4753
      %v4755 = vpop.f32.mrf.mxu0
      %v4756 = vadd.f32 %v4587, %v4755
      %4757 = vmatmul.bf16.gmra.mxu0 %v3960
      %v4758 = vpop.f32.mrf.mxu0
      %v4759 = vadd.f32 %v4590, %v4758
      %v4760 = vpop.f32.mrf.mxu0
      %v4761 = vadd.f32 %v4592, %v4760
      %4762 = vmatmul.bf16.gmra.mxu0 %v3962
      %v4763 = vpop.f32.mrf.mxu0
      %v4764 = vadd.f32 %v4595, %v4763
      %v4765 = vpop.f32.mrf.mxu0
      %v4766 = vadd.f32 %v4597, %v4765
      %4767 = vmatmul.bf16.gmra.mxu0 %v3964
      %v4768 = vpop.f32.mrf.mxu0
      %v4769 = vadd.f32 %v4600, %v4768
      %v4770 = vpop.f32.mrf.mxu0
      %v4771 = vadd.f32 %v4602, %v4770
      %4772 = vmatmul.bf16.gmra.mxu0 %v3966
      %v4773 = vpop.f32.mrf.mxu0
      %v4774 = vadd.f32 %v4605, %v4773
      %v4775 = vpop.f32.mrf.mxu0
      %v4776 = vadd.f32 %v4607, %v4775
      %4777 = vmatmul.bf16.gmra.mxu0 %v3968
      %v4778 = vpop.f32.mrf.mxu0
      %v4779 = vadd.f32 %v4610, %v4778
      %v4780 = vpop.f32.mrf.mxu0
      %v4781 = vadd.f32 %v4612, %v4780
      %4782 = vmatmul.bf16.gmra.mxu0 %v3970
      %v4783 = vpop.f32.mrf.mxu0
      %v4784 = vadd.f32 %v4615, %v4783
      %v4785 = vpop.f32.mrf.mxu0
      %v4786 = vadd.f32 %v4617, %v4785
      %4787 = vmatmul.bf16.gmra.mxu0 %v3972
      %v4788 = vpop.f32.mrf.mxu0
      %v4789 = vadd.f32 %v4620, %v4788
      %v4790 = vpop.f32.mrf.mxu0
      %v4791 = vadd.f32 %v4622, %v4790
      %4792 = vmatmul.bf16.gmra.mxu0 %v3974
      %v4793 = vpop.f32.mrf.mxu0
      %v4794 = vadd.f32 %v4625, %v4793
      %v4795 = vpop.f32.mrf.mxu0
      %v4796 = vadd.f32 %v4627, %v4795
      %4797 = vmatmul.bf16.gmra.mxu0 %v3976
      %v4798 = vpop.f32.mrf.mxu0
      %v4799 = vadd.f32 %v4630, %v4798
      %v4800 = vpop.f32.mrf.mxu0
      %v4801 = vadd.f32 %v4632, %v4800
      %4802 = vmatmul.bf16.gmra.mxu0 %v3978
      %v4803 = vpop.f32.mrf.mxu0
      %v4804 = vadd.f32 %v4635, %v4803
      %v4805 = vpop.f32.mrf.mxu0
      %v4806 = vadd.f32 %v4637, %v4805
      %4807 = vmatmul.bf16.gmra.mxu0 %v3980
      %v4808 = vpop.f32.mrf.mxu0
      %v4809 = vadd.f32 %v4640, %v4808
      %v4810 = vpop.f32.mrf.mxu0
      %v4811 = vadd.f32 %v4642, %v4810
      %4812 = vmatmul.bf16.gmra.mxu0 %v3982
      %v4813 = vpop.f32.mrf.mxu0
      %v4814 = vadd.f32 %v4645, %v4813
      %v4815 = vpop.f32.mrf.mxu0
      %v4816 = vadd.f32 %v4647, %v4815
      %4817 = vmatmul.bf16.gmra.mxu0 %v3984
      %v4818 = vpop.f32.mrf.mxu0
      %v4819 = vadd.f32 %v4650, %v4818
      %v4820 = vpop.f32.mrf.mxu0
      %v4821 = vadd.f32 %v4652, %v4820
      %4822 = vmatmul.bf16.gmra.mxu0 %v3986
      %v4823 = vpop.f32.mrf.mxu0
      %v4824 = vadd.f32 %v4655, %v4823
      %v4825 = vpop.f32.mrf.mxu0
      %v4826 = vadd.f32 %v4657, %v4825
      %4827 = vmatmul.bf16.gmra.mxu0 %v3988
      %v4828 = vpop.f32.mrf.mxu0
      %v4829 = vadd.f32 %v4660, %v4828
      %v4830 = vpop.f32.mrf.mxu0
      %v4831 = vadd.f32 %v4662, %v4830
      %4832 = vmatmul.bf16.gmra.mxu0 %v3990
      %v4833 = vpop.f32.mrf.mxu0
      %v4834 = vadd.f32 %v4665, %v4833
      %v4835 = vpop.f32.mrf.mxu0
      %v4836 = vadd.f32 %v4667, %v4835
      %4837 = vmatmul.bf16.gmra.mxu0 %v3992
      %v4838 = vpop.f32.mrf.mxu0
      %v4839 = vadd.f32 %v4670, %v4838
      %v4840 = vpop.f32.mrf.mxu0
      %v4841 = vadd.f32 %v4672, %v4840
      %4842 = vmatmul.bf16.gmra.mxu0 %v3994
      %v4843 = vpop.f32.mrf.mxu0
      %v4844 = vadd.f32 %v4675, %v4843
      %v4845 = vpop.f32.mrf.mxu0
      %v4846 = vadd.f32 %v4677, %v4845
      %4847 = vmatmul.bf16.gmra.mxu0 %v3996
      %v4848 = vpop.f32.mrf.mxu0
      %v4849 = vadd.f32 %v4680, %v4848
      %v4850 = vpop.f32.mrf.mxu0
      %v4851 = vadd.f32 %v4682, %v4850
      %4852 = vmatmul.bf16.gmra.mxu0 %v3998
      %v4853 = vpop.f32.mrf.mxu0
      %v4854 = vadd.f32 %v4685, %v4853
      %v4855 = vpop.f32.mrf.mxu0
      %v4856 = vadd.f32 %v4687, %v4855
      %4857 = vmatmul.bf16.gmra.mxu0 %v4000
      %v4858 = vpop.f32.mrf.mxu0
      %v4859 = vadd.f32 %v4690, %v4858
      %v4860 = vpop.f32.mrf.mxu0
      %v4861 = vadd.f32 %v4692, %v4860
      %4862 = vmatmul.bf16.gmra.mxu0 %v4002
      %v4863 = vpop.f32.mrf.mxu0
      %v4864 = vadd.f32 %v4695, %v4863
      %v4865 = vpop.f32.mrf.mxu0
      %v4866 = vadd.f32 %v4697, %v4865
      %4867 = vmatmul.bf16.gmra.mxu0 %v4004
      %v4868 = vpop.f32.mrf.mxu0
      %v4869 = vadd.f32 %v4700, %v4868
      %v4870 = vpop.f32.mrf.mxu0
      %v4871 = vadd.f32 %v4702, %v4870
      %4872 = vdwg.mxu0
      %v4873 = vpack.c.bf16 %v4714, %v4376
      %v4874 = vpack.c.bf16 %v4716, %v4378
      %v4875 = vpack.c.bf16 %v4719, %v4381
      %v4876 = vpack.c.bf16 %v4721, %v4383
      %v4877 = vpack.c.bf16 %v4724, %v4386
      %v4878 = vpack.c.bf16 %v4726, %v4388
      %v4879 = vpack.c.bf16 %v4729, %v4391
      %v4880 = vpack.c.bf16 %v4731, %v4393
      %v4881 = vpack.c.bf16 %v4734, %v4396
      %v4882 = vpack.c.bf16 %v4736, %v4398
      %v4883 = vpack.c.bf16 %v4739, %v4401
      %v4884 = vpack.c.bf16 %v4741, %v4403
      %v4885 = vpack.c.bf16 %v4744, %v4406
      %v4886 = vpack.c.bf16 %v4746, %v4408
      %v4887 = vpack.c.bf16 %v4749, %v4411
      %v4888 = vpack.c.bf16 %v4751, %v4413
      %v4889 = vpack.c.bf16 %v4754, %v4416
      %v4890 = vpack.c.bf16 %v4756, %v4418
      %v4891 = vpack.c.bf16 %v4759, %v4421
      %v4892 = vpack.c.bf16 %v4761, %v4423
      %v4893 = vpack.c.bf16 %v4764, %v4426
      %v4894 = vpack.c.bf16 %v4766, %v4428
      %v4895 = vpack.c.bf16 %v4769, %v4431
      %v4896 = vpack.c.bf16 %v4771, %v4433
      %v4897 = vpack.c.bf16 %v4774, %v4436
      %v4898 = vpack.c.bf16 %v4776, %v4438
      %v4899 = vpack.c.bf16 %v4779, %v4441
      %v4900 = vpack.c.bf16 %v4781, %v4443
      %v4901 = vpack.c.bf16 %v4784, %v4446
      %v4902 = vpack.c.bf16 %v4786, %v4448
      %v4903 = vpack.c.bf16 %v4789, %v4451
      %v4904 = vpack.c.bf16 %v4791, %v4453
      %v4905 = vpack.c.bf16 %v4794, %v4456
      %v4906 = vpack.c.bf16 %v4796, %v4458
      %v4907 = vpack.c.bf16 %v4799, %v4461
      %v4908 = vpack.c.bf16 %v4801, %v4463
      %v4909 = vpack.c.bf16 %v4804, %v4466
      %v4910 = vpack.c.bf16 %v4806, %v4468
      %v4911 = vpack.c.bf16 %v4809, %v4471
      %v4912 = vpack.c.bf16 %v4811, %v4473
      %v4913 = vpack.c.bf16 %v4814, %v4476
      %v4914 = vpack.c.bf16 %v4816, %v4478
      %v4915 = vpack.c.bf16 %v4819, %v4481
      %v4916 = vpack.c.bf16 %v4821, %v4483
      %v4917 = vpack.c.bf16 %v4824, %v4486
      %v4918 = vpack.c.bf16 %v4826, %v4488
      %v4919 = vpack.c.bf16 %v4829, %v4491
      %v4920 = vpack.c.bf16 %v4831, %v4493
      %v4921 = vpack.c.bf16 %v4834, %v4496
      %v4922 = vpack.c.bf16 %v4836, %v4498
      %v4923 = vpack.c.bf16 %v4839, %v4501
      %v4924 = vpack.c.bf16 %v4841, %v4503
      %v4925 = vpack.c.bf16 %v4844, %v4506
      %v4926 = vpack.c.bf16 %v4846, %v4508
      %v4927 = vpack.c.bf16 %v4849, %v4511
      %v4928 = vpack.c.bf16 %v4851, %v4513
      %v4929 = vpack.c.bf16 %v4854, %v4516
      %v4930 = vpack.c.bf16 %v4856, %v4518
      %v4931 = vpack.c.bf16 %v4859, %v4521
      %v4932 = vpack.c.bf16 %v4861, %v4523
      %v4933 = vpack.c.bf16 %v4864, %v4526
      %v4934 = vpack.c.bf16 %v4866, %v4528
      %v4935 = vpack.c.bf16 %v4869, %v4531
      %v4936 = vpack.c.bf16 %v4871, %v4533
      %v4937 = vld [vmem:[%s6] sm:$0x3]
      %4939 = vst [vmem:[#allocation1] ss:$9 sm:$0xff] %v4937
      %v4940 = vld [vmem:[#allocation1] sm:$0xff]
      %v4941 = vld [vmem:[#allocation1 + $0x9] sm:$0xff]
      %v4942 = vpack.i.b16 %v4940, %v4940
      %v4944 = vperm.slane %v4942, 0
      %v4945 = vpack.i.b16 %v4941, %v4941
      %v4947 = vperm.slane %v4945, 0
      %v4948 = vunpack.c.l.bf16 %v4873
      %v4949 = vunpack.c.h.bf16 %v4873
      %v4950 = vunpack.c.l.bf16 %v4874
      %v4951 = vunpack.c.h.bf16 %v4874
      %v4952 = vunpack.c.l.bf16 %v4875
      %v4953 = vunpack.c.h.bf16 %v4875
      %v4954 = vunpack.c.l.bf16 %v4876
      %v4955 = vunpack.c.h.bf16 %v4876
      %v4956 = vunpack.c.l.bf16 %v4877
      %v4957 = vunpack.c.h.bf16 %v4877
      %v4958 = vunpack.c.l.bf16 %v4878
      %v4959 = vunpack.c.h.bf16 %v4878
      %v4960 = vunpack.c.l.bf16 %v4879
      %v4961 = vunpack.c.h.bf16 %v4879
      %v4962 = vunpack.c.l.bf16 %v4880
      %v4963 = vunpack.c.h.bf16 %v4880
      %v4964 = vunpack.c.l.bf16 %v4881
      %v4965 = vunpack.c.h.bf16 %v4881
      %v4966 = vunpack.c.l.bf16 %v4882
      %v4967 = vunpack.c.h.bf16 %v4882
      %v4968 = vunpack.c.l.bf16 %v4883
      %v4969 = vunpack.c.h.bf16 %v4883
      %v4970 = vunpack.c.l.bf16 %v4884
      %v4971 = vunpack.c.h.bf16 %v4884
      %v4972 = vunpack.c.l.bf16 %v4885
      %v4973 = vunpack.c.h.bf16 %v4885
      %v4974 = vunpack.c.l.bf16 %v4886
      %v4975 = vunpack.c.h.bf16 %v4886
      %v4976 = vunpack.c.l.bf16 %v4887
      %v4977 = vunpack.c.h.bf16 %v4887
      %v4978 = vunpack.c.l.bf16 %v4888
      %v4979 = vunpack.c.h.bf16 %v4888
      %v4980 = vunpack.c.l.bf16 %v4889
      %v4981 = vunpack.c.h.bf16 %v4889
      %v4982 = vunpack.c.l.bf16 %v4890
      %v4983 = vunpack.c.h.bf16 %v4890
      %v4984 = vunpack.c.l.bf16 %v4891
      %v4985 = vunpack.c.h.bf16 %v4891
      %v4986 = vunpack.c.l.bf16 %v4892
      %v4987 = vunpack.c.h.bf16 %v4892
      %v4988 = vunpack.c.l.bf16 %v4893
      %v4989 = vunpack.c.h.bf16 %v4893
      %v4990 = vunpack.c.l.bf16 %v4894
      %v4991 = vunpack.c.h.bf16 %v4894
      %v4992 = vunpack.c.l.bf16 %v4895
      %v4993 = vunpack.c.h.bf16 %v4895
      %v4994 = vunpack.c.l.bf16 %v4896
      %v4995 = vunpack.c.h.bf16 %v4896
      %v4996 = vunpack.c.l.bf16 %v4897
      %v4997 = vunpack.c.h.bf16 %v4897
      %v4998 = vunpack.c.l.bf16 %v4898
      %v4999 = vunpack.c.h.bf16 %v4898
      %v5000 = vunpack.c.l.bf16 %v4899
      %v5001 = vunpack.c.h.bf16 %v4899
      %v5002 = vunpack.c.l.bf16 %v4900
      %v5003 = vunpack.c.h.bf16 %v4900
      %v5004 = vunpack.c.l.bf16 %v4901
      %v5005 = vunpack.c.h.bf16 %v4901
      %v5006 = vunpack.c.l.bf16 %v4902
      %v5007 = vunpack.c.h.bf16 %v4902
      %v5008 = vunpack.c.l.bf16 %v4903
      %v5009 = vunpack.c.h.bf16 %v4903
      %v5010 = vunpack.c.l.bf16 %v4904
      %v5011 = vunpack.c.h.bf16 %v4904
      %v5012 = vunpack.c.l.bf16 %v4905
      %v5013 = vunpack.c.h.bf16 %v4905
      %v5014 = vunpack.c.l.bf16 %v4906
      %v5015 = vunpack.c.h.bf16 %v4906
      %v5016 = vunpack.c.l.bf16 %v4907
      %v5017 = vunpack.c.h.bf16 %v4907
      %v5018 = vunpack.c.l.bf16 %v4908
      %v5019 = vunpack.c.h.bf16 %v4908
      %v5020 = vunpack.c.l.bf16 %v4909
      %v5021 = vunpack.c.h.bf16 %v4909
      %v5022 = vunpack.c.l.bf16 %v4910
      %v5023 = vunpack.c.h.bf16 %v4910
      %v5024 = vunpack.c.l.bf16 %v4911
      %v5025 = vunpack.c.h.bf16 %v4911
      %v5026 = vunpack.c.l.bf16 %v4912
      %v5027 = vunpack.c.h.bf16 %v4912
      %v5028 = vunpack.c.l.bf16 %v4913
      %v5029 = vunpack.c.h.bf16 %v4913
      %v5030 = vunpack.c.l.bf16 %v4914
      %v5031 = vunpack.c.h.bf16 %v4914
      %v5032 = vunpack.c.l.bf16 %v4915
      %v5033 = vunpack.c.h.bf16 %v4915
      %v5034 = vunpack.c.l.bf16 %v4916
      %v5035 = vunpack.c.h.bf16 %v4916
      %v5036 = vunpack.c.l.bf16 %v4917
      %v5037 = vunpack.c.h.bf16 %v4917
      %v5038 = vunpack.c.l.bf16 %v4918
      %v5039 = vunpack.c.h.bf16 %v4918
      %v5040 = vunpack.c.l.bf16 %v4919
      %v5041 = vunpack.c.h.bf16 %v4919
      %v5042 = vunpack.c.l.bf16 %v4920
      %v5043 = vunpack.c.h.bf16 %v4920
      %v5044 = vunpack.c.l.bf16 %v4921
      %v5045 = vunpack.c.h.bf16 %v4921
      %v5046 = vunpack.c.l.bf16 %v4922
      %v5047 = vunpack.c.h.bf16 %v4922
      %v5048 = vunpack.c.l.bf16 %v4923
      %v5049 = vunpack.c.h.bf16 %v4923
      %v5050 = vunpack.c.l.bf16 %v4924
      %v5051 = vunpack.c.h.bf16 %v4924
      %v5052 = vunpack.c.l.bf16 %v4925
      %v5053 = vunpack.c.h.bf16 %v4925
      %v5054 = vunpack.c.l.bf16 %v4926
      %v5055 = vunpack.c.h.bf16 %v4926
      %v5056 = vunpack.c.l.bf16 %v4927
      %v5057 = vunpack.c.h.bf16 %v4927
      %v5058 = vunpack.c.l.bf16 %v4928
      %v5059 = vunpack.c.h.bf16 %v4928
      %v5060 = vunpack.c.l.bf16 %v4929
      %v5061 = vunpack.c.h.bf16 %v4929
      %v5062 = vunpack.c.l.bf16 %v4930
      %v5063 = vunpack.c.h.bf16 %v4930
      %v5064 = vunpack.c.l.bf16 %v4931
      %v5065 = vunpack.c.h.bf16 %v4931
      %v5066 = vunpack.c.l.bf16 %v4932
      %v5067 = vunpack.c.h.bf16 %v4932
      %v5068 = vunpack.c.l.bf16 %v4933
      %v5069 = vunpack.c.h.bf16 %v4933
      %v5070 = vunpack.c.l.bf16 %v4934
      %v5071 = vunpack.c.h.bf16 %v4934
      %v5072 = vunpack.c.l.bf16 %v4935
      %v5073 = vunpack.c.h.bf16 %v4935
      %v5074 = vunpack.c.l.bf16 %v4936
      %v5075 = vunpack.c.h.bf16 %v4936
      %v5076 = vunpack.c.l.bf16 %v4944
      %v5077 = vunpack.c.l.bf16 %v4947
      %v5078 = vadd.f32 %v4948, %v5076
      %v5079 = vadd.f32 %v4949, %v5077
      %v5080 = vadd.f32 %v4950, %v5076
      %v5081 = vadd.f32 %v4951, %v5077
      %v5082 = vadd.f32 %v4952, %v5076
      %v5083 = vadd.f32 %v4953, %v5077
      %v5084 = vadd.f32 %v4954, %v5076
      %v5085 = vadd.f32 %v4955, %v5077
      %v5086 = vadd.f32 %v4956, %v5076
      %v5087 = vadd.f32 %v4957, %v5077
      %v5088 = vadd.f32 %v4958, %v5076
      %v5089 = vadd.f32 %v4959, %v5077
      %v5090 = vadd.f32 %v4960, %v5076
      %v5091 = vadd.f32 %v4961, %v5077
      %v5092 = vadd.f32 %v4962, %v5076
      %v5093 = vadd.f32 %v4963, %v5077
      %v5094 = vadd.f32 %v4964, %v5076
      %v5095 = vadd.f32 %v4965, %v5077
      %v5096 = vadd.f32 %v4966, %v5076
      %v5097 = vadd.f32 %v4967, %v5077
      %v5098 = vadd.f32 %v4968, %v5076
      %v5099 = vadd.f32 %v4969, %v5077
      %v5100 = vadd.f32 %v4970, %v5076
      %v5101 = vadd.f32 %v4971, %v5077
      %v5102 = vadd.f32 %v4972, %v5076
      %v5103 = vadd.f32 %v4973, %v5077
      %v5104 = vadd.f32 %v4974, %v5076
      %v5105 = vadd.f32 %v4975, %v5077
      %v5106 = vadd.f32 %v4976, %v5076
      %v5107 = vadd.f32 %v4977, %v5077
      %v5108 = vadd.f32 %v4978, %v5076
      %v5109 = vadd.f32 %v4979, %v5077
      %v5110 = vadd.f32 %v4980, %v5076
      %v5111 = vadd.f32 %v4981, %v5077
      %v5112 = vadd.f32 %v4982, %v5076
      %v5113 = vadd.f32 %v4983, %v5077
      %v5114 = vadd.f32 %v4984, %v5076
      %v5115 = vadd.f32 %v4985, %v5077
      %v5116 = vadd.f32 %v4986, %v5076
      %v5117 = vadd.f32 %v4987, %v5077
      %v5118 = vadd.f32 %v4988, %v5076
      %v5119 = vadd.f32 %v4989, %v5077
      %v5120 = vadd.f32 %v4990, %v5076
      %v5121 = vadd.f32 %v4991, %v5077
      %v5122 = vadd.f32 %v4992, %v5076
      %v5123 = vadd.f32 %v4993, %v5077
      %v5124 = vadd.f32 %v4994, %v5076
      %v5125 = vadd.f32 %v4995, %v5077
      %v5126 = vadd.f32 %v4996, %v5076
      %v5127 = vadd.f32 %v4997, %v5077
      %v5128 = vadd.f32 %v4998, %v5076
      %v5129 = vadd.f32 %v4999, %v5077
      %v5130 = vadd.f32 %v5000, %v5076
      %v5131 = vadd.f32 %v5001, %v5077
      %v5132 = vadd.f32 %v5002, %v5076
      %v5133 = vadd.f32 %v5003, %v5077
      %v5134 = vadd.f32 %v5004, %v5076
      %v5135 = vadd.f32 %v5005, %v5077
      %v5136 = vadd.f32 %v5006, %v5076
      %v5137 = vadd.f32 %v5007, %v5077
      %v5138 = vadd.f32 %v5008, %v5076
      %v5139 = vadd.f32 %v5009, %v5077
      %v5140 = vadd.f32 %v5010, %v5076
      %v5141 = vadd.f32 %v5011, %v5077
      %v5142 = vadd.f32 %v5012, %v5076
      %v5143 = vadd.f32 %v5013, %v5077
      %v5144 = vadd.f32 %v5014, %v5076
      %v5145 = vadd.f32 %v5015, %v5077
      %v5146 = vadd.f32 %v5016, %v5076
      %v5147 = vadd.f32 %v5017, %v5077
      %v5148 = vadd.f32 %v5018, %v5076
      %v5149 = vadd.f32 %v5019, %v5077
      %v5150 = vadd.f32 %v5020, %v5076
      %v5151 = vadd.f32 %v5021, %v5077
      %v5152 = vadd.f32 %v5022, %v5076
      %v5153 = vadd.f32 %v5023, %v5077
      %v5154 = vadd.f32 %v5024, %v5076
      %v5155 = vadd.f32 %v5025, %v5077
      %v5156 = vadd.f32 %v5026, %v5076
      %v5157 = vadd.f32 %v5027, %v5077
      %v5158 = vadd.f32 %v5028, %v5076
      %v5159 = vadd.f32 %v5029, %v5077
      %v5160 = vadd.f32 %v5030, %v5076
      %v5161 = vadd.f32 %v5031, %v5077
      %v5162 = vadd.f32 %v5032, %v5076
      %v5163 = vadd.f32 %v5033, %v5077
      %v5164 = vadd.f32 %v5034, %v5076
      %v5165 = vadd.f32 %v5035, %v5077
      %v5166 = vadd.f32 %v5036, %v5076
      %v5167 = vadd.f32 %v5037, %v5077
      %v5168 = vadd.f32 %v5038, %v5076
      %v5169 = vadd.f32 %v5039, %v5077
      %v5170 = vadd.f32 %v5040, %v5076
      %v5171 = vadd.f32 %v5041, %v5077
      %v5172 = vadd.f32 %v5042, %v5076
      %v5173 = vadd.f32 %v5043, %v5077
      %v5174 = vadd.f32 %v5044, %v5076
      %v5175 = vadd.f32 %v5045, %v5077
      %v5176 = vadd.f32 %v5046, %v5076
      %v5177 = vadd.f32 %v5047, %v5077
      %v5178 = vadd.f32 %v5048, %v5076
      %v5179 = vadd.f32 %v5049, %v5077
      %v5180 = vadd.f32 %v5050, %v5076
      %v5181 = vadd.f32 %v5051, %v5077
      %v5182 = vadd.f32 %v5052, %v5076
      %v5183 = vadd.f32 %v5053, %v5077
      %v5184 = vadd.f32 %v5054, %v5076
      %v5185 = vadd.f32 %v5055, %v5077
      %v5186 = vadd.f32 %v5056, %v5076
      %v5187 = vadd.f32 %v5057, %v5077
      %v5188 = vadd.f32 %v5058, %v5076
      %v5189 = vadd.f32 %v5059, %v5077
      %v5190 = vadd.f32 %v5060, %v5076
      %v5191 = vadd.f32 %v5061, %v5077
      %v5192 = vadd.f32 %v5062, %v5076
      %v5193 = vadd.f32 %v5063, %v5077
      %v5194 = vadd.f32 %v5064, %v5076
      %v5195 = vadd.f32 %v5065, %v5077
      %v5196 = vadd.f32 %v5066, %v5076
      %v5197 = vadd.f32 %v5067, %v5077
      %v5198 = vadd.f32 %v5068, %v5076
      %v5199 = vadd.f32 %v5069, %v5077
      %v5200 = vadd.f32 %v5070, %v5076
      %v5201 = vadd.f32 %v5071, %v5077
      %v5202 = vadd.f32 %v5072, %v5076
      %v5203 = vadd.f32 %v5073, %v5077
      %v5204 = vadd.f32 %v5074, %v5076
      %v5205 = vadd.f32 %v5075, %v5077
      %v5206 = vpack.c.bf16 %v5079, %v5078
      %v5207 = vpack.c.bf16 %v5081, %v5080
      %v5208 = vpack.c.bf16 %v5083, %v5082
      %v5209 = vpack.c.bf16 %v5085, %v5084
      %v5210 = vpack.c.bf16 %v5087, %v5086
      %v5211 = vpack.c.bf16 %v5089, %v5088
      %v5212 = vpack.c.bf16 %v5091, %v5090
      %v5213 = vpack.c.bf16 %v5093, %v5092
      %v5214 = vpack.c.bf16 %v5095, %v5094
      %v5215 = vpack.c.bf16 %v5097, %v5096
      %v5216 = vpack.c.bf16 %v5099, %v5098
      %v5217 = vpack.c.bf16 %v5101, %v5100
      %v5218 = vpack.c.bf16 %v5103, %v5102
      %v5219 = vpack.c.bf16 %v5105, %v5104
      %v5220 = vpack.c.bf16 %v5107, %v5106
      %v5221 = vpack.c.bf16 %v5109, %v5108
      %v5222 = vpack.c.bf16 %v5111, %v5110
      %v5223 = vpack.c.bf16 %v5113, %v5112
      %v5224 = vpack.c.bf16 %v5115, %v5114
      %v5225 = vpack.c.bf16 %v5117, %v5116
      %v5226 = vpack.c.bf16 %v5119, %v5118
      %v5227 = vpack.c.bf16 %v5121, %v5120
      %v5228 = vpack.c.bf16 %v5123, %v5122
      %v5229 = vpack.c.bf16 %v5125, %v5124
      %v5230 = vpack.c.bf16 %v5127, %v5126
      %v5231 = vpack.c.bf16 %v5129, %v5128
      %v5232 = vpack.c.bf16 %v5131, %v5130
      %v5233 = vpack.c.bf16 %v5133, %v5132
      %v5234 = vpack.c.bf16 %v5135, %v5134
      %v5235 = vpack.c.bf16 %v5137, %v5136
      %v5236 = vpack.c.bf16 %v5139, %v5138
      %v5237 = vpack.c.bf16 %v5141, %v5140
      %v5238 = vpack.c.bf16 %v5143, %v5142
      %v5239 = vpack.c.bf16 %v5145, %v5144
      %v5240 = vpack.c.bf16 %v5147, %v5146
      %v5241 = vpack.c.bf16 %v5149, %v5148
      %v5242 = vpack.c.bf16 %v5151, %v5150
      %v5243 = vpack.c.bf16 %v5153, %v5152
      %v5244 = vpack.c.bf16 %v5155, %v5154
      %v5245 = vpack.c.bf16 %v5157, %v5156
      %v5246 = vpack.c.bf16 %v5159, %v5158
      %v5247 = vpack.c.bf16 %v5161, %v5160
      %v5248 = vpack.c.bf16 %v5163, %v5162
      %v5249 = vpack.c.bf16 %v5165, %v5164
      %v5250 = vpack.c.bf16 %v5167, %v5166
      %v5251 = vpack.c.bf16 %v5169, %v5168
      %v5252 = vpack.c.bf16 %v5171, %v5170
      %v5253 = vpack.c.bf16 %v5173, %v5172
      %v5254 = vpack.c.bf16 %v5175, %v5174
      %v5255 = vpack.c.bf16 %v5177, %v5176
      %v5256 = vpack.c.bf16 %v5179, %v5178
      %v5257 = vpack.c.bf16 %v5181, %v5180
      %v5258 = vpack.c.bf16 %v5183, %v5182
      %v5259 = vpack.c.bf16 %v5185, %v5184
      %v5260 = vpack.c.bf16 %v5187, %v5186
      %v5261 = vpack.c.bf16 %v5189, %v5188
      %v5262 = vpack.c.bf16 %v5191, %v5190
      %v5263 = vpack.c.bf16 %v5193, %v5192
      %v5264 = vpack.c.bf16 %v5195, %v5194
      %v5265 = vpack.c.bf16 %v5197, %v5196
      %v5266 = vpack.c.bf16 %v5199, %v5198
      %v5267 = vpack.c.bf16 %v5201, %v5200
      %v5268 = vpack.c.bf16 %v5203, %v5202
      %v5269 = vpack.c.bf16 %v5205, %v5204
      %v5270 = vunpack.c.l.bf16 %v5206
      %v5271 = vunpack.c.h.bf16 %v5206
      %v5272 = vunpack.c.l.bf16 %v5207
      %v5273 = vunpack.c.h.bf16 %v5207
      %v5274 = vunpack.c.l.bf16 %v5208
      %v5275 = vunpack.c.h.bf16 %v5208
      %v5276 = vunpack.c.l.bf16 %v5209
      %v5277 = vunpack.c.h.bf16 %v5209
      %v5278 = vunpack.c.l.bf16 %v5210
      %v5279 = vunpack.c.h.bf16 %v5210
      %v5280 = vunpack.c.l.bf16 %v5211
      %v5281 = vunpack.c.h.bf16 %v5211
      %v5282 = vunpack.c.l.bf16 %v5212
      %v5283 = vunpack.c.h.bf16 %v5212
      %v5284 = vunpack.c.l.bf16 %v5213
      %v5285 = vunpack.c.h.bf16 %v5213
      %v5286 = vunpack.c.l.bf16 %v5214
      %v5287 = vunpack.c.h.bf16 %v5214
      %v5288 = vunpack.c.l.bf16 %v5215
      %v5289 = vunpack.c.h.bf16 %v5215
      %v5290 = vunpack.c.l.bf16 %v5216
      %v5291 = vunpack.c.h.bf16 %v5216
      %v5292 = vunpack.c.l.bf16 %v5217
      %v5293 = vunpack.c.h.bf16 %v5217
      %v5294 = vunpack.c.l.bf16 %v5218
      %v5295 = vunpack.c.h.bf16 %v5218
      %v5296 = vunpack.c.l.bf16 %v5219
      %v5297 = vunpack.c.h.bf16 %v5219
      %v5298 = vunpack.c.l.bf16 %v5220
      %v5299 = vunpack.c.h.bf16 %v5220
      %v5300 = vunpack.c.l.bf16 %v5221
      %v5301 = vunpack.c.h.bf16 %v5221
      %v5302 = vunpack.c.l.bf16 %v5222
      %v5303 = vunpack.c.h.bf16 %v5222
      %v5304 = vunpack.c.l.bf16 %v5223
      %v5305 = vunpack.c.h.bf16 %v5223
      %v5306 = vunpack.c.l.bf16 %v5224
      %v5307 = vunpack.c.h.bf16 %v5224
      %v5308 = vunpack.c.l.bf16 %v5225
      %v5309 = vunpack.c.h.bf16 %v5225
      %v5310 = vunpack.c.l.bf16 %v5226
      %v5311 = vunpack.c.h.bf16 %v5226
      %v5312 = vunpack.c.l.bf16 %v5227
      %v5313 = vunpack.c.h.bf16 %v5227
      %v5314 = vunpack.c.l.bf16 %v5228
      %v5315 = vunpack.c.h.bf16 %v5228
      %v5316 = vunpack.c.l.bf16 %v5229
      %v5317 = vunpack.c.h.bf16 %v5229
      %v5318 = vunpack.c.l.bf16 %v5230
      %v5319 = vunpack.c.h.bf16 %v5230
      %v5320 = vunpack.c.l.bf16 %v5231
      %v5321 = vunpack.c.h.bf16 %v5231
      %v5322 = vunpack.c.l.bf16 %v5232
      %v5323 = vunpack.c.h.bf16 %v5232
      %v5324 = vunpack.c.l.bf16 %v5233
      %v5325 = vunpack.c.h.bf16 %v5233
      %v5326 = vunpack.c.l.bf16 %v5234
      %v5327 = vunpack.c.h.bf16 %v5234
      %v5328 = vunpack.c.l.bf16 %v5235
      %v5329 = vunpack.c.h.bf16 %v5235
      %v5330 = vunpack.c.l.bf16 %v5236
      %v5331 = vunpack.c.h.bf16 %v5236
      %v5332 = vunpack.c.l.bf16 %v5237
      %v5333 = vunpack.c.h.bf16 %v5237
      %v5334 = vunpack.c.l.bf16 %v5238
      %v5335 = vunpack.c.h.bf16 %v5238
      %v5336 = vunpack.c.l.bf16 %v5239
      %v5337 = vunpack.c.h.bf16 %v5239
      %v5338 = vunpack.c.l.bf16 %v5240
      %v5339 = vunpack.c.h.bf16 %v5240
      %v5340 = vunpack.c.l.bf16 %v5241
      %v5341 = vunpack.c.h.bf16 %v5241
      %v5342 = vunpack.c.l.bf16 %v5242
      %v5343 = vunpack.c.h.bf16 %v5242
      %v5344 = vunpack.c.l.bf16 %v5243
      %v5345 = vunpack.c.h.bf16 %v5243
      %v5346 = vunpack.c.l.bf16 %v5244
      %v5347 = vunpack.c.h.bf16 %v5244
      %v5348 = vunpack.c.l.bf16 %v5245
      %v5349 = vunpack.c.h.bf16 %v5245
      %v5350 = vunpack.c.l.bf16 %v5246
      %v5351 = vunpack.c.h.bf16 %v5246
      %v5352 = vunpack.c.l.bf16 %v5247
      %v5353 = vunpack.c.h.bf16 %v5247
      %v5354 = vunpack.c.l.bf16 %v5248
      %v5355 = vunpack.c.h.bf16 %v5248
      %v5356 = vunpack.c.l.bf16 %v5249
      %v5357 = vunpack.c.h.bf16 %v5249
      %v5358 = vunpack.c.l.bf16 %v5250
      %v5359 = vunpack.c.h.bf16 %v5250
      %v5360 = vunpack.c.l.bf16 %v5251
      %v5361 = vunpack.c.h.bf16 %v5251
      %v5362 = vunpack.c.l.bf16 %v5252
      %v5363 = vunpack.c.h.bf16 %v5252
      %v5364 = vunpack.c.l.bf16 %v5253
      %v5365 = vunpack.c.h.bf16 %v5253
      %v5366 = vunpack.c.l.bf16 %v5254
      %v5367 = vunpack.c.h.bf16 %v5254
      %v5368 = vunpack.c.l.bf16 %v5255
      %v5369 = vunpack.c.h.bf16 %v5255
      %v5370 = vunpack.c.l.bf16 %v5256
      %v5371 = vunpack.c.h.bf16 %v5256
      %v5372 = vunpack.c.l.bf16 %v5257
      %v5373 = vunpack.c.h.bf16 %v5257
      %v5374 = vunpack.c.l.bf16 %v5258
      %v5375 = vunpack.c.h.bf16 %v5258
      %v5376 = vunpack.c.l.bf16 %v5259
      %v5377 = vunpack.c.h.bf16 %v5259
      %v5378 = vunpack.c.l.bf16 %v5260
      %v5379 = vunpack.c.h.bf16 %v5260
      %v5380 = vunpack.c.l.bf16 %v5261
      %v5381 = vunpack.c.h.bf16 %v5261
      %v5382 = vunpack.c.l.bf16 %v5262
      %v5383 = vunpack.c.h.bf16 %v5262
      %v5384 = vunpack.c.l.bf16 %v5263
      %v5385 = vunpack.c.h.bf16 %v5263
      %v5386 = vunpack.c.l.bf16 %v5264
      %v5387 = vunpack.c.h.bf16 %v5264
      %v5388 = vunpack.c.l.bf16 %v5265
      %v5389 = vunpack.c.h.bf16 %v5265
      %v5390 = vunpack.c.l.bf16 %v5266
      %v5391 = vunpack.c.h.bf16 %v5266
      %v5392 = vunpack.c.l.bf16 %v5267
      %v5393 = vunpack.c.h.bf16 %v5267
      %v5394 = vunpack.c.l.bf16 %v5268
      %v5395 = vunpack.c.h.bf16 %v5268
      %v5396 = vunpack.c.l.bf16 %v5269
      %v5397 = vunpack.c.h.bf16 %v5269
      %v5398 = vmul.f32 %v5270, 0.010009766
      %v5399 = vmul.f32 %v5271, 0.010009766
      %v5400 = vmul.f32 %v5272, 0.010009766
      %v5401 = vmul.f32 %v5273, 0.010009766
      %v5402 = vmul.f32 %v5274, 0.010009766
      %v5403 = vmul.f32 %v5275, 0.010009766
      %v5404 = vmul.f32 %v5276, 0.010009766
      %v5405 = vmul.f32 %v5277, 0.010009766
      %v5406 = vmul.f32 %v5278, 0.010009766
      %v5407 = vmul.f32 %v5279, 0.010009766
      %v5408 = vmul.f32 %v5280, 0.010009766
      %v5409 = vmul.f32 %v5281, 0.010009766
      %v5410 = vmul.f32 %v5282, 0.010009766
      %v5411 = vmul.f32 %v5283, 0.010009766
      %v5412 = vmul.f32 %v5284, 0.010009766
      %v5413 = vmul.f32 %v5285, 0.010009766
      %v5414 = vmul.f32 %v5286, 0.010009766
      %v5415 = vmul.f32 %v5287, 0.010009766
      %v5416 = vmul.f32 %v5288, 0.010009766
      %v5417 = vmul.f32 %v5289, 0.010009766
      %v5418 = vmul.f32 %v5290, 0.010009766
      %v5419 = vmul.f32 %v5291, 0.010009766
      %v5420 = vmul.f32 %v5292, 0.010009766
      %v5421 = vmul.f32 %v5293, 0.010009766
      %v5422 = vmul.f32 %v5294, 0.010009766
      %v5423 = vmul.f32 %v5295, 0.010009766
      %v5424 = vmul.f32 %v5296, 0.010009766
      %v5425 = vmul.f32 %v5297, 0.010009766
      %v5426 = vmul.f32 %v5298, 0.010009766
      %v5427 = vmul.f32 %v5299, 0.010009766
      %v5428 = vmul.f32 %v5300, 0.010009766
      %v5429 = vmul.f32 %v5301, 0.010009766
      %v5430 = vmul.f32 %v5302, 0.010009766
      %v5431 = vmul.f32 %v5303, 0.010009766
      %v5432 = vmul.f32 %v5304, 0.010009766
      %v5433 = vmul.f32 %v5305, 0.010009766
      %v5434 = vmul.f32 %v5306, 0.010009766
      %v5435 = vmul.f32 %v5307, 0.010009766
      %v5436 = vmul.f32 %v5308, 0.010009766
      %v5437 = vmul.f32 %v5309, 0.010009766
      %v5438 = vmul.f32 %v5310, 0.010009766
      %v5439 = vmul.f32 %v5311, 0.010009766
      %v5440 = vmul.f32 %v5312, 0.010009766
      %v5441 = vmul.f32 %v5313, 0.010009766
      %v5442 = vmul.f32 %v5314, 0.010009766
      %v5443 = vmul.f32 %v5315, 0.010009766
      %v5444 = vmul.f32 %v5316, 0.010009766
      %v5445 = vmul.f32 %v5317, 0.010009766
      %v5446 = vmul.f32 %v5318, 0.010009766
      %v5447 = vmul.f32 %v5319, 0.010009766
      %v5448 = vmul.f32 %v5320, 0.010009766
      %v5449 = vmul.f32 %v5321, 0.010009766
      %v5450 = vmul.f32 %v5322, 0.010009766
      %v5451 = vmul.f32 %v5323, 0.010009766
      %v5452 = vmul.f32 %v5324, 0.010009766
      %v5453 = vmul.f32 %v5325, 0.010009766
      %v5454 = vmul.f32 %v5326, 0.010009766
      %v5455 = vmul.f32 %v5327, 0.010009766
      %v5456 = vmul.f32 %v5328, 0.010009766
      %v5457 = vmul.f32 %v5329, 0.010009766
      %v5458 = vmul.f32 %v5330, 0.010009766
      %v5459 = vmul.f32 %v5331, 0.010009766
      %v5460 = vmul.f32 %v5332, 0.010009766
      %v5461 = vmul.f32 %v5333, 0.010009766
      %v5462 = vmul.f32 %v5334, 0.010009766
      %v5463 = vmul.f32 %v5335, 0.010009766
      %v5464 = vmul.f32 %v5336, 0.010009766
      %v5465 = vmul.f32 %v5337, 0.010009766
      %v5466 = vmul.f32 %v5338, 0.010009766
      %v5467 = vmul.f32 %v5339, 0.010009766
      %v5468 = vmul.f32 %v5340, 0.010009766
      %v5469 = vmul.f32 %v5341, 0.010009766
      %v5470 = vmul.f32 %v5342, 0.010009766
      %v5471 = vmul.f32 %v5343, 0.010009766
      %v5472 = vmul.f32 %v5344, 0.010009766
      %v5473 = vmul.f32 %v5345, 0.010009766
      %v5474 = vmul.f32 %v5346, 0.010009766
      %v5475 = vmul.f32 %v5347, 0.010009766
      %v5476 = vmul.f32 %v5348, 0.010009766
      %v5477 = vmul.f32 %v5349, 0.010009766
      %v5478 = vmul.f32 %v5350, 0.010009766
      %v5479 = vmul.f32 %v5351, 0.010009766
      %v5480 = vmul.f32 %v5352, 0.010009766
      %v5481 = vmul.f32 %v5353, 0.010009766
      %v5482 = vmul.f32 %v5354, 0.010009766
      %v5483 = vmul.f32 %v5355, 0.010009766
      %v5484 = vmul.f32 %v5356, 0.010009766
      %v5485 = vmul.f32 %v5357, 0.010009766
      %v5486 = vmul.f32 %v5358, 0.010009766
      %v5487 = vmul.f32 %v5359, 0.010009766
      %v5488 = vmul.f32 %v5360, 0.010009766
      %v5489 = vmul.f32 %v5361, 0.010009766
      %v5490 = vmul.f32 %v5362, 0.010009766
      %v5491 = vmul.f32 %v5363, 0.010009766
      %v5492 = vmul.f32 %v5364, 0.010009766
      %v5493 = vmul.f32 %v5365, 0.010009766
      %v5494 = vmul.f32 %v5366, 0.010009766
      %v5495 = vmul.f32 %v5367, 0.010009766
      %v5496 = vmul.f32 %v5368, 0.010009766
      %v5497 = vmul.f32 %v5369, 0.010009766
      %v5498 = vmul.f32 %v5370, 0.010009766
      %v5499 = vmul.f32 %v5371, 0.010009766
      %v5500 = vmul.f32 %v5372, 0.010009766
      %v5501 = vmul.f32 %v5373, 0.010009766
      %v5502 = vmul.f32 %v5374, 0.010009766
      %v5503 = vmul.f32 %v5375, 0.010009766
      %v5504 = vmul.f32 %v5376, 0.010009766
      %v5505 = vmul.f32 %v5377, 0.010009766
      %v5506 = vmul.f32 %v5378, 0.010009766
      %v5507 = vmul.f32 %v5379, 0.010009766
      %v5508 = vmul.f32 %v5380, 0.010009766
      %v5509 = vmul.f32 %v5381, 0.010009766
      %v5510 = vmul.f32 %v5382, 0.010009766
      %v5511 = vmul.f32 %v5383, 0.010009766
      %v5512 = vmul.f32 %v5384, 0.010009766
      %v5513 = vmul.f32 %v5385, 0.010009766
      %v5514 = vmul.f32 %v5386, 0.010009766
      %v5515 = vmul.f32 %v5387, 0.010009766
      %v5516 = vmul.f32 %v5388, 0.010009766
      %v5517 = vmul.f32 %v5389, 0.010009766
      %v5518 = vmul.f32 %v5390, 0.010009766
      %v5519 = vmul.f32 %v5391, 0.010009766
      %v5520 = vmul.f32 %v5392, 0.010009766
      %v5521 = vmul.f32 %v5393, 0.010009766
      %v5522 = vmul.f32 %v5394, 0.010009766
      %v5523 = vmul.f32 %v5395, 0.010009766
      %v5524 = vmul.f32 %v5396, 0.010009766
      %v5525 = vmul.f32 %v5397, 0.010009766
      %v5526 = vpack.c.bf16 %v5399, %v5398
      %v5527 = vpack.c.bf16 %v5401, %v5400
      %v5528 = vpack.c.bf16 %v5403, %v5402
      %v5529 = vpack.c.bf16 %v5405, %v5404
      %v5530 = vpack.c.bf16 %v5407, %v5406
      %v5531 = vpack.c.bf16 %v5409, %v5408
      %v5532 = vpack.c.bf16 %v5411, %v5410
      %v5533 = vpack.c.bf16 %v5413, %v5412
      %v5534 = vpack.c.bf16 %v5415, %v5414
      %v5535 = vpack.c.bf16 %v5417, %v5416
      %v5536 = vpack.c.bf16 %v5419, %v5418
      %v5537 = vpack.c.bf16 %v5421, %v5420
      %v5538 = vpack.c.bf16 %v5423, %v5422
      %v5539 = vpack.c.bf16 %v5425, %v5424
      %v5540 = vpack.c.bf16 %v5427, %v5426
      %v5541 = vpack.c.bf16 %v5429, %v5428
      %v5542 = vpack.c.bf16 %v5431, %v5430
      %v5543 = vpack.c.bf16 %v5433, %v5432
      %v5544 = vpack.c.bf16 %v5435, %v5434
      %v5545 = vpack.c.bf16 %v5437, %v5436
      %v5546 = vpack.c.bf16 %v5439, %v5438
      %v5547 = vpack.c.bf16 %v5441, %v5440
      %v5548 = vpack.c.bf16 %v5443, %v5442
      %v5549 = vpack.c.bf16 %v5445, %v5444
      %v5550 = vpack.c.bf16 %v5447, %v5446
      %v5551 = vpack.c.bf16 %v5449, %v5448
      %v5552 = vpack.c.bf16 %v5451, %v5450
      %v5553 = vpack.c.bf16 %v5453, %v5452
      %v5554 = vpack.c.bf16 %v5455, %v5454
      %v5555 = vpack.c.bf16 %v5457, %v5456
      %v5556 = vpack.c.bf16 %v5459, %v5458
      %v5557 = vpack.c.bf16 %v5461, %v5460
      %v5558 = vpack.c.bf16 %v5463, %v5462
      %v5559 = vpack.c.bf16 %v5465, %v5464
      %v5560 = vpack.c.bf16 %v5467, %v5466
      %v5561 = vpack.c.bf16 %v5469, %v5468
      %v5562 = vpack.c.bf16 %v5471, %v5470
      %v5563 = vpack.c.bf16 %v5473, %v5472
      %v5564 = vpack.c.bf16 %v5475, %v5474
      %v5565 = vpack.c.bf16 %v5477, %v5476
      %v5566 = vpack.c.bf16 %v5479, %v5478
      %v5567 = vpack.c.bf16 %v5481, %v5480
      %v5568 = vpack.c.bf16 %v5483, %v5482
      %v5569 = vpack.c.bf16 %v5485, %v5484
      %v5570 = vpack.c.bf16 %v5487, %v5486
      %v5571 = vpack.c.bf16 %v5489, %v5488
      %v5572 = vpack.c.bf16 %v5491, %v5490
      %v5573 = vpack.c.bf16 %v5493, %v5492
      %v5574 = vpack.c.bf16 %v5495, %v5494
      %v5575 = vpack.c.bf16 %v5497, %v5496
      %v5576 = vpack.c.bf16 %v5499, %v5498
      %v5577 = vpack.c.bf16 %v5501, %v5500
      %v5578 = vpack.c.bf16 %v5503, %v5502
      %v5579 = vpack.c.bf16 %v5505, %v5504
      %v5580 = vpack.c.bf16 %v5507, %v5506
      %v5581 = vpack.c.bf16 %v5509, %v5508
      %v5582 = vpack.c.bf16 %v5511, %v5510
      %v5583 = vpack.c.bf16 %v5513, %v5512
      %v5584 = vpack.c.bf16 %v5515, %v5514
      %v5585 = vpack.c.bf16 %v5517, %v5516
      %v5586 = vpack.c.bf16 %v5519, %v5518
      %v5587 = vpack.c.bf16 %v5521, %v5520
      %v5588 = vpack.c.bf16 %v5523, %v5522
      %v5589 = vpack.c.bf16 %v5525, %v5524
      %v5590 = vunpack.c.l.bf16 %v5526
      %v5591 = vunpack.c.h.bf16 %v5526
      %v5592 = vunpack.c.l.bf16 %v5527
      %v5593 = vunpack.c.h.bf16 %v5527
      %v5594 = vunpack.c.l.bf16 %v5528
      %v5595 = vunpack.c.h.bf16 %v5528
      %v5596 = vunpack.c.l.bf16 %v5529
      %v5597 = vunpack.c.h.bf16 %v5529
      %v5598 = vunpack.c.l.bf16 %v5530
      %v5599 = vunpack.c.h.bf16 %v5530
      %v5600 = vunpack.c.l.bf16 %v5531
      %v5601 = vunpack.c.h.bf16 %v5531
      %v5602 = vunpack.c.l.bf16 %v5532
      %v5603 = vunpack.c.h.bf16 %v5532
      %v5604 = vunpack.c.l.bf16 %v5533
      %v5605 = vunpack.c.h.bf16 %v5533
      %v5606 = vunpack.c.l.bf16 %v5534
      %v5607 = vunpack.c.h.bf16 %v5534
      %v5608 = vunpack.c.l.bf16 %v5535
      %v5609 = vunpack.c.h.bf16 %v5535
      %v5610 = vunpack.c.l.bf16 %v5536
      %v5611 = vunpack.c.h.bf16 %v5536
      %v5612 = vunpack.c.l.bf16 %v5537
      %v5613 = vunpack.c.h.bf16 %v5537
      %v5614 = vunpack.c.l.bf16 %v5538
      %v5615 = vunpack.c.h.bf16 %v5538
      %v5616 = vunpack.c.l.bf16 %v5539
      %v5617 = vunpack.c.h.bf16 %v5539
      %v5618 = vunpack.c.l.bf16 %v5540
      %v5619 = vunpack.c.h.bf16 %v5540
      %v5620 = vunpack.c.l.bf16 %v5541
      %v5621 = vunpack.c.h.bf16 %v5541
      %v5622 = vunpack.c.l.bf16 %v5542
      %v5623 = vunpack.c.h.bf16 %v5542
      %v5624 = vunpack.c.l.bf16 %v5543
      %v5625 = vunpack.c.h.bf16 %v5543
      %v5626 = vunpack.c.l.bf16 %v5544
      %v5627 = vunpack.c.h.bf16 %v5544
      %v5628 = vunpack.c.l.bf16 %v5545
      %v5629 = vunpack.c.h.bf16 %v5545
      %v5630 = vunpack.c.l.bf16 %v5546
      %v5631 = vunpack.c.h.bf16 %v5546
      %v5632 = vunpack.c.l.bf16 %v5547
      %v5633 = vunpack.c.h.bf16 %v5547
      %v5634 = vunpack.c.l.bf16 %v5548
      %v5635 = vunpack.c.h.bf16 %v5548
      %v5636 = vunpack.c.l.bf16 %v5549
      %v5637 = vunpack.c.h.bf16 %v5549
      %v5638 = vunpack.c.l.bf16 %v5550
      %v5639 = vunpack.c.h.bf16 %v5550
      %v5640 = vunpack.c.l.bf16 %v5551
      %v5641 = vunpack.c.h.bf16 %v5551
      %v5642 = vunpack.c.l.bf16 %v5552
      %v5643 = vunpack.c.h.bf16 %v5552
      %v5644 = vunpack.c.l.bf16 %v5553
      %v5645 = vunpack.c.h.bf16 %v5553
      %v5646 = vunpack.c.l.bf16 %v5554
      %v5647 = vunpack.c.h.bf16 %v5554
      %v5648 = vunpack.c.l.bf16 %v5555
      %v5649 = vunpack.c.h.bf16 %v5555
      %v5650 = vunpack.c.l.bf16 %v5556
      %v5651 = vunpack.c.h.bf16 %v5556
      %v5652 = vunpack.c.l.bf16 %v5557
      %v5653 = vunpack.c.h.bf16 %v5557
      %v5654 = vunpack.c.l.bf16 %v5558
      %v5655 = vunpack.c.h.bf16 %v5558
      %v5656 = vunpack.c.l.bf16 %v5559
      %v5657 = vunpack.c.h.bf16 %v5559
      %v5658 = vunpack.c.l.bf16 %v5560
      %v5659 = vunpack.c.h.bf16 %v5560
      %v5660 = vunpack.c.l.bf16 %v5561
      %v5661 = vunpack.c.h.bf16 %v5561
      %v5662 = vunpack.c.l.bf16 %v5562
      %v5663 = vunpack.c.h.bf16 %v5562
      %v5664 = vunpack.c.l.bf16 %v5563
      %v5665 = vunpack.c.h.bf16 %v5563
      %v5666 = vunpack.c.l.bf16 %v5564
      %v5667 = vunpack.c.h.bf16 %v5564
      %v5668 = vunpack.c.l.bf16 %v5565
      %v5669 = vunpack.c.h.bf16 %v5565
      %v5670 = vunpack.c.l.bf16 %v5566
      %v5671 = vunpack.c.h.bf16 %v5566
      %v5672 = vunpack.c.l.bf16 %v5567
      %v5673 = vunpack.c.h.bf16 %v5567
      %v5674 = vunpack.c.l.bf16 %v5568
      %v5675 = vunpack.c.h.bf16 %v5568
      %v5676 = vunpack.c.l.bf16 %v5569
      %v5677 = vunpack.c.h.bf16 %v5569
      %v5678 = vunpack.c.l.bf16 %v5570
      %v5679 = vunpack.c.h.bf16 %v5570
      %v5680 = vunpack.c.l.bf16 %v5571
      %v5681 = vunpack.c.h.bf16 %v5571
      %v5682 = vunpack.c.l.bf16 %v5572
      %v5683 = vunpack.c.h.bf16 %v5572
      %v5684 = vunpack.c.l.bf16 %v5573
      %v5685 = vunpack.c.h.bf16 %v5573
      %v5686 = vunpack.c.l.bf16 %v5574
      %v5687 = vunpack.c.h.bf16 %v5574
      %v5688 = vunpack.c.l.bf16 %v5575
      %v5689 = vunpack.c.h.bf16 %v5575
      %v5690 = vunpack.c.l.bf16 %v5576
      %v5691 = vunpack.c.h.bf16 %v5576
      %v5692 = vunpack.c.l.bf16 %v5577
      %v5693 = vunpack.c.h.bf16 %v5577
      %v5694 = vunpack.c.l.bf16 %v5578
      %v5695 = vunpack.c.h.bf16 %v5578
      %v5696 = vunpack.c.l.bf16 %v5579
      %v5697 = vunpack.c.h.bf16 %v5579
      %v5698 = vunpack.c.l.bf16 %v5580
      %v5699 = vunpack.c.h.bf16 %v5580
      %v5700 = vunpack.c.l.bf16 %v5581
      %v5701 = vunpack.c.h.bf16 %v5581
      %v5702 = vunpack.c.l.bf16 %v5582
      %v5703 = vunpack.c.h.bf16 %v5582
      %v5704 = vunpack.c.l.bf16 %v5583
      %v5705 = vunpack.c.h.bf16 %v5583
      %v5706 = vunpack.c.l.bf16 %v5584
      %v5707 = vunpack.c.h.bf16 %v5584
      %v5708 = vunpack.c.l.bf16 %v5585
      %v5709 = vunpack.c.h.bf16 %v5585
      %v5710 = vunpack.c.l.bf16 %v5586
      %v5711 = vunpack.c.h.bf16 %v5586
      %v5712 = vunpack.c.l.bf16 %v5587
      %v5713 = vunpack.c.h.bf16 %v5587
      %v5714 = vunpack.c.l.bf16 %v5588
      %v5715 = vunpack.c.h.bf16 %v5588
      %v5716 = vunpack.c.l.bf16 %v5589
      %v5717 = vunpack.c.h.bf16 %v5589
      %v5718 = vmax.f32 %v5270, %v5590
      %v5719 = vmax.f32 %v5271, %v5591
      %v5720 = vmax.f32 %v5272, %v5592
      %v5721 = vmax.f32 %v5273, %v5593
      %v5722 = vmax.f32 %v5274, %v5594
      %v5723 = vmax.f32 %v5275, %v5595
      %v5724 = vmax.f32 %v5276, %v5596
      %v5725 = vmax.f32 %v5277, %v5597
      %v5726 = vmax.f32 %v5278, %v5598
      %v5727 = vmax.f32 %v5279, %v5599
      %v5728 = vmax.f32 %v5280, %v5600
      %v5729 = vmax.f32 %v5281, %v5601
      %v5730 = vmax.f32 %v5282, %v5602
      %v5731 = vmax.f32 %v5283, %v5603
      %v5732 = vmax.f32 %v5284, %v5604
      %v5733 = vmax.f32 %v5285, %v5605
      %v5734 = vmax.f32 %v5286, %v5606
      %v5735 = vmax.f32 %v5287, %v5607
      %v5736 = vmax.f32 %v5288, %v5608
      %v5737 = vmax.f32 %v5289, %v5609
      %v5738 = vmax.f32 %v5290, %v5610
      %v5739 = vmax.f32 %v5291, %v5611
      %v5740 = vmax.f32 %v5292, %v5612
      %v5741 = vmax.f32 %v5293, %v5613
      %v5742 = vmax.f32 %v5294, %v5614
      %v5743 = vmax.f32 %v5295, %v5615
      %v5744 = vmax.f32 %v5296, %v5616
      %v5745 = vmax.f32 %v5297, %v5617
      %v5746 = vmax.f32 %v5298, %v5618
      %v5747 = vmax.f32 %v5299, %v5619
      %v5748 = vmax.f32 %v5300, %v5620
      %v5749 = vmax.f32 %v5301, %v5621
      %v5750 = vmax.f32 %v5302, %v5622
      %v5751 = vmax.f32 %v5303, %v5623
      %v5752 = vmax.f32 %v5304, %v5624
      %v5753 = vmax.f32 %v5305, %v5625
      %v5754 = vmax.f32 %v5306, %v5626
      %v5755 = vmax.f32 %v5307, %v5627
      %v5756 = vmax.f32 %v5308, %v5628
      %v5757 = vmax.f32 %v5309, %v5629
      %v5758 = vmax.f32 %v5310, %v5630
      %v5759 = vmax.f32 %v5311, %v5631
      %v5760 = vmax.f32 %v5312, %v5632
      %v5761 = vmax.f32 %v5313, %v5633
      %v5762 = vmax.f32 %v5314, %v5634
      %v5763 = vmax.f32 %v5315, %v5635
      %v5764 = vmax.f32 %v5316, %v5636
      %v5765 = vmax.f32 %v5317, %v5637
      %v5766 = vmax.f32 %v5318, %v5638
      %v5767 = vmax.f32 %v5319, %v5639
      %v5768 = vmax.f32 %v5320, %v5640
      %v5769 = vmax.f32 %v5321, %v5641
      %v5770 = vmax.f32 %v5322, %v5642
      %v5771 = vmax.f32 %v5323, %v5643
      %v5772 = vmax.f32 %v5324, %v5644
      %v5773 = vmax.f32 %v5325, %v5645
      %v5774 = vmax.f32 %v5326, %v5646
      %v5775 = vmax.f32 %v5327, %v5647
      %v5776 = vmax.f32 %v5328, %v5648
      %v5777 = vmax.f32 %v5329, %v5649
      %v5778 = vmax.f32 %v5330, %v5650
      %v5779 = vmax.f32 %v5331, %v5651
      %v5780 = vmax.f32 %v5332, %v5652
      %v5781 = vmax.f32 %v5333, %v5653
      %v5782 = vmax.f32 %v5334, %v5654
      %v5783 = vmax.f32 %v5335, %v5655
      %v5784 = vmax.f32 %v5336, %v5656
      %v5785 = vmax.f32 %v5337, %v5657
      %v5786 = vmax.f32 %v5338, %v5658
      %v5787 = vmax.f32 %v5339, %v5659
      %v5788 = vmax.f32 %v5340, %v5660
      %v5789 = vmax.f32 %v5341, %v5661
      %v5790 = vmax.f32 %v5342, %v5662
      %v5791 = vmax.f32 %v5343, %v5663
      %v5792 = vmax.f32 %v5344, %v5664
      %v5793 = vmax.f32 %v5345, %v5665
      %v5794 = vmax.f32 %v5346, %v5666
      %v5795 = vmax.f32 %v5347, %v5667
      %v5796 = vmax.f32 %v5348, %v5668
      %v5797 = vmax.f32 %v5349, %v5669
      %v5798 = vmax.f32 %v5350, %v5670
      %v5799 = vmax.f32 %v5351, %v5671
      %v5800 = vmax.f32 %v5352, %v5672
      %v5801 = vmax.f32 %v5353, %v5673
      %v5802 = vmax.f32 %v5354, %v5674
      %v5803 = vmax.f32 %v5355, %v5675
      %v5804 = vmax.f32 %v5356, %v5676
      %v5805 = vmax.f32 %v5357, %v5677
      %v5806 = vmax.f32 %v5358, %v5678
      %v5807 = vmax.f32 %v5359, %v5679
      %v5808 = vmax.f32 %v5360, %v5680
      %v5809 = vmax.f32 %v5361, %v5681
      %v5810 = vmax.f32 %v5362, %v5682
      %v5811 = vmax.f32 %v5363, %v5683
      %v5812 = vmax.f32 %v5364, %v5684
      %v5813 = vmax.f32 %v5365, %v5685
      %v5814 = vmax.f32 %v5366, %v5686
      %v5815 = vmax.f32 %v5367, %v5687
      %v5816 = vmax.f32 %v5368, %v5688
      %v5817 = vmax.f32 %v5369, %v5689
      %v5818 = vmax.f32 %v5370, %v5690
      %v5819 = vmax.f32 %v5371, %v5691
      %v5820 = vmax.f32 %v5372, %v5692
      %v5821 = vmax.f32 %v5373, %v5693
      %v5822 = vmax.f32 %v5374, %v5694
      %v5823 = vmax.f32 %v5375, %v5695
      %v5824 = vmax.f32 %v5376, %v5696
      %v5825 = vmax.f32 %v5377, %v5697
      %v5826 = vmax.f32 %v5378, %v5698
      %v5827 = vmax.f32 %v5379, %v5699
      %v5828 = vmax.f32 %v5380, %v5700
      %v5829 = vmax.f32 %v5381, %v5701
      %v5830 = vmax.f32 %v5382, %v5702
      %v5831 = vmax.f32 %v5383, %v5703
      %v5832 = vmax.f32 %v5384, %v5704
      %v5833 = vmax.f32 %v5385, %v5705
      %v5834 = vmax.f32 %v5386, %v5706
      %v5835 = vmax.f32 %v5387, %v5707
      %v5836 = vmax.f32 %v5388, %v5708
      %v5837 = vmax.f32 %v5389, %v5709
      %v5838 = vmax.f32 %v5390, %v5710
      %v5839 = vmax.f32 %v5391, %v5711
      %v5840 = vmax.f32 %v5392, %v5712
      %v5841 = vmax.f32 %v5393, %v5713
      %v5842 = vmax.f32 %v5394, %v5714
      %v5843 = vmax.f32 %v5395, %v5715
      %v5844 = vmax.f32 %v5396, %v5716
      %v5845 = vmax.f32 %v5397, %v5717
      %v5846 = vpack.c.bf16 %v5720, %v5718
      %v5847 = vpack.c.bf16 %v5721, %v5719
      %v5848 = vpack.c.bf16 %v5724, %v5722
      %v5849 = vpack.c.bf16 %v5725, %v5723
      %v5850 = vpack.c.bf16 %v5728, %v5726
      %v5851 = vpack.c.bf16 %v5729, %v5727
      %v5852 = vpack.c.bf16 %v5732, %v5730
      %v5853 = vpack.c.bf16 %v5733, %v5731
      %v5854 = vpack.c.bf16 %v5736, %v5734
      %v5855 = vpack.c.bf16 %v5737, %v5735
      %v5856 = vpack.c.bf16 %v5740, %v5738
      %v5857 = vpack.c.bf16 %v5741, %v5739
      %v5858 = vpack.c.bf16 %v5744, %v5742
      %v5859 = vpack.c.bf16 %v5745, %v5743
      %v5860 = vpack.c.bf16 %v5748, %v5746
      %v5861 = vpack.c.bf16 %v5749, %v5747
      %v5862 = vpack.c.bf16 %v5752, %v5750
      %v5863 = vpack.c.bf16 %v5753, %v5751
      %v5864 = vpack.c.bf16 %v5756, %v5754
      %v5865 = vpack.c.bf16 %v5757, %v5755
      %v5866 = vpack.c.bf16 %v5760, %v5758
      %v5867 = vpack.c.bf16 %v5761, %v5759
      %v5868 = vpack.c.bf16 %v5764, %v5762
      %v5869 = vpack.c.bf16 %v5765, %v5763
      %v5870 = vpack.c.bf16 %v5768, %v5766
      %v5871 = vpack.c.bf16 %v5769, %v5767
      %v5872 = vpack.c.bf16 %v5772, %v5770
      %v5873 = vpack.c.bf16 %v5773, %v5771
      %v5874 = vpack.c.bf16 %v5776, %v5774
      %v5875 = vpack.c.bf16 %v5777, %v5775
      %v5876 = vpack.c.bf16 %v5780, %v5778
      %v5877 = vpack.c.bf16 %v5781, %v5779
      %v5878 = vpack.c.bf16 %v5784, %v5782
      %v5879 = vpack.c.bf16 %v5785, %v5783
      %v5880 = vpack.c.bf16 %v5788, %v5786
      %v5881 = vpack.c.bf16 %v5789, %v5787
      %v5882 = vpack.c.bf16 %v5792, %v5790
      %v5883 = vpack.c.bf16 %v5793, %v5791
      %v5884 = vpack.c.bf16 %v5796, %v5794
      %v5885 = vpack.c.bf16 %v5797, %v5795
      %v5886 = vpack.c.bf16 %v5800, %v5798
      %v5887 = vpack.c.bf16 %v5801, %v5799
      %v5888 = vpack.c.bf16 %v5804, %v5802
      %v5889 = vpack.c.bf16 %v5805, %v5803
      %v5890 = vpack.c.bf16 %v5808, %v5806
      %v5891 = vpack.c.bf16 %v5809, %v5807
      %v5892 = vpack.c.bf16 %v5812, %v5810
      %v5893 = vpack.c.bf16 %v5813, %v5811
      %v5894 = vpack.c.bf16 %v5816, %v5814
      %v5895 = vpack.c.bf16 %v5817, %v5815
      %v5896 = vpack.c.bf16 %v5820, %v5818
      %v5897 = vpack.c.bf16 %v5821, %v5819
      %v5898 = vpack.c.bf16 %v5824, %v5822
      %v5899 = vpack.c.bf16 %v5825, %v5823
      %v5900 = vpack.c.bf16 %v5828, %v5826
      %v5901 = vpack.c.bf16 %v5829, %v5827
      %v5902 = vpack.c.bf16 %v5832, %v5830
      %v5903 = vpack.c.bf16 %v5833, %v5831
      %v5904 = vpack.c.bf16 %v5836, %v5834
      %v5905 = vpack.c.bf16 %v5837, %v5835
      %v5906 = vpack.c.bf16 %v5840, %v5838
      %v5907 = vpack.c.bf16 %v5841, %v5839
      %v5908 = vpack.c.bf16 %v5844, %v5842
      %v5909 = vpack.c.bf16 %v5845, %v5843
      %v5910 = vld [vmem:[%s7] sm:$0xff]
      %v5911 = vld [vmem:[%s7 + $0x8] sm:$0xff]
      %v5912 = vld [vmem:[%s7 + $0x10] sm:$0xff]
      %v5913 = vld [vmem:[%s7 + $0x18] sm:$0xff]
      %v5914 = vld [vmem:[%s7 + $0x20] sm:$0xff]
      %v5915 = vld [vmem:[%s7 + $0x28] sm:$0xff]
      %v5916 = vld [vmem:[%s7 + $0x30] sm:$0xff]
      %v5917 = vld [vmem:[%s7 + $0x38] sm:$0xff]
      %v5918 = vld [vmem:[%s7 + $0x40] sm:$0xff]
      %v5919 = vld [vmem:[%s7 + $0x48] sm:$0xff]
      %v5920 = vld [vmem:[%s7 + $0x50] sm:$0xff]
      %v5921 = vld [vmem:[%s7 + $0x58] sm:$0xff]
      %v5922 = vld [vmem:[%s7 + $0x60] sm:$0xff]
      %v5923 = vld [vmem:[%s7 + $0x68] sm:$0xff]
      %v5924 = vld [vmem:[%s7 + $0x70] sm:$0xff]
      %v5925 = vld [vmem:[%s7 + $0x78] sm:$0xff]
      %v5926 = vld [vmem:[%s7 + $0x80] sm:$0xff]
      %v5927 = vld [vmem:[%s7 + $0x88] sm:$0xff]
      %v5928 = vld [vmem:[%s7 + $0x90] sm:$0xff]
      %v5929 = vld [vmem:[%s7 + $0x98] sm:$0xff]
      %v5930 = vld [vmem:[%s7 + $0xa0] sm:$0xff]
      %v5931 = vld [vmem:[%s7 + $0xa8] sm:$0xff]
      %v5932 = vld [vmem:[%s7 + $0xb0] sm:$0xff]
      %v5933 = vld [vmem:[%s7 + $0xb8] sm:$0xff]
      %v5934 = vld [vmem:[%s7 + $0xc0] sm:$0xff]
      %v5935 = vld [vmem:[%s7 + $0xc8] sm:$0xff]
      %v5936 = vld [vmem:[%s7 + $0xd0] sm:$0xff]
      %v5937 = vld [vmem:[%s7 + $0xd8] sm:$0xff]
      %v5938 = vld [vmem:[%s7 + $0xe0] sm:$0xff]
      %v5939 = vld [vmem:[%s7 + $0xe8] sm:$0xff]
      %v5940 = vld [vmem:[%s7 + $0xf0] sm:$0xff]
      %v5941 = vld [vmem:[%s7 + $0xf8] sm:$0xff]
      %v5974 = vunpack.c.l.b16 %v5910
      %v5975 = vunpack.c.h.b16 %v5910
      %v5976 = vunpack.c.l.b16 %v5911
      %v5977 = vunpack.c.h.b16 %v5911
      %v5978 = vunpack.c.l.b16 %v5912
      %v5979 = vunpack.c.h.b16 %v5912
      %v5980 = vunpack.c.l.b16 %v5913
      %v5981 = vunpack.c.h.b16 %v5913
      %v5982 = vunpack.c.l.b16 %v5914
      %v5983 = vunpack.c.h.b16 %v5914
      %v5984 = vunpack.c.l.b16 %v5915
      %v5985 = vunpack.c.h.b16 %v5915
      %v5986 = vunpack.c.l.b16 %v5916
      %v5987 = vunpack.c.h.b16 %v5916
      %v5988 = vunpack.c.l.b16 %v5917
      %v5989 = vunpack.c.h.b16 %v5917
      %v5990 = vunpack.c.l.b16 %v5918
      %v5991 = vunpack.c.h.b16 %v5918
      %v5992 = vunpack.c.l.b16 %v5919
      %v5993 = vunpack.c.h.b16 %v5919
      %v5994 = vunpack.c.l.b16 %v5920
      %v5995 = vunpack.c.h.b16 %v5920
      %v5996 = vunpack.c.l.b16 %v5921
      %v5997 = vunpack.c.h.b16 %v5921
      %v5998 = vunpack.c.l.b16 %v5922
      %v5999 = vunpack.c.h.b16 %v5922
      %v6000 = vunpack.c.l.b16 %v5923
      %v6001 = vunpack.c.h.b16 %v5923
      %v6002 = vunpack.c.l.b16 %v5924
      %v6003 = vunpack.c.h.b16 %v5924
      %v6004 = vunpack.c.l.b16 %v5925
      %v6005 = vunpack.c.h.b16 %v5925
      %v6006 = vunpack.c.l.b16 %v5926
      %v6007 = vunpack.c.h.b16 %v5926
      %v6008 = vunpack.c.l.b16 %v5927
      %v6009 = vunpack.c.h.b16 %v5927
      %v6010 = vunpack.c.l.b16 %v5928
      %v6011 = vunpack.c.h.b16 %v5928
      %v6012 = vunpack.c.l.b16 %v5929
      %v6013 = vunpack.c.h.b16 %v5929
      %v6014 = vunpack.c.l.b16 %v5930
      %v6015 = vunpack.c.h.b16 %v5930
      %v6016 = vunpack.c.l.b16 %v5931
      %v6017 = vunpack.c.h.b16 %v5931
      %v6018 = vunpack.c.l.b16 %v5932
      %v6019 = vunpack.c.h.b16 %v5932
      %v6020 = vunpack.c.l.b16 %v5933
      %v6021 = vunpack.c.h.b16 %v5933
      %v6022 = vunpack.c.l.b16 %v5934
      %v6023 = vunpack.c.h.b16 %v5934
      %v6024 = vunpack.c.l.b16 %v5935
      %v6025 = vunpack.c.h.b16 %v5935
      %v6026 = vunpack.c.l.b16 %v5936
      %v6027 = vunpack.c.h.b16 %v5936
      %v6028 = vunpack.c.l.b16 %v5937
      %v6029 = vunpack.c.h.b16 %v5937
      %v6030 = vunpack.c.l.b16 %v5938
      %v6031 = vunpack.c.h.b16 %v5938
      %v6032 = vunpack.c.l.b16 %v5939
      %v6033 = vunpack.c.h.b16 %v5939
      %v6034 = vunpack.c.l.b16 %v5940
      %v6035 = vunpack.c.h.b16 %v5940
      %v6036 = vunpack.c.l.b16 %v5941
      %v6037 = vunpack.c.h.b16 %v5941
      %v6038 = vpack.c.b16 %v5976, %v5974
      %v6039 = vpack.c.b16 %v5977, %v5975
      %v6040 = vpack.c.b16 %v5980, %v5978
      %v6041 = vpack.c.b16 %v5981, %v5979
      %v6042 = vpack.c.b16 %v5984, %v5982
      %v6043 = vpack.c.b16 %v5985, %v5983
      %v6044 = vpack.c.b16 %v5988, %v5986
      %v6045 = vpack.c.b16 %v5989, %v5987
      %v6046 = vpack.c.b16 %v5992, %v5990
      %v6047 = vpack.c.b16 %v5993, %v5991
      %v6048 = vpack.c.b16 %v5996, %v5994
      %v6049 = vpack.c.b16 %v5997, %v5995
      %v6050 = vpack.c.b16 %v6000, %v5998
      %v6051 = vpack.c.b16 %v6001, %v5999
      %v6052 = vpack.c.b16 %v6004, %v6002
      %v6053 = vpack.c.b16 %v6005, %v6003
      %v6054 = vpack.c.b16 %v6008, %v6006
      %v6055 = vpack.c.b16 %v6009, %v6007
      %v6056 = vpack.c.b16 %v6012, %v6010
      %v6057 = vpack.c.b16 %v6013, %v6011
      %v6058 = vpack.c.b16 %v6016, %v6014
      %v6059 = vpack.c.b16 %v6017, %v6015
      %v6060 = vpack.c.b16 %v6020, %v6018
      %v6061 = vpack.c.b16 %v6021, %v6019
      %v6062 = vpack.c.b16 %v6024, %v6022
      %v6063 = vpack.c.b16 %v6025, %v6023
      %v6064 = vpack.c.b16 %v6028, %v6026
      %v6065 = vpack.c.b16 %v6029, %v6027
      %v6066 = vpack.c.b16 %v6032, %v6030
      %v6067 = vpack.c.b16 %v6033, %v6031
      %v6068 = vpack.c.b16 %v6036, %v6034
      %v6069 = vpack.c.b16 %v6037, %v6035
      %6102 = vmatpush.bf16.msra.mxu0 %v6052
      %6103 = vmatpush.bf16.msra.mxu0 %v6050
      %6104 = vmatpush.bf16.msra.mxu0 %v6048
      %6105 = vmatpush.bf16.msra.mxu0 %v6046
      %6106 = vmatpush.bf16.msra.mxu0 %v6044
      %6107 = vmatpush.bf16.msra.mxu0 %v6042
      %6108 = vmatpush.bf16.msra.mxu0 %v6040
      %6109 = vmatpush.bf16.msra.mxu0 %v6038
      %6110 = vmatmul.bf16.gmra.mxu0 %v5846
      %v6111 = vpop.f32.mrf.mxu0
      %v6112 = vadd.f32 0.0, %v6111
      %v6113 = vpop.f32.mrf.mxu0
      %v6114 = vadd.f32 0.0, %v6113
      %6115 = vmatmul.bf16.gmra.mxu0 %v5848
      %v6116 = vpop.f32.mrf.mxu0
      %v6117 = vadd.f32 0.0, %v6116
      %v6118 = vpop.f32.mrf.mxu0
      %v6119 = vadd.f32 0.0, %v6118
      %6120 = vmatmul.bf16.gmra.mxu0 %v5850
      %v6121 = vpop.f32.mrf.mxu0
      %v6122 = vadd.f32 0.0, %v6121
      %v6123 = vpop.f32.mrf.mxu0
      %v6124 = vadd.f32 0.0, %v6123
      %6125 = vmatmul.bf16.gmra.mxu0 %v5852
      %v6126 = vpop.f32.mrf.mxu0
      %v6127 = vadd.f32 0.0, %v6126
      %v6128 = vpop.f32.mrf.mxu0
      %v6129 = vadd.f32 0.0, %v6128
      %6130 = vmatmul.bf16.gmra.mxu0 %v5854
      %v6131 = vpop.f32.mrf.mxu0
      %v6132 = vadd.f32 0.0, %v6131
      %v6133 = vpop.f32.mrf.mxu0
      %v6134 = vadd.f32 0.0, %v6133
      %6135 = vmatmul.bf16.gmra.mxu0 %v5856
      %v6136 = vpop.f32.mrf.mxu0
      %v6137 = vadd.f32 0.0, %v6136
      %v6138 = vpop.f32.mrf.mxu0
      %v6139 = vadd.f32 0.0, %v6138
      %6140 = vmatmul.bf16.gmra.mxu0 %v5858
      %v6141 = vpop.f32.mrf.mxu0
      %v6142 = vadd.f32 0.0, %v6141
      %v6143 = vpop.f32.mrf.mxu0
      %v6144 = vadd.f32 0.0, %v6143
      %6145 = vmatmul.bf16.gmra.mxu0 %v5860
      %v6146 = vpop.f32.mrf.mxu0
      %v6147 = vadd.f32 0.0, %v6146
      %v6148 = vpop.f32.mrf.mxu0
      %v6149 = vadd.f32 0.0, %v6148
      %6150 = vmatmul.bf16.gmra.mxu0 %v5862
      %v6151 = vpop.f32.mrf.mxu0
      %v6152 = vadd.f32 0.0, %v6151
      %v6153 = vpop.f32.mrf.mxu0
      %v6154 = vadd.f32 0.0, %v6153
      %6155 = vmatmul.bf16.gmra.mxu0 %v5864
      %v6156 = vpop.f32.mrf.mxu0
      %v6157 = vadd.f32 0.0, %v6156
      %v6158 = vpop.f32.mrf.mxu0
      %v6159 = vadd.f32 0.0, %v6158
      %6160 = vmatmul.bf16.gmra.mxu0 %v5866
      %v6161 = vpop.f32.mrf.mxu0
      %v6162 = vadd.f32 0.0, %v6161
      %v6163 = vpop.f32.mrf.mxu0
      %v6164 = vadd.f32 0.0, %v6163
      %6165 = vmatmul.bf16.gmra.mxu0 %v5868
      %v6166 = vpop.f32.mrf.mxu0
      %v6167 = vadd.f32 0.0, %v6166
      %v6168 = vpop.f32.mrf.mxu0
      %v6169 = vadd.f32 0.0, %v6168
      %6170 = vmatmul.bf16.gmra.mxu0 %v5870
      %v6171 = vpop.f32.mrf.mxu0
      %v6172 = vadd.f32 0.0, %v6171
      %v6173 = vpop.f32.mrf.mxu0
      %v6174 = vadd.f32 0.0, %v6173
      %6175 = vmatmul.bf16.gmra.mxu0 %v5872
      %v6176 = vpop.f32.mrf.mxu0
      %v6177 = vadd.f32 0.0, %v6176
      %v6178 = vpop.f32.mrf.mxu0
      %v6179 = vadd.f32 0.0, %v6178
      %6180 = vmatmul.bf16.gmra.mxu0 %v5874
      %v6181 = vpop.f32.mrf.mxu0
      %v6182 = vadd.f32 0.0, %v6181
      %v6183 = vpop.f32.mrf.mxu0
      %v6184 = vadd.f32 0.0, %v6183
      %6185 = vmatmul.bf16.gmra.mxu0 %v5876
      %v6186 = vpop.f32.mrf.mxu0
      %v6187 = vadd.f32 0.0, %v6186
      %v6188 = vpop.f32.mrf.mxu0
      %v6189 = vadd.f32 0.0, %v6188
      %6190 = vmatmul.bf16.gmra.mxu0 %v5878
      %v6191 = vpop.f32.mrf.mxu0
      %v6192 = vadd.f32 0.0, %v6191
      %v6193 = vpop.f32.mrf.mxu0
      %v6194 = vadd.f32 0.0, %v6193
      %6195 = vmatmul.bf16.gmra.mxu0 %v5880
      %v6196 = vpop.f32.mrf.mxu0
      %v6197 = vadd.f32 0.0, %v6196
      %v6198 = vpop.f32.mrf.mxu0
      %v6199 = vadd.f32 0.0, %v6198
      %6200 = vmatmul.bf16.gmra.mxu0 %v5882
      %v6201 = vpop.f32.mrf.mxu0
      %v6202 = vadd.f32 0.0, %v6201
      %v6203 = vpop.f32.mrf.mxu0
      %v6204 = vadd.f32 0.0, %v6203
      %6205 = vmatmul.bf16.gmra.mxu0 %v5884
      %v6206 = vpop.f32.mrf.mxu0
      %v6207 = vadd.f32 0.0, %v6206
      %v6208 = vpop.f32.mrf.mxu0
      %v6209 = vadd.f32 0.0, %v6208
      %6210 = vmatmul.bf16.gmra.mxu0 %v5886
      %v6211 = vpop.f32.mrf.mxu0
      %v6212 = vadd.f32 0.0, %v6211
      %v6213 = vpop.f32.mrf.mxu0
      %v6214 = vadd.f32 0.0, %v6213
      %6215 = vmatmul.bf16.gmra.mxu0 %v5888
      %v6216 = vpop.f32.mrf.mxu0
      %v6217 = vadd.f32 0.0, %v6216
      %v6218 = vpop.f32.mrf.mxu0
      %v6219 = vadd.f32 0.0, %v6218
      %6220 = vmatmul.bf16.gmra.mxu0 %v5890
      %v6221 = vpop.f32.mrf.mxu0
      %v6222 = vadd.f32 0.0, %v6221
      %v6223 = vpop.f32.mrf.mxu0
      %v6224 = vadd.f32 0.0, %v6223
      %6225 = vmatmul.bf16.gmra.mxu0 %v5892
      %v6226 = vpop.f32.mrf.mxu0
      %v6227 = vadd.f32 0.0, %v6226
      %v6228 = vpop.f32.mrf.mxu0
      %v6229 = vadd.f32 0.0, %v6228
      %6230 = vmatmul.bf16.gmra.mxu0 %v5894
      %v6231 = vpop.f32.mrf.mxu0
      %v6232 = vadd.f32 0.0, %v6231
      %v6233 = vpop.f32.mrf.mxu0
      %v6234 = vadd.f32 0.0, %v6233
      %6235 = vmatmul.bf16.gmra.mxu0 %v5896
      %v6236 = vpop.f32.mrf.mxu0
      %v6237 = vadd.f32 0.0, %v6236
      %v6238 = vpop.f32.mrf.mxu0
      %v6239 = vadd.f32 0.0, %v6238
      %6240 = vmatmul.bf16.gmra.mxu0 %v5898
      %v6241 = vpop.f32.mrf.mxu0
      %v6242 = vadd.f32 0.0, %v6241
      %v6243 = vpop.f32.mrf.mxu0
      %v6244 = vadd.f32 0.0, %v6243
      %6245 = vmatmul.bf16.gmra.mxu0 %v5900
      %v6246 = vpop.f32.mrf.mxu0
      %v6247 = vadd.f32 0.0, %v6246
      %v6248 = vpop.f32.mrf.mxu0
      %v6249 = vadd.f32 0.0, %v6248
      %6250 = vmatmul.bf16.gmra.mxu0 %v5902
      %v6251 = vpop.f32.mrf.mxu0
      %v6252 = vadd.f32 0.0, %v6251
      %v6253 = vpop.f32.mrf.mxu0
      %v6254 = vadd.f32 0.0, %v6253
      %6255 = vmatmul.bf16.gmra.mxu0 %v5904
      %v6256 = vpop.f32.mrf.mxu0
      %v6257 = vadd.f32 0.0, %v6256
      %v6258 = vpop.f32.mrf.mxu0
      %v6259 = vadd.f32 0.0, %v6258
      %6260 = vmatmul.bf16.gmra.mxu0 %v5906
      %v6261 = vpop.f32.mrf.mxu0
      %v6262 = vadd.f32 0.0, %v6261
      %v6263 = vpop.f32.mrf.mxu0
      %v6264 = vadd.f32 0.0, %v6263
      %6265 = vmatmul.bf16.gmra.mxu0 %v5908
      %v6266 = vpop.f32.mrf.mxu0
      %v6267 = vadd.f32 0.0, %v6266
      %v6268 = vpop.f32.mrf.mxu0
      %v6269 = vadd.f32 0.0, %v6268
      %6270 = vdwg.mxu0
      %6271 = vmatpush.bf16.msra.mxu0 %v6068
      %6272 = vmatpush.bf16.msra.mxu0 %v6066
      %6273 = vmatpush.bf16.msra.mxu0 %v6064
      %6274 = vmatpush.bf16.msra.mxu0 %v6062
      %6275 = vmatpush.bf16.msra.mxu0 %v6060
      %6276 = vmatpush.bf16.msra.mxu0 %v6058
      %6277 = vmatpush.bf16.msra.mxu0 %v6056
      %6278 = vmatpush.bf16.msra.mxu0 %v6054
      %6279 = vmatmul.bf16.gmra.mxu0 %v5847
      %v6280 = vpop.f32.mrf.mxu0
      %v6281 = vadd.f32 %v6112, %v6280
      %v6282 = vpop.f32.mrf.mxu0
      %v6283 = vadd.f32 %v6114, %v6282
      %6284 = vmatmul.bf16.gmra.mxu0 %v5849
      %v6285 = vpop.f32.mrf.mxu0
      %v6286 = vadd.f32 %v6117, %v6285
      %v6287 = vpop.f32.mrf.mxu0
      %v6288 = vadd.f32 %v6119, %v6287
      %6289 = vmatmul.bf16.gmra.mxu0 %v5851
      %v6290 = vpop.f32.mrf.mxu0
      %v6291 = vadd.f32 %v6122, %v6290
      %v6292 = vpop.f32.mrf.mxu0
      %v6293 = vadd.f32 %v6124, %v6292
      %6294 = vmatmul.bf16.gmra.mxu0 %v5853
      %v6295 = vpop.f32.mrf.mxu0
      %v6296 = vadd.f32 %v6127, %v6295
      %v6297 = vpop.f32.mrf.mxu0
      %v6298 = vadd.f32 %v6129, %v6297
      %6299 = vmatmul.bf16.gmra.mxu0 %v5855
      %v6300 = vpop.f32.mrf.mxu0
      %v6301 = vadd.f32 %v6132, %v6300
      %v6302 = vpop.f32.mrf.mxu0
      %v6303 = vadd.f32 %v6134, %v6302
      %6304 = vmatmul.bf16.gmra.mxu0 %v5857
      %v6305 = vpop.f32.mrf.mxu0
      %v6306 = vadd.f32 %v6137, %v6305
      %v6307 = vpop.f32.mrf.mxu0
      %v6308 = vadd.f32 %v6139, %v6307
      %6309 = vmatmul.bf16.gmra.mxu0 %v5859
      %v6310 = vpop.f32.mrf.mxu0
      %v6311 = vadd.f32 %v6142, %v6310
      %v6312 = vpop.f32.mrf.mxu0
      %v6313 = vadd.f32 %v6144, %v6312
      %6314 = vmatmul.bf16.gmra.mxu0 %v5861
      %v6315 = vpop.f32.mrf.mxu0
      %v6316 = vadd.f32 %v6147, %v6315
      %v6317 = vpop.f32.mrf.mxu0
      %v6318 = vadd.f32 %v6149, %v6317
      %6319 = vmatmul.bf16.gmra.mxu0 %v5863
      %v6320 = vpop.f32.mrf.mxu0
      %v6321 = vadd.f32 %v6152, %v6320
      %v6322 = vpop.f32.mrf.mxu0
      %v6323 = vadd.f32 %v6154, %v6322
      %6324 = vmatmul.bf16.gmra.mxu0 %v5865
      %v6325 = vpop.f32.mrf.mxu0
      %v6326 = vadd.f32 %v6157, %v6325
      %v6327 = vpop.f32.mrf.mxu0
      %v6328 = vadd.f32 %v6159, %v6327
      %6329 = vmatmul.bf16.gmra.mxu0 %v5867
      %v6330 = vpop.f32.mrf.mxu0
      %v6331 = vadd.f32 %v6162, %v6330
      %v6332 = vpop.f32.mrf.mxu0
      %v6333 = vadd.f32 %v6164, %v6332
      %6334 = vmatmul.bf16.gmra.mxu0 %v5869
      %v6335 = vpop.f32.mrf.mxu0
      %v6336 = vadd.f32 %v6167, %v6335
      %v6337 = vpop.f32.mrf.mxu0
      %v6338 = vadd.f32 %v6169, %v6337
      %6339 = vmatmul.bf16.gmra.mxu0 %v5871
      %v6340 = vpop.f32.mrf.mxu0
      %v6341 = vadd.f32 %v6172, %v6340
      %v6342 = vpop.f32.mrf.mxu0
      %v6343 = vadd.f32 %v6174, %v6342
      %6344 = vmatmul.bf16.gmra.mxu0 %v5873
      %v6345 = vpop.f32.mrf.mxu0
      %v6346 = vadd.f32 %v6177, %v6345
      %v6347 = vpop.f32.mrf.mxu0
      %v6348 = vadd.f32 %v6179, %v6347
      %6349 = vmatmul.bf16.gmra.mxu0 %v5875
      %v6350 = vpop.f32.mrf.mxu0
      %v6351 = vadd.f32 %v6182, %v6350
      %v6352 = vpop.f32.mrf.mxu0
      %v6353 = vadd.f32 %v6184, %v6352
      %6354 = vmatmul.bf16.gmra.mxu0 %v5877
      %v6355 = vpop.f32.mrf.mxu0
      %v6356 = vadd.f32 %v6187, %v6355
      %v6357 = vpop.f32.mrf.mxu0
      %v6358 = vadd.f32 %v6189, %v6357
      %6359 = vmatmul.bf16.gmra.mxu0 %v5879
      %v6360 = vpop.f32.mrf.mxu0
      %v6361 = vadd.f32 %v6192, %v6360
      %v6362 = vpop.f32.mrf.mxu0
      %v6363 = vadd.f32 %v6194, %v6362
      %6364 = vmatmul.bf16.gmra.mxu0 %v5881
      %v6365 = vpop.f32.mrf.mxu0
      %v6366 = vadd.f32 %v6197, %v6365
      %v6367 = vpop.f32.mrf.mxu0
      %v6368 = vadd.f32 %v6199, %v6367
      %6369 = vmatmul.bf16.gmra.mxu0 %v5883
      %v6370 = vpop.f32.mrf.mxu0
      %v6371 = vadd.f32 %v6202, %v6370
      %v6372 = vpop.f32.mrf.mxu0
      %v6373 = vadd.f32 %v6204, %v6372
      %6374 = vmatmul.bf16.gmra.mxu0 %v5885
      %v6375 = vpop.f32.mrf.mxu0
      %v6376 = vadd.f32 %v6207, %v6375
      %v6377 = vpop.f32.mrf.mxu0
      %v6378 = vadd.f32 %v6209, %v6377
      %6379 = vmatmul.bf16.gmra.mxu0 %v5887
      %v6380 = vpop.f32.mrf.mxu0
      %v6381 = vadd.f32 %v6212, %v6380
      %v6382 = vpop.f32.mrf.mxu0
      %v6383 = vadd.f32 %v6214, %v6382
      %6384 = vmatmul.bf16.gmra.mxu0 %v5889
      %v6385 = vpop.f32.mrf.mxu0
      %v6386 = vadd.f32 %v6217, %v6385
      %v6387 = vpop.f32.mrf.mxu0
      %v6388 = vadd.f32 %v6219, %v6387
      %6389 = vmatmul.bf16.gmra.mxu0 %v5891
      %v6390 = vpop.f32.mrf.mxu0
      %v6391 = vadd.f32 %v6222, %v6390
      %v6392 = vpop.f32.mrf.mxu0
      %v6393 = vadd.f32 %v6224, %v6392
      %6394 = vmatmul.bf16.gmra.mxu0 %v5893
      %v6395 = vpop.f32.mrf.mxu0
      %v6396 = vadd.f32 %v6227, %v6395
      %v6397 = vpop.f32.mrf.mxu0
      %v6398 = vadd.f32 %v6229, %v6397
      %6399 = vmatmul.bf16.gmra.mxu0 %v5895
      %v6400 = vpop.f32.mrf.mxu0
      %v6401 = vadd.f32 %v6232, %v6400
      %v6402 = vpop.f32.mrf.mxu0
      %v6403 = vadd.f32 %v6234, %v6402
      %6404 = vmatmul.bf16.gmra.mxu0 %v5897
      %v6405 = vpop.f32.mrf.mxu0
      %v6406 = vadd.f32 %v6237, %v6405
      %v6407 = vpop.f32.mrf.mxu0
      %v6408 = vadd.f32 %v6239, %v6407
      %6409 = vmatmul.bf16.gmra.mxu0 %v5899
      %v6410 = vpop.f32.mrf.mxu0
      %v6411 = vadd.f32 %v6242, %v6410
      %v6412 = vpop.f32.mrf.mxu0
      %v6413 = vadd.f32 %v6244, %v6412
      %6414 = vmatmul.bf16.gmra.mxu0 %v5901
      %v6415 = vpop.f32.mrf.mxu0
      %v6416 = vadd.f32 %v6247, %v6415
      %v6417 = vpop.f32.mrf.mxu0
      %v6418 = vadd.f32 %v6249, %v6417
      %6419 = vmatmul.bf16.gmra.mxu0 %v5903
      %v6420 = vpop.f32.mrf.mxu0
      %v6421 = vadd.f32 %v6252, %v6420
      %v6422 = vpop.f32.mrf.mxu0
      %v6423 = vadd.f32 %v6254, %v6422
      %6424 = vmatmul.bf16.gmra.mxu0 %v5905
      %v6425 = vpop.f32.mrf.mxu0
      %v6426 = vadd.f32 %v6257, %v6425
      %v6427 = vpop.f32.mrf.mxu0
      %v6428 = vadd.f32 %v6259, %v6427
      %6429 = vmatmul.bf16.gmra.mxu0 %v5907
      %v6430 = vpop.f32.mrf.mxu0
      %v6431 = vadd.f32 %v6262, %v6430
      %v6432 = vpop.f32.mrf.mxu0
      %v6433 = vadd.f32 %v6264, %v6432
      %6434 = vmatmul.bf16.gmra.mxu0 %v5909
      %v6435 = vpop.f32.mrf.mxu0
      %v6436 = vadd.f32 %v6267, %v6435
      %v6437 = vpop.f32.mrf.mxu0
      %v6438 = vadd.f32 %v6269, %v6437
      %6439 = vdwg.mxu0
      %6440 = vmatpush.bf16.msra.mxu0 %v6053
      %6441 = vmatpush.bf16.msra.mxu0 %v6051
      %6442 = vmatpush.bf16.msra.mxu0 %v6049
      %6443 = vmatpush.bf16.msra.mxu0 %v6047
      %6444 = vmatpush.bf16.msra.mxu0 %v6045
      %6445 = vmatpush.bf16.msra.mxu0 %v6043
      %6446 = vmatpush.bf16.msra.mxu0 %v6041
      %6447 = vmatpush.bf16.msra.mxu0 %v6039
      %6448 = vmatmul.bf16.gmra.mxu0 %v5846
      %v6449 = vpop.f32.mrf.mxu0
      %v6450 = vadd.f32 0.0, %v6449
      %v6451 = vpop.f32.mrf.mxu0
      %v6452 = vadd.f32 0.0, %v6451
      %6453 = vmatmul.bf16.gmra.mxu0 %v5848
      %v6454 = vpop.f32.mrf.mxu0
      %v6455 = vadd.f32 0.0, %v6454
      %v6456 = vpop.f32.mrf.mxu0
      %v6457 = vadd.f32 0.0, %v6456
      %6458 = vmatmul.bf16.gmra.mxu0 %v5850
      %v6459 = vpop.f32.mrf.mxu0
      %v6460 = vadd.f32 0.0, %v6459
      %v6461 = vpop.f32.mrf.mxu0
      %v6462 = vadd.f32 0.0, %v6461
      %6463 = vmatmul.bf16.gmra.mxu0 %v5852
      %v6464 = vpop.f32.mrf.mxu0
      %v6465 = vadd.f32 0.0, %v6464
      %v6466 = vpop.f32.mrf.mxu0
      %v6467 = vadd.f32 0.0, %v6466
      %6468 = vmatmul.bf16.gmra.mxu0 %v5854
      %v6469 = vpop.f32.mrf.mxu0
      %v6470 = vadd.f32 0.0, %v6469
      %v6471 = vpop.f32.mrf.mxu0
      %v6472 = vadd.f32 0.0, %v6471
      %6473 = vmatmul.bf16.gmra.mxu0 %v5856
      %v6474 = vpop.f32.mrf.mxu0
      %v6475 = vadd.f32 0.0, %v6474
      %v6476 = vpop.f32.mrf.mxu0
      %v6477 = vadd.f32 0.0, %v6476
      %6478 = vmatmul.bf16.gmra.mxu0 %v5858
      %v6479 = vpop.f32.mrf.mxu0
      %v6480 = vadd.f32 0.0, %v6479
      %v6481 = vpop.f32.mrf.mxu0
      %v6482 = vadd.f32 0.0, %v6481
      %6483 = vmatmul.bf16.gmra.mxu0 %v5860
      %v6484 = vpop.f32.mrf.mxu0
      %v6485 = vadd.f32 0.0, %v6484
      %v6486 = vpop.f32.mrf.mxu0
      %v6487 = vadd.f32 0.0, %v6486
      %6488 = vmatmul.bf16.gmra.mxu0 %v5862
      %v6489 = vpop.f32.mrf.mxu0
      %v6490 = vadd.f32 0.0, %v6489
      %v6491 = vpop.f32.mrf.mxu0
      %v6492 = vadd.f32 0.0, %v6491
      %6493 = vmatmul.bf16.gmra.mxu0 %v5864
      %v6494 = vpop.f32.mrf.mxu0
      %v6495 = vadd.f32 0.0, %v6494
      %v6496 = vpop.f32.mrf.mxu0
      %v6497 = vadd.f32 0.0, %v6496
      %6498 = vmatmul.bf16.gmra.mxu0 %v5866
      %v6499 = vpop.f32.mrf.mxu0
      %v6500 = vadd.f32 0.0, %v6499
      %v6501 = vpop.f32.mrf.mxu0
      %v6502 = vadd.f32 0.0, %v6501
      %6503 = vmatmul.bf16.gmra.mxu0 %v5868
      %v6504 = vpop.f32.mrf.mxu0
      %v6505 = vadd.f32 0.0, %v6504
      %v6506 = vpop.f32.mrf.mxu0
      %v6507 = vadd.f32 0.0, %v6506
      %6508 = vmatmul.bf16.gmra.mxu0 %v5870
      %v6509 = vpop.f32.mrf.mxu0
      %v6510 = vadd.f32 0.0, %v6509
      %v6511 = vpop.f32.mrf.mxu0
      %v6512 = vadd.f32 0.0, %v6511
      %6513 = vmatmul.bf16.gmra.mxu0 %v5872
      %v6514 = vpop.f32.mrf.mxu0
      %v6515 = vadd.f32 0.0, %v6514
      %v6516 = vpop.f32.mrf.mxu0
      %v6517 = vadd.f32 0.0, %v6516
      %6518 = vmatmul.bf16.gmra.mxu0 %v5874
      %v6519 = vpop.f32.mrf.mxu0
      %v6520 = vadd.f32 0.0, %v6519
      %v6521 = vpop.f32.mrf.mxu0
      %v6522 = vadd.f32 0.0, %v6521
      %6523 = vmatmul.bf16.gmra.mxu0 %v5876
      %v6524 = vpop.f32.mrf.mxu0
      %v6525 = vadd.f32 0.0, %v6524
      %v6526 = vpop.f32.mrf.mxu0
      %v6527 = vadd.f32 0.0, %v6526
      %6528 = vmatmul.bf16.gmra.mxu0 %v5878
      %v6529 = vpop.f32.mrf.mxu0
      %v6530 = vadd.f32 0.0, %v6529
      %v6531 = vpop.f32.mrf.mxu0
      %v6532 = vadd.f32 0.0, %v6531
      %6533 = vmatmul.bf16.gmra.mxu0 %v5880
      %v6534 = vpop.f32.mrf.mxu0
      %v6535 = vadd.f32 0.0, %v6534
      %v6536 = vpop.f32.mrf.mxu0
      %v6537 = vadd.f32 0.0, %v6536
      %6538 = vmatmul.bf16.gmra.mxu0 %v5882
      %v6539 = vpop.f32.mrf.mxu0
      %v6540 = vadd.f32 0.0, %v6539
      %v6541 = vpop.f32.mrf.mxu0
      %v6542 = vadd.f32 0.0, %v6541
      %6543 = vmatmul.bf16.gmra.mxu0 %v5884
      %v6544 = vpop.f32.mrf.mxu0
      %v6545 = vadd.f32 0.0, %v6544
      %v6546 = vpop.f32.mrf.mxu0
      %v6547 = vadd.f32 0.0, %v6546
      %6548 = vmatmul.bf16.gmra.mxu0 %v5886
      %v6549 = vpop.f32.mrf.mxu0
      %v6550 = vadd.f32 0.0, %v6549
      %v6551 = vpop.f32.mrf.mxu0
      %v6552 = vadd.f32 0.0, %v6551
      %6553 = vmatmul.bf16.gmra.mxu0 %v5888
      %v6554 = vpop.f32.mrf.mxu0
      %v6555 = vadd.f32 0.0, %v6554
      %v6556 = vpop.f32.mrf.mxu0
      %v6557 = vadd.f32 0.0, %v6556
      %6558 = vmatmul.bf16.gmra.mxu0 %v5890
      %v6559 = vpop.f32.mrf.mxu0
      %v6560 = vadd.f32 0.0, %v6559
      %v6561 = vpop.f32.mrf.mxu0
      %v6562 = vadd.f32 0.0, %v6561
      %6563 = vmatmul.bf16.gmra.mxu0 %v5892
      %v6564 = vpop.f32.mrf.mxu0
      %v6565 = vadd.f32 0.0, %v6564
      %v6566 = vpop.f32.mrf.mxu0
      %v6567 = vadd.f32 0.0, %v6566
      %6568 = vmatmul.bf16.gmra.mxu0 %v5894
      %v6569 = vpop.f32.mrf.mxu0
      %v6570 = vadd.f32 0.0, %v6569
      %v6571 = vpop.f32.mrf.mxu0
      %v6572 = vadd.f32 0.0, %v6571
      %6573 = vmatmul.bf16.gmra.mxu0 %v5896
      %v6574 = vpop.f32.mrf.mxu0
      %v6575 = vadd.f32 0.0, %v6574
      %v6576 = vpop.f32.mrf.mxu0
      %v6577 = vadd.f32 0.0, %v6576
      %6578 = vmatmul.bf16.gmra.mxu0 %v5898
      %v6579 = vpop.f32.mrf.mxu0
      %v6580 = vadd.f32 0.0, %v6579
      %v6581 = vpop.f32.mrf.mxu0
      %v6582 = vadd.f32 0.0, %v6581
      %6583 = vmatmul.bf16.gmra.mxu0 %v5900
      %v6584 = vpop.f32.mrf.mxu0
      %v6585 = vadd.f32 0.0, %v6584
      %v6586 = vpop.f32.mrf.mxu0
      %v6587 = vadd.f32 0.0, %v6586
      %6588 = vmatmul.bf16.gmra.mxu0 %v5902
      %v6589 = vpop.f32.mrf.mxu0
      %v6590 = vadd.f32 0.0, %v6589
      %v6591 = vpop.f32.mrf.mxu0
      %v6592 = vadd.f32 0.0, %v6591
      %6593 = vmatmul.bf16.gmra.mxu0 %v5904
      %v6594 = vpop.f32.mrf.mxu0
      %v6595 = vadd.f32 0.0, %v6594
      %v6596 = vpop.f32.mrf.mxu0
      %v6597 = vadd.f32 0.0, %v6596
      %6598 = vmatmul.bf16.gmra.mxu0 %v5906
      %v6599 = vpop.f32.mrf.mxu0
      %v6600 = vadd.f32 0.0, %v6599
      %v6601 = vpop.f32.mrf.mxu0
      %v6602 = vadd.f32 0.0, %v6601
      %6603 = vmatmul.bf16.gmra.mxu0 %v5908
      %v6604 = vpop.f32.mrf.mxu0
      %v6605 = vadd.f32 0.0, %v6604
      %v6606 = vpop.f32.mrf.mxu0
      %v6607 = vadd.f32 0.0, %v6606
      %6608 = vdwg.mxu0
      %6609 = vmatpush.bf16.msra.mxu0 %v6069
      %6610 = vmatpush.bf16.msra.mxu0 %v6067
      %6611 = vmatpush.bf16.msra.mxu0 %v6065
      %6612 = vmatpush.bf16.msra.mxu0 %v6063
      %6613 = vmatpush.bf16.msra.mxu0 %v6061
      %6614 = vmatpush.bf16.msra.mxu0 %v6059
      %6615 = vmatpush.bf16.msra.mxu0 %v6057
      %6616 = vmatpush.bf16.msra.mxu0 %v6055
      %6617 = vmatmul.bf16.gmra.mxu0 %v5847
      %v6618 = vpop.f32.mrf.mxu0
      %v6619 = vadd.f32 %v6450, %v6618
      %v6620 = vpop.f32.mrf.mxu0
      %v6621 = vadd.f32 %v6452, %v6620
      %6622 = vmatmul.bf16.gmra.mxu0 %v5849
      %v6623 = vpop.f32.mrf.mxu0
      %v6624 = vadd.f32 %v6455, %v6623
      %v6625 = vpop.f32.mrf.mxu0
      %v6626 = vadd.f32 %v6457, %v6625
      %6627 = vmatmul.bf16.gmra.mxu0 %v5851
      %v6628 = vpop.f32.mrf.mxu0
      %v6629 = vadd.f32 %v6460, %v6628
      %v6630 = vpop.f32.mrf.mxu0
      %v6631 = vadd.f32 %v6462, %v6630
      %6632 = vmatmul.bf16.gmra.mxu0 %v5853
      %v6633 = vpop.f32.mrf.mxu0
      %v6634 = vadd.f32 %v6465, %v6633
      %v6635 = vpop.f32.mrf.mxu0
      %v6636 = vadd.f32 %v6467, %v6635
      %6637 = vmatmul.bf16.gmra.mxu0 %v5855
      %v6638 = vpop.f32.mrf.mxu0
      %v6639 = vadd.f32 %v6470, %v6638
      %v6640 = vpop.f32.mrf.mxu0
      %v6641 = vadd.f32 %v6472, %v6640
      %6642 = vmatmul.bf16.gmra.mxu0 %v5857
      %v6643 = vpop.f32.mrf.mxu0
      %v6644 = vadd.f32 %v6475, %v6643
      %v6645 = vpop.f32.mrf.mxu0
      %v6646 = vadd.f32 %v6477, %v6645
      %6647 = vmatmul.bf16.gmra.mxu0 %v5859
      %v6648 = vpop.f32.mrf.mxu0
      %v6649 = vadd.f32 %v6480, %v6648
      %v6650 = vpop.f32.mrf.mxu0
      %v6651 = vadd.f32 %v6482, %v6650
      %6652 = vmatmul.bf16.gmra.mxu0 %v5861
      %v6653 = vpop.f32.mrf.mxu0
      %v6654 = vadd.f32 %v6485, %v6653
      %v6655 = vpop.f32.mrf.mxu0
      %v6656 = vadd.f32 %v6487, %v6655
      %6657 = vmatmul.bf16.gmra.mxu0 %v5863
      %v6658 = vpop.f32.mrf.mxu0
      %v6659 = vadd.f32 %v6490, %v6658
      %v6660 = vpop.f32.mrf.mxu0
      %v6661 = vadd.f32 %v6492, %v6660
      %6662 = vmatmul.bf16.gmra.mxu0 %v5865
      %v6663 = vpop.f32.mrf.mxu0
      %v6664 = vadd.f32 %v6495, %v6663
      %v6665 = vpop.f32.mrf.mxu0
      %v6666 = vadd.f32 %v6497, %v6665
      %6667 = vmatmul.bf16.gmra.mxu0 %v5867
      %v6668 = vpop.f32.mrf.mxu0
      %v6669 = vadd.f32 %v6500, %v6668
      %v6670 = vpop.f32.mrf.mxu0
      %v6671 = vadd.f32 %v6502, %v6670
      %6672 = vmatmul.bf16.gmra.mxu0 %v5869
      %v6673 = vpop.f32.mrf.mxu0
      %v6674 = vadd.f32 %v6505, %v6673
      %v6675 = vpop.f32.mrf.mxu0
      %v6676 = vadd.f32 %v6507, %v6675
      %6677 = vmatmul.bf16.gmra.mxu0 %v5871
      %v6678 = vpop.f32.mrf.mxu0
      %v6679 = vadd.f32 %v6510, %v6678
      %v6680 = vpop.f32.mrf.mxu0
      %v6681 = vadd.f32 %v6512, %v6680
      %6682 = vmatmul.bf16.gmra.mxu0 %v5873
      %v6683 = vpop.f32.mrf.mxu0
      %v6684 = vadd.f32 %v6515, %v6683
      %v6685 = vpop.f32.mrf.mxu0
      %v6686 = vadd.f32 %v6517, %v6685
      %6687 = vmatmul.bf16.gmra.mxu0 %v5875
      %v6688 = vpop.f32.mrf.mxu0
      %v6689 = vadd.f32 %v6520, %v6688
      %v6690 = vpop.f32.mrf.mxu0
      %v6691 = vadd.f32 %v6522, %v6690
      %6692 = vmatmul.bf16.gmra.mxu0 %v5877
      %v6693 = vpop.f32.mrf.mxu0
      %v6694 = vadd.f32 %v6525, %v6693
      %v6695 = vpop.f32.mrf.mxu0
      %v6696 = vadd.f32 %v6527, %v6695
      %6697 = vmatmul.bf16.gmra.mxu0 %v5879
      %v6698 = vpop.f32.mrf.mxu0
      %v6699 = vadd.f32 %v6530, %v6698
      %v6700 = vpop.f32.mrf.mxu0
      %v6701 = vadd.f32 %v6532, %v6700
      %6702 = vmatmul.bf16.gmra.mxu0 %v5881
      %v6703 = vpop.f32.mrf.mxu0
      %v6704 = vadd.f32 %v6535, %v6703
      %v6705 = vpop.f32.mrf.mxu0
      %v6706 = vadd.f32 %v6537, %v6705
      %6707 = vmatmul.bf16.gmra.mxu0 %v5883
      %v6708 = vpop.f32.mrf.mxu0
      %v6709 = vadd.f32 %v6540, %v6708
      %v6710 = vpop.f32.mrf.mxu0
      %v6711 = vadd.f32 %v6542, %v6710
      %6712 = vmatmul.bf16.gmra.mxu0 %v5885
      %v6713 = vpop.f32.mrf.mxu0
      %v6714 = vadd.f32 %v6545, %v6713
      %v6715 = vpop.f32.mrf.mxu0
      %v6716 = vadd.f32 %v6547, %v6715
      %6717 = vmatmul.bf16.gmra.mxu0 %v5887
      %v6718 = vpop.f32.mrf.mxu0
      %v6719 = vadd.f32 %v6550, %v6718
      %v6720 = vpop.f32.mrf.mxu0
      %v6721 = vadd.f32 %v6552, %v6720
      %6722 = vmatmul.bf16.gmra.mxu0 %v5889
      %v6723 = vpop.f32.mrf.mxu0
      %v6724 = vadd.f32 %v6555, %v6723
      %v6725 = vpop.f32.mrf.mxu0
      %v6726 = vadd.f32 %v6557, %v6725
      %6727 = vmatmul.bf16.gmra.mxu0 %v5891
      %v6728 = vpop.f32.mrf.mxu0
      %v6729 = vadd.f32 %v6560, %v6728
      %v6730 = vpop.f32.mrf.mxu0
      %v6731 = vadd.f32 %v6562, %v6730
      %6732 = vmatmul.bf16.gmra.mxu0 %v5893
      %v6733 = vpop.f32.mrf.mxu0
      %v6734 = vadd.f32 %v6565, %v6733
      %v6735 = vpop.f32.mrf.mxu0
      %v6736 = vadd.f32 %v6567, %v6735
      %6737 = vmatmul.bf16.gmra.mxu0 %v5895
      %v6738 = vpop.f32.mrf.mxu0
      %v6739 = vadd.f32 %v6570, %v6738
      %v6740 = vpop.f32.mrf.mxu0
      %v6741 = vadd.f32 %v6572, %v6740
      %6742 = vmatmul.bf16.gmra.mxu0 %v5897
      %v6743 = vpop.f32.mrf.mxu0
      %v6744 = vadd.f32 %v6575, %v6743
      %v6745 = vpop.f32.mrf.mxu0
      %v6746 = vadd.f32 %v6577, %v6745
      %6747 = vmatmul.bf16.gmra.mxu0 %v5899
      %v6748 = vpop.f32.mrf.mxu0
      %v6749 = vadd.f32 %v6580, %v6748
      %v6750 = vpop.f32.mrf.mxu0
      %v6751 = vadd.f32 %v6582, %v6750
      %6752 = vmatmul.bf16.gmra.mxu0 %v5901
      %v6753 = vpop.f32.mrf.mxu0
      %v6754 = vadd.f32 %v6585, %v6753
      %v6755 = vpop.f32.mrf.mxu0
      %v6756 = vadd.f32 %v6587, %v6755
      %6757 = vmatmul.bf16.gmra.mxu0 %v5903
      %v6758 = vpop.f32.mrf.mxu0
      %v6759 = vadd.f32 %v6590, %v6758
      %v6760 = vpop.f32.mrf.mxu0
      %v6761 = vadd.f32 %v6592, %v6760
      %6762 = vmatmul.bf16.gmra.mxu0 %v5905
      %v6763 = vpop.f32.mrf.mxu0
      %v6764 = vadd.f32 %v6595, %v6763
      %v6765 = vpop.f32.mrf.mxu0
      %v6766 = vadd.f32 %v6597, %v6765
      %6767 = vmatmul.bf16.gmra.mxu0 %v5907
      %v6768 = vpop.f32.mrf.mxu0
      %v6769 = vadd.f32 %v6600, %v6768
      %v6770 = vpop.f32.mrf.mxu0
      %v6771 = vadd.f32 %v6602, %v6770
      %6772 = vmatmul.bf16.gmra.mxu0 %v5909
      %v6773 = vpop.f32.mrf.mxu0
      %v6774 = vadd.f32 %v6605, %v6773
      %v6775 = vpop.f32.mrf.mxu0
      %v6776 = vadd.f32 %v6607, %v6775
      %6777 = vdwg.mxu0
      %v6778 = vpack.c.bf16 %v6619, %v6281
      %v6779 = vpack.c.bf16 %v6621, %v6283
      %v6780 = vpack.c.bf16 %v6624, %v6286
      %v6781 = vpack.c.bf16 %v6626, %v6288
      %v6782 = vpack.c.bf16 %v6629, %v6291
      %v6783 = vpack.c.bf16 %v6631, %v6293
      %v6784 = vpack.c.bf16 %v6634, %v6296
      %v6785 = vpack.c.bf16 %v6636, %v6298
      %v6786 = vpack.c.bf16 %v6639, %v6301
      %v6787 = vpack.c.bf16 %v6641, %v6303
      %v6788 = vpack.c.bf16 %v6644, %v6306
      %v6789 = vpack.c.bf16 %v6646, %v6308
      %v6790 = vpack.c.bf16 %v6649, %v6311
      %v6791 = vpack.c.bf16 %v6651, %v6313
      %v6792 = vpack.c.bf16 %v6654, %v6316
      %v6793 = vpack.c.bf16 %v6656, %v6318
      %v6794 = vpack.c.bf16 %v6659, %v6321
      %v6795 = vpack.c.bf16 %v6661, %v6323
      %v6796 = vpack.c.bf16 %v6664, %v6326
      %v6797 = vpack.c.bf16 %v6666, %v6328
      %v6798 = vpack.c.bf16 %v6669, %v6331
      %v6799 = vpack.c.bf16 %v6671, %v6333
      %v6800 = vpack.c.bf16 %v6674, %v6336
      %v6801 = vpack.c.bf16 %v6676, %v6338
      %v6802 = vpack.c.bf16 %v6679, %v6341
      %v6803 = vpack.c.bf16 %v6681, %v6343
      %v6804 = vpack.c.bf16 %v6684, %v6346
      %v6805 = vpack.c.bf16 %v6686, %v6348
      %v6806 = vpack.c.bf16 %v6689, %v6351
      %v6807 = vpack.c.bf16 %v6691, %v6353
      %v6808 = vpack.c.bf16 %v6694, %v6356
      %v6809 = vpack.c.bf16 %v6696, %v6358
      %v6810 = vpack.c.bf16 %v6699, %v6361
      %v6811 = vpack.c.bf16 %v6701, %v6363
      %v6812 = vpack.c.bf16 %v6704, %v6366
      %v6813 = vpack.c.bf16 %v6706, %v6368
      %v6814 = vpack.c.bf16 %v6709, %v6371
      %v6815 = vpack.c.bf16 %v6711, %v6373
      %v6816 = vpack.c.bf16 %v6714, %v6376
      %v6817 = vpack.c.bf16 %v6716, %v6378
      %v6818 = vpack.c.bf16 %v6719, %v6381
      %v6819 = vpack.c.bf16 %v6721, %v6383
      %v6820 = vpack.c.bf16 %v6724, %v6386
      %v6821 = vpack.c.bf16 %v6726, %v6388
      %v6822 = vpack.c.bf16 %v6729, %v6391
      %v6823 = vpack.c.bf16 %v6731, %v6393
      %v6824 = vpack.c.bf16 %v6734, %v6396
      %v6825 = vpack.c.bf16 %v6736, %v6398
      %v6826 = vpack.c.bf16 %v6739, %v6401
      %v6827 = vpack.c.bf16 %v6741, %v6403
      %v6828 = vpack.c.bf16 %v6744, %v6406
      %v6829 = vpack.c.bf16 %v6746, %v6408
      %v6830 = vpack.c.bf16 %v6749, %v6411
      %v6831 = vpack.c.bf16 %v6751, %v6413
      %v6832 = vpack.c.bf16 %v6754, %v6416
      %v6833 = vpack.c.bf16 %v6756, %v6418
      %v6834 = vpack.c.bf16 %v6759, %v6421
      %v6835 = vpack.c.bf16 %v6761, %v6423
      %v6836 = vpack.c.bf16 %v6764, %v6426
      %v6837 = vpack.c.bf16 %v6766, %v6428
      %v6838 = vpack.c.bf16 %v6769, %v6431
      %v6839 = vpack.c.bf16 %v6771, %v6433
      %v6840 = vpack.c.bf16 %v6774, %v6436
      %v6841 = vpack.c.bf16 %v6776, %v6438
      %v6842 = vld [vmem:[%s8] sm:$0x3]
      %6844 = vst [vmem:[#allocation1] ss:$9 sm:$0xff] %v6842
      %v6845 = vld [vmem:[#allocation1] sm:$0xff]
      %v6846 = vld [vmem:[#allocation1 + $0x9] sm:$0xff]
      %v6847 = vpack.i.b16 %v6845, %v6845
      %v6849 = vperm.slane %v6847, 0
      %v6850 = vpack.i.b16 %v6846, %v6846
      %v6852 = vperm.slane %v6850, 0
      %v6853 = vunpack.c.l.bf16 %v6778
      %v6854 = vunpack.c.h.bf16 %v6778
      %v6855 = vunpack.c.l.bf16 %v6779
      %v6856 = vunpack.c.h.bf16 %v6779
      %v6857 = vunpack.c.l.bf16 %v6780
      %v6858 = vunpack.c.h.bf16 %v6780
      %v6859 = vunpack.c.l.bf16 %v6781
      %v6860 = vunpack.c.h.bf16 %v6781
      %v6861 = vunpack.c.l.bf16 %v6782
      %v6862 = vunpack.c.h.bf16 %v6782
      %v6863 = vunpack.c.l.bf16 %v6783
      %v6864 = vunpack.c.h.bf16 %v6783
      %v6865 = vunpack.c.l.bf16 %v6784
      %v6866 = vunpack.c.h.bf16 %v6784
      %v6867 = vunpack.c.l.bf16 %v6785
      %v6868 = vunpack.c.h.bf16 %v6785
      %v6869 = vunpack.c.l.bf16 %v6786
      %v6870 = vunpack.c.h.bf16 %v6786
      %v6871 = vunpack.c.l.bf16 %v6787
      %v6872 = vunpack.c.h.bf16 %v6787
      %v6873 = vunpack.c.l.bf16 %v6788
      %v6874 = vunpack.c.h.bf16 %v6788
      %v6875 = vunpack.c.l.bf16 %v6789
      %v6876 = vunpack.c.h.bf16 %v6789
      %v6877 = vunpack.c.l.bf16 %v6790
      %v6878 = vunpack.c.h.bf16 %v6790
      %v6879 = vunpack.c.l.bf16 %v6791
      %v6880 = vunpack.c.h.bf16 %v6791
      %v6881 = vunpack.c.l.bf16 %v6792
      %v6882 = vunpack.c.h.bf16 %v6792
      %v6883 = vunpack.c.l.bf16 %v6793
      %v6884 = vunpack.c.h.bf16 %v6793
      %v6885 = vunpack.c.l.bf16 %v6794
      %v6886 = vunpack.c.h.bf16 %v6794
      %v6887 = vunpack.c.l.bf16 %v6795
      %v6888 = vunpack.c.h.bf16 %v6795
      %v6889 = vunpack.c.l.bf16 %v6796
      %v6890 = vunpack.c.h.bf16 %v6796
      %v6891 = vunpack.c.l.bf16 %v6797
      %v6892 = vunpack.c.h.bf16 %v6797
      %v6893 = vunpack.c.l.bf16 %v6798
      %v6894 = vunpack.c.h.bf16 %v6798
      %v6895 = vunpack.c.l.bf16 %v6799
      %v6896 = vunpack.c.h.bf16 %v6799
      %v6897 = vunpack.c.l.bf16 %v6800
      %v6898 = vunpack.c.h.bf16 %v6800
      %v6899 = vunpack.c.l.bf16 %v6801
      %v6900 = vunpack.c.h.bf16 %v6801
      %v6901 = vunpack.c.l.bf16 %v6802
      %v6902 = vunpack.c.h.bf16 %v6802
      %v6903 = vunpack.c.l.bf16 %v6803
      %v6904 = vunpack.c.h.bf16 %v6803
      %v6905 = vunpack.c.l.bf16 %v6804
      %v6906 = vunpack.c.h.bf16 %v6804
      %v6907 = vunpack.c.l.bf16 %v6805
      %v6908 = vunpack.c.h.bf16 %v6805
      %v6909 = vunpack.c.l.bf16 %v6806
      %v6910 = vunpack.c.h.bf16 %v6806
      %v6911 = vunpack.c.l.bf16 %v6807
      %v6912 = vunpack.c.h.bf16 %v6807
      %v6913 = vunpack.c.l.bf16 %v6808
      %v6914 = vunpack.c.h.bf16 %v6808
      %v6915 = vunpack.c.l.bf16 %v6809
      %v6916 = vunpack.c.h.bf16 %v6809
      %v6917 = vunpack.c.l.bf16 %v6810
      %v6918 = vunpack.c.h.bf16 %v6810
      %v6919 = vunpack.c.l.bf16 %v6811
      %v6920 = vunpack.c.h.bf16 %v6811
      %v6921 = vunpack.c.l.bf16 %v6812
      %v6922 = vunpack.c.h.bf16 %v6812
      %v6923 = vunpack.c.l.bf16 %v6813
      %v6924 = vunpack.c.h.bf16 %v6813
      %v6925 = vunpack.c.l.bf16 %v6814
      %v6926 = vunpack.c.h.bf16 %v6814
      %v6927 = vunpack.c.l.bf16 %v6815
      %v6928 = vunpack.c.h.bf16 %v6815
      %v6929 = vunpack.c.l.bf16 %v6816
      %v6930 = vunpack.c.h.bf16 %v6816
      %v6931 = vunpack.c.l.bf16 %v6817
      %v6932 = vunpack.c.h.bf16 %v6817
      %v6933 = vunpack.c.l.bf16 %v6818
      %v6934 = vunpack.c.h.bf16 %v6818
      %v6935 = vunpack.c.l.bf16 %v6819
      %v6936 = vunpack.c.h.bf16 %v6819
      %v6937 = vunpack.c.l.bf16 %v6820
      %v6938 = vunpack.c.h.bf16 %v6820
      %v6939 = vunpack.c.l.bf16 %v6821
      %v6940 = vunpack.c.h.bf16 %v6821
      %v6941 = vunpack.c.l.bf16 %v6822
      %v6942 = vunpack.c.h.bf16 %v6822
      %v6943 = vunpack.c.l.bf16 %v6823
      %v6944 = vunpack.c.h.bf16 %v6823
      %v6945 = vunpack.c.l.bf16 %v6824
      %v6946 = vunpack.c.h.bf16 %v6824
      %v6947 = vunpack.c.l.bf16 %v6825
      %v6948 = vunpack.c.h.bf16 %v6825
      %v6949 = vunpack.c.l.bf16 %v6826
      %v6950 = vunpack.c.h.bf16 %v6826
      %v6951 = vunpack.c.l.bf16 %v6827
      %v6952 = vunpack.c.h.bf16 %v6827
      %v6953 = vunpack.c.l.bf16 %v6828
      %v6954 = vunpack.c.h.bf16 %v6828
      %v6955 = vunpack.c.l.bf16 %v6829
      %v6956 = vunpack.c.h.bf16 %v6829
      %v6957 = vunpack.c.l.bf16 %v6830
      %v6958 = vunpack.c.h.bf16 %v6830
      %v6959 = vunpack.c.l.bf16 %v6831
      %v6960 = vunpack.c.h.bf16 %v6831
      %v6961 = vunpack.c.l.bf16 %v6832
      %v6962 = vunpack.c.h.bf16 %v6832
      %v6963 = vunpack.c.l.bf16 %v6833
      %v6964 = vunpack.c.h.bf16 %v6833
      %v6965 = vunpack.c.l.bf16 %v6834
      %v6966 = vunpack.c.h.bf16 %v6834
      %v6967 = vunpack.c.l.bf16 %v6835
      %v6968 = vunpack.c.h.bf16 %v6835
      %v6969 = vunpack.c.l.bf16 %v6836
      %v6970 = vunpack.c.h.bf16 %v6836
      %v6971 = vunpack.c.l.bf16 %v6837
      %v6972 = vunpack.c.h.bf16 %v6837
      %v6973 = vunpack.c.l.bf16 %v6838
      %v6974 = vunpack.c.h.bf16 %v6838
      %v6975 = vunpack.c.l.bf16 %v6839
      %v6976 = vunpack.c.h.bf16 %v6839
      %v6977 = vunpack.c.l.bf16 %v6840
      %v6978 = vunpack.c.h.bf16 %v6840
      %v6979 = vunpack.c.l.bf16 %v6841
      %v6980 = vunpack.c.h.bf16 %v6841
      %v6981 = vunpack.c.l.bf16 %v6849
      %v6982 = vunpack.c.l.bf16 %v6852
      %v6983 = vadd.f32 %v6853, %v6981
      %v6984 = vadd.f32 %v6854, %v6982
      %v6985 = vadd.f32 %v6855, %v6981
      %v6986 = vadd.f32 %v6856, %v6982
      %v6987 = vadd.f32 %v6857, %v6981
      %v6988 = vadd.f32 %v6858, %v6982
      %v6989 = vadd.f32 %v6859, %v6981
      %v6990 = vadd.f32 %v6860, %v6982
      %v6991 = vadd.f32 %v6861, %v6981
      %v6992 = vadd.f32 %v6862, %v6982
      %v6993 = vadd.f32 %v6863, %v6981
      %v6994 = vadd.f32 %v6864, %v6982
      %v6995 = vadd.f32 %v6865, %v6981
      %v6996 = vadd.f32 %v6866, %v6982
      %v6997 = vadd.f32 %v6867, %v6981
      %v6998 = vadd.f32 %v6868, %v6982
      %v6999 = vadd.f32 %v6869, %v6981
      %v7000 = vadd.f32 %v6870, %v6982
      %v7001 = vadd.f32 %v6871, %v6981
      %v7002 = vadd.f32 %v6872, %v6982
      %v7003 = vadd.f32 %v6873, %v6981
      %v7004 = vadd.f32 %v6874, %v6982
      %v7005 = vadd.f32 %v6875, %v6981
      %v7006 = vadd.f32 %v6876, %v6982
      %v7007 = vadd.f32 %v6877, %v6981
      %v7008 = vadd.f32 %v6878, %v6982
      %v7009 = vadd.f32 %v6879, %v6981
      %v7010 = vadd.f32 %v6880, %v6982
      %v7011 = vadd.f32 %v6881, %v6981
      %v7012 = vadd.f32 %v6882, %v6982
      %v7013 = vadd.f32 %v6883, %v6981
      %v7014 = vadd.f32 %v6884, %v6982
      %v7015 = vadd.f32 %v6885, %v6981
      %v7016 = vadd.f32 %v6886, %v6982
      %v7017 = vadd.f32 %v6887, %v6981
      %v7018 = vadd.f32 %v6888, %v6982
      %v7019 = vadd.f32 %v6889, %v6981
      %v7020 = vadd.f32 %v6890, %v6982
      %v7021 = vadd.f32 %v6891, %v6981
      %v7022 = vadd.f32 %v6892, %v6982
      %v7023 = vadd.f32 %v6893, %v6981
      %v7024 = vadd.f32 %v6894, %v6982
      %v7025 = vadd.f32 %v6895, %v6981
      %v7026 = vadd.f32 %v6896, %v6982
      %v7027 = vadd.f32 %v6897, %v6981
      %v7028 = vadd.f32 %v6898, %v6982
      %v7029 = vadd.f32 %v6899, %v6981
      %v7030 = vadd.f32 %v6900, %v6982
      %v7031 = vadd.f32 %v6901, %v6981
      %v7032 = vadd.f32 %v6902, %v6982
      %v7033 = vadd.f32 %v6903, %v6981
      %v7034 = vadd.f32 %v6904, %v6982
      %v7035 = vadd.f32 %v6905, %v6981
      %v7036 = vadd.f32 %v6906, %v6982
      %v7037 = vadd.f32 %v6907, %v6981
      %v7038 = vadd.f32 %v6908, %v6982
      %v7039 = vadd.f32 %v6909, %v6981
      %v7040 = vadd.f32 %v6910, %v6982
      %v7041 = vadd.f32 %v6911, %v6981
      %v7042 = vadd.f32 %v6912, %v6982
      %v7043 = vadd.f32 %v6913, %v6981
      %v7044 = vadd.f32 %v6914, %v6982
      %v7045 = vadd.f32 %v6915, %v6981
      %v7046 = vadd.f32 %v6916, %v6982
      %v7047 = vadd.f32 %v6917, %v6981
      %v7048 = vadd.f32 %v6918, %v6982
      %v7049 = vadd.f32 %v6919, %v6981
      %v7050 = vadd.f32 %v6920, %v6982
      %v7051 = vadd.f32 %v6921, %v6981
      %v7052 = vadd.f32 %v6922, %v6982
      %v7053 = vadd.f32 %v6923, %v6981
      %v7054 = vadd.f32 %v6924, %v6982
      %v7055 = vadd.f32 %v6925, %v6981
      %v7056 = vadd.f32 %v6926, %v6982
      %v7057 = vadd.f32 %v6927, %v6981
      %v7058 = vadd.f32 %v6928, %v6982
      %v7059 = vadd.f32 %v6929, %v6981
      %v7060 = vadd.f32 %v6930, %v6982
      %v7061 = vadd.f32 %v6931, %v6981
      %v7062 = vadd.f32 %v6932, %v6982
      %v7063 = vadd.f32 %v6933, %v6981
      %v7064 = vadd.f32 %v6934, %v6982
      %v7065 = vadd.f32 %v6935, %v6981
      %v7066 = vadd.f32 %v6936, %v6982
      %v7067 = vadd.f32 %v6937, %v6981
      %v7068 = vadd.f32 %v6938, %v6982
      %v7069 = vadd.f32 %v6939, %v6981
      %v7070 = vadd.f32 %v6940, %v6982
      %v7071 = vadd.f32 %v6941, %v6981
      %v7072 = vadd.f32 %v6942, %v6982
      %v7073 = vadd.f32 %v6943, %v6981
      %v7074 = vadd.f32 %v6944, %v6982
      %v7075 = vadd.f32 %v6945, %v6981
      %v7076 = vadd.f32 %v6946, %v6982
      %v7077 = vadd.f32 %v6947, %v6981
      %v7078 = vadd.f32 %v6948, %v6982
      %v7079 = vadd.f32 %v6949, %v6981
      %v7080 = vadd.f32 %v6950, %v6982
      %v7081 = vadd.f32 %v6951, %v6981
      %v7082 = vadd.f32 %v6952, %v6982
      %v7083 = vadd.f32 %v6953, %v6981
      %v7084 = vadd.f32 %v6954, %v6982
      %v7085 = vadd.f32 %v6955, %v6981
      %v7086 = vadd.f32 %v6956, %v6982
      %v7087 = vadd.f32 %v6957, %v6981
      %v7088 = vadd.f32 %v6958, %v6982
      %v7089 = vadd.f32 %v6959, %v6981
      %v7090 = vadd.f32 %v6960, %v6982
      %v7091 = vadd.f32 %v6961, %v6981
      %v7092 = vadd.f32 %v6962, %v6982
      %v7093 = vadd.f32 %v6963, %v6981
      %v7094 = vadd.f32 %v6964, %v6982
      %v7095 = vadd.f32 %v6965, %v6981
      %v7096 = vadd.f32 %v6966, %v6982
      %v7097 = vadd.f32 %v6967, %v6981
      %v7098 = vadd.f32 %v6968, %v6982
      %v7099 = vadd.f32 %v6969, %v6981
      %v7100 = vadd.f32 %v6970, %v6982
      %v7101 = vadd.f32 %v6971, %v6981
      %v7102 = vadd.f32 %v6972, %v6982
      %v7103 = vadd.f32 %v6973, %v6981
      %v7104 = vadd.f32 %v6974, %v6982
      %v7105 = vadd.f32 %v6975, %v6981
      %v7106 = vadd.f32 %v6976, %v6982
      %v7107 = vadd.f32 %v6977, %v6981
      %v7108 = vadd.f32 %v6978, %v6982
      %v7109 = vadd.f32 %v6979, %v6981
      %v7110 = vadd.f32 %v6980, %v6982
      %v7111 = vpack.c.bf16 %v6984, %v6983
      %v7112 = vpack.c.bf16 %v6986, %v6985
      %v7113 = vpack.c.bf16 %v6988, %v6987
      %v7114 = vpack.c.bf16 %v6990, %v6989
      %v7115 = vpack.c.bf16 %v6992, %v6991
      %v7116 = vpack.c.bf16 %v6994, %v6993
      %v7117 = vpack.c.bf16 %v6996, %v6995
      %v7118 = vpack.c.bf16 %v6998, %v6997
      %v7119 = vpack.c.bf16 %v7000, %v6999
      %v7120 = vpack.c.bf16 %v7002, %v7001
      %v7121 = vpack.c.bf16 %v7004, %v7003
      %v7122 = vpack.c.bf16 %v7006, %v7005
      %v7123 = vpack.c.bf16 %v7008, %v7007
      %v7124 = vpack.c.bf16 %v7010, %v7009
      %v7125 = vpack.c.bf16 %v7012, %v7011
      %v7126 = vpack.c.bf16 %v7014, %v7013
      %v7127 = vpack.c.bf16 %v7016, %v7015
      %v7128 = vpack.c.bf16 %v7018, %v7017
      %v7129 = vpack.c.bf16 %v7020, %v7019
      %v7130 = vpack.c.bf16 %v7022, %v7021
      %v7131 = vpack.c.bf16 %v7024, %v7023
      %v7132 = vpack.c.bf16 %v7026, %v7025
      %v7133 = vpack.c.bf16 %v7028, %v7027
      %v7134 = vpack.c.bf16 %v7030, %v7029
      %v7135 = vpack.c.bf16 %v7032, %v7031
      %v7136 = vpack.c.bf16 %v7034, %v7033
      %v7137 = vpack.c.bf16 %v7036, %v7035
      %v7138 = vpack.c.bf16 %v7038, %v7037
      %v7139 = vpack.c.bf16 %v7040, %v7039
      %v7140 = vpack.c.bf16 %v7042, %v7041
      %v7141 = vpack.c.bf16 %v7044, %v7043
      %v7142 = vpack.c.bf16 %v7046, %v7045
      %v7143 = vpack.c.bf16 %v7048, %v7047
      %v7144 = vpack.c.bf16 %v7050, %v7049
      %v7145 = vpack.c.bf16 %v7052, %v7051
      %v7146 = vpack.c.bf16 %v7054, %v7053
      %v7147 = vpack.c.bf16 %v7056, %v7055
      %v7148 = vpack.c.bf16 %v7058, %v7057
      %v7149 = vpack.c.bf16 %v7060, %v7059
      %v7150 = vpack.c.bf16 %v7062, %v7061
      %v7151 = vpack.c.bf16 %v7064, %v7063
      %v7152 = vpack.c.bf16 %v7066, %v7065
      %v7153 = vpack.c.bf16 %v7068, %v7067
      %v7154 = vpack.c.bf16 %v7070, %v7069
      %v7155 = vpack.c.bf16 %v7072, %v7071
      %v7156 = vpack.c.bf16 %v7074, %v7073
      %v7157 = vpack.c.bf16 %v7076, %v7075
      %v7158 = vpack.c.bf16 %v7078, %v7077
      %v7159 = vpack.c.bf16 %v7080, %v7079
      %v7160 = vpack.c.bf16 %v7082, %v7081
      %v7161 = vpack.c.bf16 %v7084, %v7083
      %v7162 = vpack.c.bf16 %v7086, %v7085
      %v7163 = vpack.c.bf16 %v7088, %v7087
      %v7164 = vpack.c.bf16 %v7090, %v7089
      %v7165 = vpack.c.bf16 %v7092, %v7091
      %v7166 = vpack.c.bf16 %v7094, %v7093
      %v7167 = vpack.c.bf16 %v7096, %v7095
      %v7168 = vpack.c.bf16 %v7098, %v7097
      %v7169 = vpack.c.bf16 %v7100, %v7099
      %v7170 = vpack.c.bf16 %v7102, %v7101
      %v7171 = vpack.c.bf16 %v7104, %v7103
      %v7172 = vpack.c.bf16 %v7106, %v7105
      %v7173 = vpack.c.bf16 %v7108, %v7107
      %v7174 = vpack.c.bf16 %v7110, %v7109
      %v7175 = vunpack.c.l.bf16 %v7111
      %v7176 = vunpack.c.h.bf16 %v7111
      %v7177 = vunpack.c.l.bf16 %v7112
      %v7178 = vunpack.c.h.bf16 %v7112
      %v7179 = vunpack.c.l.bf16 %v7113
      %v7180 = vunpack.c.h.bf16 %v7113
      %v7181 = vunpack.c.l.bf16 %v7114
      %v7182 = vunpack.c.h.bf16 %v7114
      %v7183 = vunpack.c.l.bf16 %v7115
      %v7184 = vunpack.c.h.bf16 %v7115
      %v7185 = vunpack.c.l.bf16 %v7116
      %v7186 = vunpack.c.h.bf16 %v7116
      %v7187 = vunpack.c.l.bf16 %v7117
      %v7188 = vunpack.c.h.bf16 %v7117
      %v7189 = vunpack.c.l.bf16 %v7118
      %v7190 = vunpack.c.h.bf16 %v7118
      %v7191 = vunpack.c.l.bf16 %v7119
      %v7192 = vunpack.c.h.bf16 %v7119
      %v7193 = vunpack.c.l.bf16 %v7120
      %v7194 = vunpack.c.h.bf16 %v7120
      %v7195 = vunpack.c.l.bf16 %v7121
      %v7196 = vunpack.c.h.bf16 %v7121
      %v7197 = vunpack.c.l.bf16 %v7122
      %v7198 = vunpack.c.h.bf16 %v7122
      %v7199 = vunpack.c.l.bf16 %v7123
      %v7200 = vunpack.c.h.bf16 %v7123
      %v7201 = vunpack.c.l.bf16 %v7124
      %v7202 = vunpack.c.h.bf16 %v7124
      %v7203 = vunpack.c.l.bf16 %v7125
      %v7204 = vunpack.c.h.bf16 %v7125
      %v7205 = vunpack.c.l.bf16 %v7126
      %v7206 = vunpack.c.h.bf16 %v7126
      %v7207 = vunpack.c.l.bf16 %v7127
      %v7208 = vunpack.c.h.bf16 %v7127
      %v7209 = vunpack.c.l.bf16 %v7128
      %v7210 = vunpack.c.h.bf16 %v7128
      %v7211 = vunpack.c.l.bf16 %v7129
      %v7212 = vunpack.c.h.bf16 %v7129
      %v7213 = vunpack.c.l.bf16 %v7130
      %v7214 = vunpack.c.h.bf16 %v7130
      %v7215 = vunpack.c.l.bf16 %v7131
      %v7216 = vunpack.c.h.bf16 %v7131
      %v7217 = vunpack.c.l.bf16 %v7132
      %v7218 = vunpack.c.h.bf16 %v7132
      %v7219 = vunpack.c.l.bf16 %v7133
      %v7220 = vunpack.c.h.bf16 %v7133
      %v7221 = vunpack.c.l.bf16 %v7134
      %v7222 = vunpack.c.h.bf16 %v7134
      %v7223 = vunpack.c.l.bf16 %v7135
      %v7224 = vunpack.c.h.bf16 %v7135
      %v7225 = vunpack.c.l.bf16 %v7136
      %v7226 = vunpack.c.h.bf16 %v7136
      %v7227 = vunpack.c.l.bf16 %v7137
      %v7228 = vunpack.c.h.bf16 %v7137
      %v7229 = vunpack.c.l.bf16 %v7138
      %v7230 = vunpack.c.h.bf16 %v7138
      %v7231 = vunpack.c.l.bf16 %v7139
      %v7232 = vunpack.c.h.bf16 %v7139
      %v7233 = vunpack.c.l.bf16 %v7140
      %v7234 = vunpack.c.h.bf16 %v7140
      %v7235 = vunpack.c.l.bf16 %v7141
      %v7236 = vunpack.c.h.bf16 %v7141
      %v7237 = vunpack.c.l.bf16 %v7142
      %v7238 = vunpack.c.h.bf16 %v7142
      %v7239 = vunpack.c.l.bf16 %v7143
      %v7240 = vunpack.c.h.bf16 %v7143
      %v7241 = vunpack.c.l.bf16 %v7144
      %v7242 = vunpack.c.h.bf16 %v7144
      %v7243 = vunpack.c.l.bf16 %v7145
      %v7244 = vunpack.c.h.bf16 %v7145
      %v7245 = vunpack.c.l.bf16 %v7146
      %v7246 = vunpack.c.h.bf16 %v7146
      %v7247 = vunpack.c.l.bf16 %v7147
      %v7248 = vunpack.c.h.bf16 %v7147
      %v7249 = vunpack.c.l.bf16 %v7148
      %v7250 = vunpack.c.h.bf16 %v7148
      %v7251 = vunpack.c.l.bf16 %v7149
      %v7252 = vunpack.c.h.bf16 %v7149
      %v7253 = vunpack.c.l.bf16 %v7150
      %v7254 = vunpack.c.h.bf16 %v7150
      %v7255 = vunpack.c.l.bf16 %v7151
      %v7256 = vunpack.c.h.bf16 %v7151
      %v7257 = vunpack.c.l.bf16 %v7152
      %v7258 = vunpack.c.h.bf16 %v7152
      %v7259 = vunpack.c.l.bf16 %v7153
      %v7260 = vunpack.c.h.bf16 %v7153
      %v7261 = vunpack.c.l.bf16 %v7154
      %v7262 = vunpack.c.h.bf16 %v7154
      %v7263 = vunpack.c.l.bf16 %v7155
      %v7264 = vunpack.c.h.bf16 %v7155
      %v7265 = vunpack.c.l.bf16 %v7156
      %v7266 = vunpack.c.h.bf16 %v7156
      %v7267 = vunpack.c.l.bf16 %v7157
      %v7268 = vunpack.c.h.bf16 %v7157
      %v7269 = vunpack.c.l.bf16 %v7158
      %v7270 = vunpack.c.h.bf16 %v7158
      %v7271 = vunpack.c.l.bf16 %v7159
      %v7272 = vunpack.c.h.bf16 %v7159
      %v7273 = vunpack.c.l.bf16 %v7160
      %v7274 = vunpack.c.h.bf16 %v7160
      %v7275 = vunpack.c.l.bf16 %v7161
      %v7276 = vunpack.c.h.bf16 %v7161
      %v7277 = vunpack.c.l.bf16 %v7162
      %v7278 = vunpack.c.h.bf16 %v7162
      %v7279 = vunpack.c.l.bf16 %v7163
      %v7280 = vunpack.c.h.bf16 %v7163
      %v7281 = vunpack.c.l.bf16 %v7164
      %v7282 = vunpack.c.h.bf16 %v7164
      %v7283 = vunpack.c.l.bf16 %v7165
      %v7284 = vunpack.c.h.bf16 %v7165
      %v7285 = vunpack.c.l.bf16 %v7166
      %v7286 = vunpack.c.h.bf16 %v7166
      %v7287 = vunpack.c.l.bf16 %v7167
      %v7288 = vunpack.c.h.bf16 %v7167
      %v7289 = vunpack.c.l.bf16 %v7168
      %v7290 = vunpack.c.h.bf16 %v7168
      %v7291 = vunpack.c.l.bf16 %v7169
      %v7292 = vunpack.c.h.bf16 %v7169
      %v7293 = vunpack.c.l.bf16 %v7170
      %v7294 = vunpack.c.h.bf16 %v7170
      %v7295 = vunpack.c.l.bf16 %v7171
      %v7296 = vunpack.c.h.bf16 %v7171
      %v7297 = vunpack.c.l.bf16 %v7172
      %v7298 = vunpack.c.h.bf16 %v7172
      %v7299 = vunpack.c.l.bf16 %v7173
      %v7300 = vunpack.c.h.bf16 %v7173
      %v7301 = vunpack.c.l.bf16 %v7174
      %v7302 = vunpack.c.h.bf16 %v7174
      %v7303 = vmul.f32 %v7175, 0.010009766
      %v7304 = vmul.f32 %v7176, 0.010009766
      %v7305 = vmul.f32 %v7177, 0.010009766
      %v7306 = vmul.f32 %v7178, 0.010009766
      %v7307 = vmul.f32 %v7179, 0.010009766
      %v7308 = vmul.f32 %v7180, 0.010009766
      %v7309 = vmul.f32 %v7181, 0.010009766
      %v7310 = vmul.f32 %v7182, 0.010009766
      %v7311 = vmul.f32 %v7183, 0.010009766
      %v7312 = vmul.f32 %v7184, 0.010009766
      %v7313 = vmul.f32 %v7185, 0.010009766
      %v7314 = vmul.f32 %v7186, 0.010009766
      %v7315 = vmul.f32 %v7187, 0.010009766
      %v7316 = vmul.f32 %v7188, 0.010009766
      %v7317 = vmul.f32 %v7189, 0.010009766
      %v7318 = vmul.f32 %v7190, 0.010009766
      %v7319 = vmul.f32 %v7191, 0.010009766
      %v7320 = vmul.f32 %v7192, 0.010009766
      %v7321 = vmul.f32 %v7193, 0.010009766
      %v7322 = vmul.f32 %v7194, 0.010009766
      %v7323 = vmul.f32 %v7195, 0.010009766
      %v7324 = vmul.f32 %v7196, 0.010009766
      %v7325 = vmul.f32 %v7197, 0.010009766
      %v7326 = vmul.f32 %v7198, 0.010009766
      %v7327 = vmul.f32 %v7199, 0.010009766
      %v7328 = vmul.f32 %v7200, 0.010009766
      %v7329 = vmul.f32 %v7201, 0.010009766
      %v7330 = vmul.f32 %v7202, 0.010009766
      %v7331 = vmul.f32 %v7203, 0.010009766
      %v7332 = vmul.f32 %v7204, 0.010009766
      %v7333 = vmul.f32 %v7205, 0.010009766
      %v7334 = vmul.f32 %v7206, 0.010009766
      %v7335 = vmul.f32 %v7207, 0.010009766
      %v7336 = vmul.f32 %v7208, 0.010009766
      %v7337 = vmul.f32 %v7209, 0.010009766
      %v7338 = vmul.f32 %v7210, 0.010009766
      %v7339 = vmul.f32 %v7211, 0.010009766
      %v7340 = vmul.f32 %v7212, 0.010009766
      %v7341 = vmul.f32 %v7213, 0.010009766
      %v7342 = vmul.f32 %v7214, 0.010009766
      %v7343 = vmul.f32 %v7215, 0.010009766
      %v7344 = vmul.f32 %v7216, 0.010009766
      %v7345 = vmul.f32 %v7217, 0.010009766
      %v7346 = vmul.f32 %v7218, 0.010009766
      %v7347 = vmul.f32 %v7219, 0.010009766
      %v7348 = vmul.f32 %v7220, 0.010009766
      %v7349 = vmul.f32 %v7221, 0.010009766
      %v7350 = vmul.f32 %v7222, 0.010009766
      %v7351 = vmul.f32 %v7223, 0.010009766
      %v7352 = vmul.f32 %v7224, 0.010009766
      %v7353 = vmul.f32 %v7225, 0.010009766
      %v7354 = vmul.f32 %v7226, 0.010009766
      %v7355 = vmul.f32 %v7227, 0.010009766
      %v7356 = vmul.f32 %v7228, 0.010009766
      %v7357 = vmul.f32 %v7229, 0.010009766
      %v7358 = vmul.f32 %v7230, 0.010009766
      %v7359 = vmul.f32 %v7231, 0.010009766
      %v7360 = vmul.f32 %v7232, 0.010009766
      %v7361 = vmul.f32 %v7233, 0.010009766
      %v7362 = vmul.f32 %v7234, 0.010009766
      %v7363 = vmul.f32 %v7235, 0.010009766
      %v7364 = vmul.f32 %v7236, 0.010009766
      %v7365 = vmul.f32 %v7237, 0.010009766
      %v7366 = vmul.f32 %v7238, 0.010009766
      %v7367 = vmul.f32 %v7239, 0.010009766
      %v7368 = vmul.f32 %v7240, 0.010009766
      %v7369 = vmul.f32 %v7241, 0.010009766
      %v7370 = vmul.f32 %v7242, 0.010009766
      %v7371 = vmul.f32 %v7243, 0.010009766
      %v7372 = vmul.f32 %v7244, 0.010009766
      %v7373 = vmul.f32 %v7245, 0.010009766
      %v7374 = vmul.f32 %v7246, 0.010009766
      %v7375 = vmul.f32 %v7247, 0.010009766
      %v7376 = vmul.f32 %v7248, 0.010009766
      %v7377 = vmul.f32 %v7249, 0.010009766
      %v7378 = vmul.f32 %v7250, 0.010009766
      %v7379 = vmul.f32 %v7251, 0.010009766
      %v7380 = vmul.f32 %v7252, 0.010009766
      %v7381 = vmul.f32 %v7253, 0.010009766
      %v7382 = vmul.f32 %v7254, 0.010009766
      %v7383 = vmul.f32 %v7255, 0.010009766
      %v7384 = vmul.f32 %v7256, 0.010009766
      %v7385 = vmul.f32 %v7257, 0.010009766
      %v7386 = vmul.f32 %v7258, 0.010009766
      %v7387 = vmul.f32 %v7259, 0.010009766
      %v7388 = vmul.f32 %v7260, 0.010009766
      %v7389 = vmul.f32 %v7261, 0.010009766
      %v7390 = vmul.f32 %v7262, 0.010009766
      %v7391 = vmul.f32 %v7263, 0.010009766
      %v7392 = vmul.f32 %v7264, 0.010009766
      %v7393 = vmul.f32 %v7265, 0.010009766
      %v7394 = vmul.f32 %v7266, 0.010009766
      %v7395 = vmul.f32 %v7267, 0.010009766
      %v7396 = vmul.f32 %v7268, 0.010009766
      %v7397 = vmul.f32 %v7269, 0.010009766
      %v7398 = vmul.f32 %v7270, 0.010009766
      %v7399 = vmul.f32 %v7271, 0.010009766
      %v7400 = vmul.f32 %v7272, 0.010009766
      %v7401 = vmul.f32 %v7273, 0.010009766
      %v7402 = vmul.f32 %v7274, 0.010009766
      %v7403 = vmul.f32 %v7275, 0.010009766
      %v7404 = vmul.f32 %v7276, 0.010009766
      %v7405 = vmul.f32 %v7277, 0.010009766
      %v7406 = vmul.f32 %v7278, 0.010009766
      %v7407 = vmul.f32 %v7279, 0.010009766
      %v7408 = vmul.f32 %v7280, 0.010009766
      %v7409 = vmul.f32 %v7281, 0.010009766
      %v7410 = vmul.f32 %v7282, 0.010009766
      %v7411 = vmul.f32 %v7283, 0.010009766
      %v7412 = vmul.f32 %v7284, 0.010009766
      %v7413 = vmul.f32 %v7285, 0.010009766
      %v7414 = vmul.f32 %v7286, 0.010009766
      %v7415 = vmul.f32 %v7287, 0.010009766
      %v7416 = vmul.f32 %v7288, 0.010009766
      %v7417 = vmul.f32 %v7289, 0.010009766
      %v7418 = vmul.f32 %v7290, 0.010009766
      %v7419 = vmul.f32 %v7291, 0.010009766
      %v7420 = vmul.f32 %v7292, 0.010009766
      %v7421 = vmul.f32 %v7293, 0.010009766
      %v7422 = vmul.f32 %v7294, 0.010009766
      %v7423 = vmul.f32 %v7295, 0.010009766
      %v7424 = vmul.f32 %v7296, 0.010009766
      %v7425 = vmul.f32 %v7297, 0.010009766
      %v7426 = vmul.f32 %v7298, 0.010009766
      %v7427 = vmul.f32 %v7299, 0.010009766
      %v7428 = vmul.f32 %v7300, 0.010009766
      %v7429 = vmul.f32 %v7301, 0.010009766
      %v7430 = vmul.f32 %v7302, 0.010009766
      %v7431 = vpack.c.bf16 %v7304, %v7303
      %v7432 = vpack.c.bf16 %v7306, %v7305
      %v7433 = vpack.c.bf16 %v7308, %v7307
      %v7434 = vpack.c.bf16 %v7310, %v7309
      %v7435 = vpack.c.bf16 %v7312, %v7311
      %v7436 = vpack.c.bf16 %v7314, %v7313
      %v7437 = vpack.c.bf16 %v7316, %v7315
      %v7438 = vpack.c.bf16 %v7318, %v7317
      %v7439 = vpack.c.bf16 %v7320, %v7319
      %v7440 = vpack.c.bf16 %v7322, %v7321
      %v7441 = vpack.c.bf16 %v7324, %v7323
      %v7442 = vpack.c.bf16 %v7326, %v7325
      %v7443 = vpack.c.bf16 %v7328, %v7327
      %v7444 = vpack.c.bf16 %v7330, %v7329
      %v7445 = vpack.c.bf16 %v7332, %v7331
      %v7446 = vpack.c.bf16 %v7334, %v7333
      %v7447 = vpack.c.bf16 %v7336, %v7335
      %v7448 = vpack.c.bf16 %v7338, %v7337
      %v7449 = vpack.c.bf16 %v7340, %v7339
      %v7450 = vpack.c.bf16 %v7342, %v7341
      %v7451 = vpack.c.bf16 %v7344, %v7343
      %v7452 = vpack.c.bf16 %v7346, %v7345
      %v7453 = vpack.c.bf16 %v7348, %v7347
      %v7454 = vpack.c.bf16 %v7350, %v7349
      %v7455 = vpack.c.bf16 %v7352, %v7351
      %v7456 = vpack.c.bf16 %v7354, %v7353
      %v7457 = vpack.c.bf16 %v7356, %v7355
      %v7458 = vpack.c.bf16 %v7358, %v7357
      %v7459 = vpack.c.bf16 %v7360, %v7359
      %v7460 = vpack.c.bf16 %v7362, %v7361
      %v7461 = vpack.c.bf16 %v7364, %v7363
      %v7462 = vpack.c.bf16 %v7366, %v7365
      %v7463 = vpack.c.bf16 %v7368, %v7367
      %v7464 = vpack.c.bf16 %v7370, %v7369
      %v7465 = vpack.c.bf16 %v7372, %v7371
      %v7466 = vpack.c.bf16 %v7374, %v7373
      %v7467 = vpack.c.bf16 %v7376, %v7375
      %v7468 = vpack.c.bf16 %v7378, %v7377
      %v7469 = vpack.c.bf16 %v7380, %v7379
      %v7470 = vpack.c.bf16 %v7382, %v7381
      %v7471 = vpack.c.bf16 %v7384, %v7383
      %v7472 = vpack.c.bf16 %v7386, %v7385
      %v7473 = vpack.c.bf16 %v7388, %v7387
      %v7474 = vpack.c.bf16 %v7390, %v7389
      %v7475 = vpack.c.bf16 %v7392, %v7391
      %v7476 = vpack.c.bf16 %v7394, %v7393
      %v7477 = vpack.c.bf16 %v7396, %v7395
      %v7478 = vpack.c.bf16 %v7398, %v7397
      %v7479 = vpack.c.bf16 %v7400, %v7399
      %v7480 = vpack.c.bf16 %v7402, %v7401
      %v7481 = vpack.c.bf16 %v7404, %v7403
      %v7482 = vpack.c.bf16 %v7406, %v7405
      %v7483 = vpack.c.bf16 %v7408, %v7407
      %v7484 = vpack.c.bf16 %v7410, %v7409
      %v7485 = vpack.c.bf16 %v7412, %v7411
      %v7486 = vpack.c.bf16 %v7414, %v7413
      %v7487 = vpack.c.bf16 %v7416, %v7415
      %v7488 = vpack.c.bf16 %v7418, %v7417
      %v7489 = vpack.c.bf16 %v7420, %v7419
      %v7490 = vpack.c.bf16 %v7422, %v7421
      %v7491 = vpack.c.bf16 %v7424, %v7423
      %v7492 = vpack.c.bf16 %v7426, %v7425
      %v7493 = vpack.c.bf16 %v7428, %v7427
      %v7494 = vpack.c.bf16 %v7430, %v7429
      %v7495 = vunpack.c.l.bf16 %v7431
      %v7496 = vunpack.c.h.bf16 %v7431
      %v7497 = vunpack.c.l.bf16 %v7432
      %v7498 = vunpack.c.h.bf16 %v7432
      %v7499 = vunpack.c.l.bf16 %v7433
      %v7500 = vunpack.c.h.bf16 %v7433
      %v7501 = vunpack.c.l.bf16 %v7434
      %v7502 = vunpack.c.h.bf16 %v7434
      %v7503 = vunpack.c.l.bf16 %v7435
      %v7504 = vunpack.c.h.bf16 %v7435
      %v7505 = vunpack.c.l.bf16 %v7436
      %v7506 = vunpack.c.h.bf16 %v7436
      %v7507 = vunpack.c.l.bf16 %v7437
      %v7508 = vunpack.c.h.bf16 %v7437
      %v7509 = vunpack.c.l.bf16 %v7438
      %v7510 = vunpack.c.h.bf16 %v7438
      %v7511 = vunpack.c.l.bf16 %v7439
      %v7512 = vunpack.c.h.bf16 %v7439
      %v7513 = vunpack.c.l.bf16 %v7440
      %v7514 = vunpack.c.h.bf16 %v7440
      %v7515 = vunpack.c.l.bf16 %v7441
      %v7516 = vunpack.c.h.bf16 %v7441
      %v7517 = vunpack.c.l.bf16 %v7442
      %v7518 = vunpack.c.h.bf16 %v7442
      %v7519 = vunpack.c.l.bf16 %v7443
      %v7520 = vunpack.c.h.bf16 %v7443
      %v7521 = vunpack.c.l.bf16 %v7444
      %v7522 = vunpack.c.h.bf16 %v7444
      %v7523 = vunpack.c.l.bf16 %v7445
      %v7524 = vunpack.c.h.bf16 %v7445
      %v7525 = vunpack.c.l.bf16 %v7446
      %v7526 = vunpack.c.h.bf16 %v7446
      %v7527 = vunpack.c.l.bf16 %v7447
      %v7528 = vunpack.c.h.bf16 %v7447
      %v7529 = vunpack.c.l.bf16 %v7448
      %v7530 = vunpack.c.h.bf16 %v7448
      %v7531 = vunpack.c.l.bf16 %v7449
      %v7532 = vunpack.c.h.bf16 %v7449
      %v7533 = vunpack.c.l.bf16 %v7450
      %v7534 = vunpack.c.h.bf16 %v7450
      %v7535 = vunpack.c.l.bf16 %v7451
      %v7536 = vunpack.c.h.bf16 %v7451
      %v7537 = vunpack.c.l.bf16 %v7452
      %v7538 = vunpack.c.h.bf16 %v7452
      %v7539 = vunpack.c.l.bf16 %v7453
      %v7540 = vunpack.c.h.bf16 %v7453
      %v7541 = vunpack.c.l.bf16 %v7454
      %v7542 = vunpack.c.h.bf16 %v7454
      %v7543 = vunpack.c.l.bf16 %v7455
      %v7544 = vunpack.c.h.bf16 %v7455
      %v7545 = vunpack.c.l.bf16 %v7456
      %v7546 = vunpack.c.h.bf16 %v7456
      %v7547 = vunpack.c.l.bf16 %v7457
      %v7548 = vunpack.c.h.bf16 %v7457
      %v7549 = vunpack.c.l.bf16 %v7458
      %v7550 = vunpack.c.h.bf16 %v7458
      %v7551 = vunpack.c.l.bf16 %v7459
      %v7552 = vunpack.c.h.bf16 %v7459
      %v7553 = vunpack.c.l.bf16 %v7460
      %v7554 = vunpack.c.h.bf16 %v7460
      %v7555 = vunpack.c.l.bf16 %v7461
      %v7556 = vunpack.c.h.bf16 %v7461
      %v7557 = vunpack.c.l.bf16 %v7462
      %v7558 = vunpack.c.h.bf16 %v7462
      %v7559 = vunpack.c.l.bf16 %v7463
      %v7560 = vunpack.c.h.bf16 %v7463
      %v7561 = vunpack.c.l.bf16 %v7464
      %v7562 = vunpack.c.h.bf16 %v7464
      %v7563 = vunpack.c.l.bf16 %v7465
      %v7564 = vunpack.c.h.bf16 %v7465
      %v7565 = vunpack.c.l.bf16 %v7466
      %v7566 = vunpack.c.h.bf16 %v7466
      %v7567 = vunpack.c.l.bf16 %v7467
      %v7568 = vunpack.c.h.bf16 %v7467
      %v7569 = vunpack.c.l.bf16 %v7468
      %v7570 = vunpack.c.h.bf16 %v7468
      %v7571 = vunpack.c.l.bf16 %v7469
      %v7572 = vunpack.c.h.bf16 %v7469
      %v7573 = vunpack.c.l.bf16 %v7470
      %v7574 = vunpack.c.h.bf16 %v7470
      %v7575 = vunpack.c.l.bf16 %v7471
      %v7576 = vunpack.c.h.bf16 %v7471
      %v7577 = vunpack.c.l.bf16 %v7472
      %v7578 = vunpack.c.h.bf16 %v7472
      %v7579 = vunpack.c.l.bf16 %v7473
      %v7580 = vunpack.c.h.bf16 %v7473
      %v7581 = vunpack.c.l.bf16 %v7474
      %v7582 = vunpack.c.h.bf16 %v7474
      %v7583 = vunpack.c.l.bf16 %v7475
      %v7584 = vunpack.c.h.bf16 %v7475
      %v7585 = vunpack.c.l.bf16 %v7476
      %v7586 = vunpack.c.h.bf16 %v7476
      %v7587 = vunpack.c.l.bf16 %v7477
      %v7588 = vunpack.c.h.bf16 %v7477
      %v7589 = vunpack.c.l.bf16 %v7478
      %v7590 = vunpack.c.h.bf16 %v7478
      %v7591 = vunpack.c.l.bf16 %v7479
      %v7592 = vunpack.c.h.bf16 %v7479
      %v7593 = vunpack.c.l.bf16 %v7480
      %v7594 = vunpack.c.h.bf16 %v7480
      %v7595 = vunpack.c.l.bf16 %v7481
      %v7596 = vunpack.c.h.bf16 %v7481
      %v7597 = vunpack.c.l.bf16 %v7482
      %v7598 = vunpack.c.h.bf16 %v7482
      %v7599 = vunpack.c.l.bf16 %v7483
      %v7600 = vunpack.c.h.bf16 %v7483
      %v7601 = vunpack.c.l.bf16 %v7484
      %v7602 = vunpack.c.h.bf16 %v7484
      %v7603 = vunpack.c.l.bf16 %v7485
      %v7604 = vunpack.c.h.bf16 %v7485
      %v7605 = vunpack.c.l.bf16 %v7486
      %v7606 = vunpack.c.h.bf16 %v7486
      %v7607 = vunpack.c.l.bf16 %v7487
      %v7608 = vunpack.c.h.bf16 %v7487
      %v7609 = vunpack.c.l.bf16 %v7488
      %v7610 = vunpack.c.h.bf16 %v7488
      %v7611 = vunpack.c.l.bf16 %v7489
      %v7612 = vunpack.c.h.bf16 %v7489
      %v7613 = vunpack.c.l.bf16 %v7490
      %v7614 = vunpack.c.h.bf16 %v7490
      %v7615 = vunpack.c.l.bf16 %v7491
      %v7616 = vunpack.c.h.bf16 %v7491
      %v7617 = vunpack.c.l.bf16 %v7492
      %v7618 = vunpack.c.h.bf16 %v7492
      %v7619 = vunpack.c.l.bf16 %v7493
      %v7620 = vunpack.c.h.bf16 %v7493
      %v7621 = vunpack.c.l.bf16 %v7494
      %v7622 = vunpack.c.h.bf16 %v7494
      %v7623 = vmax.f32 %v7175, %v7495
      %v7624 = vmax.f32 %v7176, %v7496
      %v7625 = vmax.f32 %v7177, %v7497
      %v7626 = vmax.f32 %v7178, %v7498
      %v7627 = vmax.f32 %v7179, %v7499
      %v7628 = vmax.f32 %v7180, %v7500
      %v7629 = vmax.f32 %v7181, %v7501
      %v7630 = vmax.f32 %v7182, %v7502
      %v7631 = vmax.f32 %v7183, %v7503
      %v7632 = vmax.f32 %v7184, %v7504
      %v7633 = vmax.f32 %v7185, %v7505
      %v7634 = vmax.f32 %v7186, %v7506
      %v7635 = vmax.f32 %v7187, %v7507
      %v7636 = vmax.f32 %v7188, %v7508
      %v7637 = vmax.f32 %v7189, %v7509
      %v7638 = vmax.f32 %v7190, %v7510
      %v7639 = vmax.f32 %v7191, %v7511
      %v7640 = vmax.f32 %v7192, %v7512
      %v7641 = vmax.f32 %v7193, %v7513
      %v7642 = vmax.f32 %v7194, %v7514
      %v7643 = vmax.f32 %v7195, %v7515
      %v7644 = vmax.f32 %v7196, %v7516
      %v7645 = vmax.f32 %v7197, %v7517
      %v7646 = vmax.f32 %v7198, %v7518
      %v7647 = vmax.f32 %v7199, %v7519
      %v7648 = vmax.f32 %v7200, %v7520
      %v7649 = vmax.f32 %v7201, %v7521
      %v7650 = vmax.f32 %v7202, %v7522
      %v7651 = vmax.f32 %v7203, %v7523
      %v7652 = vmax.f32 %v7204, %v7524
      %v7653 = vmax.f32 %v7205, %v7525
      %v7654 = vmax.f32 %v7206, %v7526
      %v7655 = vmax.f32 %v7207, %v7527
      %v7656 = vmax.f32 %v7208, %v7528
      %v7657 = vmax.f32 %v7209, %v7529
      %v7658 = vmax.f32 %v7210, %v7530
      %v7659 = vmax.f32 %v7211, %v7531
      %v7660 = vmax.f32 %v7212, %v7532
      %v7661 = vmax.f32 %v7213, %v7533
      %v7662 = vmax.f32 %v7214, %v7534
      %v7663 = vmax.f32 %v7215, %v7535
      %v7664 = vmax.f32 %v7216, %v7536
      %v7665 = vmax.f32 %v7217, %v7537
      %v7666 = vmax.f32 %v7218, %v7538
      %v7667 = vmax.f32 %v7219, %v7539
      %v7668 = vmax.f32 %v7220, %v7540
      %v7669 = vmax.f32 %v7221, %v7541
      %v7670 = vmax.f32 %v7222, %v7542
      %v7671 = vmax.f32 %v7223, %v7543
      %v7672 = vmax.f32 %v7224, %v7544
      %v7673 = vmax.f32 %v7225, %v7545
      %v7674 = vmax.f32 %v7226, %v7546
      %v7675 = vmax.f32 %v7227, %v7547
      %v7676 = vmax.f32 %v7228, %v7548
      %v7677 = vmax.f32 %v7229, %v7549
      %v7678 = vmax.f32 %v7230, %v7550
      %v7679 = vmax.f32 %v7231, %v7551
      %v7680 = vmax.f32 %v7232, %v7552
      %v7681 = vmax.f32 %v7233, %v7553
      %v7682 = vmax.f32 %v7234, %v7554
      %v7683 = vmax.f32 %v7235, %v7555
      %v7684 = vmax.f32 %v7236, %v7556
      %v7685 = vmax.f32 %v7237, %v7557
      %v7686 = vmax.f32 %v7238, %v7558
      %v7687 = vmax.f32 %v7239, %v7559
      %v7688 = vmax.f32 %v7240, %v7560
      %v7689 = vmax.f32 %v7241, %v7561
      %v7690 = vmax.f32 %v7242, %v7562
      %v7691 = vmax.f32 %v7243, %v7563
      %v7692 = vmax.f32 %v7244, %v7564
      %v7693 = vmax.f32 %v7245, %v7565
      %v7694 = vmax.f32 %v7246, %v7566
      %v7695 = vmax.f32 %v7247, %v7567
      %v7696 = vmax.f32 %v7248, %v7568
      %v7697 = vmax.f32 %v7249, %v7569
      %v7698 = vmax.f32 %v7250, %v7570
      %v7699 = vmax.f32 %v7251, %v7571
      %v7700 = vmax.f32 %v7252, %v7572
      %v7701 = vmax.f32 %v7253, %v7573
      %v7702 = vmax.f32 %v7254, %v7574
      %v7703 = vmax.f32 %v7255, %v7575
      %v7704 = vmax.f32 %v7256, %v7576
      %v7705 = vmax.f32 %v7257, %v7577
      %v7706 = vmax.f32 %v7258, %v7578
      %v7707 = vmax.f32 %v7259, %v7579
      %v7708 = vmax.f32 %v7260, %v7580
      %v7709 = vmax.f32 %v7261, %v7581
      %v7710 = vmax.f32 %v7262, %v7582
      %v7711 = vmax.f32 %v7263, %v7583
      %v7712 = vmax.f32 %v7264, %v7584
      %v7713 = vmax.f32 %v7265, %v7585
      %v7714 = vmax.f32 %v7266, %v7586
      %v7715 = vmax.f32 %v7267, %v7587
      %v7716 = vmax.f32 %v7268, %v7588
      %v7717 = vmax.f32 %v7269, %v7589
      %v7718 = vmax.f32 %v7270, %v7590
      %v7719 = vmax.f32 %v7271, %v7591
      %v7720 = vmax.f32 %v7272, %v7592
      %v7721 = vmax.f32 %v7273, %v7593
      %v7722 = vmax.f32 %v7274, %v7594
      %v7723 = vmax.f32 %v7275, %v7595
      %v7724 = vmax.f32 %v7276, %v7596
      %v7725 = vmax.f32 %v7277, %v7597
      %v7726 = vmax.f32 %v7278, %v7598
      %v7727 = vmax.f32 %v7279, %v7599
      %v7728 = vmax.f32 %v7280, %v7600
      %v7729 = vmax.f32 %v7281, %v7601
      %v7730 = vmax.f32 %v7282, %v7602
      %v7731 = vmax.f32 %v7283, %v7603
      %v7732 = vmax.f32 %v7284, %v7604
      %v7733 = vmax.f32 %v7285, %v7605
      %v7734 = vmax.f32 %v7286, %v7606
      %v7735 = vmax.f32 %v7287, %v7607
      %v7736 = vmax.f32 %v7288, %v7608
      %v7737 = vmax.f32 %v7289, %v7609
      %v7738 = vmax.f32 %v7290, %v7610
      %v7739 = vmax.f32 %v7291, %v7611
      %v7740 = vmax.f32 %v7292, %v7612
      %v7741 = vmax.f32 %v7293, %v7613
      %v7742 = vmax.f32 %v7294, %v7614
      %v7743 = vmax.f32 %v7295, %v7615
      %v7744 = vmax.f32 %v7296, %v7616
      %v7745 = vmax.f32 %v7297, %v7617
      %v7746 = vmax.f32 %v7298, %v7618
      %v7747 = vmax.f32 %v7299, %v7619
      %v7748 = vmax.f32 %v7300, %v7620
      %v7749 = vmax.f32 %v7301, %v7621
      %v7750 = vmax.f32 %v7302, %v7622
      %v7751 = vpack.c.bf16 %v7625, %v7623
      %v7752 = vpack.c.bf16 %v7626, %v7624
      %v7753 = vpack.c.bf16 %v7629, %v7627
      %v7754 = vpack.c.bf16 %v7630, %v7628
      %v7755 = vpack.c.bf16 %v7633, %v7631
      %v7756 = vpack.c.bf16 %v7634, %v7632
      %v7757 = vpack.c.bf16 %v7637, %v7635
      %v7758 = vpack.c.bf16 %v7638, %v7636
      %v7759 = vpack.c.bf16 %v7641, %v7639
      %v7760 = vpack.c.bf16 %v7642, %v7640
      %v7761 = vpack.c.bf16 %v7645, %v7643
      %v7762 = vpack.c.bf16 %v7646, %v7644
      %v7763 = vpack.c.bf16 %v7649, %v7647
      %v7764 = vpack.c.bf16 %v7650, %v7648
      %v7765 = vpack.c.bf16 %v7653, %v7651
      %v7766 = vpack.c.bf16 %v7654, %v7652
      %v7767 = vpack.c.bf16 %v7657, %v7655
      %v7768 = vpack.c.bf16 %v7658, %v7656
      %v7769 = vpack.c.bf16 %v7661, %v7659
      %v7770 = vpack.c.bf16 %v7662, %v7660
      %v7771 = vpack.c.bf16 %v7665, %v7663
      %v7772 = vpack.c.bf16 %v7666, %v7664
      %v7773 = vpack.c.bf16 %v7669, %v7667
      %v7774 = vpack.c.bf16 %v7670, %v7668
      %v7775 = vpack.c.bf16 %v7673, %v7671
      %v7776 = vpack.c.bf16 %v7674, %v7672
      %v7777 = vpack.c.bf16 %v7677, %v7675
      %v7778 = vpack.c.bf16 %v7678, %v7676
      %v7779 = vpack.c.bf16 %v7681, %v7679
      %v7780 = vpack.c.bf16 %v7682, %v7680
      %v7781 = vpack.c.bf16 %v7685, %v7683
      %v7782 = vpack.c.bf16 %v7686, %v7684
      %v7783 = vpack.c.bf16 %v7689, %v7687
      %v7784 = vpack.c.bf16 %v7690, %v7688
      %v7785 = vpack.c.bf16 %v7693, %v7691
      %v7786 = vpack.c.bf16 %v7694, %v7692
      %v7787 = vpack.c.bf16 %v7697, %v7695
      %v7788 = vpack.c.bf16 %v7698, %v7696
      %v7789 = vpack.c.bf16 %v7701, %v7699
      %v7790 = vpack.c.bf16 %v7702, %v7700
      %v7791 = vpack.c.bf16 %v7705, %v7703
      %v7792 = vpack.c.bf16 %v7706, %v7704
      %v7793 = vpack.c.bf16 %v7709, %v7707
      %v7794 = vpack.c.bf16 %v7710, %v7708
      %v7795 = vpack.c.bf16 %v7713, %v7711
      %v7796 = vpack.c.bf16 %v7714, %v7712
      %v7797 = vpack.c.bf16 %v7717, %v7715
      %v7798 = vpack.c.bf16 %v7718, %v7716
      %v7799 = vpack.c.bf16 %v7721, %v7719
      %v7800 = vpack.c.bf16 %v7722, %v7720
      %v7801 = vpack.c.bf16 %v7725, %v7723
      %v7802 = vpack.c.bf16 %v7726, %v7724
      %v7803 = vpack.c.bf16 %v7729, %v7727
      %v7804 = vpack.c.bf16 %v7730, %v7728
      %v7805 = vpack.c.bf16 %v7733, %v7731
      %v7806 = vpack.c.bf16 %v7734, %v7732
      %v7807 = vpack.c.bf16 %v7737, %v7735
      %v7808 = vpack.c.bf16 %v7738, %v7736
      %v7809 = vpack.c.bf16 %v7741, %v7739
      %v7810 = vpack.c.bf16 %v7742, %v7740
      %v7811 = vpack.c.bf16 %v7745, %v7743
      %v7812 = vpack.c.bf16 %v7746, %v7744
      %v7813 = vpack.c.bf16 %v7749, %v7747
      %v7814 = vpack.c.bf16 %v7750, %v7748
      %v7815 = vld [vmem:[%s9] sm:$0xf]
      %v7816 = vld [vmem:[%s9 + $0x4] sm:$0xf]
      %v7817 = vld [vmem:[%s9 + $0x8] sm:$0xf]
      %v7818 = vld [vmem:[%s9 + $0xc] sm:$0xf]
      %v7819 = vld [vmem:[%s9 + $0x10] sm:$0xf]
      %v7820 = vld [vmem:[%s9 + $0x14] sm:$0xf]
      %v7821 = vld [vmem:[%s9 + $0x18] sm:$0xf]
      %v7822 = vld [vmem:[%s9 + $0x1c] sm:$0xf]
      %v7823 = vld [vmem:[%s9 + $0x20] sm:$0xf]
      %v7824 = vld [vmem:[%s9 + $0x24] sm:$0xf]
      %v7825 = vld [vmem:[%s9 + $0x28] sm:$0xf]
      %v7826 = vld [vmem:[%s9 + $0x2c] sm:$0xf]
      %v7827 = vld [vmem:[%s9 + $0x30] sm:$0xf]
      %v7828 = vld [vmem:[%s9 + $0x34] sm:$0xf]
      %v7829 = vld [vmem:[%s9 + $0x38] sm:$0xf]
      %v7830 = vld [vmem:[%s9 + $0x3c] sm:$0xf]
      %v7831 = vld [vmem:[%s9 + $0x40] sm:$0xf]
      %v7832 = vld [vmem:[%s9 + $0x44] sm:$0xf]
      %v7833 = vld [vmem:[%s9 + $0x48] sm:$0xf]
      %v7834 = vld [vmem:[%s9 + $0x4c] sm:$0xf]
      %v7835 = vld [vmem:[%s9 + $0x50] sm:$0xf]
      %v7836 = vld [vmem:[%s9 + $0x54] sm:$0xf]
      %v7837 = vld [vmem:[%s9 + $0x58] sm:$0xf]
      %v7838 = vld [vmem:[%s9 + $0x5c] sm:$0xf]
      %v7839 = vld [vmem:[%s9 + $0x60] sm:$0xf]
      %v7840 = vld [vmem:[%s9 + $0x64] sm:$0xf]
      %v7841 = vld [vmem:[%s9 + $0x68] sm:$0xf]
      %v7842 = vld [vmem:[%s9 + $0x6c] sm:$0xf]
      %v7843 = vld [vmem:[%s9 + $0x70] sm:$0xf]
      %v7844 = vld [vmem:[%s9 + $0x74] sm:$0xf]
      %v7845 = vld [vmem:[%s9 + $0x78] sm:$0xf]
      %v7846 = vld [vmem:[%s9 + $0x7c] sm:$0xf]
      %v7847 = vld [vmem:[%s10] sm:$0x1]
      %v7849 = vperm.slane %v7847, 0
      %v7883 = vunpack.c.l.b16 %v7815
      %v7884 = vunpack.c.l.b16 %v7816
      %v7885 = vunpack.c.l.b16 %v7817
      %v7886 = vunpack.c.l.b16 %v7818
      %v7887 = vunpack.c.l.b16 %v7819
      %v7888 = vunpack.c.l.b16 %v7820
      %v7889 = vunpack.c.l.b16 %v7821
      %v7890 = vunpack.c.l.b16 %v7822
      %v7891 = vunpack.c.l.b16 %v7823
      %v7892 = vunpack.c.l.b16 %v7824
      %v7893 = vunpack.c.l.b16 %v7825
      %v7894 = vunpack.c.l.b16 %v7826
      %v7895 = vunpack.c.l.b16 %v7827
      %v7896 = vunpack.c.l.b16 %v7828
      %v7897 = vunpack.c.l.b16 %v7829
      %v7898 = vunpack.c.l.b16 %v7830
      %v7899 = vunpack.c.l.b16 %v7831
      %v7900 = vunpack.c.l.b16 %v7832
      %v7901 = vunpack.c.l.b16 %v7833
      %v7902 = vunpack.c.l.b16 %v7834
      %v7903 = vunpack.c.l.b16 %v7835
      %v7904 = vunpack.c.l.b16 %v7836
      %v7905 = vunpack.c.l.b16 %v7837
      %v7906 = vunpack.c.l.b16 %v7838
      %v7907 = vunpack.c.l.b16 %v7839
      %v7908 = vunpack.c.l.b16 %v7840
      %v7909 = vunpack.c.l.b16 %v7841
      %v7910 = vunpack.c.l.b16 %v7842
      %v7911 = vunpack.c.l.b16 %v7843
      %v7912 = vunpack.c.l.b16 %v7844
      %v7913 = vunpack.c.l.b16 %v7845
      %v7914 = vunpack.c.l.b16 %v7846
      %v7915 = vpack.c.b16 %v7884, %v7883
      %v7916 = vpack.c.b16 %v7886, %v7885
      %v7917 = vpack.c.b16 %v7888, %v7887
      %v7918 = vpack.c.b16 %v7890, %v7889
      %v7919 = vpack.c.b16 %v7892, %v7891
      %v7920 = vpack.c.b16 %v7894, %v7893
      %v7921 = vpack.c.b16 %v7896, %v7895
      %v7922 = vpack.c.b16 %v7898, %v7897
      %v7923 = vpack.c.b16 %v7900, %v7899
      %v7924 = vpack.c.b16 %v7902, %v7901
      %v7925 = vpack.c.b16 %v7904, %v7903
      %v7926 = vpack.c.b16 %v7906, %v7905
      %v7927 = vpack.c.b16 %v7908, %v7907
      %v7928 = vpack.c.b16 %v7910, %v7909
      %v7929 = vpack.c.b16 %v7912, %v7911
      %v7930 = vpack.c.b16 %v7914, %v7913
      %7947 = vmatpush.bf16.msra.mxu0 %v7922
      %7948 = vmatpush.bf16.msra.mxu0 %v7921
      %7949 = vmatpush.bf16.msra.mxu0 %v7920
      %7950 = vmatpush.bf16.msra.mxu0 %v7919
      %7951 = vmatpush.bf16.msra.mxu0 %v7918
      %7952 = vmatpush.bf16.msra.mxu0 %v7917
      %7953 = vmatpush.bf16.msra.mxu0 %v7916
      %7954 = vmatpush.bf16.msra.mxu0 %v7915
      %7955 = vmatmul.bf16.gmra.mxu0 %v7751
      %v7956 = vpop.f32.mrf.mxu0
      %v7957 = vadd.f32 %v7849, %v7956
      %v7958 = vpop.f32.mrf.mxu0
      %v7959 = vadd.f32 %v7849, %v7958
      %7960 = vmatmul.bf16.gmra.mxu0 %v7753
      %v7961 = vpop.f32.mrf.mxu0
      %v7962 = vadd.f32 %v7849, %v7961
      %v7963 = vpop.f32.mrf.mxu0
      %v7964 = vadd.f32 %v7849, %v7963
      %7965 = vmatmul.bf16.gmra.mxu0 %v7755
      %v7966 = vpop.f32.mrf.mxu0
      %v7967 = vadd.f32 %v7849, %v7966
      %v7968 = vpop.f32.mrf.mxu0
      %v7969 = vadd.f32 %v7849, %v7968
      %7970 = vmatmul.bf16.gmra.mxu0 %v7757
      %v7971 = vpop.f32.mrf.mxu0
      %v7972 = vadd.f32 %v7849, %v7971
      %v7973 = vpop.f32.mrf.mxu0
      %v7974 = vadd.f32 %v7849, %v7973
      %7975 = vmatmul.bf16.gmra.mxu0 %v7759
      %v7976 = vpop.f32.mrf.mxu0
      %v7977 = vadd.f32 %v7849, %v7976
      %v7978 = vpop.f32.mrf.mxu0
      %v7979 = vadd.f32 %v7849, %v7978
      %7980 = vmatmul.bf16.gmra.mxu0 %v7761
      %v7981 = vpop.f32.mrf.mxu0
      %v7982 = vadd.f32 %v7849, %v7981
      %v7983 = vpop.f32.mrf.mxu0
      %v7984 = vadd.f32 %v7849, %v7983
      %7985 = vmatmul.bf16.gmra.mxu0 %v7763
      %v7986 = vpop.f32.mrf.mxu0
      %v7987 = vadd.f32 %v7849, %v7986
      %v7988 = vpop.f32.mrf.mxu0
      %v7989 = vadd.f32 %v7849, %v7988
      %7990 = vmatmul.bf16.gmra.mxu0 %v7765
      %v7991 = vpop.f32.mrf.mxu0
      %v7992 = vadd.f32 %v7849, %v7991
      %v7993 = vpop.f32.mrf.mxu0
      %v7994 = vadd.f32 %v7849, %v7993
      %7995 = vmatmul.bf16.gmra.mxu0 %v7767
      %v7996 = vpop.f32.mrf.mxu0
      %v7997 = vadd.f32 %v7849, %v7996
      %v7998 = vpop.f32.mrf.mxu0
      %v7999 = vadd.f32 %v7849, %v7998
      %8000 = vmatmul.bf16.gmra.mxu0 %v7769
      %v8001 = vpop.f32.mrf.mxu0
      %v8002 = vadd.f32 %v7849, %v8001
      %v8003 = vpop.f32.mrf.mxu0
      %v8004 = vadd.f32 %v7849, %v8003
      %8005 = vmatmul.bf16.gmra.mxu0 %v7771
      %v8006 = vpop.f32.mrf.mxu0
      %v8007 = vadd.f32 %v7849, %v8006
      %v8008 = vpop.f32.mrf.mxu0
      %v8009 = vadd.f32 %v7849, %v8008
      %8010 = vmatmul.bf16.gmra.mxu0 %v7773
      %v8011 = vpop.f32.mrf.mxu0
      %v8012 = vadd.f32 %v7849, %v8011
      %v8013 = vpop.f32.mrf.mxu0
      %v8014 = vadd.f32 %v7849, %v8013
      %8015 = vmatmul.bf16.gmra.mxu0 %v7775
      %v8016 = vpop.f32.mrf.mxu0
      %v8017 = vadd.f32 %v7849, %v8016
      %v8018 = vpop.f32.mrf.mxu0
      %v8019 = vadd.f32 %v7849, %v8018
      %8020 = vmatmul.bf16.gmra.mxu0 %v7777
      %v8021 = vpop.f32.mrf.mxu0
      %v8022 = vadd.f32 %v7849, %v8021
      %v8023 = vpop.f32.mrf.mxu0
      %v8024 = vadd.f32 %v7849, %v8023
      %8025 = vmatmul.bf16.gmra.mxu0 %v7779
      %v8026 = vpop.f32.mrf.mxu0
      %v8027 = vadd.f32 %v7849, %v8026
      %v8028 = vpop.f32.mrf.mxu0
      %v8029 = vadd.f32 %v7849, %v8028
      %8030 = vmatmul.bf16.gmra.mxu0 %v7781
      %v8031 = vpop.f32.mrf.mxu0
      %v8032 = vadd.f32 %v7849, %v8031
      %v8033 = vpop.f32.mrf.mxu0
      %v8034 = vadd.f32 %v7849, %v8033
      %8035 = vmatmul.bf16.gmra.mxu0 %v7783
      %v8036 = vpop.f32.mrf.mxu0
      %v8037 = vadd.f32 %v7849, %v8036
      %v8038 = vpop.f32.mrf.mxu0
      %v8039 = vadd.f32 %v7849, %v8038
      %8040 = vmatmul.bf16.gmra.mxu0 %v7785
      %v8041 = vpop.f32.mrf.mxu0
      %v8042 = vadd.f32 %v7849, %v8041
      %v8043 = vpop.f32.mrf.mxu0
      %v8044 = vadd.f32 %v7849, %v8043
      %8045 = vmatmul.bf16.gmra.mxu0 %v7787
      %v8046 = vpop.f32.mrf.mxu0
      %v8047 = vadd.f32 %v7849, %v8046
      %v8048 = vpop.f32.mrf.mxu0
      %v8049 = vadd.f32 %v7849, %v8048
      %8050 = vmatmul.bf16.gmra.mxu0 %v7789
      %v8051 = vpop.f32.mrf.mxu0
      %v8052 = vadd.f32 %v7849, %v8051
      %v8053 = vpop.f32.mrf.mxu0
      %v8054 = vadd.f32 %v7849, %v8053
      %8055 = vmatmul.bf16.gmra.mxu0 %v7791
      %v8056 = vpop.f32.mrf.mxu0
      %v8057 = vadd.f32 %v7849, %v8056
      %v8058 = vpop.f32.mrf.mxu0
      %v8059 = vadd.f32 %v7849, %v8058
      %8060 = vmatmul.bf16.gmra.mxu0 %v7793
      %v8061 = vpop.f32.mrf.mxu0
      %v8062 = vadd.f32 %v7849, %v8061
      %v8063 = vpop.f32.mrf.mxu0
      %v8064 = vadd.f32 %v7849, %v8063
      %8065 = vmatmul.bf16.gmra.mxu0 %v7795
      %v8066 = vpop.f32.mrf.mxu0
      %v8067 = vadd.f32 %v7849, %v8066
      %v8068 = vpop.f32.mrf.mxu0
      %v8069 = vadd.f32 %v7849, %v8068
      %8070 = vmatmul.bf16.gmra.mxu0 %v7797
      %v8071 = vpop.f32.mrf.mxu0
      %v8072 = vadd.f32 %v7849, %v8071
      %v8073 = vpop.f32.mrf.mxu0
      %v8074 = vadd.f32 %v7849, %v8073
      %8075 = vmatmul.bf16.gmra.mxu0 %v7799
      %v8076 = vpop.f32.mrf.mxu0
      %v8077 = vadd.f32 %v7849, %v8076
      %v8078 = vpop.f32.mrf.mxu0
      %v8079 = vadd.f32 %v7849, %v8078
      %8080 = vmatmul.bf16.gmra.mxu0 %v7801
      %v8081 = vpop.f32.mrf.mxu0
      %v8082 = vadd.f32 %v7849, %v8081
      %v8083 = vpop.f32.mrf.mxu0
      %v8084 = vadd.f32 %v7849, %v8083
      %8085 = vmatmul.bf16.gmra.mxu0 %v7803
      %v8086 = vpop.f32.mrf.mxu0
      %v8087 = vadd.f32 %v7849, %v8086
      %v8088 = vpop.f32.mrf.mxu0
      %v8089 = vadd.f32 %v7849, %v8088
      %8090 = vmatmul.bf16.gmra.mxu0 %v7805
      %v8091 = vpop.f32.mrf.mxu0
      %v8092 = vadd.f32 %v7849, %v8091
      %v8093 = vpop.f32.mrf.mxu0
      %v8094 = vadd.f32 %v7849, %v8093
      %8095 = vmatmul.bf16.gmra.mxu0 %v7807
      %v8096 = vpop.f32.mrf.mxu0
      %v8097 = vadd.f32 %v7849, %v8096
      %v8098 = vpop.f32.mrf.mxu0
      %v8099 = vadd.f32 %v7849, %v8098
      %8100 = vmatmul.bf16.gmra.mxu0 %v7809
      %v8101 = vpop.f32.mrf.mxu0
      %v8102 = vadd.f32 %v7849, %v8101
      %v8103 = vpop.f32.mrf.mxu0
      %v8104 = vadd.f32 %v7849, %v8103
      %8105 = vmatmul.bf16.gmra.mxu0 %v7811
      %v8106 = vpop.f32.mrf.mxu0
      %v8107 = vadd.f32 %v7849, %v8106
      %v8108 = vpop.f32.mrf.mxu0
      %v8109 = vadd.f32 %v7849, %v8108
      %8110 = vmatmul.bf16.gmra.mxu0 %v7813
      %v8111 = vpop.f32.mrf.mxu0
      %v8112 = vadd.f32 %v7849, %v8111
      %v8113 = vpop.f32.mrf.mxu0
      %v8114 = vadd.f32 %v7849, %v8113
      %8115 = vdwg.mxu0
      %8116 = vmatpush.bf16.msra.mxu0 %v7930
      %8117 = vmatpush.bf16.msra.mxu0 %v7929
      %8118 = vmatpush.bf16.msra.mxu0 %v7928
      %8119 = vmatpush.bf16.msra.mxu0 %v7927
      %8120 = vmatpush.bf16.msra.mxu0 %v7926
      %8121 = vmatpush.bf16.msra.mxu0 %v7925
      %8122 = vmatpush.bf16.msra.mxu0 %v7924
      %8123 = vmatpush.bf16.msra.mxu0 %v7923
      %8124 = vmatmul.bf16.gmra.mxu0 %v7752
      %v8125 = vpop.f32.mrf.mxu0
      %v8126 = vadd.f32 %v7957, %v8125
      %v8127 = vpop.f32.mrf.mxu0
      %v8128 = vadd.f32 %v7959, %v8127
      %8129 = vmatmul.bf16.gmra.mxu0 %v7754
      %v8130 = vpop.f32.mrf.mxu0
      %v8131 = vadd.f32 %v7962, %v8130
      %v8132 = vpop.f32.mrf.mxu0
      %v8133 = vadd.f32 %v7964, %v8132
      %8134 = vmatmul.bf16.gmra.mxu0 %v7756
      %v8135 = vpop.f32.mrf.mxu0
      %v8136 = vadd.f32 %v7967, %v8135
      %v8137 = vpop.f32.mrf.mxu0
      %v8138 = vadd.f32 %v7969, %v8137
      %8139 = vmatmul.bf16.gmra.mxu0 %v7758
      %v8140 = vpop.f32.mrf.mxu0
      %v8141 = vadd.f32 %v7972, %v8140
      %v8142 = vpop.f32.mrf.mxu0
      %v8143 = vadd.f32 %v7974, %v8142
      %8144 = vmatmul.bf16.gmra.mxu0 %v7760
      %v8145 = vpop.f32.mrf.mxu0
      %v8146 = vadd.f32 %v7977, %v8145
      %v8147 = vpop.f32.mrf.mxu0
      %v8148 = vadd.f32 %v7979, %v8147
      %8149 = vmatmul.bf16.gmra.mxu0 %v7762
      %v8150 = vpop.f32.mrf.mxu0
      %v8151 = vadd.f32 %v7982, %v8150
      %v8152 = vpop.f32.mrf.mxu0
      %v8153 = vadd.f32 %v7984, %v8152
      %8154 = vmatmul.bf16.gmra.mxu0 %v7764
      %v8155 = vpop.f32.mrf.mxu0
      %v8156 = vadd.f32 %v7987, %v8155
      %v8157 = vpop.f32.mrf.mxu0
      %v8158 = vadd.f32 %v7989, %v8157
      %8159 = vmatmul.bf16.gmra.mxu0 %v7766
      %v8160 = vpop.f32.mrf.mxu0
      %v8161 = vadd.f32 %v7992, %v8160
      %v8162 = vpop.f32.mrf.mxu0
      %v8163 = vadd.f32 %v7994, %v8162
      %8164 = vmatmul.bf16.gmra.mxu0 %v7768
      %v8165 = vpop.f32.mrf.mxu0
      %v8166 = vadd.f32 %v7997, %v8165
      %v8167 = vpop.f32.mrf.mxu0
      %v8168 = vadd.f32 %v7999, %v8167
      %8169 = vmatmul.bf16.gmra.mxu0 %v7770
      %v8170 = vpop.f32.mrf.mxu0
      %v8171 = vadd.f32 %v8002, %v8170
      %v8172 = vpop.f32.mrf.mxu0
      %v8173 = vadd.f32 %v8004, %v8172
      %8174 = vmatmul.bf16.gmra.mxu0 %v7772
      %v8175 = vpop.f32.mrf.mxu0
      %v8176 = vadd.f32 %v8007, %v8175
      %v8177 = vpop.f32.mrf.mxu0
      %v8178 = vadd.f32 %v8009, %v8177
      %8179 = vmatmul.bf16.gmra.mxu0 %v7774
      %v8180 = vpop.f32.mrf.mxu0
      %v8181 = vadd.f32 %v8012, %v8180
      %v8182 = vpop.f32.mrf.mxu0
      %v8183 = vadd.f32 %v8014, %v8182
      %8184 = vmatmul.bf16.gmra.mxu0 %v7776
      %v8185 = vpop.f32.mrf.mxu0
      %v8186 = vadd.f32 %v8017, %v8185
      %v8187 = vpop.f32.mrf.mxu0
      %v8188 = vadd.f32 %v8019, %v8187
      %8189 = vmatmul.bf16.gmra.mxu0 %v7778
      %v8190 = vpop.f32.mrf.mxu0
      %v8191 = vadd.f32 %v8022, %v8190
      %v8192 = vpop.f32.mrf.mxu0
      %v8193 = vadd.f32 %v8024, %v8192
      %8194 = vmatmul.bf16.gmra.mxu0 %v7780
      %v8195 = vpop.f32.mrf.mxu0
      %v8196 = vadd.f32 %v8027, %v8195
      %v8197 = vpop.f32.mrf.mxu0
      %v8198 = vadd.f32 %v8029, %v8197
      %8199 = vmatmul.bf16.gmra.mxu0 %v7782
      %v8200 = vpop.f32.mrf.mxu0
      %v8201 = vadd.f32 %v8032, %v8200
      %v8202 = vpop.f32.mrf.mxu0
      %v8203 = vadd.f32 %v8034, %v8202
      %8204 = vmatmul.bf16.gmra.mxu0 %v7784
      %v8205 = vpop.f32.mrf.mxu0
      %v8206 = vadd.f32 %v8037, %v8205
      %v8207 = vpop.f32.mrf.mxu0
      %v8208 = vadd.f32 %v8039, %v8207
      %8209 = vmatmul.bf16.gmra.mxu0 %v7786
      %v8210 = vpop.f32.mrf.mxu0
      %v8211 = vadd.f32 %v8042, %v8210
      %v8212 = vpop.f32.mrf.mxu0
      %v8213 = vadd.f32 %v8044, %v8212
      %8214 = vmatmul.bf16.gmra.mxu0 %v7788
      %v8215 = vpop.f32.mrf.mxu0
      %v8216 = vadd.f32 %v8047, %v8215
      %v8217 = vpop.f32.mrf.mxu0
      %v8218 = vadd.f32 %v8049, %v8217
      %8219 = vmatmul.bf16.gmra.mxu0 %v7790
      %v8220 = vpop.f32.mrf.mxu0
      %v8221 = vadd.f32 %v8052, %v8220
      %v8222 = vpop.f32.mrf.mxu0
      %v8223 = vadd.f32 %v8054, %v8222
      %8224 = vmatmul.bf16.gmra.mxu0 %v7792
      %v8225 = vpop.f32.mrf.mxu0
      %v8226 = vadd.f32 %v8057, %v8225
      %v8227 = vpop.f32.mrf.mxu0
      %v8228 = vadd.f32 %v8059, %v8227
      %8229 = vmatmul.bf16.gmra.mxu0 %v7794
      %v8230 = vpop.f32.mrf.mxu0
      %v8231 = vadd.f32 %v8062, %v8230
      %v8232 = vpop.f32.mrf.mxu0
      %v8233 = vadd.f32 %v8064, %v8232
      %8234 = vmatmul.bf16.gmra.mxu0 %v7796
      %v8235 = vpop.f32.mrf.mxu0
      %v8236 = vadd.f32 %v8067, %v8235
      %v8237 = vpop.f32.mrf.mxu0
      %v8238 = vadd.f32 %v8069, %v8237
      %8239 = vmatmul.bf16.gmra.mxu0 %v7798
      %v8240 = vpop.f32.mrf.mxu0
      %v8241 = vadd.f32 %v8072, %v8240
      %v8242 = vpop.f32.mrf.mxu0
      %v8243 = vadd.f32 %v8074, %v8242
      %8244 = vmatmul.bf16.gmra.mxu0 %v7800
      %v8245 = vpop.f32.mrf.mxu0
      %v8246 = vadd.f32 %v8077, %v8245
      %v8247 = vpop.f32.mrf.mxu0
      %v8248 = vadd.f32 %v8079, %v8247
      %8249 = vmatmul.bf16.gmra.mxu0 %v7802
      %v8250 = vpop.f32.mrf.mxu0
      %v8251 = vadd.f32 %v8082, %v8250
      %v8252 = vpop.f32.mrf.mxu0
      %v8253 = vadd.f32 %v8084, %v8252
      %8254 = vmatmul.bf16.gmra.mxu0 %v7804
      %v8255 = vpop.f32.mrf.mxu0
      %v8256 = vadd.f32 %v8087, %v8255
      %v8257 = vpop.f32.mrf.mxu0
      %v8258 = vadd.f32 %v8089, %v8257
      %8259 = vmatmul.bf16.gmra.mxu0 %v7806
      %v8260 = vpop.f32.mrf.mxu0
      %v8261 = vadd.f32 %v8092, %v8260
      %v8262 = vpop.f32.mrf.mxu0
      %v8263 = vadd.f32 %v8094, %v8262
      %8264 = vmatmul.bf16.gmra.mxu0 %v7808
      %v8265 = vpop.f32.mrf.mxu0
      %v8266 = vadd.f32 %v8097, %v8265
      %v8267 = vpop.f32.mrf.mxu0
      %v8268 = vadd.f32 %v8099, %v8267
      %8269 = vmatmul.bf16.gmra.mxu0 %v7810
      %v8270 = vpop.f32.mrf.mxu0
      %v8271 = vadd.f32 %v8102, %v8270
      %v8272 = vpop.f32.mrf.mxu0
      %v8273 = vadd.f32 %v8104, %v8272
      %8274 = vmatmul.bf16.gmra.mxu0 %v7812
      %v8275 = vpop.f32.mrf.mxu0
      %v8276 = vadd.f32 %v8107, %v8275
      %v8277 = vpop.f32.mrf.mxu0
      %v8278 = vadd.f32 %v8109, %v8277
      %8279 = vmatmul.bf16.gmra.mxu0 %v7814
      %v8280 = vpop.f32.mrf.mxu0
      %v8281 = vadd.f32 %v8112, %v8280
      %v8282 = vpop.f32.mrf.mxu0
      %v8283 = vadd.f32 %v8114, %v8282
      %8284 = vdwg.mxu0
      %vm8285 = vcmask 15360
      %8286 = vst.msk [vmem:[%s388] sm:$0xff] %vm8285, %v8126
      %8287 = vst.msk [vmem:[%s388 + $0x8] sm:$0xff] %vm8285, %v8128
      %8288 = vst.msk [vmem:[%s388 + $0x10] sm:$0xff] %vm8285, %v8131
      %8289 = vst.msk [vmem:[%s388 + $0x18] sm:$0xff] %vm8285, %v8133
      %8290 = vst.msk [vmem:[%s388 + $0x20] sm:$0xff] %vm8285, %v8136
      %8291 = vst.msk [vmem:[%s388 + $0x28] sm:$0xff] %vm8285, %v8138
      %8292 = vst.msk [vmem:[%s388 + $0x30] sm:$0xff] %vm8285, %v8141
      %8293 = vst.msk [vmem:[%s388 + $0x38] sm:$0xff] %vm8285, %v8143
      %8294 = vst.msk [vmem:[%s388 + $0x40] sm:$0xff] %vm8285, %v8146
      %8295 = vst.msk [vmem:[%s388 + $0x48] sm:$0xff] %vm8285, %v8148
      %8296 = vst.msk [vmem:[%s388 + $0x50] sm:$0xff] %vm8285, %v8151
      %8297 = vst.msk [vmem:[%s388 + $0x58] sm:$0xff] %vm8285, %v8153
      %8298 = vst.msk [vmem:[%s388 + $0x60] sm:$0xff] %vm8285, %v8156
      %8299 = vst.msk [vmem:[%s388 + $0x68] sm:$0xff] %vm8285, %v8158
      %8300 = vst.msk [vmem:[%s388 + $0x70] sm:$0xff] %vm8285, %v8161
      %8301 = vst.msk [vmem:[%s388 + $0x78] sm:$0xff] %vm8285, %v8163
      %8302 = vst.msk [vmem:[%s388 + $0x80] sm:$0xff] %vm8285, %v8166
      %8303 = vst.msk [vmem:[%s388 + $0x88] sm:$0xff] %vm8285, %v8168
      %8304 = vst.msk [vmem:[%s388 + $0x90] sm:$0xff] %vm8285, %v8171
      %8305 = vst.msk [vmem:[%s388 + $0x98] sm:$0xff] %vm8285, %v8173
      %8306 = vst.msk [vmem:[%s388 + $0xa0] sm:$0xff] %vm8285, %v8176
      %8307 = vst.msk [vmem:[%s388 + $0xa8] sm:$0xff] %vm8285, %v8178
      %8308 = vst.msk [vmem:[%s388 + $0xb0] sm:$0xff] %vm8285, %v8181
      %8309 = vst.msk [vmem:[%s388 + $0xb8] sm:$0xff] %vm8285, %v8183
      %8310 = vst.msk [vmem:[%s388 + $0xc0] sm:$0xff] %vm8285, %v8186
      %8311 = vst.msk [vmem:[%s388 + $0xc8] sm:$0xff] %vm8285, %v8188
      %8312 = vst.msk [vmem:[%s388 + $0xd0] sm:$0xff] %vm8285, %v8191
      %8313 = vst.msk [vmem:[%s388 + $0xd8] sm:$0xff] %vm8285, %v8193
      %8314 = vst.msk [vmem:[%s388 + $0xe0] sm:$0xff] %vm8285, %v8196
      %8315 = vst.msk [vmem:[%s388 + $0xe8] sm:$0xff] %vm8285, %v8198
      %8316 = vst.msk [vmem:[%s388 + $0xf0] sm:$0xff] %vm8285, %v8201
      %8317 = vst.msk [vmem:[%s388 + $0xf8] sm:$0xff] %vm8285, %v8203
      %8318 = vst.msk [vmem:[%s388 + $0x100] sm:$0xff] %vm8285, %v8206
      %8319 = vst.msk [vmem:[%s388 + $0x108] sm:$0xff] %vm8285, %v8208
      %8320 = vst.msk [vmem:[%s388 + $0x110] sm:$0xff] %vm8285, %v8211
      %8321 = vst.msk [vmem:[%s388 + $0x118] sm:$0xff] %vm8285, %v8213
      %8322 = vst.msk [vmem:[%s388 + $0x120] sm:$0xff] %vm8285, %v8216
      %8323 = vst.msk [vmem:[%s388 + $0x128] sm:$0xff] %vm8285, %v8218
      %8324 = vst.msk [vmem:[%s388 + $0x130] sm:$0xff] %vm8285, %v8221
      %8325 = vst.msk [vmem:[%s388 + $0x138] sm:$0xff] %vm8285, %v8223
      %8326 = vst.msk [vmem:[%s388 + $0x140] sm:$0xff] %vm8285, %v8226
      %8327 = vst.msk [vmem:[%s388 + $0x148] sm:$0xff] %vm8285, %v8228
      %8328 = vst.msk [vmem:[%s388 + $0x150] sm:$0xff] %vm8285, %v8231
      %8329 = vst.msk [vmem:[%s388 + $0x158] sm:$0xff] %vm8285, %v8233
      %8330 = vst.msk [vmem:[%s388 + $0x160] sm:$0xff] %vm8285, %v8236
      %8331 = vst.msk [vmem:[%s388 + $0x168] sm:$0xff] %vm8285, %v8238
      %8332 = vst.msk [vmem:[%s388 + $0x170] sm:$0xff] %vm8285, %v8241
      %8333 = vst.msk [vmem:[%s388 + $0x178] sm:$0xff] %vm8285, %v8243
      %8334 = vst.msk [vmem:[%s388 + $0x180] sm:$0xff] %vm8285, %v8246
      %8335 = vst.msk [vmem:[%s388 + $0x188] sm:$0xff] %vm8285, %v8248
      %8336 = vst.msk [vmem:[%s388 + $0x190] sm:$0xff] %vm8285, %v8251
      %8337 = vst.msk [vmem:[%s388 + $0x198] sm:$0xff] %vm8285, %v8253
      %8338 = vst.msk [vmem:[%s388 + $0x1a0] sm:$0xff] %vm8285, %v8256
      %8339 = vst.msk [vmem:[%s388 + $0x1a8] sm:$0xff] %vm8285, %v8258
      %8340 = vst.msk [vmem:[%s388 + $0x1b0] sm:$0xff] %vm8285, %v8261
      %8341 = vst.msk [vmem:[%s388 + $0x1b8] sm:$0xff] %vm8285, %v8263
      %8342 = vst.msk [vmem:[%s388 + $0x1c0] sm:$0xff] %vm8285, %v8266
      %8343 = vst.msk [vmem:[%s388 + $0x1c8] sm:$0xff] %vm8285, %v8268
      %8344 = vst.msk [vmem:[%s388 + $0x1d0] sm:$0xff] %vm8285, %v8271
      %8345 = vst.msk [vmem:[%s388 + $0x1d8] sm:$0xff] %vm8285, %v8273
      %8346 = vst.msk [vmem:[%s388 + $0x1e0] sm:$0xff] %vm8285, %v8276
      %8347 = vst.msk [vmem:[%s388 + $0x1e8] sm:$0xff] %vm8285, %v8278
      %8348 = vst.msk [vmem:[%s388 + $0x1f0] sm:$0xff] %vm8285, %v8281
      %8349 = vst.msk [vmem:[%s388 + $0x1f8] sm:$0xff] %vm8285, %v8283
      %s8350 = smul.u32 64, %s22
      %p8351 = scmp.lt.s32.totalorder %s8350, 127
      %s8352 = scalar_select %p8351, %s8350, 127
      %s8353 = smul.addr %s8352, 8
      %s8354 = scalar_lea.vmem %s11, %s8353
      // Predicated region
      $region65: #{network_forward.1} parent=63 // pred_check
        %p8355 = pneg %p276
      $region66: #{network_forward.1} parent=63 // pred_check_branch
        %8357 = sbr.rel (%p8355) target = $region68
      $region67: #{network_forward.1} parent=63 // pred_region
        %s8358 = smul.u32 64, %s22
      $region68: #{network_forward.1} parent=63 // pred_fallthru
        _
    $region64: #{network_forward.1} parent=5 // pred_fallthru
      _
    %p8359 = scmp.le.s32.totalorder 2, %s17
    // Predicated region
    $region69: #{network_forward.1} parent=5 // pred_check
      %p8360 = pneg %p8359
    $region70: #{network_forward.1} parent=5 // pred_check_branch
      %8362 = sbr.rel (%p8360) target = $region72
    $region71: #{network_forward.1} parent=5 // pred_region
      %s8363 = ssub.s32 %s17, 2
      // Predicated region
      $region73: #{network_forward.1} parent=71 // pred_check
        %p8364 = pneg %p282
      $region74: #{network_forward.1} parent=71 // pred_check_branch
        %8366 = sbr.rel (%p8364) target = $region76
      $region75: #{network_forward.1} parent=71 // pred_region
        %s8367 = smul.u32 64, %s23
        %p8368 = scmp.lt.s32.totalorder %s8367, 127
        %s8369 = scalar_select %p8368, %s8367, 127
        %s8370 = smul.addr %s8369, 8
        %s8371 = scalar_lea.vmem %s11, %s8370
      $region76: #{network_forward.1} parent=71 // pred_fallthru
        _
    $region72: #{network_forward.1} parent=5 // pred_fallthru
      _
  $region6: #{network_forward.1} parent=0 // loop_footer
    %s21 = sadd.s32 1, %s17
  $region7: #{network_forward.1} parent=0 // loop_footer_branch
    %16 = sbr.rel target = $region3
  $region8: #{network_forward.1} parent=0 // loop_exit
    _

</llo_original>
